<compile_context>
chip_gen: v5e
topology: v5e:2x2
jax: 0.10.0
libtpu: 0.0.40
codegen_flags: <defaults>
</compile_context>

<pallas_src>
import jax
import jax.numpy as jnp
from jax.experimental import pallas as pl
from jax.experimental.pallas import tpu as pltpu


# ----------------------------------------------------------------------------
# Fused kernel: whole forward pass for ONE batch element.
# Activation layout inside the kernel: (L, C)  (spatial on sublanes, channels
# on lanes -> lane-dense for the wide conv2/conv3/FC tensors).
# ----------------------------------------------------------------------------
def _conv_tap_gemm(h, g_ref, w_ref, b_ref):
    """h:(Lin,Cin).  g:(K,Lout,Lin) 0/1 gather (pad+stride folded in).
    w:(K,Cin,Cout).  b:(1,Cout).  Returns relu(conv) as (Lout, Cout)."""
    K = g_ref.shape[0]
    acc = b_ref[...]                                                   # (1, Cout)
    for k in range(K):                                                 # static unroll
        xk = jnp.dot(g_ref[k], h, preferred_element_type=jnp.float32)  # (Lout, Cin)
        acc = acc + jnp.dot(xk, w_ref[k], preferred_element_type=jnp.float32)
    return jnp.maximum(acc, 0.0)                                       # (Lout, Cout)


def _fused_forward_kernel(x_ref, w1_ref, b1_ref,
                          g2_ref, w2_ref, b2_ref,
                          g3_ref, w3_ref, b3_ref,
                          wr1_ref, br1_ref, wr2_ref, br2_ref,
                          o_ref):
    # ---- conv1 (Cin=1, k=3, s=1): VPU shifted multiply-adds (no MXU) --------
    xp = x_ref[0]                                   # (L+2, 1) replication-padded input
    K1 = w1_ref.shape[0]
    L1 = xp.shape[0] - (K1 - 1)
    h = b1_ref[...] + xp[0:L1, :] * w1_ref[0:1, :]  # (L1,1)*(1,C1) -> (L1,C1)
    for k in range(1, K1):
        h = h + xp[k:k + L1, :] * w1_ref[k:k + 1, :]
    h = jnp.maximum(h, 0.0)                         # (L1, 32)

    # ---- conv2 (32->128, k=5, s=2) and conv3 (128->524, k=7, s=3) -----------
    h = _conv_tap_gemm(h, g2_ref, w2_ref, b2_ref)   # (L2, 128)
    h = _conv_tap_gemm(h, g3_ref, w3_ref, b3_ref)   # (L3, 524)

    # ---- FC1 (flatten -> 1024, ReLU) with FC2 fused in the epilogue ---------
    # wr1_ref is (L3, C3, 1024): row l holds the FC1 weights for flat index
    # c*L3 + l (PyTorch channel-major .view()), so no in-kernel flatten needed.
    L3 = wr1_ref.shape[0]
    acc = br1_ref[...]                              # (1, 1024)
    for l in range(L3):                             # static unroll (L3 = 3 at L=16)
        acc = acc + jnp.dot(h[l:l + 1, :], wr1_ref[l],
                            preferred_element_type=jnp.float32)
    h4 = jnp.maximum(acc, 0.0)                      # (1, 1024)

    out = jnp.dot(h4, wr2_ref[...], preferred_element_type=jnp.float32) + br2_ref[...]
    o_ref[0] = out.astype(o_ref.dtype)              # (1, out_dim)


# ----------------------------------------------------------------------------
# Parameter preparation (one-time, outside the kernel)
# ----------------------------------------------------------------------------
def _gather_matrix(L_in, K, stride, pad):
    """0/1 matrices G[k, lo, i] = 1 iff i == clamp(lo*stride + k - pad, 0, L_in-1).
    Folds ReplicationPad1d + stride into a tiny constant gather."""
    L_out = (L_in + 2 * pad - K) // stride + 1
    lo = jnp.arange(L_out)
    ks = jnp.arange(K)
    idx = jnp.clip(ks[:, None] + lo[None, :] * stride - pad, 0, L_in - 1)   # (K, L_out)
    return jax.nn.one_hot(idx, L_in, dtype=jnp.float32), L_out              # (K, L_out, L_in)


def prepare_params(p, in_seq_dim):
    """Convert PyTorch-layout params into the kernel's resident-VMEM layouts."""
    L = in_seq_dim
    L1 = (L + 2 * 1 - 3) // 1 + 1
    g2, L2 = _gather_matrix(L1, 5, 2, 2)
    g3, L3 = _gather_matrix(L2, 7, 3, 3)

    wr1 = p["wr1"]                               # (1024, C3*L3), columns = c*L3 + l
    H = wr1.shape[0]
    C3 = p["w3"].shape[0]
    wr1p = wr1.reshape(H, C3, L3).transpose(2, 1, 0)     # (L3, C3, 1024)

    return {
        "w1t": p["w1"][:, 0, :].T,                       # (3, 32)
        "b1": p["b1"].reshape(1, -1),
        "g2": g2,
        "w2t": jnp.transpose(p["w2"], (2, 1, 0)),        # (5, 32, 128)
        "b2": p["b2"].reshape(1, -1),
        "g3": g3,
        "w3t": jnp.transpose(p["w3"], (2, 1, 0)),        # (7, 128, 524)
        "b3": p["b3"].reshape(1, -1),
        "wr1p": wr1p,                                    # (L3, 524, 1024)
        "br1": p["br1"].reshape(1, -1),
        "wr2t": p["wr2"].T,                              # (1024, out_dim)
        "br2": p["br2"].reshape(1, -1),
    }


# ----------------------------------------------------------------------------
# Forward pass: one fused pallas_call, grid over batch ("parallel" for megacore)
# ----------------------------------------------------------------------------
@jax.jit
def ablation_mark_ws_forward(x, pp):
    """x: (N, 1, L) float32 -> (N, out_seq_dim) float32"""
    N, Cin, L = x.shape
    assert Cin == 1
    out_dim = pp["br2"].shape[1]

    # Replication-pad the raw (tiny) input once; conv2/conv3 padding is folded
    # into the gather matrices, so no padding / im2col happens in XLA-land.
    xpad = jnp.pad(x[:, 0, :], ((0, 0), (1, 1)), mode="edge")[..., None]   # (N, L+2, 1)

    args = (xpad,
            pp["w1t"], pp["b1"],
            pp["g2"], pp["w2t"], pp["b2"],
            pp["g3"], pp["w3t"], pp["b3"],
            pp["wr1p"], pp["br1"], pp["wr2t"], pp["br2"])

    def full_spec(a):
        nd = a.ndim
        return pl.BlockSpec(a.shape, lambda n, _nd=nd: (0,) * _nd)

    in_specs = [pl.BlockSpec((1, L + 2, 1), lambda n: (n, 0, 0))]
    in_specs += [full_spec(a) for a in args[1:]]

    out = pl.pallas_call(
        _fused_forward_kernel,
        out_shape=jax.ShapeDtypeStruct((N, 1, out_dim), jnp.float32),
        grid=(N,),
        in_specs=in_specs,
        out_specs=pl.BlockSpec((1, 1, out_dim), lambda n: (n, 0, 0)),
        compiler_params=pltpu.CompilerParams(
            dimension_semantics=("parallel",),          # shard batch across TCs (v7x)
            vmem_limit_bytes=40 * 1024 * 1024,          # resident weights + 2x buffering
        ),
    )(*args)
    return out.reshape(N, out_dim)


# ----------------------------------------------------------------------------
# Model shapes / init (PyTorch layouts)
# ----------------------------------------------------------------------------
def cnn_output_length(L):
    l1 = (L + 2 - 3) // 1 + 1        # pad(1,1), k=3, s=1
    l2 = (l1 + 4 - 5) // 2 + 1       # pad(2,2), k=5, s=2
    l3 = (l2 + 6 - 7) // 3 + 1       # pad(3,3), k=7, s=3
    return l3


def init_params(in_seq_dim, out_seq_dim=1, seed=0):
    l3 = cnn_output_length(in_seq_dim)
    flatten = 524 * l3
    keys = jax.random.split(jax.random.PRNGKey(seed), 10)

    def nrm(key, shape, scale):
        return (scale * jax.random.normal(key, shape)).astype(jnp.float32)

    return {
        "w1": nrm(keys[0], (32, 1, 3), 0.2),     "b1": nrm(keys[1], (32,), 0.1),
        "w2": nrm(keys[2], (128, 32, 5), 0.05),  "b2": nrm(keys[3], (128,), 0.1),
        "w3": nrm(keys[4], (524, 128, 7), 0.02), "b3": nrm(keys[5], (524,), 0.1),
        "wr1": nrm(keys[6], (1024, flatten), 0.01), "br1": nrm(keys[7], (1024,), 0.1),
        "wr2": nrm(keys[8], (out_seq_dim, 1024), 0.02), "br2": nrm(keys[9], (out_seq_dim,), 0.1),
        "flatten": flatten,
    }


# ----------------------------------------------------------------------------
# Pure-JAX reference (for correctness check)
# ----------------------------------------------------------------------------
def reference_forward(x, p):
    def conv(x, w, b, stride, pad):
        xp = jnp.pad(x, ((0, 0), (0, 0), (pad, pad)), mode="edge")
        y = jax.lax.conv_general_dilated(
            xp, w, window_strides=(stride,), padding="VALID",
            dimension_numbers=("NCH", "OIH", "NCH"))
        return jax.nn.relu(y + b[None, :, None])

    h = conv(x, p["w1"], p["b1"], 1, 1)
    h = conv(h, p["w2"], p["b2"], 2, 2)
    h = conv(h, p["w3"], p["b3"], 3, 3)
    h = h.reshape(h.shape[0], -1)                       # channel-major, like .view()
    h = jax.nn.relu(h @ p["wr1"].T + p["br1"])
    return h @ p["wr2"].T + p["br2"]


if __name__ == "__main__":
    batch, in_seq_dim, out_seq_dim = 2, 16, 1
    params = init_params(in_seq_dim, out_seq_dim, seed=0)
    prepped = prepare_params(params, in_seq_dim)

    x = jax.random.normal(jax.random.PRNGKey(0), (batch, 1, in_seq_dim), dtype=jnp.float32)

    out = jax.block_until_ready(ablation_mark_ws_forward(x, prepped))
    ref = jax.block_until_ready(reference_forward(x, params))

    assert out.shape == (batch, out_seq_dim), out.shape
    assert jnp.allclose(out, ref, rtol=1e-3, atol=1e-3), (out, ref)
    print("KERNEL_OK")
</pallas_src>

<mosaic_0001>
module attributes {stable_mosaic.version = 11 : i64} {
  func.func @_fused_forward_kernel(%arg0: i32, %arg1: memref<1x18x1xf32, #tpu.memory_space<vmem>>, %arg2: memref<3x32xf32, #tpu.memory_space<vmem>>, %arg3: memref<1x32xf32, #tpu.memory_space<vmem>>, %arg4: memref<5x8x16xf32, #tpu.memory_space<vmem>>, %arg5: memref<5x32x128xf32, #tpu.memory_space<vmem>>, %arg6: memref<1x128xf32, #tpu.memory_space<vmem>>, %arg7: memref<7x3x8xf32, #tpu.memory_space<vmem>>, %arg8: memref<7x128x524xf32, #tpu.memory_space<vmem>>, %arg9: memref<1x524xf32, #tpu.memory_space<vmem>>, %arg10: memref<3x524x1024xf32, #tpu.memory_space<vmem>>, %arg11: memref<1x1024xf32, #tpu.memory_space<vmem>>, %arg12: memref<1024x1xf32, #tpu.memory_space<vmem>>, %arg13: memref<1x1xf32, #tpu.memory_space<vmem>>, %arg14: memref<1x1x1xf32, #tpu.memory_space<vmem>>) attributes {dimension_semantics = [#tpu.dimension_semantics<parallel>], iteration_bounds = array<i64: 2>, scalar_prefetch = 0 : i64, scratch_operands = 0 : i64, tpu.core_type = #tpu.core_type<tc>, window_params = [{transform_indices = @transform_0, window_bounds = array<i64: 1, 18, 1>}, {pipeline_mode = #tpu.pipeline_mode<synchronous>, transform_indices = @transform_1, window_bounds = array<i64: 3, 32>}, {pipeline_mode = #tpu.pipeline_mode<synchronous>, transform_indices = @transform_2, window_bounds = array<i64: 1, 32>}, {pipeline_mode = #tpu.pipeline_mode<synchronous>, transform_indices = @transform_3, window_bounds = array<i64: 5, 8, 16>}, {pipeline_mode = #tpu.pipeline_mode<synchronous>, transform_indices = @transform_4, window_bounds = array<i64: 5, 32, 128>}, {pipeline_mode = #tpu.pipeline_mode<synchronous>, transform_indices = @transform_5, window_bounds = array<i64: 1, 128>}, {pipeline_mode = #tpu.pipeline_mode<synchronous>, transform_indices = @transform_6, window_bounds = array<i64: 7, 3, 8>}, {pipeline_mode = #tpu.pipeline_mode<synchronous>, transform_indices = @transform_7, window_bounds = array<i64: 7, 128, 524>}, {pipeline_mode = #tpu.pipeline_mode<synchronous>, transform_indices = @transform_8, window_bounds = array<i64: 1, 524>}, {pipeline_mode = #tpu.pipeline_mode<synchronous>, transform_indices = @transform_9, window_bounds = array<i64: 3, 524, 1024>}, {pipeline_mode = #tpu.pipeline_mode<synchronous>, transform_indices = @transform_10, window_bounds = array<i64: 1, 1024>}, {pipeline_mode = #tpu.pipeline_mode<synchronous>, transform_indices = @transform_11, window_bounds = array<i64: 1024, 1>}, {pipeline_mode = #tpu.pipeline_mode<synchronous>, transform_indices = @transform_12, window_bounds = array<i64: 1, 1>}, {transform_indices = @transform_13, window_bounds = array<i64: 1, 1, 1>}]} {
    %c0 = arith.constant 0 : index
    %c0_0 = arith.constant 0 : index
    %c0_1 = arith.constant 0 : index
    %0 = vector.load %arg1[%c0, %c0_0, %c0_1] : memref<1x18x1xf32, #tpu.memory_space<vmem>>, vector<1x18x1xf32>
    %1 = vector.shape_cast %0 : vector<1x18x1xf32> to vector<18x1xf32>
    %c0_2 = arith.constant 0 : index
    %c0_3 = arith.constant 0 : index
    %2 = vector.load %arg3[%c0_2, %c0_3] : memref<1x32xf32, #tpu.memory_space<vmem>>, vector<1x32xf32>
    %3 = vector.extract_strided_slice %1 {offsets = [0, 0], sizes = [16, 1], strides = [1, 1]} : vector<18x1xf32> to vector<16x1xf32>
    %c0_4 = arith.constant 0 : index
    %c0_5 = arith.constant 0 : index
    %4 = vector.load %arg2[%c0_4, %c0_5] : memref<3x32xf32, #tpu.memory_space<vmem>>, vector<1x32xf32>
    %5 = vector.broadcast %3 : vector<16x1xf32> to vector<16x32xf32>
    %6 = vector.broadcast %4 : vector<1x32xf32> to vector<16x32xf32>
    %7 = arith.mulf %5, %6 : vector<16x32xf32>
    %8 = vector.broadcast %2 : vector<1x32xf32> to vector<16x32xf32>
    %9 = arith.addf %8, %7 : vector<16x32xf32>
    %10 = vector.extract_strided_slice %1 {offsets = [1, 0], sizes = [16, 1], strides = [1, 1]} : vector<18x1xf32> to vector<16x1xf32>
    %c1 = arith.constant 1 : index
    %c0_6 = arith.constant 0 : index
    %11 = vector.load %arg2[%c1, %c0_6] : memref<3x32xf32, #tpu.memory_space<vmem>>, vector<1x32xf32>
    %12 = vector.broadcast %10 : vector<16x1xf32> to vector<16x32xf32>
    %13 = vector.broadcast %11 : vector<1x32xf32> to vector<16x32xf32>
    %14 = arith.mulf %12, %13 : vector<16x32xf32>
    %15 = arith.addf %9, %14 : vector<16x32xf32>
    %16 = vector.extract_strided_slice %1 {offsets = [2, 0], sizes = [16, 1], strides = [1, 1]} : vector<18x1xf32> to vector<16x1xf32>
    %c2 = arith.constant 2 : index
    %c0_7 = arith.constant 0 : index
    %17 = vector.load %arg2[%c2, %c0_7] : memref<3x32xf32, #tpu.memory_space<vmem>>, vector<1x32xf32>
    %18 = vector.broadcast %16 : vector<16x1xf32> to vector<16x32xf32>
    %19 = vector.broadcast %17 : vector<1x32xf32> to vector<16x32xf32>
    %20 = arith.mulf %18, %19 : vector<16x32xf32>
    %21 = arith.addf %15, %20 : vector<16x32xf32>
    %cst = arith.constant 0.000000e+00 : f32
    %22 = vector.broadcast %cst : f32 to vector<16x32xf32>
    %23 = arith.maximumf %21, %22 : vector<16x32xf32>
    %c0_8 = arith.constant 0 : index
    %c0_9 = arith.constant 0 : index
    %24 = vector.load %arg6[%c0_8, %c0_9] : memref<1x128xf32, #tpu.memory_space<vmem>>, vector<1x128xf32>
    %c0_10 = arith.constant 0 : index
    %c0_11 = arith.constant 0 : index
    %c0_12 = arith.constant 0 : index
    %25 = vector.load %arg4[%c0_10, %c0_11, %c0_12] : memref<5x8x16xf32, #tpu.memory_space<vmem>>, vector<1x8x16xf32>
    %26 = vector.shape_cast %25 : vector<1x8x16xf32> to vector<8x16xf32>
    %cst_13 = arith.constant dense<0.000000e+00> : vector<8x32xf32>
    %27 = tpu.matmul %26, %23, %cst_13 {dimension_numbers = #tpu.dot_dimension_numbers<[1], [0], [0], [1], [0, 0, 1, 1], [], []>} : vector<8x16xf32>, vector<16x32xf32>, vector<8x32xf32> -> vector<8x32xf32>
    %c0_14 = arith.constant 0 : index
    %c0_15 = arith.constant 0 : index
    %c0_16 = arith.constant 0 : index
    %28 = vector.load %arg5[%c0_14, %c0_15, %c0_16] : memref<5x32x128xf32, #tpu.memory_space<vmem>>, vector<1x32x128xf32>
    %29 = vector.shape_cast %28 : vector<1x32x128xf32> to vector<32x128xf32>
    %cst_17 = arith.constant dense<0.000000e+00> : vector<8x128xf32>
    %30 = tpu.matmul %27, %29, %cst_17 {dimension_numbers = #tpu.dot_dimension_numbers<[1], [0], [0], [1], [0, 0, 1, 1], [], []>} : vector<8x32xf32>, vector<32x128xf32>, vector<8x128xf32> -> vector<8x128xf32>
    %31 = vector.broadcast %24 : vector<1x128xf32> to vector<8x128xf32>
    %32 = arith.addf %31, %30 : vector<8x128xf32>
    %c1_18 = arith.constant 1 : index
    %c0_19 = arith.constant 0 : index
    %c0_20 = arith.constant 0 : index
    %33 = vector.load %arg4[%c1_18, %c0_19, %c0_20] : memref<5x8x16xf32, #tpu.memory_space<vmem>>, vector<1x8x16xf32>
    %34 = vector.shape_cast %33 : vector<1x8x16xf32> to vector<8x16xf32>
    %cst_21 = arith.constant dense<0.000000e+00> : vector<8x32xf32>
    %35 = tpu.matmul %34, %23, %cst_21 {dimension_numbers = #tpu.dot_dimension_numbers<[1], [0], [0], [1], [0, 0, 1, 1], [], []>} : vector<8x16xf32>, vector<16x32xf32>, vector<8x32xf32> -> vector<8x32xf32>
    %c1_22 = arith.constant 1 : index
    %c0_23 = arith.constant 0 : index
    %c0_24 = arith.constant 0 : index
    %36 = vector.load %arg5[%c1_22, %c0_23, %c0_24] : memref<5x32x128xf32, #tpu.memory_space<vmem>>, vector<1x32x128xf32>
    %37 = vector.shape_cast %36 : vector<1x32x128xf32> to vector<32x128xf32>
    %cst_25 = arith.constant dense<0.000000e+00> : vector<8x128xf32>
    %38 = tpu.matmul %35, %37, %cst_25 {dimension_numbers = #tpu.dot_dimension_numbers<[1], [0], [0], [1], [0, 0, 1, 1], [], []>} : vector<8x32xf32>, vector<32x128xf32>, vector<8x128xf32> -> vector<8x128xf32>
    %39 = arith.addf %32, %38 : vector<8x128xf32>
    %c2_26 = arith.constant 2 : index
    %c0_27 = arith.constant 0 : index
    %c0_28 = arith.constant 0 : index
    %40 = vector.load %arg4[%c2_26, %c0_27, %c0_28] : memref<5x8x16xf32, #tpu.memory_space<vmem>>, vector<1x8x16xf32>
    %41 = vector.shape_cast %40 : vector<1x8x16xf32> to vector<8x16xf32>
    %cst_29 = arith.constant dense<0.000000e+00> : vector<8x32xf32>
    %42 = tpu.matmul %41, %23, %cst_29 {dimension_numbers = #tpu.dot_dimension_numbers<[1], [0], [0], [1], [0, 0, 1, 1], [], []>} : vector<8x16xf32>, vector<16x32xf32>, vector<8x32xf32> -> vector<8x32xf32>
    %c2_30 = arith.constant 2 : index
    %c0_31 = arith.constant 0 : index
    %c0_32 = arith.constant 0 : index
    %43 = vector.load %arg5[%c2_30, %c0_31, %c0_32] : memref<5x32x128xf32, #tpu.memory_space<vmem>>, vector<1x32x128xf32>
    %44 = vector.shape_cast %43 : vector<1x32x128xf32> to vector<32x128xf32>
    %cst_33 = arith.constant dense<0.000000e+00> : vector<8x128xf32>
    %45 = tpu.matmul %42, %44, %cst_33 {dimension_numbers = #tpu.dot_dimension_numbers<[1], [0], [0], [1], [0, 0, 1, 1], [], []>} : vector<8x32xf32>, vector<32x128xf32>, vector<8x128xf32> -> vector<8x128xf32>
    %46 = arith.addf %39, %45 : vector<8x128xf32>
    %c3 = arith.constant 3 : index
    %c0_34 = arith.constant 0 : index
    %c0_35 = arith.constant 0 : index
    %47 = vector.load %arg4[%c3, %c0_34, %c0_35] : memref<5x8x16xf32, #tpu.memory_space<vmem>>, vector<1x8x16xf32>
    %48 = vector.shape_cast %47 : vector<1x8x16xf32> to vector<8x16xf32>
    %cst_36 = arith.constant dense<0.000000e+00> : vector<8x32xf32>
    %49 = tpu.matmul %48, %23, %cst_36 {dimension_numbers = #tpu.dot_dimension_numbers<[1], [0], [0], [1], [0, 0, 1, 1], [], []>} : vector<8x16xf32>, vector<16x32xf32>, vector<8x32xf32> -> vector<8x32xf32>
    %c3_37 = arith.constant 3 : index
    %c0_38 = arith.constant 0 : index
    %c0_39 = arith.constant 0 : index
    %50 = vector.load %arg5[%c3_37, %c0_38, %c0_39] : memref<5x32x128xf32, #tpu.memory_space<vmem>>, vector<1x32x128xf32>
    %51 = vector.shape_cast %50 : vector<1x32x128xf32> to vector<32x128xf32>
    %cst_40 = arith.constant dense<0.000000e+00> : vector<8x128xf32>
    %52 = tpu.matmul %49, %51, %cst_40 {dimension_numbers = #tpu.dot_dimension_numbers<[1], [0], [0], [1], [0, 0, 1, 1], [], []>} : vector<8x32xf32>, vector<32x128xf32>, vector<8x128xf32> -> vector<8x128xf32>
    %53 = arith.addf %46, %52 : vector<8x128xf32>
    %c4 = arith.constant 4 : index
    %c0_41 = arith.constant 0 : index
    %c0_42 = arith.constant 0 : index
    %54 = vector.load %arg4[%c4, %c0_41, %c0_42] : memref<5x8x16xf32, #tpu.memory_space<vmem>>, vector<1x8x16xf32>
    %55 = vector.shape_cast %54 : vector<1x8x16xf32> to vector<8x16xf32>
    %cst_43 = arith.constant dense<0.000000e+00> : vector<8x32xf32>
    %56 = tpu.matmul %55, %23, %cst_43 {dimension_numbers = #tpu.dot_dimension_numbers<[1], [0], [0], [1], [0, 0, 1, 1], [], []>} : vector<8x16xf32>, vector<16x32xf32>, vector<8x32xf32> -> vector<8x32xf32>
    %c4_44 = arith.constant 4 : index
    %c0_45 = arith.constant 0 : index
    %c0_46 = arith.constant 0 : index
    %57 = vector.load %arg5[%c4_44, %c0_45, %c0_46] : memref<5x32x128xf32, #tpu.memory_space<vmem>>, vector<1x32x128xf32>
    %58 = vector.shape_cast %57 : vector<1x32x128xf32> to vector<32x128xf32>
    %cst_47 = arith.constant dense<0.000000e+00> : vector<8x128xf32>
    %59 = tpu.matmul %56, %58, %cst_47 {dimension_numbers = #tpu.dot_dimension_numbers<[1], [0], [0], [1], [0, 0, 1, 1], [], []>} : vector<8x32xf32>, vector<32x128xf32>, vector<8x128xf32> -> vector<8x128xf32>
    %60 = arith.addf %53, %59 : vector<8x128xf32>
    %cst_48 = arith.constant 0.000000e+00 : f32
    %61 = vector.broadcast %cst_48 : f32 to vector<8x128xf32>
    %62 = arith.maximumf %60, %61 : vector<8x128xf32>
    %c0_49 = arith.constant 0 : index
    %c0_50 = arith.constant 0 : index
    %63 = vector.load %arg9[%c0_49, %c0_50] : memref<1x524xf32, #tpu.memory_space<vmem>>, vector<1x524xf32>
    %c0_51 = arith.constant 0 : index
    %c0_52 = arith.constant 0 : index
    %c0_53 = arith.constant 0 : index
    %64 = vector.load %arg7[%c0_51, %c0_52, %c0_53] : memref<7x3x8xf32, #tpu.memory_space<vmem>>, vector<1x3x8xf32>
    %65 = vector.shape_cast %64 : vector<1x3x8xf32> to vector<3x8xf32>
    %cst_54 = arith.constant dense<0.000000e+00> : vector<3x128xf32>
    %66 = tpu.matmul %65, %62, %cst_54 {dimension_numbers = #tpu.dot_dimension_numbers<[1], [0], [0], [1], [0, 0, 1, 1], [], []>} : vector<3x8xf32>, vector<8x128xf32>, vector<3x128xf32> -> vector<3x128xf32>
    %c0_55 = arith.constant 0 : index
    %c0_56 = arith.constant 0 : index
    %c0_57 = arith.constant 0 : index
    %67 = vector.load %arg8[%c0_55, %c0_56, %c0_57] : memref<7x128x524xf32, #tpu.memory_space<vmem>>, vector<1x128x524xf32>
    %68 = vector.shape_cast %67 : vector<1x128x524xf32> to vector<128x524xf32>
    %cst_58 = arith.constant dense<0.000000e+00> : vector<3x524xf32>
    %69 = tpu.matmul %66, %68, %cst_58 {dimension_numbers = #tpu.dot_dimension_numbers<[1], [0], [0], [1], [0, 0, 1, 1], [], []>} : vector<3x128xf32>, vector<128x524xf32>, vector<3x524xf32> -> vector<3x524xf32>
    %70 = vector.broadcast %63 : vector<1x524xf32> to vector<3x524xf32>
    %71 = arith.addf %70, %69 : vector<3x524xf32>
    %c1_59 = arith.constant 1 : index
    %c0_60 = arith.constant 0 : index
    %c0_61 = arith.constant 0 : index
    %72 = vector.load %arg7[%c1_59, %c0_60, %c0_61] : memref<7x3x8xf32, #tpu.memory_space<vmem>>, vector<1x3x8xf32>
    %73 = vector.shape_cast %72 : vector<1x3x8xf32> to vector<3x8xf32>
    %cst_62 = arith.constant dense<0.000000e+00> : vector<3x128xf32>
    %74 = tpu.matmul %73, %62, %cst_62 {dimension_numbers = #tpu.dot_dimension_numbers<[1], [0], [0], [1], [0, 0, 1, 1], [], []>} : vector<3x8xf32>, vector<8x128xf32>, vector<3x128xf32> -> vector<3x128xf32>
    %c1_63 = arith.constant 1 : index
    %c0_64 = arith.constant 0 : index
    %c0_65 = arith.constant 0 : index
    %75 = vector.load %arg8[%c1_63, %c0_64, %c0_65] : memref<7x128x524xf32, #tpu.memory_space<vmem>>, vector<1x128x524xf32>
    %76 = vector.shape_cast %75 : vector<1x128x524xf32> to vector<128x524xf32>
    %cst_66 = arith.constant dense<0.000000e+00> : vector<3x524xf32>
    %77 = tpu.matmul %74, %76, %cst_66 {dimension_numbers = #tpu.dot_dimension_numbers<[1], [0], [0], [1], [0, 0, 1, 1], [], []>} : vector<3x128xf32>, vector<128x524xf32>, vector<3x524xf32> -> vector<3x524xf32>
    %78 = arith.addf %71, %77 : vector<3x524xf32>
    %c2_67 = arith.constant 2 : index
    %c0_68 = arith.constant 0 : index
    %c0_69 = arith.constant 0 : index
    %79 = vector.load %arg7[%c2_67, %c0_68, %c0_69] : memref<7x3x8xf32, #tpu.memory_space<vmem>>, vector<1x3x8xf32>
    %80 = vector.shape_cast %79 : vector<1x3x8xf32> to vector<3x8xf32>
    %cst_70 = arith.constant dense<0.000000e+00> : vector<3x128xf32>
    %81 = tpu.matmul %80, %62, %cst_70 {dimension_numbers = #tpu.dot_dimension_numbers<[1], [0], [0], [1], [0, 0, 1, 1], [], []>} : vector<3x8xf32>, vector<8x128xf32>, vector<3x128xf32> -> vector<3x128xf32>
    %c2_71 = arith.constant 2 : index
    %c0_72 = arith.constant 0 : index
    %c0_73 = arith.constant 0 : index
    %82 = vector.load %arg8[%c2_71, %c0_72, %c0_73] : memref<7x128x524xf32, #tpu.memory_space<vmem>>, vector<1x128x524xf32>
    %83 = vector.shape_cast %82 : vector<1x128x524xf32> to vector<128x524xf32>
    %cst_74 = arith.constant dense<0.000000e+00> : vector<3x524xf32>
    %84 = tpu.matmul %81, %83, %cst_74 {dimension_numbers = #tpu.dot_dimension_numbers<[1], [0], [0], [1], [0, 0, 1, 1], [], []>} : vector<3x128xf32>, vector<128x524xf32>, vector<3x524xf32> -> vector<3x524xf32>
    %85 = arith.addf %78, %84 : vector<3x524xf32>
    %c3_75 = arith.constant 3 : index
    %c0_76 = arith.constant 0 : index
    %c0_77 = arith.constant 0 : index
    %86 = vector.load %arg7[%c3_75, %c0_76, %c0_77] : memref<7x3x8xf32, #tpu.memory_space<vmem>>, vector<1x3x8xf32>
    %87 = vector.shape_cast %86 : vector<1x3x8xf32> to vector<3x8xf32>
    %cst_78 = arith.constant dense<0.000000e+00> : vector<3x128xf32>
    %88 = tpu.matmul %87, %62, %cst_78 {dimension_numbers = #tpu.dot_dimension_numbers<[1], [0], [0], [1], [0, 0, 1, 1], [], []>} : vector<3x8xf32>, vector<8x128xf32>, vector<3x128xf32> -> vector<3x128xf32>
    %c3_79 = arith.constant 3 : index
    %c0_80 = arith.constant 0 : index
    %c0_81 = arith.constant 0 : index
    %89 = vector.load %arg8[%c3_79, %c0_80, %c0_81] : memref<7x128x524xf32, #tpu.memory_space<vmem>>, vector<1x128x524xf32>
    %90 = vector.shape_cast %89 : vector<1x128x524xf32> to vector<128x524xf32>
    %cst_82 = arith.constant dense<0.000000e+00> : vector<3x524xf32>
    %91 = tpu.matmul %88, %90, %cst_82 {dimension_numbers = #tpu.dot_dimension_numbers<[1], [0], [0], [1], [0, 0, 1, 1], [], []>} : vector<3x128xf32>, vector<128x524xf32>, vector<3x524xf32> -> vector<3x524xf32>
    %92 = arith.addf %85, %91 : vector<3x524xf32>
    %c4_83 = arith.constant 4 : index
    %c0_84 = arith.constant 0 : index
    %c0_85 = arith.constant 0 : index
    %93 = vector.load %arg7[%c4_83, %c0_84, %c0_85] : memref<7x3x8xf32, #tpu.memory_space<vmem>>, vector<1x3x8xf32>
    %94 = vector.shape_cast %93 : vector<1x3x8xf32> to vector<3x8xf32>
    %cst_86 = arith.constant dense<0.000000e+00> : vector<3x128xf32>
    %95 = tpu.matmul %94, %62, %cst_86 {dimension_numbers = #tpu.dot_dimension_numbers<[1], [0], [0], [1], [0, 0, 1, 1], [], []>} : vector<3x8xf32>, vector<8x128xf32>, vector<3x128xf32> -> vector<3x128xf32>
    %c4_87 = arith.constant 4 : index
    %c0_88 = arith.constant 0 : index
    %c0_89 = arith.constant 0 : index
    %96 = vector.load %arg8[%c4_87, %c0_88, %c0_89] : memref<7x128x524xf32, #tpu.memory_space<vmem>>, vector<1x128x524xf32>
    %97 = vector.shape_cast %96 : vector<1x128x524xf32> to vector<128x524xf32>
    %cst_90 = arith.constant dense<0.000000e+00> : vector<3x524xf32>
    %98 = tpu.matmul %95, %97, %cst_90 {dimension_numbers = #tpu.dot_dimension_numbers<[1], [0], [0], [1], [0, 0, 1, 1], [], []>} : vector<3x128xf32>, vector<128x524xf32>, vector<3x524xf32> -> vector<3x524xf32>
    %99 = arith.addf %92, %98 : vector<3x524xf32>
    %c5 = arith.constant 5 : index
    %c0_91 = arith.constant 0 : index
    %c0_92 = arith.constant 0 : index
    %100 = vector.load %arg7[%c5, %c0_91, %c0_92] : memref<7x3x8xf32, #tpu.memory_space<vmem>>, vector<1x3x8xf32>
    %101 = vector.shape_cast %100 : vector<1x3x8xf32> to vector<3x8xf32>
    %cst_93 = arith.constant dense<0.000000e+00> : vector<3x128xf32>
    %102 = tpu.matmul %101, %62, %cst_93 {dimension_numbers = #tpu.dot_dimension_numbers<[1], [0], [0], [1], [0, 0, 1, 1], [], []>} : vector<3x8xf32>, vector<8x128xf32>, vector<3x128xf32> -> vector<3x128xf32>
    %c5_94 = arith.constant 5 : index
    %c0_95 = arith.constant 0 : index
    %c0_96 = arith.constant 0 : index
    %103 = vector.load %arg8[%c5_94, %c0_95, %c0_96] : memref<7x128x524xf32, #tpu.memory_space<vmem>>, vector<1x128x524xf32>
    %104 = vector.shape_cast %103 : vector<1x128x524xf32> to vector<128x524xf32>
    %cst_97 = arith.constant dense<0.000000e+00> : vector<3x524xf32>
    %105 = tpu.matmul %102, %104, %cst_97 {dimension_numbers = #tpu.dot_dimension_numbers<[1], [0], [0], [1], [0, 0, 1, 1], [], []>} : vector<3x128xf32>, vector<128x524xf32>, vector<3x524xf32> -> vector<3x524xf32>
    %106 = arith.addf %99, %105 : vector<3x524xf32>
    %c6 = arith.constant 6 : index
    %c0_98 = arith.constant 0 : index
    %c0_99 = arith.constant 0 : index
    %107 = vector.load %arg7[%c6, %c0_98, %c0_99] : memref<7x3x8xf32, #tpu.memory_space<vmem>>, vector<1x3x8xf32>
    %108 = vector.shape_cast %107 : vector<1x3x8xf32> to vector<3x8xf32>
    %cst_100 = arith.constant dense<0.000000e+00> : vector<3x128xf32>
    %109 = tpu.matmul %108, %62, %cst_100 {dimension_numbers = #tpu.dot_dimension_numbers<[1], [0], [0], [1], [0, 0, 1, 1], [], []>} : vector<3x8xf32>, vector<8x128xf32>, vector<3x128xf32> -> vector<3x128xf32>
    %c6_101 = arith.constant 6 : index
    %c0_102 = arith.constant 0 : index
    %c0_103 = arith.constant 0 : index
    %110 = vector.load %arg8[%c6_101, %c0_102, %c0_103] : memref<7x128x524xf32, #tpu.memory_space<vmem>>, vector<1x128x524xf32>
    %111 = vector.shape_cast %110 : vector<1x128x524xf32> to vector<128x524xf32>
    %cst_104 = arith.constant dense<0.000000e+00> : vector<3x524xf32>
    %112 = tpu.matmul %109, %111, %cst_104 {dimension_numbers = #tpu.dot_dimension_numbers<[1], [0], [0], [1], [0, 0, 1, 1], [], []>} : vector<3x128xf32>, vector<128x524xf32>, vector<3x524xf32> -> vector<3x524xf32>
    %113 = arith.addf %106, %112 : vector<3x524xf32>
    %cst_105 = arith.constant 0.000000e+00 : f32
    %114 = vector.broadcast %cst_105 : f32 to vector<3x524xf32>
    %115 = arith.maximumf %113, %114 : vector<3x524xf32>
    %c0_106 = arith.constant 0 : index
    %c0_107 = arith.constant 0 : index
    %116 = vector.load %arg11[%c0_106, %c0_107] : memref<1x1024xf32, #tpu.memory_space<vmem>>, vector<1x1024xf32>
    %117 = vector.extract_strided_slice %115 {offsets = [0, 0], sizes = [1, 524], strides = [1, 1]} : vector<3x524xf32> to vector<1x524xf32>
    %c0_108 = arith.constant 0 : index
    %c0_109 = arith.constant 0 : index
    %c0_110 = arith.constant 0 : index
    %118 = vector.load %arg10[%c0_108, %c0_109, %c0_110] : memref<3x524x1024xf32, #tpu.memory_space<vmem>>, vector<1x524x1024xf32>
    %119 = vector.shape_cast %118 : vector<1x524x1024xf32> to vector<524x1024xf32>
    %cst_111 = arith.constant dense<0.000000e+00> : vector<1x1024xf32>
    %120 = tpu.matmul %117, %119, %cst_111 {dimension_numbers = #tpu.dot_dimension_numbers<[1], [0], [0], [1], [0, 0, 1, 1], [], []>} : vector<1x524xf32>, vector<524x1024xf32>, vector<1x1024xf32> -> vector<1x1024xf32>
    %121 = arith.addf %116, %120 : vector<1x1024xf32>
    %122 = vector.extract_strided_slice %115 {offsets = [1, 0], sizes = [1, 524], strides = [1, 1]} : vector<3x524xf32> to vector<1x524xf32>
    %c1_112 = arith.constant 1 : index
    %c0_113 = arith.constant 0 : index
    %c0_114 = arith.constant 0 : index
    %123 = vector.load %arg10[%c1_112, %c0_113, %c0_114] : memref<3x524x1024xf32, #tpu.memory_space<vmem>>, vector<1x524x1024xf32>
    %124 = vector.shape_cast %123 : vector<1x524x1024xf32> to vector<524x1024xf32>
    %cst_115 = arith.constant dense<0.000000e+00> : vector<1x1024xf32>
    %125 = tpu.matmul %122, %124, %cst_115 {dimension_numbers = #tpu.dot_dimension_numbers<[1], [0], [0], [1], [0, 0, 1, 1], [], []>} : vector<1x524xf32>, vector<524x1024xf32>, vector<1x1024xf32> -> vector<1x1024xf32>
    %126 = arith.addf %121, %125 : vector<1x1024xf32>
    %127 = vector.extract_strided_slice %115 {offsets = [2, 0], sizes = [1, 524], strides = [1, 1]} : vector<3x524xf32> to vector<1x524xf32>
    %c2_116 = arith.constant 2 : index
    %c0_117 = arith.constant 0 : index
    %c0_118 = arith.constant 0 : index
    %128 = vector.load %arg10[%c2_116, %c0_117, %c0_118] : memref<3x524x1024xf32, #tpu.memory_space<vmem>>, vector<1x524x1024xf32>
    %129 = vector.shape_cast %128 : vector<1x524x1024xf32> to vector<524x1024xf32>
    %cst_119 = arith.constant dense<0.000000e+00> : vector<1x1024xf32>
    %130 = tpu.matmul %127, %129, %cst_119 {dimension_numbers = #tpu.dot_dimension_numbers<[1], [0], [0], [1], [0, 0, 1, 1], [], []>} : vector<1x524xf32>, vector<524x1024xf32>, vector<1x1024xf32> -> vector<1x1024xf32>
    %131 = arith.addf %126, %130 : vector<1x1024xf32>
    %cst_120 = arith.constant 0.000000e+00 : f32
    %132 = vector.broadcast %cst_120 : f32 to vector<1x1024xf32>
    %133 = arith.maximumf %131, %132 : vector<1x1024xf32>
    %c0_121 = arith.constant 0 : index
    %c0_122 = arith.constant 0 : index
    %134 = vector.load %arg12[%c0_121, %c0_122] : memref<1024x1xf32, #tpu.memory_space<vmem>>, vector<1024x1xf32>
    %cst_123 = arith.constant dense<0.000000e+00> : vector<1x1xf32>
    %135 = tpu.matmul %133, %134, %cst_123 {dimension_numbers = #tpu.dot_dimension_numbers<[1], [0], [0], [1], [0, 0, 1, 1], [], []>} : vector<1x1024xf32>, vector<1024x1xf32>, vector<1x1xf32> -> vector<1x1xf32>
    %c0_124 = arith.constant 0 : index
    %c0_125 = arith.constant 0 : index
    %136 = vector.load %arg13[%c0_124, %c0_125] : memref<1x1xf32, #tpu.memory_space<vmem>>, vector<1x1xf32>
    %137 = arith.addf %135, %136 : vector<1x1xf32>
    %c0_126 = arith.constant 0 : index
    %c0_127 = arith.constant 0 : index
    %c0_128 = arith.constant 0 : index
    %138 = vector.load %arg14[%c0_126, %c0_127, %c0_128] : memref<1x1x1xf32, #tpu.memory_space<vmem>>, vector<1x1x1xf32>
    %139 = vector.shape_cast %138 : vector<1x1x1xf32> to vector<1x1xf32>
    %140 = vector.shape_cast %137 : vector<1x1xf32> to vector<1x1x1xf32>
    tpu.vector_store %arg14[%c0_126, %c0_127, %c0_128], %140 {strides = array<i32>} : memref<1x1x1xf32, #tpu.memory_space<vmem>>, vector<1x1x1xf32>,
    return
  }
  func.func @transform_0(%arg0: i32) -> (i32, i32, i32) {
    %c0_i32 = arith.constant 0 : i32
    %c0_i32_0 = arith.constant 0 : i32
    %c0_i32_1 = arith.constant 0 : i32
    return %arg0, %c0_i32, %c0_i32_0 : i32, i32, i32
  }
  func.func @transform_1(%arg0: i32) -> (i32, i32) {
    %c0_i32 = arith.constant 0 : i32
    %c0_i32_0 = arith.constant 0 : i32
    %c0_i32_1 = arith.constant 0 : i32
    return %c0_i32, %c0_i32_0 : i32, i32
  }
  func.func @transform_2(%arg0: i32) -> (i32, i32) {
    %c0_i32 = arith.constant 0 : i32
    %c0_i32_0 = arith.constant 0 : i32
    %c0_i32_1 = arith.constant 0 : i32
    return %c0_i32, %c0_i32_0 : i32, i32
  }
  func.func @transform_3(%arg0: i32) -> (i32, i32, i32) {
    %c0_i32 = arith.constant 0 : i32
    %c0_i32_0 = arith.constant 0 : i32
    %c0_i32_1 = arith.constant 0 : i32
    %c0_i32_2 = arith.constant 0 : i32
    return %c0_i32, %c0_i32_0, %c0_i32_1 : i32, i32, i32
  }
  func.func @transform_4(%arg0: i32) -> (i32, i32, i32) {
    %c0_i32 = arith.constant 0 : i32
    %c0_i32_0 = arith.constant 0 : i32
    %c0_i32_1 = arith.constant 0 : i32
    %c0_i32_2 = arith.constant 0 : i32
    return %c0_i32, %c0_i32_0, %c0_i32_1 : i32, i32, i32
  }
  func.func @transform_5(%arg0: i32) -> (i32, i32) {
    %c0_i32 = arith.constant 0 : i32
    %c0_i32_0 = arith.constant 0 : i32
    %c0_i32_1 = arith.constant 0 : i32
    return %c0_i32, %c0_i32_0 : i32, i32
  }
  func.func @transform_6(%arg0: i32) -> (i32, i32, i32) {
    %c0_i32 = arith.constant 0 : i32
    %c0_i32_0 = arith.constant 0 : i32
    %c0_i32_1 = arith.constant 0 : i32
    %c0_i32_2 = arith.constant 0 : i32
    return %c0_i32, %c0_i32_0, %c0_i32_1 : i32, i32, i32
  }
  func.func @transform_7(%arg0: i32) -> (i32, i32, i32) {
    %c0_i32 = arith.constant 0 : i32
    %c0_i32_0 = arith.constant 0 : i32
    %c0_i32_1 = arith.constant 0 : i32
    %c0_i32_2 = arith.constant 0 : i32
    return %c0_i32, %c0_i32_0, %c0_i32_1 : i32, i32, i32
  }
  func.func @transform_8(%arg0: i32) -> (i32, i32) {
    %c0_i32 = arith.constant 0 : i32
    %c0_i32_0 = arith.constant 0 : i32
    %c0_i32_1 = arith.constant 0 : i32
    return %c0_i32, %c0_i32_0 : i32, i32
  }
  func.func @transform_9(%arg0: i32) -> (i32, i32, i32) {
    %c0_i32 = arith.constant 0 : i32
    %c0_i32_0 = arith.constant 0 : i32
    %c0_i32_1 = arith.constant 0 : i32
    %c0_i32_2 = arith.constant 0 : i32
    return %c0_i32, %c0_i32_0, %c0_i32_1 : i32, i32, i32
  }
  func.func @transform_10(%arg0: i32) -> (i32, i32) {
    %c0_i32 = arith.constant 0 : i32
    %c0_i32_0 = arith.constant 0 : i32
    %c0_i32_1 = arith.constant 0 : i32
    return %c0_i32, %c0_i32_0 : i32, i32
  }
  func.func @transform_11(%arg0: i32) -> (i32, i32) {
    %c0_i32 = arith.constant 0 : i32
    %c0_i32_0 = arith.constant 0 : i32
    %c0_i32_1 = arith.constant 0 : i32
    return %c0_i32, %c0_i32_0 : i32, i32
  }
  func.func @transform_12(%arg0: i32) -> (i32, i32) {
    %c0_i32 = arith.constant 0 : i32
    %c0_i32_0 = arith.constant 0 : i32
    %c0_i32_1 = arith.constant 0 : i32
    return %c0_i32, %c0_i32_0 : i32, i32
  }
  func.func @transform_13(%arg0: i32) -> (i32, i32, i32) {
    %c0_i32 = arith.constant 0 : i32
    %c0_i32_0 = arith.constant 0 : i32
    %c0_i32_1 = arith.constant 0 : i32
    return %arg0, %c0_i32, %c0_i32_0 : i32, i32, i32
  }
}

</mosaic_0001>

<llo_original>
// kernel: ablation_mark_ws_forward.1
$region0: #{ablation_mark_ws_forward.1}
  #allocation0 [shape = 'u32[]', space=smem, size = 0x4, offset = 0x4, fixed_abs, tag = 'smem constant byte address 0x4 - core index']
  #allocation1 [shape = 'u32[72,128]{1,0:T(1,128)}', space=vmem, size = 0x9000, scoped, tag = 'internal scratch']
  #allocation2 [shape = 'f32[1,1]{1,0:T(1,128)S(1)}', space=vmem, size = 0x200, scoped, tag = 'scoped memory for ablation_mark_ws_forward.1']
  %s0 = inlined_call_operand.vmem [shape: f32[2,18,1], index: 0, kind: input, shape index: {}]
  %s1 = inlined_call_operand.vmem [shape: f32[3,32], index: 1, kind: input, shape index: {}]
  %s2 = inlined_call_operand.vmem [shape: f32[1,32], index: 2, kind: input, shape index: {}]
  %s3 = inlined_call_operand.vmem [shape: f32[5,8,16], index: 3, kind: input, shape index: {}]
  %s4 = inlined_call_operand.vmem [shape: f32[5,32,128], index: 4, kind: input, shape index: {}]
  %s5 = inlined_call_operand.vmem [shape: f32[1,128], index: 5, kind: input, shape index: {}]
  %s6 = inlined_call_operand.vmem [shape: f32[7,3,8], index: 6, kind: input, shape index: {}]
  %s7 = inlined_call_operand.vmem [shape: f32[7,128,524], index: 7, kind: input, shape index: {}]
  %s8 = inlined_call_operand.vmem [shape: f32[1,524], index: 8, kind: input, shape index: {}]
  %s9 = inlined_call_operand.hbm [shape: f32[3,524,1024], index: 9, kind: input, shape index: {}]
  %s10 = inlined_call_operand.vmem [shape: f32[1,1024], index: 10, kind: input, shape index: {}]
  %s11 = inlined_call_operand.vmem [shape: f32[1024,1], index: 11, kind: input, shape index: {}]
  %s12 = inlined_call_operand.<no memory space> [shape: f32[1,1], index: 12, kind: input, shape index: {}]
  %s13 = inlined_call_operand.vmem [shape: f32[2,1,1], index: 13, kind: output, shape index: {}]
  %s14 = sld [smem:[#allocation0]]
  $region89: #{ablation_mark_ws_forward.1} parent=0
    _
  %s16 = ssub.s32 1, %s14
  %s17 = scalar_select 0, %s16, %s14
  %v18 = vstv %s12
  %19 = vst [vmem:[#allocation2] sm:$0x1] %v18
  $region1: #{ablation_mark_ws_forward.1} parent=0
    #allocation3 [shape = 'u8[6488064]{0}', space=vmem, size = 0x630000, scoped, tag = 'input window, operand 9, single buffered']
    #allocation4 [shape = 's32[2]{0}', space=sflag, size = 0x8, scoped, tag = 'scoped memory for ablation_mark_ws_forward.1']
    %20 = vsyncpa [#allocation4], 0
    loop: start=0, step=1, limit=4
    $region2: #{ablation_mark_ws_forward.1} parent=1 // loop_pre_header
      _
    $region3: #{ablation_mark_ws_forward.1} parent=1 // loop_header
      %s22 = sphi 0, %s26
      %p23 = scmp.ge.s32.totalorder %s22, 4
      %s32 = sphi 0, %s34
      %s35 = sphi 0, %s32
      %s36 = sphi 0, %s35
      %s52 = sphi 0, %s36
      %s56 = sphi 0, %s56
      %s58 = sphi 0, %s56
      %s59 = sphi 0, %s58
      %s73 = sphi 0, %s59
      %s77 = sphi 0, %s77
      %s79 = sphi 0, %s77
      %s80 = sphi 0, %s79
      %s94 = sphi 0, %s80
      %s98 = sphi 0, %s98
      %s100 = sphi 0, %s98
      %s101 = sphi 0, %s100
      %s115 = sphi 0, %s101
      %s119 = sphi 0, %s119
      %s121 = sphi 0, %s119
      %s122 = sphi 0, %s121
      %s136 = sphi 0, %s122
      %s140 = sphi 0, %s140
      %s142 = sphi 0, %s140
      %s143 = sphi 0, %s142
      %s157 = sphi 0, %s143
      %s161 = sphi 0, %s161
      %s163 = sphi 0, %s161
      %s164 = sphi 0, %s163
      %s178 = sphi 0, %s164
      %s182 = sphi 0, %s182
      %s184 = sphi 0, %s182
      %s185 = sphi 0, %s184
      %s199 = sphi 0, %s185
      %s203 = sphi 0, %s203
      %s205 = sphi 0, %s203
      %s206 = sphi 0, %s205
      %s220 = sphi 0, %s206
      %s224 = sphi 0, %s224
      %s226 = sphi 0, %s224
      %s227 = sphi 0, %s226
      %s241 = sphi 0, %s227
      %s245 = sphi 0, %s245
      %s247 = sphi 0, %s245
      %s248 = sphi 0, %s247
      %s262 = sphi 0, %s248
      %s266 = sphi 0, %s266
      %s268 = sphi 0, %s266
      %s269 = sphi 0, %s268
      %s283 = sphi 0, %s269
      %s287 = sphi 0, %s287
      %s289 = sphi 0, %s287
      %s290 = sphi 0, %s289
      %s304 = sphi 0, %s290
      %s310 = sphi 0, %s312
      %s313 = sphi 0, %s310
      %s314 = sphi 0, %s313
      %s330 = sphi 0, %s314
    $region4: #{ablation_mark_ws_forward.1} parent=1 // loop_header_branch
      %25 = sbr.rel (%p23) target = $region8
    $region5: #{ablation_mark_ws_forward.1} parent=1 // loop_body
      %s27 = ssub.s32 %s22, 1
      %s28 = ssub.s32 %s22, 2
      %s29 = sadd.s32 %s22, 1
      %s30 = ssub.s32 %s22, %s29
      %p31 = scmp.eq.s32.totalorder %s30, 0
      %s33 = sadd.s32 %s32, 1
      %s34 = scalar_select %p31, %s32, %s33
      %p37 = pneg %p31
      %p38 = scmp.eq.s32.totalorder %s22, 1
      %p39 = por %p37, %p38
      %p40 = scmp.ne.s32.totalorder %s32, %s35
      %p41 = scmp.eq.s32.totalorder %s22, 0
      %p42 = por %p40, %p41
      %p43 = scmp.ne.s32.totalorder %s32, %s35
      %p44 = scmp.eq.s32.totalorder %s27, 1
      %p45 = por %p43, %p44
      %p46 = scmp.ne.s32.totalorder %s35, %s36
      %p47 = scmp.eq.s32.totalorder %s27, 0
      %p48 = por %p46, %p47
      %p49 = scmp.ne.s32.totalorder %s35, %s36
      %p50 = scmp.eq.s32.totalorder %s28, 1
      %p51 = por %p49, %p50
      %p53 = scmp.ne.s32.totalorder %s36, %s52
      %p54 = scmp.eq.s32.totalorder %s28, 0
      %p55 = por %p53, %p54
      %s57 = sadd.s32 %s56, 1
      %p60 = scmp.eq.s32.totalorder %s22, 1
      %p61 = scmp.ne.s32.totalorder %s56, %s58
      %p62 = scmp.eq.s32.totalorder %s22, 0
      %p63 = por %p61, %p62
      %p64 = scmp.ne.s32.totalorder %s56, %s58
      %p65 = scmp.eq.s32.totalorder %s27, 1
      %p66 = por %p64, %p65
      %p67 = scmp.ne.s32.totalorder %s58, %s59
      %p68 = scmp.eq.s32.totalorder %s27, 0
      %p69 = por %p67, %p68
      %p70 = scmp.ne.s32.totalorder %s58, %s59
      %p71 = scmp.eq.s32.totalorder %s28, 1
      %p72 = por %p70, %p71
      %p74 = scmp.ne.s32.totalorder %s59, %s73
      %p75 = scmp.eq.s32.totalorder %s28, 0
      %p76 = por %p74, %p75
      %s78 = sadd.s32 %s77, 1
      %p81 = scmp.eq.s32.totalorder %s22, 1
      %p82 = scmp.ne.s32.totalorder %s77, %s79
      %p83 = scmp.eq.s32.totalorder %s22, 0
      %p84 = por %p82, %p83
      %p85 = scmp.ne.s32.totalorder %s77, %s79
      %p86 = scmp.eq.s32.totalorder %s27, 1
      %p87 = por %p85, %p86
      %p88 = scmp.ne.s32.totalorder %s79, %s80
      %p89 = scmp.eq.s32.totalorder %s27, 0
      %p90 = por %p88, %p89
      %p91 = scmp.ne.s32.totalorder %s79, %s80
      %p92 = scmp.eq.s32.totalorder %s28, 1
      %p93 = por %p91, %p92
      %p95 = scmp.ne.s32.totalorder %s80, %s94
      %p96 = scmp.eq.s32.totalorder %s28, 0
      %p97 = por %p95, %p96
      %s99 = sadd.s32 %s98, 1
      %p102 = scmp.eq.s32.totalorder %s22, 1
      %p103 = scmp.ne.s32.totalorder %s98, %s100
      %p104 = scmp.eq.s32.totalorder %s22, 0
      %p105 = por %p103, %p104
      %p106 = scmp.ne.s32.totalorder %s98, %s100
      %p107 = scmp.eq.s32.totalorder %s27, 1
      %p108 = por %p106, %p107
      %p109 = scmp.ne.s32.totalorder %s100, %s101
      %p110 = scmp.eq.s32.totalorder %s27, 0
      %p111 = por %p109, %p110
      %p112 = scmp.ne.s32.totalorder %s100, %s101
      %p113 = scmp.eq.s32.totalorder %s28, 1
      %p114 = por %p112, %p113
      %p116 = scmp.ne.s32.totalorder %s101, %s115
      %p117 = scmp.eq.s32.totalorder %s28, 0
      %p118 = por %p116, %p117
      %s120 = sadd.s32 %s119, 1
      %p123 = scmp.eq.s32.totalorder %s22, 1
      %p124 = scmp.ne.s32.totalorder %s119, %s121
      %p125 = scmp.eq.s32.totalorder %s22, 0
      %p126 = por %p124, %p125
      %p127 = scmp.ne.s32.totalorder %s119, %s121
      %p128 = scmp.eq.s32.totalorder %s27, 1
      %p129 = por %p127, %p128
      %p130 = scmp.ne.s32.totalorder %s121, %s122
      %p131 = scmp.eq.s32.totalorder %s27, 0
      %p132 = por %p130, %p131
      %p133 = scmp.ne.s32.totalorder %s121, %s122
      %p134 = scmp.eq.s32.totalorder %s28, 1
      %p135 = por %p133, %p134
      %p137 = scmp.ne.s32.totalorder %s122, %s136
      %p138 = scmp.eq.s32.totalorder %s28, 0
      %p139 = por %p137, %p138
      %s141 = sadd.s32 %s140, 1
      %p144 = scmp.eq.s32.totalorder %s22, 1
      %p145 = scmp.ne.s32.totalorder %s140, %s142
      %p146 = scmp.eq.s32.totalorder %s22, 0
      %p147 = por %p145, %p146
      %p148 = scmp.ne.s32.totalorder %s140, %s142
      %p149 = scmp.eq.s32.totalorder %s27, 1
      %p150 = por %p148, %p149
      %p151 = scmp.ne.s32.totalorder %s142, %s143
      %p152 = scmp.eq.s32.totalorder %s27, 0
      %p153 = por %p151, %p152
      %p154 = scmp.ne.s32.totalorder %s142, %s143
      %p155 = scmp.eq.s32.totalorder %s28, 1
      %p156 = por %p154, %p155
      %p158 = scmp.ne.s32.totalorder %s143, %s157
      %p159 = scmp.eq.s32.totalorder %s28, 0
      %p160 = por %p158, %p159
      %s162 = sadd.s32 %s161, 1
      %p165 = scmp.eq.s32.totalorder %s22, 1
      %p166 = scmp.ne.s32.totalorder %s161, %s163
      %p167 = scmp.eq.s32.totalorder %s22, 0
      %p168 = por %p166, %p167
      %p169 = scmp.ne.s32.totalorder %s161, %s163
      %p170 = scmp.eq.s32.totalorder %s27, 1
      %p171 = por %p169, %p170
      %p172 = scmp.ne.s32.totalorder %s163, %s164
      %p173 = scmp.eq.s32.totalorder %s27, 0
      %p174 = por %p172, %p173
      %p175 = scmp.ne.s32.totalorder %s163, %s164
      %p176 = scmp.eq.s32.totalorder %s28, 1
      %p177 = por %p175, %p176
      %p179 = scmp.ne.s32.totalorder %s164, %s178
      %p180 = scmp.eq.s32.totalorder %s28, 0
      %p181 = por %p179, %p180
      %s183 = sadd.s32 %s182, 1
      %p186 = scmp.eq.s32.totalorder %s22, 1
      %p187 = scmp.ne.s32.totalorder %s182, %s184
      %p188 = scmp.eq.s32.totalorder %s22, 0
      %p189 = por %p187, %p188
      %p190 = scmp.ne.s32.totalorder %s182, %s184
      %p191 = scmp.eq.s32.totalorder %s27, 1
      %p192 = por %p190, %p191
      %p193 = scmp.ne.s32.totalorder %s184, %s185
      %p194 = scmp.eq.s32.totalorder %s27, 0
      %p195 = por %p193, %p194
      %p196 = scmp.ne.s32.totalorder %s184, %s185
      %p197 = scmp.eq.s32.totalorder %s28, 1
      %p198 = por %p196, %p197
      %p200 = scmp.ne.s32.totalorder %s185, %s199
      %p201 = scmp.eq.s32.totalorder %s28, 0
      %p202 = por %p200, %p201
      %s204 = sadd.s32 %s203, 1
      %p207 = scmp.eq.s32.totalorder %s22, 1
      %p208 = scmp.ne.s32.totalorder %s203, %s205
      %p209 = scmp.eq.s32.totalorder %s22, 0
      %p210 = por %p208, %p209
      %p211 = scmp.ne.s32.totalorder %s203, %s205
      %p212 = scmp.eq.s32.totalorder %s27, 1
      %p213 = por %p211, %p212
      %p214 = scmp.ne.s32.totalorder %s205, %s206
      %p215 = scmp.eq.s32.totalorder %s27, 0
      %p216 = por %p214, %p215
      %p217 = scmp.ne.s32.totalorder %s205, %s206
      %p218 = scmp.eq.s32.totalorder %s28, 1
      %p219 = por %p217, %p218
      %p221 = scmp.ne.s32.totalorder %s206, %s220
      %p222 = scmp.eq.s32.totalorder %s28, 0
      %p223 = por %p221, %p222
      %s225 = sadd.s32 %s224, 1
      %p228 = scmp.eq.s32.totalorder %s22, 1
      %p229 = scmp.ne.s32.totalorder %s224, %s226
      %p230 = scmp.eq.s32.totalorder %s22, 0
      %p231 = por %p229, %p230
      %p232 = scmp.ne.s32.totalorder %s224, %s226
      %p233 = scmp.eq.s32.totalorder %s27, 1
      %p234 = por %p232, %p233
      %p235 = scmp.ne.s32.totalorder %s226, %s227
      %p236 = scmp.eq.s32.totalorder %s27, 0
      %p237 = por %p235, %p236
      %p238 = scmp.ne.s32.totalorder %s226, %s227
      %p239 = scmp.eq.s32.totalorder %s28, 1
      %p240 = por %p238, %p239
      %p242 = scmp.ne.s32.totalorder %s227, %s241
      %p243 = scmp.eq.s32.totalorder %s28, 0
      %p244 = por %p242, %p243
      %s246 = sadd.s32 %s245, 1
      %p249 = scmp.eq.s32.totalorder %s22, 1
      %p250 = scmp.ne.s32.totalorder %s245, %s247
      %p251 = scmp.eq.s32.totalorder %s22, 0
      %p252 = por %p250, %p251
      %p253 = scmp.ne.s32.totalorder %s245, %s247
      %p254 = scmp.eq.s32.totalorder %s27, 1
      %p255 = por %p253, %p254
      %p256 = scmp.ne.s32.totalorder %s247, %s248
      %p257 = scmp.eq.s32.totalorder %s27, 0
      %p258 = por %p256, %p257
      %p259 = scmp.ne.s32.totalorder %s247, %s248
      %p260 = scmp.eq.s32.totalorder %s28, 1
      %p261 = por %p259, %p260
      %p263 = scmp.ne.s32.totalorder %s248, %s262
      %p264 = scmp.eq.s32.totalorder %s28, 0
      %p265 = por %p263, %p264
      %s267 = sadd.s32 %s266, 1
      %p270 = scmp.eq.s32.totalorder %s22, 1
      %p271 = scmp.ne.s32.totalorder %s266, %s268
      %p272 = scmp.eq.s32.totalorder %s22, 0
      %p273 = por %p271, %p272
      %p274 = scmp.ne.s32.totalorder %s266, %s268
      %p275 = scmp.eq.s32.totalorder %s27, 1
      %p276 = por %p274, %p275
      %p277 = scmp.ne.s32.totalorder %s268, %s269
      %p278 = scmp.eq.s32.totalorder %s27, 0
      %p279 = por %p277, %p278
      %p280 = scmp.ne.s32.totalorder %s268, %s269
      %p281 = scmp.eq.s32.totalorder %s28, 1
      %p282 = por %p280, %p281
      %p284 = scmp.ne.s32.totalorder %s269, %s283
      %p285 = scmp.eq.s32.totalorder %s28, 0
      %p286 = por %p284, %p285
      %s288 = sadd.s32 %s287, 1
      %p291 = scmp.eq.s32.totalorder %s22, 1
      %p292 = scmp.ne.s32.totalorder %s287, %s289
      %p293 = scmp.eq.s32.totalorder %s22, 0
      %p294 = por %p292, %p293
      %p295 = scmp.ne.s32.totalorder %s287, %s289
      %p296 = scmp.eq.s32.totalorder %s27, 1
      %p297 = por %p295, %p296
      %p298 = scmp.ne.s32.totalorder %s289, %s290
      %p299 = scmp.eq.s32.totalorder %s27, 0
      %p300 = por %p298, %p299
      %p301 = scmp.ne.s32.totalorder %s289, %s290
      %p302 = scmp.eq.s32.totalorder %s28, 1
      %p303 = por %p301, %p302
      %p305 = scmp.ne.s32.totalorder %s290, %s304
      %p306 = scmp.eq.s32.totalorder %s28, 0
      %p307 = por %p305, %p306
      %s308 = ssub.s32 %s22, %s29
      %p309 = scmp.eq.s32.totalorder %s308, 0
      %s311 = sadd.s32 %s310, 1
      %s312 = scalar_select %p309, %s310, %s311
      %p315 = pneg %p309
      %p316 = scmp.eq.s32.totalorder %s22, 1
      %p317 = por %p315, %p316
      %p318 = scmp.ne.s32.totalorder %s310, %s313
      %p319 = scmp.eq.s32.totalorder %s22, 0
      %p320 = por %p318, %p319
      %p321 = scmp.ne.s32.totalorder %s310, %s313
      %p322 = scmp.eq.s32.totalorder %s27, 1
      %p323 = por %p321, %p322
      %p324 = scmp.ne.s32.totalorder %s313, %s314
      %p325 = scmp.eq.s32.totalorder %s27, 0
      %p326 = por %p324, %p325
      %p327 = scmp.ne.s32.totalorder %s313, %s314
      %p328 = scmp.eq.s32.totalorder %s28, 1
      %p329 = por %p327, %p328
      %p331 = scmp.ne.s32.totalorder %s314, %s330
      %p332 = scmp.eq.s32.totalorder %s28, 0
      %p333 = por %p331, %p332
      %p334 = scmp.le.s32.totalorder 1, %s22
      %p335 = scmp.lt.s32.totalorder %s22, 3
      %p336 = pnand %p334, %p335
      %p337 = pneg %p336
      // Predicated region
      $region9: #{ablation_mark_ws_forward.1} parent=5 // pred_check
        _
      $region10: #{ablation_mark_ws_forward.1} parent=5 // pred_check_branch
        %339 = sbr.rel (%p336) target = $region12
      $region11: #{ablation_mark_ws_forward.1} parent=5 // pred_region
        %s340 = ssub.s32 %s22, 1
        // Predicated region
        $region13: #{ablation_mark_ws_forward.1} parent=11 // pred_check
          %p341 = pneg %p69
        $region14: #{ablation_mark_ws_forward.1} parent=11 // pred_check_branch
          %343 = sbr.rel (%p341) target = $region16
        $region15: #{ablation_mark_ws_forward.1} parent=11 // pred_region
          _
        $region16: #{ablation_mark_ws_forward.1} parent=11 // pred_fallthru
          _
        // Predicated region
        $region17: #{ablation_mark_ws_forward.1} parent=11 // pred_check
          %p344 = pneg %p90
        $region18: #{ablation_mark_ws_forward.1} parent=11 // pred_check_branch
          %346 = sbr.rel (%p344) target = $region20
        $region19: #{ablation_mark_ws_forward.1} parent=11 // pred_region
          _
        $region20: #{ablation_mark_ws_forward.1} parent=11 // pred_fallthru
          _
        // Predicated region
        $region21: #{ablation_mark_ws_forward.1} parent=11 // pred_check
          %p347 = pneg %p111
        $region22: #{ablation_mark_ws_forward.1} parent=11 // pred_check_branch
          %349 = sbr.rel (%p347) target = $region24
        $region23: #{ablation_mark_ws_forward.1} parent=11 // pred_region
          _
        $region24: #{ablation_mark_ws_forward.1} parent=11 // pred_fallthru
          _
        // Predicated region
        $region25: #{ablation_mark_ws_forward.1} parent=11 // pred_check
          %p350 = pneg %p132
        $region26: #{ablation_mark_ws_forward.1} parent=11 // pred_check_branch
          %352 = sbr.rel (%p350) target = $region28
        $region27: #{ablation_mark_ws_forward.1} parent=11 // pred_region
          _
        $region28: #{ablation_mark_ws_forward.1} parent=11 // pred_fallthru
          _
        // Predicated region
        $region29: #{ablation_mark_ws_forward.1} parent=11 // pred_check
          %p353 = pneg %p153
        $region30: #{ablation_mark_ws_forward.1} parent=11 // pred_check_branch
          %355 = sbr.rel (%p353) target = $region32
        $region31: #{ablation_mark_ws_forward.1} parent=11 // pred_region
          _
        $region32: #{ablation_mark_ws_forward.1} parent=11 // pred_fallthru
          _
        // Predicated region
        $region33: #{ablation_mark_ws_forward.1} parent=11 // pred_check
          %p356 = pneg %p174
        $region34: #{ablation_mark_ws_forward.1} parent=11 // pred_check_branch
          %358 = sbr.rel (%p356) target = $region36
        $region35: #{ablation_mark_ws_forward.1} parent=11 // pred_region
          _
        $region36: #{ablation_mark_ws_forward.1} parent=11 // pred_fallthru
          _
        // Predicated region
        $region37: #{ablation_mark_ws_forward.1} parent=11 // pred_check
          %p359 = pneg %p195
        $region38: #{ablation_mark_ws_forward.1} parent=11 // pred_check_branch
          %361 = sbr.rel (%p359) target = $region40
        $region39: #{ablation_mark_ws_forward.1} parent=11 // pred_region
          _
        $region40: #{ablation_mark_ws_forward.1} parent=11 // pred_fallthru
          _
        // Predicated region
        $region41: #{ablation_mark_ws_forward.1} parent=11 // pred_check
          %p362 = pneg %p216
        $region42: #{ablation_mark_ws_forward.1} parent=11 // pred_check_branch
          %364 = sbr.rel (%p362) target = $region44
        $region43: #{ablation_mark_ws_forward.1} parent=11 // pred_region
          _
        $region44: #{ablation_mark_ws_forward.1} parent=11 // pred_fallthru
          _
        // Predicated region
        $region45: #{ablation_mark_ws_forward.1} parent=11 // pred_check
          %p365 = pneg %p237
        $region46: #{ablation_mark_ws_forward.1} parent=11 // pred_check_branch
          %367 = sbr.rel (%p365) target = $region48
        $region47: #{ablation_mark_ws_forward.1} parent=11 // pred_region
          %369 = vsyncadd [#allocation4], 0
          %s370 = sshll.u32 %s9, 4
          %s371 = int_to_ptr.hbm [resolvable:$true] %s370
          %s372 = sshll.u32 [#allocation3], 4
          %s373 = int_to_ptr.vmem [resolvable:$true] %s372
          %378 = dma.hbm_to_vmem [thread:$0]  %s371, 202752, %s373, [#allocation4], 1024, 1024, 64
        $region48: #{ablation_mark_ws_forward.1} parent=11 // pred_fallthru
          _
        // Predicated region
        $region49: #{ablation_mark_ws_forward.1} parent=11 // pred_check
          %p379 = pneg %p258
        $region50: #{ablation_mark_ws_forward.1} parent=11 // pred_check_branch
          %381 = sbr.rel (%p379) target = $region52
        $region51: #{ablation_mark_ws_forward.1} parent=11 // pred_region
          _
        $region52: #{ablation_mark_ws_forward.1} parent=11 // pred_fallthru
          _
        // Predicated region
        $region53: #{ablation_mark_ws_forward.1} parent=11 // pred_check
          %p382 = pneg %p279
        $region54: #{ablation_mark_ws_forward.1} parent=11 // pred_check_branch
          %384 = sbr.rel (%p382) target = $region56
        $region55: #{ablation_mark_ws_forward.1} parent=11 // pred_region
          _
        $region56: #{ablation_mark_ws_forward.1} parent=11 // pred_fallthru
          _
        // Predicated region
        $region57: #{ablation_mark_ws_forward.1} parent=11 // pred_check
          %p385 = pneg %p300
        $region58: #{ablation_mark_ws_forward.1} parent=11 // pred_check_branch
          %387 = sbr.rel (%p385) target = $region60
        $region59: #{ablation_mark_ws_forward.1} parent=11 // pred_region
          _
        $region60: #{ablation_mark_ws_forward.1} parent=11 // pred_fallthru
          _
      $region12: #{ablation_mark_ws_forward.1} parent=5 // pred_fallthru
        _
      %p388 = scmp.lt.s32.totalorder %s22, 2
      // Predicated region
      $region61: #{ablation_mark_ws_forward.1} parent=5 // pred_check
        %p389 = pneg %p388
      $region62: #{ablation_mark_ws_forward.1} parent=5 // pred_check_branch
        %391 = sbr.rel (%p389) target = $region64
      $region63: #{ablation_mark_ws_forward.1} parent=5 // pred_region
        // Predicated region
        $region65: #{ablation_mark_ws_forward.1} parent=63 // pred_check
          %p392 = pneg %p42
        $region66: #{ablation_mark_ws_forward.1} parent=63 // pred_check_branch
          %394 = sbr.rel (%p392) target = $region68
        $region67: #{ablation_mark_ws_forward.1} parent=63 // pred_region
          %p395 = scmp.lt.s32.totalorder %s22, 1
          %s396 = scalar_select %p395, %s22, 1
          %s397 = smul.addr %s396, 3
          %s398 = smul.addr %s397, 8
          %s399 = scalar_lea.vmem %s0, %s398
        $region68: #{ablation_mark_ws_forward.1} parent=63 // pred_fallthru
          _
      $region64: #{ablation_mark_ws_forward.1} parent=5 // pred_fallthru
        _
      %p400 = scmp.le.s32.totalorder 1, %s22
      %p401 = scmp.lt.s32.totalorder %s22, 3
      %p402 = pnand %p400, %p401
      %p403 = pneg %p402
      // Predicated region
      $region69: #{ablation_mark_ws_forward.1} parent=5 // pred_check
        _
      $region70: #{ablation_mark_ws_forward.1} parent=5 // pred_check_branch
        %405 = sbr.rel (%p402) target = $region72
      $region71: #{ablation_mark_ws_forward.1} parent=5 // pred_region
        %s406 = ssub.s32 %s22, 1
        // Predicated region
        $region73: #{ablation_mark_ws_forward.1} parent=71 // pred_check
          %p407 = pneg %p237
        $region74: #{ablation_mark_ws_forward.1} parent=71 // pred_check_branch
          %409 = sbr.rel (%p407) target = $region76
        $region75: #{ablation_mark_ws_forward.1} parent=71 // pred_region
          %411 = dma.done [#allocation4], 202752
        $region76: #{ablation_mark_ws_forward.1} parent=71 // pred_fallthru
          _
        %p412 = scmp.lt.s32.totalorder %s27, 1
        %s413 = scalar_select %p412, %s27, 1
        %s414 = smul.addr %s413, 3
        %s415 = smul.addr %s414, 8
        %s416 = scalar_lea.vmem %s0, %s415
        %p417 = pneg %p48
        %p418 = pneg %p45
        %p419 = pneg %p69
        %p420 = pneg %p66
        %p421 = pneg %p90
        %p422 = pneg %p87
        %p423 = pneg %p111
        %p424 = pneg %p108
        %p425 = pneg %p132
        %p426 = pneg %p129
        %p427 = pneg %p153
        %p428 = pneg %p150
        %p429 = pneg %p174
        %p430 = pneg %p171
        %p431 = pneg %p195
        %p432 = pneg %p192
        %p433 = pneg %p216
        %p434 = pneg %p213
        %p435 = pneg %p237
        %p436 = pneg %p234
        %p437 = pneg %p258
        %p438 = pneg %p255
        %p439 = pneg %p279
        %p440 = pneg %p276
        %p441 = pneg %p300
        %p442 = pneg %p297
        %p443 = pneg %p326
        %p444 = pneg %p323
        %p445 = scmp.lt.s32.totalorder %s27, 1
        %s446 = scalar_select %p445, %s27, 1
        %s447 = scalar_lea.vmem %s13, %s446
        %p448 = scmp.lt.s32.totalorder %s27, 1
        %s449 = scalar_select %p448, %s27, 1
        %s450 = smul.addr %s449, 3
        %s451 = smul.addr %s450, 8
        %s452 = scalar_lea.vmem %s0, %s451
        %p453 = scmp.lt.s32.totalorder %s27, 1
        %s454 = scalar_select %p453, %s27, 1
        %s455 = scalar_lea.vmem %s13, %s454
        %v456 = vld [vmem:[%s452] sm:$0xff]
        %v457 = vld [vmem:[%s452 + $0x8] sm:$0xff]
        %v458 = vld [vmem:[%s452 + $0x10] sm:$0x3]
        %v459 = vld [vmem:[%s2] sm:$0x1]
        %v460 = vld [vmem:[%s1] sm:$0x1]
        %462 = vset.pattern.permute.xlu0 0
        %463 = vperm.xlu0 %462, %v456
        %v464 = vpop.permute.xlu0 %463
        %467 = vset.pattern.permute.xlu0 0
        %468 = vperm.xlu0 %467, %v457
        %v469 = vpop.permute.xlu0 %468
        %v471 = vperm.slane %v460, 0
        %v472 = vmul.f32 %v464, %v471
        %v473 = vmul.f32 %v469, %v471
        %v475 = vperm.slane %v459, 0
        %v477 = vadd.f32 %v475, %v472
        %v478 = vadd.f32 %v475, %v473
        %v479 = vld [vmem:[%s1 + $0x1] sm:$0x1]
        %481 = vset.pattern.permute.xlu0 0
        %482 = vperm.xlu0 %481, %v458
        %v483 = vpop.permute.xlu0 %482
        %v485 = vperm.slane %v479, 0
        %v486 = vmul.f32 %v464, %v485
        %v487 = vmul.f32 %v469, %v485
        %v488 = vmul.f32 %v483, %v485
        %vm492 = vcmask 1046528
        %v493 = vrot.slane %v486, 1
        %v494 = vrot.slane %v487, 1
        %v495 = vsel %vm492, %v493, %v494
        %v496 = vrot.slane %v488, 1
        %v497 = vsel %vm492, %v494, %v496
        %v500 = vadd.f32 %v477, %v495
        %v501 = vadd.f32 %v478, %v497
        %v502 = vld [vmem:[%s1 + $0x2] sm:$0x1]
        %v503 = vperm.slane %v502, 0
        %v504 = vmul.f32 %v464, %v503
        %v505 = vmul.f32 %v469, %v503
        %v506 = vmul.f32 %v483, %v503
        %vm510 = vcmask 1045504
        %v511 = vrot.slane %v504, 2
        %v512 = vrot.slane %v505, 2
        %v513 = vsel %vm510, %v511, %v512
        %v514 = vrot.slane %v506, 2
        %v515 = vsel %vm510, %v512, %v514
        %v518 = vadd.f32 %v500, %v513
        %v519 = vadd.f32 %v501, %v515
        %v520 = vmax.f32 %v518, 0.0
        %v521 = vmax.f32 %v519, 0.0
        %v522 = vld [vmem:[%s5] sm:$0x1]
        %v523 = vld [vmem:[%s3] sm:$0xff]
        %vm524 = vcmask 130048
        %v526 = vsel %vm524, %v523, 0
        %528 = vmatpush.msra.mxu0 0.0
        %529 = vmatpush.msra.mxu0 0.0
        %530 = vmatpush.msra.mxu0 0.0
        %531 = vmatpush.msra.mxu0 0.0
        %532 = vmatpush.msra.mxu0 0.0
        %533 = vmatpush.msra.mxu0 0.0
        %534 = vmatpush.msra.mxu0 0.0
        %535 = vmatpush.msra.mxu0 0.0
        %536 = vmatpush.msra.mxu0 0.0
        %537 = vmatpush.msra.mxu0 0.0
        %538 = vmatpush.msra.mxu0 0.0
        %539 = vmatpush.msra.mxu0 0.0
        %540 = vmatpush.msra.mxu0 0.0
        %541 = vmatpush.msra.mxu0 0.0
        %542 = vmatpush.msra.mxu0 %v521
        %543 = vmatpush.msra.mxu0 %v520
        %544 = vmatmul.f32.gmra.mxu0 %v526
        %v545 = vpop.f32.mrf.mxu0
        %v546 = vadd.f32 0.0, %v545
        %547 = vdwg.mxu0
        %v548 = vld [vmem:[%s4] sm:$0xff]
        %v549 = vld [vmem:[%s4 + $0x8] sm:$0xff]
        %v550 = vld [vmem:[%s4 + $0x10] sm:$0xff]
        %v551 = vld [vmem:[%s4 + $0x18] sm:$0xff]
        %vm552 = vcmask 261120
        %v554 = vsel %vm552, %v546, 0
        %556 = vmatpush.msra.mxu0 0.0
        %557 = vmatpush.msra.mxu0 0.0
        %558 = vmatpush.msra.mxu0 0.0
        %559 = vmatpush.msra.mxu0 0.0
        %560 = vmatpush.msra.mxu0 0.0
        %561 = vmatpush.msra.mxu0 0.0
        %562 = vmatpush.msra.mxu0 0.0
        %563 = vmatpush.msra.mxu0 0.0
        %564 = vmatpush.msra.mxu0 0.0
        %565 = vmatpush.msra.mxu0 0.0
        %566 = vmatpush.msra.mxu0 0.0
        %567 = vmatpush.msra.mxu0 0.0
        %568 = vmatpush.msra.mxu0 %v551
        %569 = vmatpush.msra.mxu0 %v550
        %570 = vmatpush.msra.mxu0 %v549
        %571 = vmatpush.msra.mxu0 %v548
        %572 = vmatmul.f32.gmra.mxu0 %v554
        %v573 = vpop.f32.mrf.mxu0
        %v574 = vadd.f32 0.0, %v573
        %575 = vdwg.mxu0
        %v577 = vperm.slane %v522, 0
        %v579 = vadd.f32 %v577, %v574
        %s580 = scalar_lea.vmem %s3, 8
        %v581 = vld [vmem:[%s580] sm:$0xff]
        %v583 = vsel %vm524, %v581, 0
        %585 = vmatpush.msra.mxu0 0.0
        %586 = vmatpush.msra.mxu0 0.0
        %587 = vmatpush.msra.mxu0 0.0
        %588 = vmatpush.msra.mxu0 0.0
        %589 = vmatpush.msra.mxu0 0.0
        %590 = vmatpush.msra.mxu0 0.0
        %591 = vmatpush.msra.mxu0 0.0
        %592 = vmatpush.msra.mxu0 0.0
        %593 = vmatpush.msra.mxu0 0.0
        %594 = vmatpush.msra.mxu0 0.0
        %595 = vmatpush.msra.mxu0 0.0
        %596 = vmatpush.msra.mxu0 0.0
        %597 = vmatpush.msra.mxu0 0.0
        %598 = vmatpush.msra.mxu0 0.0
        %599 = vmatpush.msra.mxu0 %v521
        %600 = vmatpush.msra.mxu0 %v520
        %601 = vmatmul.f32.gmra.mxu0 %v583
        %v602 = vpop.f32.mrf.mxu0
        %v603 = vadd.f32 0.0, %v602
        %604 = vdwg.mxu0
        %s605 = scalar_lea.vmem %s4, 32
        %v606 = vld [vmem:[%s605] sm:$0xff]
        %v607 = vld [vmem:[%s605 + $0x8] sm:$0xff]
        %v608 = vld [vmem:[%s605 + $0x10] sm:$0xff]
        %v609 = vld [vmem:[%s605 + $0x18] sm:$0xff]
        %v611 = vsel %vm552, %v603, 0
        %613 = vmatpush.msra.mxu0 0.0
        %614 = vmatpush.msra.mxu0 0.0
        %615 = vmatpush.msra.mxu0 0.0
        %616 = vmatpush.msra.mxu0 0.0
        %617 = vmatpush.msra.mxu0 0.0
        %618 = vmatpush.msra.mxu0 0.0
        %619 = vmatpush.msra.mxu0 0.0
        %620 = vmatpush.msra.mxu0 0.0
        %621 = vmatpush.msra.mxu0 0.0
        %622 = vmatpush.msra.mxu0 0.0
        %623 = vmatpush.msra.mxu0 0.0
        %624 = vmatpush.msra.mxu0 0.0
        %625 = vmatpush.msra.mxu0 %v609
        %626 = vmatpush.msra.mxu0 %v608
        %627 = vmatpush.msra.mxu0 %v607
        %628 = vmatpush.msra.mxu0 %v606
        %629 = vmatmul.f32.gmra.mxu0 %v611
        %v630 = vpop.f32.mrf.mxu0
        %v631 = vadd.f32 0.0, %v630
        %632 = vdwg.mxu0
        %v633 = vadd.f32 %v579, %v631
        %s634 = scalar_lea.vmem %s3, 16
        %v635 = vld [vmem:[%s634] sm:$0xff]
        %v637 = vsel %vm524, %v635, 0
        %639 = vmatpush.msra.mxu0 0.0
        %640 = vmatpush.msra.mxu0 0.0
        %641 = vmatpush.msra.mxu0 0.0
        %642 = vmatpush.msra.mxu0 0.0
        %643 = vmatpush.msra.mxu0 0.0
        %644 = vmatpush.msra.mxu0 0.0
        %645 = vmatpush.msra.mxu0 0.0
        %646 = vmatpush.msra.mxu0 0.0
        %647 = vmatpush.msra.mxu0 0.0
        %648 = vmatpush.msra.mxu0 0.0
        %649 = vmatpush.msra.mxu0 0.0
        %650 = vmatpush.msra.mxu0 0.0
        %651 = vmatpush.msra.mxu0 0.0
        %652 = vmatpush.msra.mxu0 0.0
        %653 = vmatpush.msra.mxu0 %v521
        %654 = vmatpush.msra.mxu0 %v520
        %655 = vmatmul.f32.gmra.mxu0 %v637
        %v656 = vpop.f32.mrf.mxu0
        %v657 = vadd.f32 0.0, %v656
        %658 = vdwg.mxu0
        %s659 = scalar_lea.vmem %s4, 64
        %v660 = vld [vmem:[%s659] sm:$0xff]
        %v661 = vld [vmem:[%s659 + $0x8] sm:$0xff]
        %v662 = vld [vmem:[%s659 + $0x10] sm:$0xff]
        %v663 = vld [vmem:[%s659 + $0x18] sm:$0xff]
        %v665 = vsel %vm552, %v657, 0
        %667 = vmatpush.msra.mxu0 0.0
        %668 = vmatpush.msra.mxu0 0.0
        %669 = vmatpush.msra.mxu0 0.0
        %670 = vmatpush.msra.mxu0 0.0
        %671 = vmatpush.msra.mxu0 0.0
        %672 = vmatpush.msra.mxu0 0.0
        %673 = vmatpush.msra.mxu0 0.0
        %674 = vmatpush.msra.mxu0 0.0
        %675 = vmatpush.msra.mxu0 0.0
        %676 = vmatpush.msra.mxu0 0.0
        %677 = vmatpush.msra.mxu0 0.0
        %678 = vmatpush.msra.mxu0 0.0
        %679 = vmatpush.msra.mxu0 %v663
        %680 = vmatpush.msra.mxu0 %v662
        %681 = vmatpush.msra.mxu0 %v661
        %682 = vmatpush.msra.mxu0 %v660
        %683 = vmatmul.f32.gmra.mxu0 %v665
        %v684 = vpop.f32.mrf.mxu0
        %v685 = vadd.f32 0.0, %v684
        %686 = vdwg.mxu0
        %v687 = vadd.f32 %v633, %v685
        %s688 = scalar_lea.vmem %s3, 24
        %v689 = vld [vmem:[%s688] sm:$0xff]
        %v691 = vsel %vm524, %v689, 0
        %693 = vmatpush.msra.mxu0 0.0
        %694 = vmatpush.msra.mxu0 0.0
        %695 = vmatpush.msra.mxu0 0.0
        %696 = vmatpush.msra.mxu0 0.0
        %697 = vmatpush.msra.mxu0 0.0
        %698 = vmatpush.msra.mxu0 0.0
        %699 = vmatpush.msra.mxu0 0.0
        %700 = vmatpush.msra.mxu0 0.0
        %701 = vmatpush.msra.mxu0 0.0
        %702 = vmatpush.msra.mxu0 0.0
        %703 = vmatpush.msra.mxu0 0.0
        %704 = vmatpush.msra.mxu0 0.0
        %705 = vmatpush.msra.mxu0 0.0
        %706 = vmatpush.msra.mxu0 0.0
        %707 = vmatpush.msra.mxu0 %v521
        %708 = vmatpush.msra.mxu0 %v520
        %709 = vmatmul.f32.gmra.mxu0 %v691
        %v710 = vpop.f32.mrf.mxu0
        %v711 = vadd.f32 0.0, %v710
        %712 = vdwg.mxu0
        %s713 = scalar_lea.vmem %s4, 96
        %v714 = vld [vmem:[%s713] sm:$0xff]
        %v715 = vld [vmem:[%s713 + $0x8] sm:$0xff]
        %v716 = vld [vmem:[%s713 + $0x10] sm:$0xff]
        %v717 = vld [vmem:[%s713 + $0x18] sm:$0xff]
        %v719 = vsel %vm552, %v711, 0
        %721 = vmatpush.msra.mxu0 0.0
        %722 = vmatpush.msra.mxu0 0.0
        %723 = vmatpush.msra.mxu0 0.0
        %724 = vmatpush.msra.mxu0 0.0
        %725 = vmatpush.msra.mxu0 0.0
        %726 = vmatpush.msra.mxu0 0.0
        %727 = vmatpush.msra.mxu0 0.0
        %728 = vmatpush.msra.mxu0 0.0
        %729 = vmatpush.msra.mxu0 0.0
        %730 = vmatpush.msra.mxu0 0.0
        %731 = vmatpush.msra.mxu0 0.0
        %732 = vmatpush.msra.mxu0 0.0
        %733 = vmatpush.msra.mxu0 %v717
        %734 = vmatpush.msra.mxu0 %v716
        %735 = vmatpush.msra.mxu0 %v715
        %736 = vmatpush.msra.mxu0 %v714
        %737 = vmatmul.f32.gmra.mxu0 %v719
        %v738 = vpop.f32.mrf.mxu0
        %v739 = vadd.f32 0.0, %v738
        %740 = vdwg.mxu0
        %v741 = vadd.f32 %v687, %v739
        %s742 = scalar_lea.vmem %s3, 32
        %v743 = vld [vmem:[%s742] sm:$0xff]
        %v745 = vsel %vm524, %v743, 0
        %747 = vmatpush.msra.mxu0 0.0
        %748 = vmatpush.msra.mxu0 0.0
        %749 = vmatpush.msra.mxu0 0.0
        %750 = vmatpush.msra.mxu0 0.0
        %751 = vmatpush.msra.mxu0 0.0
        %752 = vmatpush.msra.mxu0 0.0
        %753 = vmatpush.msra.mxu0 0.0
        %754 = vmatpush.msra.mxu0 0.0
        %755 = vmatpush.msra.mxu0 0.0
        %756 = vmatpush.msra.mxu0 0.0
        %757 = vmatpush.msra.mxu0 0.0
        %758 = vmatpush.msra.mxu0 0.0
        %759 = vmatpush.msra.mxu0 0.0
        %760 = vmatpush.msra.mxu0 0.0
        %761 = vmatpush.msra.mxu0 %v521
        %762 = vmatpush.msra.mxu0 %v520
        %763 = vmatmul.f32.gmra.mxu0 %v745
        %v764 = vpop.f32.mrf.mxu0
        %v765 = vadd.f32 0.0, %v764
        %766 = vdwg.mxu0
        %s767 = scalar_lea.vmem %s4, 128
        %v768 = vld [vmem:[%s767] sm:$0xff]
        %v769 = vld [vmem:[%s767 + $0x8] sm:$0xff]
        %v770 = vld [vmem:[%s767 + $0x10] sm:$0xff]
        %v771 = vld [vmem:[%s767 + $0x18] sm:$0xff]
        %v773 = vsel %vm552, %v765, 0
        %775 = vmatpush.msra.mxu0 0.0
        %776 = vmatpush.msra.mxu0 0.0
        %777 = vmatpush.msra.mxu0 0.0
        %778 = vmatpush.msra.mxu0 0.0
        %779 = vmatpush.msra.mxu0 0.0
        %780 = vmatpush.msra.mxu0 0.0
        %781 = vmatpush.msra.mxu0 0.0
        %782 = vmatpush.msra.mxu0 0.0
        %783 = vmatpush.msra.mxu0 0.0
        %784 = vmatpush.msra.mxu0 0.0
        %785 = vmatpush.msra.mxu0 0.0
        %786 = vmatpush.msra.mxu0 0.0
        %787 = vmatpush.msra.mxu0 %v771
        %788 = vmatpush.msra.mxu0 %v770
        %789 = vmatpush.msra.mxu0 %v769
        %790 = vmatpush.msra.mxu0 %v768
        %791 = vmatmul.f32.gmra.mxu0 %v773
        %v792 = vpop.f32.mrf.mxu0
        %v793 = vadd.f32 0.0, %v792
        %794 = vdwg.mxu0
        %v795 = vadd.f32 %v741, %v793
        %v796 = vmax.f32 %v795, 0.0
        %v797 = vld [vmem:[%s8] sm:$0x1f]
        %v798 = vld [vmem:[%s6] sm:$0x7]
        %vm799 = vcmask 64512
        %v801 = vsel %vm799, %v798, 0
        %803 = vmatpush.msra.mxu0 0.0
        %804 = vmatpush.msra.mxu0 0.0
        %805 = vmatpush.msra.mxu0 0.0
        %806 = vmatpush.msra.mxu0 0.0
        %807 = vmatpush.msra.mxu0 0.0
        %808 = vmatpush.msra.mxu0 0.0
        %809 = vmatpush.msra.mxu0 0.0
        %810 = vmatpush.msra.mxu0 0.0
        %811 = vmatpush.msra.mxu0 0.0
        %812 = vmatpush.msra.mxu0 0.0
        %813 = vmatpush.msra.mxu0 0.0
        %814 = vmatpush.msra.mxu0 0.0
        %815 = vmatpush.msra.mxu0 0.0
        %816 = vmatpush.msra.mxu0 0.0
        %817 = vmatpush.msra.mxu0 0.0
        %818 = vmatpush.msra.mxu0 %v796
        %819 = vmatmul.f32.gmra.mxu0 %v801
        %v820 = vpop.f32.mrf.mxu0
        %v821 = vadd.f32 0.0, %v820
        %822 = vdwg.mxu0
        %v823 = vld [vmem:[%s7] sm:$0xff]
        %v824 = vld [vmem:[%s7 + $0x8] sm:$0xff]
        %v825 = vld [vmem:[%s7 + $0x10] sm:$0xff]
        %v826 = vld [vmem:[%s7 + $0x18] sm:$0xff]
        %v827 = vld [vmem:[%s7 + $0x20] sm:$0xff]
        %v828 = vld [vmem:[%s7 + $0x28] sm:$0xff]
        %v829 = vld [vmem:[%s7 + $0x30] sm:$0xff]
        %v830 = vld [vmem:[%s7 + $0x38] sm:$0xff]
        %v831 = vld [vmem:[%s7 + $0x40] sm:$0xff]
        %v832 = vld [vmem:[%s7 + $0x48] sm:$0xff]
        %v833 = vld [vmem:[%s7 + $0x50] sm:$0xff]
        %v834 = vld [vmem:[%s7 + $0x58] sm:$0xff]
        %v835 = vld [vmem:[%s7 + $0x60] sm:$0xff]
        %v836 = vld [vmem:[%s7 + $0x68] sm:$0xff]
        %v837 = vld [vmem:[%s7 + $0x70] sm:$0xff]
        %v838 = vld [vmem:[%s7 + $0x78] sm:$0xff]
        %v839 = vld [vmem:[%s7 + $0x80] sm:$0xff]
        %v840 = vld [vmem:[%s7 + $0x88] sm:$0xff]
        %v841 = vld [vmem:[%s7 + $0x90] sm:$0xff]
        %v842 = vld [vmem:[%s7 + $0x98] sm:$0xff]
        %v843 = vld [vmem:[%s7 + $0xa0] sm:$0xff]
        %v844 = vld [vmem:[%s7 + $0xa8] sm:$0xff]
        %v845 = vld [vmem:[%s7 + $0xb0] sm:$0xff]
        %v846 = vld [vmem:[%s7 + $0xb8] sm:$0xff]
        %v847 = vld [vmem:[%s7 + $0xc0] sm:$0xff]
        %v848 = vld [vmem:[%s7 + $0xc8] sm:$0xff]
        %v849 = vld [vmem:[%s7 + $0xd0] sm:$0xff]
        %v850 = vld [vmem:[%s7 + $0xd8] sm:$0xff]
        %v851 = vld [vmem:[%s7 + $0xe0] sm:$0xff]
        %v852 = vld [vmem:[%s7 + $0xe8] sm:$0xff]
        %v853 = vld [vmem:[%s7 + $0xf0] sm:$0xff]
        %v854 = vld [vmem:[%s7 + $0xf8] sm:$0xff]
        %v855 = vld [vmem:[%s7 + $0x100] sm:$0xff]
        %v856 = vld [vmem:[%s7 + $0x108] sm:$0xff]
        %v857 = vld [vmem:[%s7 + $0x110] sm:$0xff]
        %v858 = vld [vmem:[%s7 + $0x118] sm:$0xff]
        %v859 = vld [vmem:[%s7 + $0x120] sm:$0xff]
        %v860 = vld [vmem:[%s7 + $0x128] sm:$0xff]
        %v861 = vld [vmem:[%s7 + $0x130] sm:$0xff]
        %v862 = vld [vmem:[%s7 + $0x138] sm:$0xff]
        %v863 = vld [vmem:[%s7 + $0x140] sm:$0xff]
        %v864 = vld [vmem:[%s7 + $0x148] sm:$0xff]
        %v865 = vld [vmem:[%s7 + $0x150] sm:$0xff]
        %v866 = vld [vmem:[%s7 + $0x158] sm:$0xff]
        %v867 = vld [vmem:[%s7 + $0x160] sm:$0xff]
        %v868 = vld [vmem:[%s7 + $0x168] sm:$0xff]
        %v869 = vld [vmem:[%s7 + $0x170] sm:$0xff]
        %v870 = vld [vmem:[%s7 + $0x178] sm:$0xff]
        %v871 = vld [vmem:[%s7 + $0x180] sm:$0xff]
        %v872 = vld [vmem:[%s7 + $0x188] sm:$0xff]
        %v873 = vld [vmem:[%s7 + $0x190] sm:$0xff]
        %v874 = vld [vmem:[%s7 + $0x198] sm:$0xff]
        %v875 = vld [vmem:[%s7 + $0x1a0] sm:$0xff]
        %v876 = vld [vmem:[%s7 + $0x1a8] sm:$0xff]
        %v877 = vld [vmem:[%s7 + $0x1b0] sm:$0xff]
        %v878 = vld [vmem:[%s7 + $0x1b8] sm:$0xff]
        %v879 = vld [vmem:[%s7 + $0x1c0] sm:$0xff]
        %v880 = vld [vmem:[%s7 + $0x1c8] sm:$0xff]
        %v881 = vld [vmem:[%s7 + $0x1d0] sm:$0xff]
        %v882 = vld [vmem:[%s7 + $0x1d8] sm:$0xff]
        %v883 = vld [vmem:[%s7 + $0x1e0] sm:$0xff]
        %v884 = vld [vmem:[%s7 + $0x1e8] sm:$0xff]
        %v885 = vld [vmem:[%s7 + $0x1f0] sm:$0xff]
        %v886 = vld [vmem:[%s7 + $0x1f8] sm:$0xff]
        %v887 = vld [vmem:[%s7 + $0x200] sm:$0xff]
        %v888 = vld [vmem:[%s7 + $0x208] sm:$0xff]
        %v889 = vld [vmem:[%s7 + $0x210] sm:$0xff]
        %v890 = vld [vmem:[%s7 + $0x218] sm:$0xff]
        %v891 = vld [vmem:[%s7 + $0x220] sm:$0xff]
        %v892 = vld [vmem:[%s7 + $0x228] sm:$0xff]
        %v893 = vld [vmem:[%s7 + $0x230] sm:$0xff]
        %v894 = vld [vmem:[%s7 + $0x238] sm:$0xff]
        %v895 = vld [vmem:[%s7 + $0x240] sm:$0xff]
        %v896 = vld [vmem:[%s7 + $0x248] sm:$0xff]
        %v897 = vld [vmem:[%s7 + $0x250] sm:$0xff]
        %v898 = vld [vmem:[%s7 + $0x258] sm:$0xff]
        %v899 = vld [vmem:[%s7 + $0x260] sm:$0xff]
        %v900 = vld [vmem:[%s7 + $0x268] sm:$0xff]
        %v901 = vld [vmem:[%s7 + $0x270] sm:$0xff]
        %v902 = vld [vmem:[%s7 + $0x278] sm:$0xff]
        %903 = vmatpush.msra.mxu0 %v898
        %904 = vmatpush.msra.mxu0 %v893
        %905 = vmatpush.msra.mxu0 %v888
        %906 = vmatpush.msra.mxu0 %v883
        %907 = vmatpush.msra.mxu0 %v878
        %908 = vmatpush.msra.mxu0 %v873
        %909 = vmatpush.msra.mxu0 %v868
        %910 = vmatpush.msra.mxu0 %v863
        %911 = vmatpush.msra.mxu0 %v858
        %912 = vmatpush.msra.mxu0 %v853
        %913 = vmatpush.msra.mxu0 %v848
        %914 = vmatpush.msra.mxu0 %v843
        %915 = vmatpush.msra.mxu0 %v838
        %916 = vmatpush.msra.mxu0 %v833
        %917 = vmatpush.msra.mxu0 %v828
        %918 = vmatpush.msra.mxu0 %v823
        %919 = vmatmul.f32.gmra.mxu0 %v821
        %v920 = vpop.f32.mrf.mxu0
        %v921 = vadd.f32 0.0, %v920
        %922 = vdwg.mxu0
        %923 = vmatpush.msra.mxu0 %v899
        %924 = vmatpush.msra.mxu0 %v894
        %925 = vmatpush.msra.mxu0 %v889
        %926 = vmatpush.msra.mxu0 %v884
        %927 = vmatpush.msra.mxu0 %v879
        %928 = vmatpush.msra.mxu0 %v874
        %929 = vmatpush.msra.mxu0 %v869
        %930 = vmatpush.msra.mxu0 %v864
        %931 = vmatpush.msra.mxu0 %v859
        %932 = vmatpush.msra.mxu0 %v854
        %933 = vmatpush.msra.mxu0 %v849
        %934 = vmatpush.msra.mxu0 %v844
        %935 = vmatpush.msra.mxu0 %v839
        %936 = vmatpush.msra.mxu0 %v834
        %937 = vmatpush.msra.mxu0 %v829
        %938 = vmatpush.msra.mxu0 %v824
        %939 = vmatmul.f32.gmra.mxu0 %v821
        %v940 = vpop.f32.mrf.mxu0
        %v941 = vadd.f32 0.0, %v940
        %942 = vdwg.mxu0
        %943 = vmatpush.msra.mxu0 %v900
        %944 = vmatpush.msra.mxu0 %v895
        %945 = vmatpush.msra.mxu0 %v890
        %946 = vmatpush.msra.mxu0 %v885
        %947 = vmatpush.msra.mxu0 %v880
        %948 = vmatpush.msra.mxu0 %v875
        %949 = vmatpush.msra.mxu0 %v870
        %950 = vmatpush.msra.mxu0 %v865
        %951 = vmatpush.msra.mxu0 %v860
        %952 = vmatpush.msra.mxu0 %v855
        %953 = vmatpush.msra.mxu0 %v850
        %954 = vmatpush.msra.mxu0 %v845
        %955 = vmatpush.msra.mxu0 %v840
        %956 = vmatpush.msra.mxu0 %v835
        %957 = vmatpush.msra.mxu0 %v830
        %958 = vmatpush.msra.mxu0 %v825
        %959 = vmatmul.f32.gmra.mxu0 %v821
        %v960 = vpop.f32.mrf.mxu0
        %v961 = vadd.f32 0.0, %v960
        %962 = vdwg.mxu0
        %963 = vmatpush.msra.mxu0 %v901
        %964 = vmatpush.msra.mxu0 %v896
        %965 = vmatpush.msra.mxu0 %v891
        %966 = vmatpush.msra.mxu0 %v886
        %967 = vmatpush.msra.mxu0 %v881
        %968 = vmatpush.msra.mxu0 %v876
        %969 = vmatpush.msra.mxu0 %v871
        %970 = vmatpush.msra.mxu0 %v866
        %971 = vmatpush.msra.mxu0 %v861
        %972 = vmatpush.msra.mxu0 %v856
        %973 = vmatpush.msra.mxu0 %v851
        %974 = vmatpush.msra.mxu0 %v846
        %975 = vmatpush.msra.mxu0 %v841
        %976 = vmatpush.msra.mxu0 %v836
        %977 = vmatpush.msra.mxu0 %v831
        %978 = vmatpush.msra.mxu0 %v826
        %979 = vmatmul.f32.gmra.mxu0 %v821
        %v980 = vpop.f32.mrf.mxu0
        %v981 = vadd.f32 0.0, %v980
        %982 = vdwg.mxu0
        %983 = vmatpush.msra.mxu0 %v902
        %984 = vmatpush.msra.mxu0 %v897
        %985 = vmatpush.msra.mxu0 %v892
        %986 = vmatpush.msra.mxu0 %v887
        %987 = vmatpush.msra.mxu0 %v882
        %988 = vmatpush.msra.mxu0 %v877
        %989 = vmatpush.msra.mxu0 %v872
        %990 = vmatpush.msra.mxu0 %v867
        %991 = vmatpush.msra.mxu0 %v862
        %992 = vmatpush.msra.mxu0 %v857
        %993 = vmatpush.msra.mxu0 %v852
        %994 = vmatpush.msra.mxu0 %v847
        %995 = vmatpush.msra.mxu0 %v842
        %996 = vmatpush.msra.mxu0 %v837
        %997 = vmatpush.msra.mxu0 %v832
        %998 = vmatpush.msra.mxu0 %v827
        %999 = vmatmul.f32.gmra.mxu0 %v821
        %v1000 = vpop.f32.mrf.mxu0
        %v1001 = vadd.f32 0.0, %v1000
        %1002 = vdwg.mxu0
        %v1004 = vperm.slane %v797, 0
        %v1005 = vperm.slane %v797, 1
        %v1006 = vperm.slane %v797, 2
        %v1007 = vperm.slane %v797, 3
        %v1008 = vperm.slane %v797, 4
        %v1014 = vadd.f32 %v1004, %v921
        %v1015 = vadd.f32 %v1005, %v941
        %v1016 = vadd.f32 %v1006, %v961
        %v1017 = vadd.f32 %v1007, %v981
        %v1018 = vadd.f32 %v1008, %v1001
        %s1019 = scalar_lea.vmem %s6, 4
        %v1020 = vld [vmem:[%s1019] sm:$0x7]
        %v1022 = vsel %vm799, %v1020, 0
        %1024 = vmatpush.msra.mxu0 0.0
        %1025 = vmatpush.msra.mxu0 0.0
        %1026 = vmatpush.msra.mxu0 0.0
        %1027 = vmatpush.msra.mxu0 0.0
        %1028 = vmatpush.msra.mxu0 0.0
        %1029 = vmatpush.msra.mxu0 0.0
        %1030 = vmatpush.msra.mxu0 0.0
        %1031 = vmatpush.msra.mxu0 0.0
        %1032 = vmatpush.msra.mxu0 0.0
        %1033 = vmatpush.msra.mxu0 0.0
        %1034 = vmatpush.msra.mxu0 0.0
        %1035 = vmatpush.msra.mxu0 0.0
        %1036 = vmatpush.msra.mxu0 0.0
        %1037 = vmatpush.msra.mxu0 0.0
        %1038 = vmatpush.msra.mxu0 0.0
        %1039 = vmatpush.msra.mxu0 %v796
        %1040 = vmatmul.f32.gmra.mxu0 %v1022
        %v1041 = vpop.f32.mrf.mxu0
        %v1042 = vadd.f32 0.0, %v1041
        %1043 = vdwg.mxu0
        %s1044 = scalar_lea.vmem %s7, 640
        %v1045 = vld [vmem:[%s1044] sm:$0xff]
        %v1046 = vld [vmem:[%s1044 + $0x8] sm:$0xff]
        %v1047 = vld [vmem:[%s1044 + $0x10] sm:$0xff]
        %v1048 = vld [vmem:[%s1044 + $0x18] sm:$0xff]
        %v1049 = vld [vmem:[%s1044 + $0x20] sm:$0xff]
        %v1050 = vld [vmem:[%s1044 + $0x28] sm:$0xff]
        %v1051 = vld [vmem:[%s1044 + $0x30] sm:$0xff]
        %v1052 = vld [vmem:[%s1044 + $0x38] sm:$0xff]
        %v1053 = vld [vmem:[%s1044 + $0x40] sm:$0xff]
        %v1054 = vld [vmem:[%s1044 + $0x48] sm:$0xff]
        %v1055 = vld [vmem:[%s1044 + $0x50] sm:$0xff]
        %v1056 = vld [vmem:[%s1044 + $0x58] sm:$0xff]
        %v1057 = vld [vmem:[%s1044 + $0x60] sm:$0xff]
        %v1058 = vld [vmem:[%s1044 + $0x68] sm:$0xff]
        %v1059 = vld [vmem:[%s1044 + $0x70] sm:$0xff]
        %v1060 = vld [vmem:[%s1044 + $0x78] sm:$0xff]
        %v1061 = vld [vmem:[%s1044 + $0x80] sm:$0xff]
        %v1062 = vld [vmem:[%s1044 + $0x88] sm:$0xff]
        %v1063 = vld [vmem:[%s1044 + $0x90] sm:$0xff]
        %v1064 = vld [vmem:[%s1044 + $0x98] sm:$0xff]
        %v1065 = vld [vmem:[%s1044 + $0xa0] sm:$0xff]
        %v1066 = vld [vmem:[%s1044 + $0xa8] sm:$0xff]
        %v1067 = vld [vmem:[%s1044 + $0xb0] sm:$0xff]
        %v1068 = vld [vmem:[%s1044 + $0xb8] sm:$0xff]
        %v1069 = vld [vmem:[%s1044 + $0xc0] sm:$0xff]
        %v1070 = vld [vmem:[%s1044 + $0xc8] sm:$0xff]
        %v1071 = vld [vmem:[%s1044 + $0xd0] sm:$0xff]
        %v1072 = vld [vmem:[%s1044 + $0xd8] sm:$0xff]
        %v1073 = vld [vmem:[%s1044 + $0xe0] sm:$0xff]
        %v1074 = vld [vmem:[%s1044 + $0xe8] sm:$0xff]
        %v1075 = vld [vmem:[%s1044 + $0xf0] sm:$0xff]
        %v1076 = vld [vmem:[%s1044 + $0xf8] sm:$0xff]
        %v1077 = vld [vmem:[%s1044 + $0x100] sm:$0xff]
        %v1078 = vld [vmem:[%s1044 + $0x108] sm:$0xff]
        %v1079 = vld [vmem:[%s1044 + $0x110] sm:$0xff]
        %v1080 = vld [vmem:[%s1044 + $0x118] sm:$0xff]
        %v1081 = vld [vmem:[%s1044 + $0x120] sm:$0xff]
        %v1082 = vld [vmem:[%s1044 + $0x128] sm:$0xff]
        %v1083 = vld [vmem:[%s1044 + $0x130] sm:$0xff]
        %v1084 = vld [vmem:[%s1044 + $0x138] sm:$0xff]
        %v1085 = vld [vmem:[%s1044 + $0x140] sm:$0xff]
        %v1086 = vld [vmem:[%s1044 + $0x148] sm:$0xff]
        %v1087 = vld [vmem:[%s1044 + $0x150] sm:$0xff]
        %v1088 = vld [vmem:[%s1044 + $0x158] sm:$0xff]
        %v1089 = vld [vmem:[%s1044 + $0x160] sm:$0xff]
        %v1090 = vld [vmem:[%s1044 + $0x168] sm:$0xff]
        %v1091 = vld [vmem:[%s1044 + $0x170] sm:$0xff]
        %v1092 = vld [vmem:[%s1044 + $0x178] sm:$0xff]
        %v1093 = vld [vmem:[%s1044 + $0x180] sm:$0xff]
        %v1094 = vld [vmem:[%s1044 + $0x188] sm:$0xff]
        %v1095 = vld [vmem:[%s1044 + $0x190] sm:$0xff]
        %v1096 = vld [vmem:[%s1044 + $0x198] sm:$0xff]
        %v1097 = vld [vmem:[%s1044 + $0x1a0] sm:$0xff]
        %v1098 = vld [vmem:[%s1044 + $0x1a8] sm:$0xff]
        %v1099 = vld [vmem:[%s1044 + $0x1b0] sm:$0xff]
        %v1100 = vld [vmem:[%s1044 + $0x1b8] sm:$0xff]
        %v1101 = vld [vmem:[%s1044 + $0x1c0] sm:$0xff]
        %v1102 = vld [vmem:[%s1044 + $0x1c8] sm:$0xff]
        %v1103 = vld [vmem:[%s1044 + $0x1d0] sm:$0xff]
        %v1104 = vld [vmem:[%s1044 + $0x1d8] sm:$0xff]
        %v1105 = vld [vmem:[%s1044 + $0x1e0] sm:$0xff]
        %v1106 = vld [vmem:[%s1044 + $0x1e8] sm:$0xff]
        %v1107 = vld [vmem:[%s1044 + $0x1f0] sm:$0xff]
        %v1108 = vld [vmem:[%s1044 + $0x1f8] sm:$0xff]
        %v1109 = vld [vmem:[%s1044 + $0x200] sm:$0xff]
        %v1110 = vld [vmem:[%s1044 + $0x208] sm:$0xff]
        %v1111 = vld [vmem:[%s1044 + $0x210] sm:$0xff]
        %v1112 = vld [vmem:[%s1044 + $0x218] sm:$0xff]
        %v1113 = vld [vmem:[%s1044 + $0x220] sm:$0xff]
        %v1114 = vld [vmem:[%s1044 + $0x228] sm:$0xff]
        %v1115 = vld [vmem:[%s1044 + $0x230] sm:$0xff]
        %v1116 = vld [vmem:[%s1044 + $0x238] sm:$0xff]
        %v1117 = vld [vmem:[%s1044 + $0x240] sm:$0xff]
        %v1118 = vld [vmem:[%s1044 + $0x248] sm:$0xff]
        %v1119 = vld [vmem:[%s1044 + $0x250] sm:$0xff]
        %v1120 = vld [vmem:[%s1044 + $0x258] sm:$0xff]
        %v1121 = vld [vmem:[%s1044 + $0x260] sm:$0xff]
        %v1122 = vld [vmem:[%s1044 + $0x268] sm:$0xff]
        %v1123 = vld [vmem:[%s1044 + $0x270] sm:$0xff]
        %v1124 = vld [vmem:[%s1044 + $0x278] sm:$0xff]
        %1125 = vmatpush.msra.mxu0 %v1120
        %1126 = vmatpush.msra.mxu0 %v1115
        %1127 = vmatpush.msra.mxu0 %v1110
        %1128 = vmatpush.msra.mxu0 %v1105
        %1129 = vmatpush.msra.mxu0 %v1100
        %1130 = vmatpush.msra.mxu0 %v1095
        %1131 = vmatpush.msra.mxu0 %v1090
        %1132 = vmatpush.msra.mxu0 %v1085
        %1133 = vmatpush.msra.mxu0 %v1080
        %1134 = vmatpush.msra.mxu0 %v1075
        %1135 = vmatpush.msra.mxu0 %v1070
        %1136 = vmatpush.msra.mxu0 %v1065
        %1137 = vmatpush.msra.mxu0 %v1060
        %1138 = vmatpush.msra.mxu0 %v1055
        %1139 = vmatpush.msra.mxu0 %v1050
        %1140 = vmatpush.msra.mxu0 %v1045
        %1141 = vmatmul.f32.gmra.mxu0 %v1042
        %v1142 = vpop.f32.mrf.mxu0
        %v1143 = vadd.f32 0.0, %v1142
        %1144 = vdwg.mxu0
        %1145 = vmatpush.msra.mxu0 %v1121
        %1146 = vmatpush.msra.mxu0 %v1116
        %1147 = vmatpush.msra.mxu0 %v1111
        %1148 = vmatpush.msra.mxu0 %v1106
        %1149 = vmatpush.msra.mxu0 %v1101
        %1150 = vmatpush.msra.mxu0 %v1096
        %1151 = vmatpush.msra.mxu0 %v1091
        %1152 = vmatpush.msra.mxu0 %v1086
        %1153 = vmatpush.msra.mxu0 %v1081
        %1154 = vmatpush.msra.mxu0 %v1076
        %1155 = vmatpush.msra.mxu0 %v1071
        %1156 = vmatpush.msra.mxu0 %v1066
        %1157 = vmatpush.msra.mxu0 %v1061
        %1158 = vmatpush.msra.mxu0 %v1056
        %1159 = vmatpush.msra.mxu0 %v1051
        %1160 = vmatpush.msra.mxu0 %v1046
        %1161 = vmatmul.f32.gmra.mxu0 %v1042
        %v1162 = vpop.f32.mrf.mxu0
        %v1163 = vadd.f32 0.0, %v1162
        %1164 = vdwg.mxu0
        %1165 = vmatpush.msra.mxu0 %v1122
        %1166 = vmatpush.msra.mxu0 %v1117
        %1167 = vmatpush.msra.mxu0 %v1112
        %1168 = vmatpush.msra.mxu0 %v1107
        %1169 = vmatpush.msra.mxu0 %v1102
        %1170 = vmatpush.msra.mxu0 %v1097
        %1171 = vmatpush.msra.mxu0 %v1092
        %1172 = vmatpush.msra.mxu0 %v1087
        %1173 = vmatpush.msra.mxu0 %v1082
        %1174 = vmatpush.msra.mxu0 %v1077
        %1175 = vmatpush.msra.mxu0 %v1072
        %1176 = vmatpush.msra.mxu0 %v1067
        %1177 = vmatpush.msra.mxu0 %v1062
        %1178 = vmatpush.msra.mxu0 %v1057
        %1179 = vmatpush.msra.mxu0 %v1052
        %1180 = vmatpush.msra.mxu0 %v1047
        %1181 = vmatmul.f32.gmra.mxu0 %v1042
        %v1182 = vpop.f32.mrf.mxu0
        %v1183 = vadd.f32 0.0, %v1182
        %1184 = vdwg.mxu0
        %1185 = vmatpush.msra.mxu0 %v1123
        %1186 = vmatpush.msra.mxu0 %v1118
        %1187 = vmatpush.msra.mxu0 %v1113
        %1188 = vmatpush.msra.mxu0 %v1108
        %1189 = vmatpush.msra.mxu0 %v1103
        %1190 = vmatpush.msra.mxu0 %v1098
        %1191 = vmatpush.msra.mxu0 %v1093
        %1192 = vmatpush.msra.mxu0 %v1088
        %1193 = vmatpush.msra.mxu0 %v1083
        %1194 = vmatpush.msra.mxu0 %v1078
        %1195 = vmatpush.msra.mxu0 %v1073
        %1196 = vmatpush.msra.mxu0 %v1068
        %1197 = vmatpush.msra.mxu0 %v1063
        %1198 = vmatpush.msra.mxu0 %v1058
        %1199 = vmatpush.msra.mxu0 %v1053
        %1200 = vmatpush.msra.mxu0 %v1048
        %1201 = vmatmul.f32.gmra.mxu0 %v1042
        %v1202 = vpop.f32.mrf.mxu0
        %v1203 = vadd.f32 0.0, %v1202
        %1204 = vdwg.mxu0
        %1205 = vmatpush.msra.mxu0 %v1124
        %1206 = vmatpush.msra.mxu0 %v1119
        %1207 = vmatpush.msra.mxu0 %v1114
        %1208 = vmatpush.msra.mxu0 %v1109
        %1209 = vmatpush.msra.mxu0 %v1104
        %1210 = vmatpush.msra.mxu0 %v1099
        %1211 = vmatpush.msra.mxu0 %v1094
        %1212 = vmatpush.msra.mxu0 %v1089
        %1213 = vmatpush.msra.mxu0 %v1084
        %1214 = vmatpush.msra.mxu0 %v1079
        %1215 = vmatpush.msra.mxu0 %v1074
        %1216 = vmatpush.msra.mxu0 %v1069
        %1217 = vmatpush.msra.mxu0 %v1064
        %1218 = vmatpush.msra.mxu0 %v1059
        %1219 = vmatpush.msra.mxu0 %v1054
        %1220 = vmatpush.msra.mxu0 %v1049
        %1221 = vmatmul.f32.gmra.mxu0 %v1042
        %v1222 = vpop.f32.mrf.mxu0
        %v1223 = vadd.f32 0.0, %v1222
        %1224 = vdwg.mxu0
        %v1225 = vadd.f32 %v1014, %v1143
        %v1226 = vadd.f32 %v1015, %v1163
        %v1227 = vadd.f32 %v1016, %v1183
        %v1228 = vadd.f32 %v1017, %v1203
        %v1229 = vadd.f32 %v1018, %v1223
        %s1230 = scalar_lea.vmem %s6, 8
        %v1231 = vld [vmem:[%s1230] sm:$0x7]
        %v1233 = vsel %vm799, %v1231, 0
        %1235 = vmatpush.msra.mxu0 0.0
        %1236 = vmatpush.msra.mxu0 0.0
        %1237 = vmatpush.msra.mxu0 0.0
        %1238 = vmatpush.msra.mxu0 0.0
        %1239 = vmatpush.msra.mxu0 0.0
        %1240 = vmatpush.msra.mxu0 0.0
        %1241 = vmatpush.msra.mxu0 0.0
        %1242 = vmatpush.msra.mxu0 0.0
        %1243 = vmatpush.msra.mxu0 0.0
        %1244 = vmatpush.msra.mxu0 0.0
        %1245 = vmatpush.msra.mxu0 0.0
        %1246 = vmatpush.msra.mxu0 0.0
        %1247 = vmatpush.msra.mxu0 0.0
        %1248 = vmatpush.msra.mxu0 0.0
        %1249 = vmatpush.msra.mxu0 0.0
        %1250 = vmatpush.msra.mxu0 %v796
        %1251 = vmatmul.f32.gmra.mxu0 %v1233
        %v1252 = vpop.f32.mrf.mxu0
        %v1253 = vadd.f32 0.0, %v1252
        %1254 = vdwg.mxu0
        %s1255 = scalar_lea.vmem %s7, 1280
        %v1256 = vld [vmem:[%s1255] sm:$0xff]
        %v1257 = vld [vmem:[%s1255 + $0x8] sm:$0xff]
        %v1258 = vld [vmem:[%s1255 + $0x10] sm:$0xff]
        %v1259 = vld [vmem:[%s1255 + $0x18] sm:$0xff]
        %v1260 = vld [vmem:[%s1255 + $0x20] sm:$0xff]
        %v1261 = vld [vmem:[%s1255 + $0x28] sm:$0xff]
        %v1262 = vld [vmem:[%s1255 + $0x30] sm:$0xff]
        %v1263 = vld [vmem:[%s1255 + $0x38] sm:$0xff]
        %v1264 = vld [vmem:[%s1255 + $0x40] sm:$0xff]
        %v1265 = vld [vmem:[%s1255 + $0x48] sm:$0xff]
        %v1266 = vld [vmem:[%s1255 + $0x50] sm:$0xff]
        %v1267 = vld [vmem:[%s1255 + $0x58] sm:$0xff]
        %v1268 = vld [vmem:[%s1255 + $0x60] sm:$0xff]
        %v1269 = vld [vmem:[%s1255 + $0x68] sm:$0xff]
        %v1270 = vld [vmem:[%s1255 + $0x70] sm:$0xff]
        %v1271 = vld [vmem:[%s1255 + $0x78] sm:$0xff]
        %v1272 = vld [vmem:[%s1255 + $0x80] sm:$0xff]
        %v1273 = vld [vmem:[%s1255 + $0x88] sm:$0xff]
        %v1274 = vld [vmem:[%s1255 + $0x90] sm:$0xff]
        %v1275 = vld [vmem:[%s1255 + $0x98] sm:$0xff]
        %v1276 = vld [vmem:[%s1255 + $0xa0] sm:$0xff]
        %v1277 = vld [vmem:[%s1255 + $0xa8] sm:$0xff]
        %v1278 = vld [vmem:[%s1255 + $0xb0] sm:$0xff]
        %v1279 = vld [vmem:[%s1255 + $0xb8] sm:$0xff]
        %v1280 = vld [vmem:[%s1255 + $0xc0] sm:$0xff]
        %v1281 = vld [vmem:[%s1255 + $0xc8] sm:$0xff]
        %v1282 = vld [vmem:[%s1255 + $0xd0] sm:$0xff]
        %v1283 = vld [vmem:[%s1255 + $0xd8] sm:$0xff]
        %v1284 = vld [vmem:[%s1255 + $0xe0] sm:$0xff]
        %v1285 = vld [vmem:[%s1255 + $0xe8] sm:$0xff]
        %v1286 = vld [vmem:[%s1255 + $0xf0] sm:$0xff]
        %v1287 = vld [vmem:[%s1255 + $0xf8] sm:$0xff]
        %v1288 = vld [vmem:[%s1255 + $0x100] sm:$0xff]
        %v1289 = vld [vmem:[%s1255 + $0x108] sm:$0xff]
        %v1290 = vld [vmem:[%s1255 + $0x110] sm:$0xff]
        %v1291 = vld [vmem:[%s1255 + $0x118] sm:$0xff]
        %v1292 = vld [vmem:[%s1255 + $0x120] sm:$0xff]
        %v1293 = vld [vmem:[%s1255 + $0x128] sm:$0xff]
        %v1294 = vld [vmem:[%s1255 + $0x130] sm:$0xff]
        %v1295 = vld [vmem:[%s1255 + $0x138] sm:$0xff]
        %v1296 = vld [vmem:[%s1255 + $0x140] sm:$0xff]
        %v1297 = vld [vmem:[%s1255 + $0x148] sm:$0xff]
        %v1298 = vld [vmem:[%s1255 + $0x150] sm:$0xff]
        %v1299 = vld [vmem:[%s1255 + $0x158] sm:$0xff]
        %v1300 = vld [vmem:[%s1255 + $0x160] sm:$0xff]
        %v1301 = vld [vmem:[%s1255 + $0x168] sm:$0xff]
        %v1302 = vld [vmem:[%s1255 + $0x170] sm:$0xff]
        %v1303 = vld [vmem:[%s1255 + $0x178] sm:$0xff]
        %v1304 = vld [vmem:[%s1255 + $0x180] sm:$0xff]
        %v1305 = vld [vmem:[%s1255 + $0x188] sm:$0xff]
        %v1306 = vld [vmem:[%s1255 + $0x190] sm:$0xff]
        %v1307 = vld [vmem:[%s1255 + $0x198] sm:$0xff]
        %v1308 = vld [vmem:[%s1255 + $0x1a0] sm:$0xff]
        %v1309 = vld [vmem:[%s1255 + $0x1a8] sm:$0xff]
        %v1310 = vld [vmem:[%s1255 + $0x1b0] sm:$0xff]
        %v1311 = vld [vmem:[%s1255 + $0x1b8] sm:$0xff]
        %v1312 = vld [vmem:[%s1255 + $0x1c0] sm:$0xff]
        %v1313 = vld [vmem:[%s1255 + $0x1c8] sm:$0xff]
        %v1314 = vld [vmem:[%s1255 + $0x1d0] sm:$0xff]
        %v1315 = vld [vmem:[%s1255 + $0x1d8] sm:$0xff]
        %v1316 = vld [vmem:[%s1255 + $0x1e0] sm:$0xff]
        %v1317 = vld [vmem:[%s1255 + $0x1e8] sm:$0xff]
        %v1318 = vld [vmem:[%s1255 + $0x1f0] sm:$0xff]
        %v1319 = vld [vmem:[%s1255 + $0x1f8] sm:$0xff]
        %v1320 = vld [vmem:[%s1255 + $0x200] sm:$0xff]
        %v1321 = vld [vmem:[%s1255 + $0x208] sm:$0xff]
        %v1322 = vld [vmem:[%s1255 + $0x210] sm:$0xff]
        %v1323 = vld [vmem:[%s1255 + $0x218] sm:$0xff]
        %v1324 = vld [vmem:[%s1255 + $0x220] sm:$0xff]
        %v1325 = vld [vmem:[%s1255 + $0x228] sm:$0xff]
        %v1326 = vld [vmem:[%s1255 + $0x230] sm:$0xff]
        %v1327 = vld [vmem:[%s1255 + $0x238] sm:$0xff]
        %v1328 = vld [vmem:[%s1255 + $0x240] sm:$0xff]
        %v1329 = vld [vmem:[%s1255 + $0x248] sm:$0xff]
        %v1330 = vld [vmem:[%s1255 + $0x250] sm:$0xff]
        %v1331 = vld [vmem:[%s1255 + $0x258] sm:$0xff]
        %v1332 = vld [vmem:[%s1255 + $0x260] sm:$0xff]
        %v1333 = vld [vmem:[%s1255 + $0x268] sm:$0xff]
        %v1334 = vld [vmem:[%s1255 + $0x270] sm:$0xff]
        %v1335 = vld [vmem:[%s1255 + $0x278] sm:$0xff]
        %1336 = vmatpush.msra.mxu0 %v1331
        %1337 = vmatpush.msra.mxu0 %v1326
        %1338 = vmatpush.msra.mxu0 %v1321
        %1339 = vmatpush.msra.mxu0 %v1316
        %1340 = vmatpush.msra.mxu0 %v1311
        %1341 = vmatpush.msra.mxu0 %v1306
        %1342 = vmatpush.msra.mxu0 %v1301
        %1343 = vmatpush.msra.mxu0 %v1296
        %1344 = vmatpush.msra.mxu0 %v1291
        %1345 = vmatpush.msra.mxu0 %v1286
        %1346 = vmatpush.msra.mxu0 %v1281
        %1347 = vmatpush.msra.mxu0 %v1276
        %1348 = vmatpush.msra.mxu0 %v1271
        %1349 = vmatpush.msra.mxu0 %v1266
        %1350 = vmatpush.msra.mxu0 %v1261
        %1351 = vmatpush.msra.mxu0 %v1256
        %1352 = vmatmul.f32.gmra.mxu0 %v1253
        %v1353 = vpop.f32.mrf.mxu0
        %v1354 = vadd.f32 0.0, %v1353
        %1355 = vdwg.mxu0
        %1356 = vmatpush.msra.mxu0 %v1332
        %1357 = vmatpush.msra.mxu0 %v1327
        %1358 = vmatpush.msra.mxu0 %v1322
        %1359 = vmatpush.msra.mxu0 %v1317
        %1360 = vmatpush.msra.mxu0 %v1312
        %1361 = vmatpush.msra.mxu0 %v1307
        %1362 = vmatpush.msra.mxu0 %v1302
        %1363 = vmatpush.msra.mxu0 %v1297
        %1364 = vmatpush.msra.mxu0 %v1292
        %1365 = vmatpush.msra.mxu0 %v1287
        %1366 = vmatpush.msra.mxu0 %v1282
        %1367 = vmatpush.msra.mxu0 %v1277
        %1368 = vmatpush.msra.mxu0 %v1272
        %1369 = vmatpush.msra.mxu0 %v1267
        %1370 = vmatpush.msra.mxu0 %v1262
        %1371 = vmatpush.msra.mxu0 %v1257
        %1372 = vmatmul.f32.gmra.mxu0 %v1253
        %v1373 = vpop.f32.mrf.mxu0
        %v1374 = vadd.f32 0.0, %v1373
        %1375 = vdwg.mxu0
        %1376 = vmatpush.msra.mxu0 %v1333
        %1377 = vmatpush.msra.mxu0 %v1328
        %1378 = vmatpush.msra.mxu0 %v1323
        %1379 = vmatpush.msra.mxu0 %v1318
        %1380 = vmatpush.msra.mxu0 %v1313
        %1381 = vmatpush.msra.mxu0 %v1308
        %1382 = vmatpush.msra.mxu0 %v1303
        %1383 = vmatpush.msra.mxu0 %v1298
        %1384 = vmatpush.msra.mxu0 %v1293
        %1385 = vmatpush.msra.mxu0 %v1288
        %1386 = vmatpush.msra.mxu0 %v1283
        %1387 = vmatpush.msra.mxu0 %v1278
        %1388 = vmatpush.msra.mxu0 %v1273
        %1389 = vmatpush.msra.mxu0 %v1268
        %1390 = vmatpush.msra.mxu0 %v1263
        %1391 = vmatpush.msra.mxu0 %v1258
        %1392 = vmatmul.f32.gmra.mxu0 %v1253
        %v1393 = vpop.f32.mrf.mxu0
        %v1394 = vadd.f32 0.0, %v1393
        %1395 = vdwg.mxu0
        %1396 = vmatpush.msra.mxu0 %v1334
        %1397 = vmatpush.msra.mxu0 %v1329
        %1398 = vmatpush.msra.mxu0 %v1324
        %1399 = vmatpush.msra.mxu0 %v1319
        %1400 = vmatpush.msra.mxu0 %v1314
        %1401 = vmatpush.msra.mxu0 %v1309
        %1402 = vmatpush.msra.mxu0 %v1304
        %1403 = vmatpush.msra.mxu0 %v1299
        %1404 = vmatpush.msra.mxu0 %v1294
        %1405 = vmatpush.msra.mxu0 %v1289
        %1406 = vmatpush.msra.mxu0 %v1284
        %1407 = vmatpush.msra.mxu0 %v1279
        %1408 = vmatpush.msra.mxu0 %v1274
        %1409 = vmatpush.msra.mxu0 %v1269
        %1410 = vmatpush.msra.mxu0 %v1264
        %1411 = vmatpush.msra.mxu0 %v1259
        %1412 = vmatmul.f32.gmra.mxu0 %v1253
        %v1413 = vpop.f32.mrf.mxu0
        %v1414 = vadd.f32 0.0, %v1413
        %1415 = vdwg.mxu0
        %1416 = vmatpush.msra.mxu0 %v1335
        %1417 = vmatpush.msra.mxu0 %v1330
        %1418 = vmatpush.msra.mxu0 %v1325
        %1419 = vmatpush.msra.mxu0 %v1320
        %1420 = vmatpush.msra.mxu0 %v1315
        %1421 = vmatpush.msra.mxu0 %v1310
        %1422 = vmatpush.msra.mxu0 %v1305
        %1423 = vmatpush.msra.mxu0 %v1300
        %1424 = vmatpush.msra.mxu0 %v1295
        %1425 = vmatpush.msra.mxu0 %v1290
        %1426 = vmatpush.msra.mxu0 %v1285
        %1427 = vmatpush.msra.mxu0 %v1280
        %1428 = vmatpush.msra.mxu0 %v1275
        %1429 = vmatpush.msra.mxu0 %v1270
        %1430 = vmatpush.msra.mxu0 %v1265
        %1431 = vmatpush.msra.mxu0 %v1260
        %1432 = vmatmul.f32.gmra.mxu0 %v1253
        %v1433 = vpop.f32.mrf.mxu0
        %v1434 = vadd.f32 0.0, %v1433
        %1435 = vdwg.mxu0
        %v1436 = vadd.f32 %v1225, %v1354
        %v1437 = vadd.f32 %v1226, %v1374
        %v1438 = vadd.f32 %v1227, %v1394
        %v1439 = vadd.f32 %v1228, %v1414
        %v1440 = vadd.f32 %v1229, %v1434
        %s1441 = scalar_lea.vmem %s6, 12
        %v1442 = vld [vmem:[%s1441] sm:$0x7]
        %v1444 = vsel %vm799, %v1442, 0
        %1446 = vmatpush.msra.mxu0 0.0
        %1447 = vmatpush.msra.mxu0 0.0
        %1448 = vmatpush.msra.mxu0 0.0
        %1449 = vmatpush.msra.mxu0 0.0
        %1450 = vmatpush.msra.mxu0 0.0
        %1451 = vmatpush.msra.mxu0 0.0
        %1452 = vmatpush.msra.mxu0 0.0
        %1453 = vmatpush.msra.mxu0 0.0
        %1454 = vmatpush.msra.mxu0 0.0
        %1455 = vmatpush.msra.mxu0 0.0
        %1456 = vmatpush.msra.mxu0 0.0
        %1457 = vmatpush.msra.mxu0 0.0
        %1458 = vmatpush.msra.mxu0 0.0
        %1459 = vmatpush.msra.mxu0 0.0
        %1460 = vmatpush.msra.mxu0 0.0
        %1461 = vmatpush.msra.mxu0 %v796
        %1462 = vmatmul.f32.gmra.mxu0 %v1444
        %v1463 = vpop.f32.mrf.mxu0
        %v1464 = vadd.f32 0.0, %v1463
        %1465 = vdwg.mxu0
        %s1466 = scalar_lea.vmem %s7, 1920
        %v1467 = vld [vmem:[%s1466] sm:$0xff]
        %v1468 = vld [vmem:[%s1466 + $0x8] sm:$0xff]
        %v1469 = vld [vmem:[%s1466 + $0x10] sm:$0xff]
        %v1470 = vld [vmem:[%s1466 + $0x18] sm:$0xff]
        %v1471 = vld [vmem:[%s1466 + $0x20] sm:$0xff]
        %v1472 = vld [vmem:[%s1466 + $0x28] sm:$0xff]
        %v1473 = vld [vmem:[%s1466 + $0x30] sm:$0xff]
        %v1474 = vld [vmem:[%s1466 + $0x38] sm:$0xff]
        %v1475 = vld [vmem:[%s1466 + $0x40] sm:$0xff]
        %v1476 = vld [vmem:[%s1466 + $0x48] sm:$0xff]
        %v1477 = vld [vmem:[%s1466 + $0x50] sm:$0xff]
        %v1478 = vld [vmem:[%s1466 + $0x58] sm:$0xff]
        %v1479 = vld [vmem:[%s1466 + $0x60] sm:$0xff]
        %v1480 = vld [vmem:[%s1466 + $0x68] sm:$0xff]
        %v1481 = vld [vmem:[%s1466 + $0x70] sm:$0xff]
        %v1482 = vld [vmem:[%s1466 + $0x78] sm:$0xff]
        %v1483 = vld [vmem:[%s1466 + $0x80] sm:$0xff]
        %v1484 = vld [vmem:[%s1466 + $0x88] sm:$0xff]
        %v1485 = vld [vmem:[%s1466 + $0x90] sm:$0xff]
        %v1486 = vld [vmem:[%s1466 + $0x98] sm:$0xff]
        %v1487 = vld [vmem:[%s1466 + $0xa0] sm:$0xff]
        %v1488 = vld [vmem:[%s1466 + $0xa8] sm:$0xff]
        %v1489 = vld [vmem:[%s1466 + $0xb0] sm:$0xff]
        %v1490 = vld [vmem:[%s1466 + $0xb8] sm:$0xff]
        %v1491 = vld [vmem:[%s1466 + $0xc0] sm:$0xff]
        %v1492 = vld [vmem:[%s1466 + $0xc8] sm:$0xff]
        %v1493 = vld [vmem:[%s1466 + $0xd0] sm:$0xff]
        %v1494 = vld [vmem:[%s1466 + $0xd8] sm:$0xff]
        %v1495 = vld [vmem:[%s1466 + $0xe0] sm:$0xff]
        %v1496 = vld [vmem:[%s1466 + $0xe8] sm:$0xff]
        %v1497 = vld [vmem:[%s1466 + $0xf0] sm:$0xff]
        %v1498 = vld [vmem:[%s1466 + $0xf8] sm:$0xff]
        %v1499 = vld [vmem:[%s1466 + $0x100] sm:$0xff]
        %v1500 = vld [vmem:[%s1466 + $0x108] sm:$0xff]
        %v1501 = vld [vmem:[%s1466 + $0x110] sm:$0xff]
        %v1502 = vld [vmem:[%s1466 + $0x118] sm:$0xff]
        %v1503 = vld [vmem:[%s1466 + $0x120] sm:$0xff]
        %v1504 = vld [vmem:[%s1466 + $0x128] sm:$0xff]
        %v1505 = vld [vmem:[%s1466 + $0x130] sm:$0xff]
        %v1506 = vld [vmem:[%s1466 + $0x138] sm:$0xff]
        %v1507 = vld [vmem:[%s1466 + $0x140] sm:$0xff]
        %v1508 = vld [vmem:[%s1466 + $0x148] sm:$0xff]
        %v1509 = vld [vmem:[%s1466 + $0x150] sm:$0xff]
        %v1510 = vld [vmem:[%s1466 + $0x158] sm:$0xff]
        %v1511 = vld [vmem:[%s1466 + $0x160] sm:$0xff]
        %v1512 = vld [vmem:[%s1466 + $0x168] sm:$0xff]
        %v1513 = vld [vmem:[%s1466 + $0x170] sm:$0xff]
        %v1514 = vld [vmem:[%s1466 + $0x178] sm:$0xff]
        %v1515 = vld [vmem:[%s1466 + $0x180] sm:$0xff]
        %v1516 = vld [vmem:[%s1466 + $0x188] sm:$0xff]
        %v1517 = vld [vmem:[%s1466 + $0x190] sm:$0xff]
        %v1518 = vld [vmem:[%s1466 + $0x198] sm:$0xff]
        %v1519 = vld [vmem:[%s1466 + $0x1a0] sm:$0xff]
        %v1520 = vld [vmem:[%s1466 + $0x1a8] sm:$0xff]
        %v1521 = vld [vmem:[%s1466 + $0x1b0] sm:$0xff]
        %v1522 = vld [vmem:[%s1466 + $0x1b8] sm:$0xff]
        %v1523 = vld [vmem:[%s1466 + $0x1c0] sm:$0xff]
        %v1524 = vld [vmem:[%s1466 + $0x1c8] sm:$0xff]
        %v1525 = vld [vmem:[%s1466 + $0x1d0] sm:$0xff]
        %v1526 = vld [vmem:[%s1466 + $0x1d8] sm:$0xff]
        %v1527 = vld [vmem:[%s1466 + $0x1e0] sm:$0xff]
        %v1528 = vld [vmem:[%s1466 + $0x1e8] sm:$0xff]
        %v1529 = vld [vmem:[%s1466 + $0x1f0] sm:$0xff]
        %v1530 = vld [vmem:[%s1466 + $0x1f8] sm:$0xff]
        %v1531 = vld [vmem:[%s1466 + $0x200] sm:$0xff]
        %v1532 = vld [vmem:[%s1466 + $0x208] sm:$0xff]
        %v1533 = vld [vmem:[%s1466 + $0x210] sm:$0xff]
        %v1534 = vld [vmem:[%s1466 + $0x218] sm:$0xff]
        %v1535 = vld [vmem:[%s1466 + $0x220] sm:$0xff]
        %v1536 = vld [vmem:[%s1466 + $0x228] sm:$0xff]
        %v1537 = vld [vmem:[%s1466 + $0x230] sm:$0xff]
        %v1538 = vld [vmem:[%s1466 + $0x238] sm:$0xff]
        %v1539 = vld [vmem:[%s1466 + $0x240] sm:$0xff]
        %v1540 = vld [vmem:[%s1466 + $0x248] sm:$0xff]
        %v1541 = vld [vmem:[%s1466 + $0x250] sm:$0xff]
        %v1542 = vld [vmem:[%s1466 + $0x258] sm:$0xff]
        %v1543 = vld [vmem:[%s1466 + $0x260] sm:$0xff]
        %v1544 = vld [vmem:[%s1466 + $0x268] sm:$0xff]
        %v1545 = vld [vmem:[%s1466 + $0x270] sm:$0xff]
        %v1546 = vld [vmem:[%s1466 + $0x278] sm:$0xff]
        %1547 = vmatpush.msra.mxu0 %v1542
        %1548 = vmatpush.msra.mxu0 %v1537
        %1549 = vmatpush.msra.mxu0 %v1532
        %1550 = vmatpush.msra.mxu0 %v1527
        %1551 = vmatpush.msra.mxu0 %v1522
        %1552 = vmatpush.msra.mxu0 %v1517
        %1553 = vmatpush.msra.mxu0 %v1512
        %1554 = vmatpush.msra.mxu0 %v1507
        %1555 = vmatpush.msra.mxu0 %v1502
        %1556 = vmatpush.msra.mxu0 %v1497
        %1557 = vmatpush.msra.mxu0 %v1492
        %1558 = vmatpush.msra.mxu0 %v1487
        %1559 = vmatpush.msra.mxu0 %v1482
        %1560 = vmatpush.msra.mxu0 %v1477
        %1561 = vmatpush.msra.mxu0 %v1472
        %1562 = vmatpush.msra.mxu0 %v1467
        %1563 = vmatmul.f32.gmra.mxu0 %v1464
        %v1564 = vpop.f32.mrf.mxu0
        %v1565 = vadd.f32 0.0, %v1564
        %1566 = vdwg.mxu0
        %1567 = vmatpush.msra.mxu0 %v1543
        %1568 = vmatpush.msra.mxu0 %v1538
        %1569 = vmatpush.msra.mxu0 %v1533
        %1570 = vmatpush.msra.mxu0 %v1528
        %1571 = vmatpush.msra.mxu0 %v1523
        %1572 = vmatpush.msra.mxu0 %v1518
        %1573 = vmatpush.msra.mxu0 %v1513
        %1574 = vmatpush.msra.mxu0 %v1508
        %1575 = vmatpush.msra.mxu0 %v1503
        %1576 = vmatpush.msra.mxu0 %v1498
        %1577 = vmatpush.msra.mxu0 %v1493
        %1578 = vmatpush.msra.mxu0 %v1488
        %1579 = vmatpush.msra.mxu0 %v1483
        %1580 = vmatpush.msra.mxu0 %v1478
        %1581 = vmatpush.msra.mxu0 %v1473
        %1582 = vmatpush.msra.mxu0 %v1468
        %1583 = vmatmul.f32.gmra.mxu0 %v1464
        %v1584 = vpop.f32.mrf.mxu0
        %v1585 = vadd.f32 0.0, %v1584
        %1586 = vdwg.mxu0
        %1587 = vmatpush.msra.mxu0 %v1544
        %1588 = vmatpush.msra.mxu0 %v1539
        %1589 = vmatpush.msra.mxu0 %v1534
        %1590 = vmatpush.msra.mxu0 %v1529
        %1591 = vmatpush.msra.mxu0 %v1524
        %1592 = vmatpush.msra.mxu0 %v1519
        %1593 = vmatpush.msra.mxu0 %v1514
        %1594 = vmatpush.msra.mxu0 %v1509
        %1595 = vmatpush.msra.mxu0 %v1504
        %1596 = vmatpush.msra.mxu0 %v1499
        %1597 = vmatpush.msra.mxu0 %v1494
        %1598 = vmatpush.msra.mxu0 %v1489
        %1599 = vmatpush.msra.mxu0 %v1484
        %1600 = vmatpush.msra.mxu0 %v1479
        %1601 = vmatpush.msra.mxu0 %v1474
        %1602 = vmatpush.msra.mxu0 %v1469
        %1603 = vmatmul.f32.gmra.mxu0 %v1464
        %v1604 = vpop.f32.mrf.mxu0
        %v1605 = vadd.f32 0.0, %v1604
        %1606 = vdwg.mxu0
        %1607 = vmatpush.msra.mxu0 %v1545
        %1608 = vmatpush.msra.mxu0 %v1540
        %1609 = vmatpush.msra.mxu0 %v1535
        %1610 = vmatpush.msra.mxu0 %v1530
        %1611 = vmatpush.msra.mxu0 %v1525
        %1612 = vmatpush.msra.mxu0 %v1520
        %1613 = vmatpush.msra.mxu0 %v1515
        %1614 = vmatpush.msra.mxu0 %v1510
        %1615 = vmatpush.msra.mxu0 %v1505
        %1616 = vmatpush.msra.mxu0 %v1500
        %1617 = vmatpush.msra.mxu0 %v1495
        %1618 = vmatpush.msra.mxu0 %v1490
        %1619 = vmatpush.msra.mxu0 %v1485
        %1620 = vmatpush.msra.mxu0 %v1480
        %1621 = vmatpush.msra.mxu0 %v1475
        %1622 = vmatpush.msra.mxu0 %v1470
        %1623 = vmatmul.f32.gmra.mxu0 %v1464
        %v1624 = vpop.f32.mrf.mxu0
        %v1625 = vadd.f32 0.0, %v1624
        %1626 = vdwg.mxu0
        %1627 = vmatpush.msra.mxu0 %v1546
        %1628 = vmatpush.msra.mxu0 %v1541
        %1629 = vmatpush.msra.mxu0 %v1536
        %1630 = vmatpush.msra.mxu0 %v1531
        %1631 = vmatpush.msra.mxu0 %v1526
        %1632 = vmatpush.msra.mxu0 %v1521
        %1633 = vmatpush.msra.mxu0 %v1516
        %1634 = vmatpush.msra.mxu0 %v1511
        %1635 = vmatpush.msra.mxu0 %v1506
        %1636 = vmatpush.msra.mxu0 %v1501
        %1637 = vmatpush.msra.mxu0 %v1496
        %1638 = vmatpush.msra.mxu0 %v1491
        %1639 = vmatpush.msra.mxu0 %v1486
        %1640 = vmatpush.msra.mxu0 %v1481
        %1641 = vmatpush.msra.mxu0 %v1476
        %1642 = vmatpush.msra.mxu0 %v1471
        %1643 = vmatmul.f32.gmra.mxu0 %v1464
        %v1644 = vpop.f32.mrf.mxu0
        %v1645 = vadd.f32 0.0, %v1644
        %1646 = vdwg.mxu0
        %v1647 = vadd.f32 %v1436, %v1565
        %v1648 = vadd.f32 %v1437, %v1585
        %v1649 = vadd.f32 %v1438, %v1605
        %v1650 = vadd.f32 %v1439, %v1625
        %v1651 = vadd.f32 %v1440, %v1645
        %s1652 = scalar_lea.vmem %s6, 16
        %v1653 = vld [vmem:[%s1652] sm:$0x7]
        %v1655 = vsel %vm799, %v1653, 0
        %1657 = vmatpush.msra.mxu0 0.0
        %1658 = vmatpush.msra.mxu0 0.0
        %1659 = vmatpush.msra.mxu0 0.0
        %1660 = vmatpush.msra.mxu0 0.0
        %1661 = vmatpush.msra.mxu0 0.0
        %1662 = vmatpush.msra.mxu0 0.0
        %1663 = vmatpush.msra.mxu0 0.0
        %1664 = vmatpush.msra.mxu0 0.0
        %1665 = vmatpush.msra.mxu0 0.0
        %1666 = vmatpush.msra.mxu0 0.0
        %1667 = vmatpush.msra.mxu0 0.0
        %1668 = vmatpush.msra.mxu0 0.0
        %1669 = vmatpush.msra.mxu0 0.0
        %1670 = vmatpush.msra.mxu0 0.0
        %1671 = vmatpush.msra.mxu0 0.0
        %1672 = vmatpush.msra.mxu0 %v796
        %1673 = vmatmul.f32.gmra.mxu0 %v1655
        %v1674 = vpop.f32.mrf.mxu0
        %v1675 = vadd.f32 0.0, %v1674
        %1676 = vdwg.mxu0
        %s1677 = scalar_lea.vmem %s7, 2560
        %v1678 = vld [vmem:[%s1677] sm:$0xff]
        %v1679 = vld [vmem:[%s1677 + $0x8] sm:$0xff]
        %v1680 = vld [vmem:[%s1677 + $0x10] sm:$0xff]
        %v1681 = vld [vmem:[%s1677 + $0x18] sm:$0xff]
        %v1682 = vld [vmem:[%s1677 + $0x20] sm:$0xff]
        %v1683 = vld [vmem:[%s1677 + $0x28] sm:$0xff]
        %v1684 = vld [vmem:[%s1677 + $0x30] sm:$0xff]
        %v1685 = vld [vmem:[%s1677 + $0x38] sm:$0xff]
        %v1686 = vld [vmem:[%s1677 + $0x40] sm:$0xff]
        %v1687 = vld [vmem:[%s1677 + $0x48] sm:$0xff]
        %v1688 = vld [vmem:[%s1677 + $0x50] sm:$0xff]
        %v1689 = vld [vmem:[%s1677 + $0x58] sm:$0xff]
        %v1690 = vld [vmem:[%s1677 + $0x60] sm:$0xff]
        %v1691 = vld [vmem:[%s1677 + $0x68] sm:$0xff]
        %v1692 = vld [vmem:[%s1677 + $0x70] sm:$0xff]
        %v1693 = vld [vmem:[%s1677 + $0x78] sm:$0xff]
        %v1694 = vld [vmem:[%s1677 + $0x80] sm:$0xff]
        %v1695 = vld [vmem:[%s1677 + $0x88] sm:$0xff]
        %v1696 = vld [vmem:[%s1677 + $0x90] sm:$0xff]
        %v1697 = vld [vmem:[%s1677 + $0x98] sm:$0xff]
        %v1698 = vld [vmem:[%s1677 + $0xa0] sm:$0xff]
        %v1699 = vld [vmem:[%s1677 + $0xa8] sm:$0xff]
        %v1700 = vld [vmem:[%s1677 + $0xb0] sm:$0xff]
        %v1701 = vld [vmem:[%s1677 + $0xb8] sm:$0xff]
        %v1702 = vld [vmem:[%s1677 + $0xc0] sm:$0xff]
        %v1703 = vld [vmem:[%s1677 + $0xc8] sm:$0xff]
        %v1704 = vld [vmem:[%s1677 + $0xd0] sm:$0xff]
        %v1705 = vld [vmem:[%s1677 + $0xd8] sm:$0xff]
        %v1706 = vld [vmem:[%s1677 + $0xe0] sm:$0xff]
        %v1707 = vld [vmem:[%s1677 + $0xe8] sm:$0xff]
        %v1708 = vld [vmem:[%s1677 + $0xf0] sm:$0xff]
        %v1709 = vld [vmem:[%s1677 + $0xf8] sm:$0xff]
        %v1710 = vld [vmem:[%s1677 + $0x100] sm:$0xff]
        %v1711 = vld [vmem:[%s1677 + $0x108] sm:$0xff]
        %v1712 = vld [vmem:[%s1677 + $0x110] sm:$0xff]
        %v1713 = vld [vmem:[%s1677 + $0x118] sm:$0xff]
        %v1714 = vld [vmem:[%s1677 + $0x120] sm:$0xff]
        %v1715 = vld [vmem:[%s1677 + $0x128] sm:$0xff]
        %v1716 = vld [vmem:[%s1677 + $0x130] sm:$0xff]
        %v1717 = vld [vmem:[%s1677 + $0x138] sm:$0xff]
        %v1718 = vld [vmem:[%s1677 + $0x140] sm:$0xff]
        %v1719 = vld [vmem:[%s1677 + $0x148] sm:$0xff]
        %v1720 = vld [vmem:[%s1677 + $0x150] sm:$0xff]
        %v1721 = vld [vmem:[%s1677 + $0x158] sm:$0xff]
        %v1722 = vld [vmem:[%s1677 + $0x160] sm:$0xff]
        %v1723 = vld [vmem:[%s1677 + $0x168] sm:$0xff]
        %v1724 = vld [vmem:[%s1677 + $0x170] sm:$0xff]
        %v1725 = vld [vmem:[%s1677 + $0x178] sm:$0xff]
        %v1726 = vld [vmem:[%s1677 + $0x180] sm:$0xff]
        %v1727 = vld [vmem:[%s1677 + $0x188] sm:$0xff]
        %v1728 = vld [vmem:[%s1677 + $0x190] sm:$0xff]
        %v1729 = vld [vmem:[%s1677 + $0x198] sm:$0xff]
        %v1730 = vld [vmem:[%s1677 + $0x1a0] sm:$0xff]
        %v1731 = vld [vmem:[%s1677 + $0x1a8] sm:$0xff]
        %v1732 = vld [vmem:[%s1677 + $0x1b0] sm:$0xff]
        %v1733 = vld [vmem:[%s1677 + $0x1b8] sm:$0xff]
        %v1734 = vld [vmem:[%s1677 + $0x1c0] sm:$0xff]
        %v1735 = vld [vmem:[%s1677 + $0x1c8] sm:$0xff]
        %v1736 = vld [vmem:[%s1677 + $0x1d0] sm:$0xff]
        %v1737 = vld [vmem:[%s1677 + $0x1d8] sm:$0xff]
        %v1738 = vld [vmem:[%s1677 + $0x1e0] sm:$0xff]
        %v1739 = vld [vmem:[%s1677 + $0x1e8] sm:$0xff]
        %v1740 = vld [vmem:[%s1677 + $0x1f0] sm:$0xff]
        %v1741 = vld [vmem:[%s1677 + $0x1f8] sm:$0xff]
        %v1742 = vld [vmem:[%s1677 + $0x200] sm:$0xff]
        %v1743 = vld [vmem:[%s1677 + $0x208] sm:$0xff]
        %v1744 = vld [vmem:[%s1677 + $0x210] sm:$0xff]
        %v1745 = vld [vmem:[%s1677 + $0x218] sm:$0xff]
        %v1746 = vld [vmem:[%s1677 + $0x220] sm:$0xff]
        %v1747 = vld [vmem:[%s1677 + $0x228] sm:$0xff]
        %v1748 = vld [vmem:[%s1677 + $0x230] sm:$0xff]
        %v1749 = vld [vmem:[%s1677 + $0x238] sm:$0xff]
        %v1750 = vld [vmem:[%s1677 + $0x240] sm:$0xff]
        %v1751 = vld [vmem:[%s1677 + $0x248] sm:$0xff]
        %v1752 = vld [vmem:[%s1677 + $0x250] sm:$0xff]
        %v1753 = vld [vmem:[%s1677 + $0x258] sm:$0xff]
        %v1754 = vld [vmem:[%s1677 + $0x260] sm:$0xff]
        %v1755 = vld [vmem:[%s1677 + $0x268] sm:$0xff]
        %v1756 = vld [vmem:[%s1677 + $0x270] sm:$0xff]
        %v1757 = vld [vmem:[%s1677 + $0x278] sm:$0xff]
        %1758 = vmatpush.msra.mxu0 %v1753
        %1759 = vmatpush.msra.mxu0 %v1748
        %1760 = vmatpush.msra.mxu0 %v1743
        %1761 = vmatpush.msra.mxu0 %v1738
        %1762 = vmatpush.msra.mxu0 %v1733
        %1763 = vmatpush.msra.mxu0 %v1728
        %1764 = vmatpush.msra.mxu0 %v1723
        %1765 = vmatpush.msra.mxu0 %v1718
        %1766 = vmatpush.msra.mxu0 %v1713
        %1767 = vmatpush.msra.mxu0 %v1708
        %1768 = vmatpush.msra.mxu0 %v1703
        %1769 = vmatpush.msra.mxu0 %v1698
        %1770 = vmatpush.msra.mxu0 %v1693
        %1771 = vmatpush.msra.mxu0 %v1688
        %1772 = vmatpush.msra.mxu0 %v1683
        %1773 = vmatpush.msra.mxu0 %v1678
        %1774 = vmatmul.f32.gmra.mxu0 %v1675
        %v1775 = vpop.f32.mrf.mxu0
        %v1776 = vadd.f32 0.0, %v1775
        %1777 = vdwg.mxu0
        %1778 = vmatpush.msra.mxu0 %v1754
        %1779 = vmatpush.msra.mxu0 %v1749
        %1780 = vmatpush.msra.mxu0 %v1744
        %1781 = vmatpush.msra.mxu0 %v1739
        %1782 = vmatpush.msra.mxu0 %v1734
        %1783 = vmatpush.msra.mxu0 %v1729
        %1784 = vmatpush.msra.mxu0 %v1724
        %1785 = vmatpush.msra.mxu0 %v1719
        %1786 = vmatpush.msra.mxu0 %v1714
        %1787 = vmatpush.msra.mxu0 %v1709
        %1788 = vmatpush.msra.mxu0 %v1704
        %1789 = vmatpush.msra.mxu0 %v1699
        %1790 = vmatpush.msra.mxu0 %v1694
        %1791 = vmatpush.msra.mxu0 %v1689
        %1792 = vmatpush.msra.mxu0 %v1684
        %1793 = vmatpush.msra.mxu0 %v1679
        %1794 = vmatmul.f32.gmra.mxu0 %v1675
        %v1795 = vpop.f32.mrf.mxu0
        %v1796 = vadd.f32 0.0, %v1795
        %1797 = vdwg.mxu0
        %1798 = vmatpush.msra.mxu0 %v1755
        %1799 = vmatpush.msra.mxu0 %v1750
        %1800 = vmatpush.msra.mxu0 %v1745
        %1801 = vmatpush.msra.mxu0 %v1740
        %1802 = vmatpush.msra.mxu0 %v1735
        %1803 = vmatpush.msra.mxu0 %v1730
        %1804 = vmatpush.msra.mxu0 %v1725
        %1805 = vmatpush.msra.mxu0 %v1720
        %1806 = vmatpush.msra.mxu0 %v1715
        %1807 = vmatpush.msra.mxu0 %v1710
        %1808 = vmatpush.msra.mxu0 %v1705
        %1809 = vmatpush.msra.mxu0 %v1700
        %1810 = vmatpush.msra.mxu0 %v1695
        %1811 = vmatpush.msra.mxu0 %v1690
        %1812 = vmatpush.msra.mxu0 %v1685
        %1813 = vmatpush.msra.mxu0 %v1680
        %1814 = vmatmul.f32.gmra.mxu0 %v1675
        %v1815 = vpop.f32.mrf.mxu0
        %v1816 = vadd.f32 0.0, %v1815
        %1817 = vdwg.mxu0
        %1818 = vmatpush.msra.mxu0 %v1756
        %1819 = vmatpush.msra.mxu0 %v1751
        %1820 = vmatpush.msra.mxu0 %v1746
        %1821 = vmatpush.msra.mxu0 %v1741
        %1822 = vmatpush.msra.mxu0 %v1736
        %1823 = vmatpush.msra.mxu0 %v1731
        %1824 = vmatpush.msra.mxu0 %v1726
        %1825 = vmatpush.msra.mxu0 %v1721
        %1826 = vmatpush.msra.mxu0 %v1716
        %1827 = vmatpush.msra.mxu0 %v1711
        %1828 = vmatpush.msra.mxu0 %v1706
        %1829 = vmatpush.msra.mxu0 %v1701
        %1830 = vmatpush.msra.mxu0 %v1696
        %1831 = vmatpush.msra.mxu0 %v1691
        %1832 = vmatpush.msra.mxu0 %v1686
        %1833 = vmatpush.msra.mxu0 %v1681
        %1834 = vmatmul.f32.gmra.mxu0 %v1675
        %v1835 = vpop.f32.mrf.mxu0
        %v1836 = vadd.f32 0.0, %v1835
        %1837 = vdwg.mxu0
        %1838 = vmatpush.msra.mxu0 %v1757
        %1839 = vmatpush.msra.mxu0 %v1752
        %1840 = vmatpush.msra.mxu0 %v1747
        %1841 = vmatpush.msra.mxu0 %v1742
        %1842 = vmatpush.msra.mxu0 %v1737
        %1843 = vmatpush.msra.mxu0 %v1732
        %1844 = vmatpush.msra.mxu0 %v1727
        %1845 = vmatpush.msra.mxu0 %v1722
        %1846 = vmatpush.msra.mxu0 %v1717
        %1847 = vmatpush.msra.mxu0 %v1712
        %1848 = vmatpush.msra.mxu0 %v1707
        %1849 = vmatpush.msra.mxu0 %v1702
        %1850 = vmatpush.msra.mxu0 %v1697
        %1851 = vmatpush.msra.mxu0 %v1692
        %1852 = vmatpush.msra.mxu0 %v1687
        %1853 = vmatpush.msra.mxu0 %v1682
        %1854 = vmatmul.f32.gmra.mxu0 %v1675
        %v1855 = vpop.f32.mrf.mxu0
        %v1856 = vadd.f32 0.0, %v1855
        %1857 = vdwg.mxu0
        %v1858 = vadd.f32 %v1647, %v1776
        %v1859 = vadd.f32 %v1648, %v1796
        %v1860 = vadd.f32 %v1649, %v1816
        %v1861 = vadd.f32 %v1650, %v1836
        %v1862 = vadd.f32 %v1651, %v1856
        %s1863 = scalar_lea.vmem %s6, 20
        %v1864 = vld [vmem:[%s1863] sm:$0x7]
        %v1866 = vsel %vm799, %v1864, 0
        %1868 = vmatpush.msra.mxu0 0.0
        %1869 = vmatpush.msra.mxu0 0.0
        %1870 = vmatpush.msra.mxu0 0.0
        %1871 = vmatpush.msra.mxu0 0.0
        %1872 = vmatpush.msra.mxu0 0.0
        %1873 = vmatpush.msra.mxu0 0.0
        %1874 = vmatpush.msra.mxu0 0.0
        %1875 = vmatpush.msra.mxu0 0.0
        %1876 = vmatpush.msra.mxu0 0.0
        %1877 = vmatpush.msra.mxu0 0.0
        %1878 = vmatpush.msra.mxu0 0.0
        %1879 = vmatpush.msra.mxu0 0.0
        %1880 = vmatpush.msra.mxu0 0.0
        %1881 = vmatpush.msra.mxu0 0.0
        %1882 = vmatpush.msra.mxu0 0.0
        %1883 = vmatpush.msra.mxu0 %v796
        %1884 = vmatmul.f32.gmra.mxu0 %v1866
        %v1885 = vpop.f32.mrf.mxu0
        %v1886 = vadd.f32 0.0, %v1885
        %1887 = vdwg.mxu0
        %s1888 = scalar_lea.vmem %s7, 3200
        %v1889 = vld [vmem:[%s1888] sm:$0xff]
        %v1890 = vld [vmem:[%s1888 + $0x8] sm:$0xff]
        %v1891 = vld [vmem:[%s1888 + $0x10] sm:$0xff]
        %v1892 = vld [vmem:[%s1888 + $0x18] sm:$0xff]
        %v1893 = vld [vmem:[%s1888 + $0x20] sm:$0xff]
        %v1894 = vld [vmem:[%s1888 + $0x28] sm:$0xff]
        %v1895 = vld [vmem:[%s1888 + $0x30] sm:$0xff]
        %v1896 = vld [vmem:[%s1888 + $0x38] sm:$0xff]
        %v1897 = vld [vmem:[%s1888 + $0x40] sm:$0xff]
        %v1898 = vld [vmem:[%s1888 + $0x48] sm:$0xff]
        %v1899 = vld [vmem:[%s1888 + $0x50] sm:$0xff]
        %v1900 = vld [vmem:[%s1888 + $0x58] sm:$0xff]
        %v1901 = vld [vmem:[%s1888 + $0x60] sm:$0xff]
        %v1902 = vld [vmem:[%s1888 + $0x68] sm:$0xff]
        %v1903 = vld [vmem:[%s1888 + $0x70] sm:$0xff]
        %v1904 = vld [vmem:[%s1888 + $0x78] sm:$0xff]
        %v1905 = vld [vmem:[%s1888 + $0x80] sm:$0xff]
        %v1906 = vld [vmem:[%s1888 + $0x88] sm:$0xff]
        %v1907 = vld [vmem:[%s1888 + $0x90] sm:$0xff]
        %v1908 = vld [vmem:[%s1888 + $0x98] sm:$0xff]
        %v1909 = vld [vmem:[%s1888 + $0xa0] sm:$0xff]
        %v1910 = vld [vmem:[%s1888 + $0xa8] sm:$0xff]
        %v1911 = vld [vmem:[%s1888 + $0xb0] sm:$0xff]
        %v1912 = vld [vmem:[%s1888 + $0xb8] sm:$0xff]
        %v1913 = vld [vmem:[%s1888 + $0xc0] sm:$0xff]
        %v1914 = vld [vmem:[%s1888 + $0xc8] sm:$0xff]
        %v1915 = vld [vmem:[%s1888 + $0xd0] sm:$0xff]
        %v1916 = vld [vmem:[%s1888 + $0xd8] sm:$0xff]
        %v1917 = vld [vmem:[%s1888 + $0xe0] sm:$0xff]
        %v1918 = vld [vmem:[%s1888 + $0xe8] sm:$0xff]
        %v1919 = vld [vmem:[%s1888 + $0xf0] sm:$0xff]
        %v1920 = vld [vmem:[%s1888 + $0xf8] sm:$0xff]
        %v1921 = vld [vmem:[%s1888 + $0x100] sm:$0xff]
        %v1922 = vld [vmem:[%s1888 + $0x108] sm:$0xff]
        %v1923 = vld [vmem:[%s1888 + $0x110] sm:$0xff]
        %v1924 = vld [vmem:[%s1888 + $0x118] sm:$0xff]
        %v1925 = vld [vmem:[%s1888 + $0x120] sm:$0xff]
        %v1926 = vld [vmem:[%s1888 + $0x128] sm:$0xff]
        %v1927 = vld [vmem:[%s1888 + $0x130] sm:$0xff]
        %v1928 = vld [vmem:[%s1888 + $0x138] sm:$0xff]
        %v1929 = vld [vmem:[%s1888 + $0x140] sm:$0xff]
        %v1930 = vld [vmem:[%s1888 + $0x148] sm:$0xff]
        %v1931 = vld [vmem:[%s1888 + $0x150] sm:$0xff]
        %v1932 = vld [vmem:[%s1888 + $0x158] sm:$0xff]
        %v1933 = vld [vmem:[%s1888 + $0x160] sm:$0xff]
        %v1934 = vld [vmem:[%s1888 + $0x168] sm:$0xff]
        %v1935 = vld [vmem:[%s1888 + $0x170] sm:$0xff]
        %v1936 = vld [vmem:[%s1888 + $0x178] sm:$0xff]
        %v1937 = vld [vmem:[%s1888 + $0x180] sm:$0xff]
        %v1938 = vld [vmem:[%s1888 + $0x188] sm:$0xff]
        %v1939 = vld [vmem:[%s1888 + $0x190] sm:$0xff]
        %v1940 = vld [vmem:[%s1888 + $0x198] sm:$0xff]
        %v1941 = vld [vmem:[%s1888 + $0x1a0] sm:$0xff]
        %v1942 = vld [vmem:[%s1888 + $0x1a8] sm:$0xff]
        %v1943 = vld [vmem:[%s1888 + $0x1b0] sm:$0xff]
        %v1944 = vld [vmem:[%s1888 + $0x1b8] sm:$0xff]
        %v1945 = vld [vmem:[%s1888 + $0x1c0] sm:$0xff]
        %v1946 = vld [vmem:[%s1888 + $0x1c8] sm:$0xff]
        %v1947 = vld [vmem:[%s1888 + $0x1d0] sm:$0xff]
        %v1948 = vld [vmem:[%s1888 + $0x1d8] sm:$0xff]
        %v1949 = vld [vmem:[%s1888 + $0x1e0] sm:$0xff]
        %v1950 = vld [vmem:[%s1888 + $0x1e8] sm:$0xff]
        %v1951 = vld [vmem:[%s1888 + $0x1f0] sm:$0xff]
        %v1952 = vld [vmem:[%s1888 + $0x1f8] sm:$0xff]
        %v1953 = vld [vmem:[%s1888 + $0x200] sm:$0xff]
        %v1954 = vld [vmem:[%s1888 + $0x208] sm:$0xff]
        %v1955 = vld [vmem:[%s1888 + $0x210] sm:$0xff]
        %v1956 = vld [vmem:[%s1888 + $0x218] sm:$0xff]
        %v1957 = vld [vmem:[%s1888 + $0x220] sm:$0xff]
        %v1958 = vld [vmem:[%s1888 + $0x228] sm:$0xff]
        %v1959 = vld [vmem:[%s1888 + $0x230] sm:$0xff]
        %v1960 = vld [vmem:[%s1888 + $0x238] sm:$0xff]
        %v1961 = vld [vmem:[%s1888 + $0x240] sm:$0xff]
        %v1962 = vld [vmem:[%s1888 + $0x248] sm:$0xff]
        %v1963 = vld [vmem:[%s1888 + $0x250] sm:$0xff]
        %v1964 = vld [vmem:[%s1888 + $0x258] sm:$0xff]
        %v1965 = vld [vmem:[%s1888 + $0x260] sm:$0xff]
        %v1966 = vld [vmem:[%s1888 + $0x268] sm:$0xff]
        %v1967 = vld [vmem:[%s1888 + $0x270] sm:$0xff]
        %v1968 = vld [vmem:[%s1888 + $0x278] sm:$0xff]
        %1969 = vmatpush.msra.mxu0 %v1964
        %1970 = vmatpush.msra.mxu0 %v1959
        %1971 = vmatpush.msra.mxu0 %v1954
        %1972 = vmatpush.msra.mxu0 %v1949
        %1973 = vmatpush.msra.mxu0 %v1944
        %1974 = vmatpush.msra.mxu0 %v1939
        %1975 = vmatpush.msra.mxu0 %v1934
        %1976 = vmatpush.msra.mxu0 %v1929
        %1977 = vmatpush.msra.mxu0 %v1924
        %1978 = vmatpush.msra.mxu0 %v1919
        %1979 = vmatpush.msra.mxu0 %v1914
        %1980 = vmatpush.msra.mxu0 %v1909
        %1981 = vmatpush.msra.mxu0 %v1904
        %1982 = vmatpush.msra.mxu0 %v1899
        %1983 = vmatpush.msra.mxu0 %v1894
        %1984 = vmatpush.msra.mxu0 %v1889
        %1985 = vmatmul.f32.gmra.mxu0 %v1886
        %v1986 = vpop.f32.mrf.mxu0
        %v1987 = vadd.f32 0.0, %v1986
        %1988 = vdwg.mxu0
        %1989 = vmatpush.msra.mxu0 %v1965
        %1990 = vmatpush.msra.mxu0 %v1960
        %1991 = vmatpush.msra.mxu0 %v1955
        %1992 = vmatpush.msra.mxu0 %v1950
        %1993 = vmatpush.msra.mxu0 %v1945
        %1994 = vmatpush.msra.mxu0 %v1940
        %1995 = vmatpush.msra.mxu0 %v1935
        %1996 = vmatpush.msra.mxu0 %v1930
        %1997 = vmatpush.msra.mxu0 %v1925
        %1998 = vmatpush.msra.mxu0 %v1920
        %1999 = vmatpush.msra.mxu0 %v1915
        %2000 = vmatpush.msra.mxu0 %v1910
        %2001 = vmatpush.msra.mxu0 %v1905
        %2002 = vmatpush.msra.mxu0 %v1900
        %2003 = vmatpush.msra.mxu0 %v1895
        %2004 = vmatpush.msra.mxu0 %v1890
        %2005 = vmatmul.f32.gmra.mxu0 %v1886
        %v2006 = vpop.f32.mrf.mxu0
        %v2007 = vadd.f32 0.0, %v2006
        %2008 = vdwg.mxu0
        %2009 = vmatpush.msra.mxu0 %v1966
        %2010 = vmatpush.msra.mxu0 %v1961
        %2011 = vmatpush.msra.mxu0 %v1956
        %2012 = vmatpush.msra.mxu0 %v1951
        %2013 = vmatpush.msra.mxu0 %v1946
        %2014 = vmatpush.msra.mxu0 %v1941
        %2015 = vmatpush.msra.mxu0 %v1936
        %2016 = vmatpush.msra.mxu0 %v1931
        %2017 = vmatpush.msra.mxu0 %v1926
        %2018 = vmatpush.msra.mxu0 %v1921
        %2019 = vmatpush.msra.mxu0 %v1916
        %2020 = vmatpush.msra.mxu0 %v1911
        %2021 = vmatpush.msra.mxu0 %v1906
        %2022 = vmatpush.msra.mxu0 %v1901
        %2023 = vmatpush.msra.mxu0 %v1896
        %2024 = vmatpush.msra.mxu0 %v1891
        %2025 = vmatmul.f32.gmra.mxu0 %v1886
        %v2026 = vpop.f32.mrf.mxu0
        %v2027 = vadd.f32 0.0, %v2026
        %2028 = vdwg.mxu0
        %2029 = vmatpush.msra.mxu0 %v1967
        %2030 = vmatpush.msra.mxu0 %v1962
        %2031 = vmatpush.msra.mxu0 %v1957
        %2032 = vmatpush.msra.mxu0 %v1952
        %2033 = vmatpush.msra.mxu0 %v1947
        %2034 = vmatpush.msra.mxu0 %v1942
        %2035 = vmatpush.msra.mxu0 %v1937
        %2036 = vmatpush.msra.mxu0 %v1932
        %2037 = vmatpush.msra.mxu0 %v1927
        %2038 = vmatpush.msra.mxu0 %v1922
        %2039 = vmatpush.msra.mxu0 %v1917
        %2040 = vmatpush.msra.mxu0 %v1912
        %2041 = vmatpush.msra.mxu0 %v1907
        %2042 = vmatpush.msra.mxu0 %v1902
        %2043 = vmatpush.msra.mxu0 %v1897
        %2044 = vmatpush.msra.mxu0 %v1892
        %2045 = vmatmul.f32.gmra.mxu0 %v1886
        %v2046 = vpop.f32.mrf.mxu0
        %v2047 = vadd.f32 0.0, %v2046
        %2048 = vdwg.mxu0
        %2049 = vmatpush.msra.mxu0 %v1968
        %2050 = vmatpush.msra.mxu0 %v1963
        %2051 = vmatpush.msra.mxu0 %v1958
        %2052 = vmatpush.msra.mxu0 %v1953
        %2053 = vmatpush.msra.mxu0 %v1948
        %2054 = vmatpush.msra.mxu0 %v1943
        %2055 = vmatpush.msra.mxu0 %v1938
        %2056 = vmatpush.msra.mxu0 %v1933
        %2057 = vmatpush.msra.mxu0 %v1928
        %2058 = vmatpush.msra.mxu0 %v1923
        %2059 = vmatpush.msra.mxu0 %v1918
        %2060 = vmatpush.msra.mxu0 %v1913
        %2061 = vmatpush.msra.mxu0 %v1908
        %2062 = vmatpush.msra.mxu0 %v1903
        %2063 = vmatpush.msra.mxu0 %v1898
        %2064 = vmatpush.msra.mxu0 %v1893
        %2065 = vmatmul.f32.gmra.mxu0 %v1886
        %v2066 = vpop.f32.mrf.mxu0
        %v2067 = vadd.f32 0.0, %v2066
        %2068 = vdwg.mxu0
        %v2069 = vadd.f32 %v1858, %v1987
        %v2070 = vadd.f32 %v1859, %v2007
        %v2071 = vadd.f32 %v1860, %v2027
        %v2072 = vadd.f32 %v1861, %v2047
        %v2073 = vadd.f32 %v1862, %v2067
        %s2074 = scalar_lea.vmem %s6, 24
        %v2075 = vld [vmem:[%s2074] sm:$0x7]
        %v2077 = vsel %vm799, %v2075, 0
        %2079 = vmatpush.msra.mxu0 0.0
        %2080 = vmatpush.msra.mxu0 0.0
        %2081 = vmatpush.msra.mxu0 0.0
        %2082 = vmatpush.msra.mxu0 0.0
        %2083 = vmatpush.msra.mxu0 0.0
        %2084 = vmatpush.msra.mxu0 0.0
        %2085 = vmatpush.msra.mxu0 0.0
        %2086 = vmatpush.msra.mxu0 0.0
        %2087 = vmatpush.msra.mxu0 0.0
        %2088 = vmatpush.msra.mxu0 0.0
        %2089 = vmatpush.msra.mxu0 0.0
        %2090 = vmatpush.msra.mxu0 0.0
        %2091 = vmatpush.msra.mxu0 0.0
        %2092 = vmatpush.msra.mxu0 0.0
        %2093 = vmatpush.msra.mxu0 0.0
        %2094 = vmatpush.msra.mxu0 %v796
        %2095 = vmatmul.f32.gmra.mxu0 %v2077
        %v2096 = vpop.f32.mrf.mxu0
        %v2097 = vadd.f32 0.0, %v2096
        %2098 = vdwg.mxu0
        %s2099 = scalar_lea.vmem %s7, 3840
        %v2100 = vld [vmem:[%s2099] sm:$0xff]
        %v2101 = vld [vmem:[%s2099 + $0x8] sm:$0xff]
        %v2102 = vld [vmem:[%s2099 + $0x10] sm:$0xff]
        %v2103 = vld [vmem:[%s2099 + $0x18] sm:$0xff]
        %v2104 = vld [vmem:[%s2099 + $0x20] sm:$0xff]
        %v2105 = vld [vmem:[%s2099 + $0x28] sm:$0xff]
        %v2106 = vld [vmem:[%s2099 + $0x30] sm:$0xff]
        %v2107 = vld [vmem:[%s2099 + $0x38] sm:$0xff]
        %v2108 = vld [vmem:[%s2099 + $0x40] sm:$0xff]
        %v2109 = vld [vmem:[%s2099 + $0x48] sm:$0xff]
        %v2110 = vld [vmem:[%s2099 + $0x50] sm:$0xff]
        %v2111 = vld [vmem:[%s2099 + $0x58] sm:$0xff]
        %v2112 = vld [vmem:[%s2099 + $0x60] sm:$0xff]
        %v2113 = vld [vmem:[%s2099 + $0x68] sm:$0xff]
        %v2114 = vld [vmem:[%s2099 + $0x70] sm:$0xff]
        %v2115 = vld [vmem:[%s2099 + $0x78] sm:$0xff]
        %v2116 = vld [vmem:[%s2099 + $0x80] sm:$0xff]
        %v2117 = vld [vmem:[%s2099 + $0x88] sm:$0xff]
        %v2118 = vld [vmem:[%s2099 + $0x90] sm:$0xff]
        %v2119 = vld [vmem:[%s2099 + $0x98] sm:$0xff]
        %v2120 = vld [vmem:[%s2099 + $0xa0] sm:$0xff]
        %v2121 = vld [vmem:[%s2099 + $0xa8] sm:$0xff]
        %v2122 = vld [vmem:[%s2099 + $0xb0] sm:$0xff]
        %v2123 = vld [vmem:[%s2099 + $0xb8] sm:$0xff]
        %v2124 = vld [vmem:[%s2099 + $0xc0] sm:$0xff]
        %v2125 = vld [vmem:[%s2099 + $0xc8] sm:$0xff]
        %v2126 = vld [vmem:[%s2099 + $0xd0] sm:$0xff]
        %v2127 = vld [vmem:[%s2099 + $0xd8] sm:$0xff]
        %v2128 = vld [vmem:[%s2099 + $0xe0] sm:$0xff]
        %v2129 = vld [vmem:[%s2099 + $0xe8] sm:$0xff]
        %v2130 = vld [vmem:[%s2099 + $0xf0] sm:$0xff]
        %v2131 = vld [vmem:[%s2099 + $0xf8] sm:$0xff]
        %v2132 = vld [vmem:[%s2099 + $0x100] sm:$0xff]
        %v2133 = vld [vmem:[%s2099 + $0x108] sm:$0xff]
        %v2134 = vld [vmem:[%s2099 + $0x110] sm:$0xff]
        %v2135 = vld [vmem:[%s2099 + $0x118] sm:$0xff]
        %v2136 = vld [vmem:[%s2099 + $0x120] sm:$0xff]
        %v2137 = vld [vmem:[%s2099 + $0x128] sm:$0xff]
        %v2138 = vld [vmem:[%s2099 + $0x130] sm:$0xff]
        %v2139 = vld [vmem:[%s2099 + $0x138] sm:$0xff]
        %v2140 = vld [vmem:[%s2099 + $0x140] sm:$0xff]
        %v2141 = vld [vmem:[%s2099 + $0x148] sm:$0xff]
        %v2142 = vld [vmem:[%s2099 + $0x150] sm:$0xff]
        %v2143 = vld [vmem:[%s2099 + $0x158] sm:$0xff]
        %v2144 = vld [vmem:[%s2099 + $0x160] sm:$0xff]
        %v2145 = vld [vmem:[%s2099 + $0x168] sm:$0xff]
        %v2146 = vld [vmem:[%s2099 + $0x170] sm:$0xff]
        %v2147 = vld [vmem:[%s2099 + $0x178] sm:$0xff]
        %v2148 = vld [vmem:[%s2099 + $0x180] sm:$0xff]
        %v2149 = vld [vmem:[%s2099 + $0x188] sm:$0xff]
        %v2150 = vld [vmem:[%s2099 + $0x190] sm:$0xff]
        %v2151 = vld [vmem:[%s2099 + $0x198] sm:$0xff]
        %v2152 = vld [vmem:[%s2099 + $0x1a0] sm:$0xff]
        %v2153 = vld [vmem:[%s2099 + $0x1a8] sm:$0xff]
        %v2154 = vld [vmem:[%s2099 + $0x1b0] sm:$0xff]
        %v2155 = vld [vmem:[%s2099 + $0x1b8] sm:$0xff]
        %v2156 = vld [vmem:[%s2099 + $0x1c0] sm:$0xff]
        %v2157 = vld [vmem:[%s2099 + $0x1c8] sm:$0xff]
        %v2158 = vld [vmem:[%s2099 + $0x1d0] sm:$0xff]
        %v2159 = vld [vmem:[%s2099 + $0x1d8] sm:$0xff]
        %v2160 = vld [vmem:[%s2099 + $0x1e0] sm:$0xff]
        %v2161 = vld [vmem:[%s2099 + $0x1e8] sm:$0xff]
        %v2162 = vld [vmem:[%s2099 + $0x1f0] sm:$0xff]
        %v2163 = vld [vmem:[%s2099 + $0x1f8] sm:$0xff]
        %v2164 = vld [vmem:[%s2099 + $0x200] sm:$0xff]
        %v2165 = vld [vmem:[%s2099 + $0x208] sm:$0xff]
        %v2166 = vld [vmem:[%s2099 + $0x210] sm:$0xff]
        %v2167 = vld [vmem:[%s2099 + $0x218] sm:$0xff]
        %v2168 = vld [vmem:[%s2099 + $0x220] sm:$0xff]
        %v2169 = vld [vmem:[%s2099 + $0x228] sm:$0xff]
        %v2170 = vld [vmem:[%s2099 + $0x230] sm:$0xff]
        %v2171 = vld [vmem:[%s2099 + $0x238] sm:$0xff]
        %v2172 = vld [vmem:[%s2099 + $0x240] sm:$0xff]
        %v2173 = vld [vmem:[%s2099 + $0x248] sm:$0xff]
        %v2174 = vld [vmem:[%s2099 + $0x250] sm:$0xff]
        %v2175 = vld [vmem:[%s2099 + $0x258] sm:$0xff]
        %v2176 = vld [vmem:[%s2099 + $0x260] sm:$0xff]
        %v2177 = vld [vmem:[%s2099 + $0x268] sm:$0xff]
        %v2178 = vld [vmem:[%s2099 + $0x270] sm:$0xff]
        %v2179 = vld [vmem:[%s2099 + $0x278] sm:$0xff]
        %2180 = vmatpush.msra.mxu0 %v2175
        %2181 = vmatpush.msra.mxu0 %v2170
        %2182 = vmatpush.msra.mxu0 %v2165
        %2183 = vmatpush.msra.mxu0 %v2160
        %2184 = vmatpush.msra.mxu0 %v2155
        %2185 = vmatpush.msra.mxu0 %v2150
        %2186 = vmatpush.msra.mxu0 %v2145
        %2187 = vmatpush.msra.mxu0 %v2140
        %2188 = vmatpush.msra.mxu0 %v2135
        %2189 = vmatpush.msra.mxu0 %v2130
        %2190 = vmatpush.msra.mxu0 %v2125
        %2191 = vmatpush.msra.mxu0 %v2120
        %2192 = vmatpush.msra.mxu0 %v2115
        %2193 = vmatpush.msra.mxu0 %v2110
        %2194 = vmatpush.msra.mxu0 %v2105
        %2195 = vmatpush.msra.mxu0 %v2100
        %2196 = vmatmul.f32.gmra.mxu0 %v2097
        %v2197 = vpop.f32.mrf.mxu0
        %v2198 = vadd.f32 0.0, %v2197
        %2199 = vdwg.mxu0
        %2200 = vmatpush.msra.mxu0 %v2176
        %2201 = vmatpush.msra.mxu0 %v2171
        %2202 = vmatpush.msra.mxu0 %v2166
        %2203 = vmatpush.msra.mxu0 %v2161
        %2204 = vmatpush.msra.mxu0 %v2156
        %2205 = vmatpush.msra.mxu0 %v2151
        %2206 = vmatpush.msra.mxu0 %v2146
        %2207 = vmatpush.msra.mxu0 %v2141
        %2208 = vmatpush.msra.mxu0 %v2136
        %2209 = vmatpush.msra.mxu0 %v2131
        %2210 = vmatpush.msra.mxu0 %v2126
        %2211 = vmatpush.msra.mxu0 %v2121
        %2212 = vmatpush.msra.mxu0 %v2116
        %2213 = vmatpush.msra.mxu0 %v2111
        %2214 = vmatpush.msra.mxu0 %v2106
        %2215 = vmatpush.msra.mxu0 %v2101
        %2216 = vmatmul.f32.gmra.mxu0 %v2097
        %v2217 = vpop.f32.mrf.mxu0
        %v2218 = vadd.f32 0.0, %v2217
        %2219 = vdwg.mxu0
        %2220 = vmatpush.msra.mxu0 %v2177
        %2221 = vmatpush.msra.mxu0 %v2172
        %2222 = vmatpush.msra.mxu0 %v2167
        %2223 = vmatpush.msra.mxu0 %v2162
        %2224 = vmatpush.msra.mxu0 %v2157
        %2225 = vmatpush.msra.mxu0 %v2152
        %2226 = vmatpush.msra.mxu0 %v2147
        %2227 = vmatpush.msra.mxu0 %v2142
        %2228 = vmatpush.msra.mxu0 %v2137
        %2229 = vmatpush.msra.mxu0 %v2132
        %2230 = vmatpush.msra.mxu0 %v2127
        %2231 = vmatpush.msra.mxu0 %v2122
        %2232 = vmatpush.msra.mxu0 %v2117
        %2233 = vmatpush.msra.mxu0 %v2112
        %2234 = vmatpush.msra.mxu0 %v2107
        %2235 = vmatpush.msra.mxu0 %v2102
        %2236 = vmatmul.f32.gmra.mxu0 %v2097
        %v2237 = vpop.f32.mrf.mxu0
        %v2238 = vadd.f32 0.0, %v2237
        %2239 = vdwg.mxu0
        %2240 = vmatpush.msra.mxu0 %v2178
        %2241 = vmatpush.msra.mxu0 %v2173
        %2242 = vmatpush.msra.mxu0 %v2168
        %2243 = vmatpush.msra.mxu0 %v2163
        %2244 = vmatpush.msra.mxu0 %v2158
        %2245 = vmatpush.msra.mxu0 %v2153
        %2246 = vmatpush.msra.mxu0 %v2148
        %2247 = vmatpush.msra.mxu0 %v2143
        %2248 = vmatpush.msra.mxu0 %v2138
        %2249 = vmatpush.msra.mxu0 %v2133
        %2250 = vmatpush.msra.mxu0 %v2128
        %2251 = vmatpush.msra.mxu0 %v2123
        %2252 = vmatpush.msra.mxu0 %v2118
        %2253 = vmatpush.msra.mxu0 %v2113
        %2254 = vmatpush.msra.mxu0 %v2108
        %2255 = vmatpush.msra.mxu0 %v2103
        %2256 = vmatmul.f32.gmra.mxu0 %v2097
        %v2257 = vpop.f32.mrf.mxu0
        %v2258 = vadd.f32 0.0, %v2257
        %2259 = vdwg.mxu0
        %2260 = vmatpush.msra.mxu0 %v2179
        %2261 = vmatpush.msra.mxu0 %v2174
        %2262 = vmatpush.msra.mxu0 %v2169
        %2263 = vmatpush.msra.mxu0 %v2164
        %2264 = vmatpush.msra.mxu0 %v2159
        %2265 = vmatpush.msra.mxu0 %v2154
        %2266 = vmatpush.msra.mxu0 %v2149
        %2267 = vmatpush.msra.mxu0 %v2144
        %2268 = vmatpush.msra.mxu0 %v2139
        %2269 = vmatpush.msra.mxu0 %v2134
        %2270 = vmatpush.msra.mxu0 %v2129
        %2271 = vmatpush.msra.mxu0 %v2124
        %2272 = vmatpush.msra.mxu0 %v2119
        %2273 = vmatpush.msra.mxu0 %v2114
        %2274 = vmatpush.msra.mxu0 %v2109
        %2275 = vmatpush.msra.mxu0 %v2104
        %2276 = vmatmul.f32.gmra.mxu0 %v2097
        %v2277 = vpop.f32.mrf.mxu0
        %v2278 = vadd.f32 0.0, %v2277
        %2279 = vdwg.mxu0
        %v2280 = vadd.f32 %v2069, %v2198
        %v2281 = vadd.f32 %v2070, %v2218
        %v2282 = vadd.f32 %v2071, %v2238
        %v2283 = vadd.f32 %v2072, %v2258
        %v2284 = vadd.f32 %v2073, %v2278
        %v2285 = vmax.f32 %v2280, 0.0
        %v2286 = vmax.f32 %v2281, 0.0
        %v2287 = vmax.f32 %v2282, 0.0
        %v2288 = vmax.f32 %v2283, 0.0
        %v2289 = vmax.f32 %v2284, 0.0
        %v2290 = vld [vmem:[%s10] sm:$0xff]
        %v2291 = vld [vmem:[#allocation3] sm:$0xff]
        %v2292 = vld [vmem:[#allocation3 + $0x8] sm:$0xff]
        %v2293 = vld [vmem:[#allocation3 + $0x10] sm:$0xff]
        %v2294 = vld [vmem:[#allocation3 + $0x18] sm:$0xff]
        %v2295 = vld [vmem:[#allocation3 + $0x20] sm:$0xff]
        %v2296 = vld [vmem:[#allocation3 + $0x28] sm:$0xff]
        %v2297 = vld [vmem:[#allocation3 + $0x30] sm:$0xff]
        %v2298 = vld [vmem:[#allocation3 + $0x38] sm:$0xff]
        %v2299 = vld [vmem:[#allocation3 + $0x40] sm:$0xff]
        %v2300 = vld [vmem:[#allocation3 + $0x48] sm:$0xff]
        %v2301 = vld [vmem:[#allocation3 + $0x50] sm:$0xff]
        %v2302 = vld [vmem:[#allocation3 + $0x58] sm:$0xff]
        %v2303 = vld [vmem:[#allocation3 + $0x60] sm:$0xff]
        %v2304 = vld [vmem:[#allocation3 + $0x68] sm:$0xff]
        %v2305 = vld [vmem:[#allocation3 + $0x70] sm:$0xff]
        %v2306 = vld [vmem:[#allocation3 + $0x78] sm:$0xff]
        %v2307 = vld [vmem:[#allocation3 + $0x80] sm:$0xff]
        %v2308 = vld [vmem:[#allocation3 + $0x88] sm:$0xff]
        %v2309 = vld [vmem:[#allocation3 + $0x90] sm:$0xff]
        %v2310 = vld [vmem:[#allocation3 + $0x98] sm:$0xff]
        %v2311 = vld [vmem:[#allocation3 + $0xa0] sm:$0xff]
        %v2312 = vld [vmem:[#allocation3 + $0xa8] sm:$0xff]
        %v2313 = vld [vmem:[#allocation3 + $0xb0] sm:$0xff]
        %v2314 = vld [vmem:[#allocation3 + $0xb8] sm:$0xff]
        %v2315 = vld [vmem:[#allocation3 + $0xc0] sm:$0xff]
        %v2316 = vld [vmem:[#allocation3 + $0xc8] sm:$0xff]
        %v2317 = vld [vmem:[#allocation3 + $0xd0] sm:$0xff]
        %v2318 = vld [vmem:[#allocation3 + $0xd8] sm:$0xff]
        %v2319 = vld [vmem:[#allocation3 + $0xe0] sm:$0xff]
        %v2320 = vld [vmem:[#allocation3 + $0xe8] sm:$0xff]
        %v2321 = vld [vmem:[#allocation3 + $0xf0] sm:$0xff]
        %v2322 = vld [vmem:[#allocation3 + $0xf8] sm:$0xff]
        %v2323 = vld [vmem:[#allocation3 + $0x100] sm:$0xff]
        %v2324 = vld [vmem:[#allocation3 + $0x108] sm:$0xff]
        %v2325 = vld [vmem:[#allocation3 + $0x110] sm:$0xff]
        %v2326 = vld [vmem:[#allocation3 + $0x118] sm:$0xff]
        %v2327 = vld [vmem:[#allocation3 + $0x120] sm:$0xff]
        %v2328 = vld [vmem:[#allocation3 + $0x128] sm:$0xff]
        %v2329 = vld [vmem:[#allocation3 + $0x130] sm:$0xff]
        %v2330 = vld [vmem:[#allocation3 + $0x138] sm:$0xff]
        %v2331 = vld [vmem:[#allocation3 + $0x140] sm:$0xff]
        %v2332 = vld [vmem:[#allocation3 + $0x148] sm:$0xff]
        %v2333 = vld [vmem:[#allocation3 + $0x150] sm:$0xff]
        %v2334 = vld [vmem:[#allocation3 + $0x158] sm:$0xff]
        %v2335 = vld [vmem:[#allocation3 + $0x160] sm:$0xff]
        %v2336 = vld [vmem:[#allocation3 + $0x168] sm:$0xff]
        %v2337 = vld [vmem:[#allocation3 + $0x170] sm:$0xff]
        %v2338 = vld [vmem:[#allocation3 + $0x178] sm:$0xff]
        %v2339 = vld [vmem:[#allocation3 + $0x180] sm:$0xff]
        %v2340 = vld [vmem:[#allocation3 + $0x188] sm:$0xff]
        %v2341 = vld [vmem:[#allocation3 + $0x190] sm:$0xff]
        %v2342 = vld [vmem:[#allocation3 + $0x198] sm:$0xff]
        %v2343 = vld [vmem:[#allocation3 + $0x1a0] sm:$0xff]
        %v2344 = vld [vmem:[#allocation3 + $0x1a8] sm:$0xff]
        %v2345 = vld [vmem:[#allocation3 + $0x1b0] sm:$0xff]
        %v2346 = vld [vmem:[#allocation3 + $0x1b8] sm:$0xff]
        %v2347 = vld [vmem:[#allocation3 + $0x1c0] sm:$0xff]
        %v2348 = vld [vmem:[#allocation3 + $0x1c8] sm:$0xff]
        %v2349 = vld [vmem:[#allocation3 + $0x1d0] sm:$0xff]
        %v2350 = vld [vmem:[#allocation3 + $0x1d8] sm:$0xff]
        %v2351 = vld [vmem:[#allocation3 + $0x1e0] sm:$0xff]
        %v2352 = vld [vmem:[#allocation3 + $0x1e8] sm:$0xff]
        %v2353 = vld [vmem:[#allocation3 + $0x1f0] sm:$0xff]
        %v2354 = vld [vmem:[#allocation3 + $0x1f8] sm:$0xff]
        %v2355 = vld [vmem:[#allocation3 + $0x200] sm:$0xff]
        %v2356 = vld [vmem:[#allocation3 + $0x208] sm:$0xff]
        %v2357 = vld [vmem:[#allocation3 + $0x210] sm:$0xff]
        %v2358 = vld [vmem:[#allocation3 + $0x218] sm:$0xff]
        %v2359 = vld [vmem:[#allocation3 + $0x220] sm:$0xff]
        %v2360 = vld [vmem:[#allocation3 + $0x228] sm:$0xff]
        %v2361 = vld [vmem:[#allocation3 + $0x230] sm:$0xff]
        %v2362 = vld [vmem:[#allocation3 + $0x238] sm:$0xff]
        %v2363 = vld [vmem:[#allocation3 + $0x240] sm:$0xff]
        %v2364 = vld [vmem:[#allocation3 + $0x248] sm:$0xff]
        %v2365 = vld [vmem:[#allocation3 + $0x250] sm:$0xff]
        %v2366 = vld [vmem:[#allocation3 + $0x258] sm:$0xff]
        %v2367 = vld [vmem:[#allocation3 + $0x260] sm:$0xff]
        %v2368 = vld [vmem:[#allocation3 + $0x268] sm:$0xff]
        %v2369 = vld [vmem:[#allocation3 + $0x270] sm:$0xff]
        %v2370 = vld [vmem:[#allocation3 + $0x278] sm:$0xff]
        %v2371 = vld [vmem:[#allocation3 + $0x280] sm:$0xff]
        %v2372 = vld [vmem:[#allocation3 + $0x288] sm:$0xff]
        %v2373 = vld [vmem:[#allocation3 + $0x290] sm:$0xff]
        %v2374 = vld [vmem:[#allocation3 + $0x298] sm:$0xff]
        %v2375 = vld [vmem:[#allocation3 + $0x2a0] sm:$0xff]
        %v2376 = vld [vmem:[#allocation3 + $0x2a8] sm:$0xff]
        %v2377 = vld [vmem:[#allocation3 + $0x2b0] sm:$0xff]
        %v2378 = vld [vmem:[#allocation3 + $0x2b8] sm:$0xff]
        %v2379 = vld [vmem:[#allocation3 + $0x2c0] sm:$0xff]
        %v2380 = vld [vmem:[#allocation3 + $0x2c8] sm:$0xff]
        %v2381 = vld [vmem:[#allocation3 + $0x2d0] sm:$0xff]
        %v2382 = vld [vmem:[#allocation3 + $0x2d8] sm:$0xff]
        %v2383 = vld [vmem:[#allocation3 + $0x2e0] sm:$0xff]
        %v2384 = vld [vmem:[#allocation3 + $0x2e8] sm:$0xff]
        %v2385 = vld [vmem:[#allocation3 + $0x2f0] sm:$0xff]
        %v2386 = vld [vmem:[#allocation3 + $0x2f8] sm:$0xff]
        %v2387 = vld [vmem:[#allocation3 + $0x300] sm:$0xff]
        %v2388 = vld [vmem:[#allocation3 + $0x308] sm:$0xff]
        %v2389 = vld [vmem:[#allocation3 + $0x310] sm:$0xff]
        %v2390 = vld [vmem:[#allocation3 + $0x318] sm:$0xff]
        %v2391 = vld [vmem:[#allocation3 + $0x320] sm:$0xff]
        %v2392 = vld [vmem:[#allocation3 + $0x328] sm:$0xff]
        %v2393 = vld [vmem:[#allocation3 + $0x330] sm:$0xff]
        %v2394 = vld [vmem:[#allocation3 + $0x338] sm:$0xff]
        %v2395 = vld [vmem:[#allocation3 + $0x340] sm:$0xff]
        %v2396 = vld [vmem:[#allocation3 + $0x348] sm:$0xff]
        %v2397 = vld [vmem:[#allocation3 + $0x350] sm:$0xff]
        %v2398 = vld [vmem:[#allocation3 + $0x358] sm:$0xff]
        %v2399 = vld [vmem:[#allocation3 + $0x360] sm:$0xff]
        %v2400 = vld [vmem:[#allocation3 + $0x368] sm:$0xff]
        %v2401 = vld [vmem:[#allocation3 + $0x370] sm:$0xff]
        %v2402 = vld [vmem:[#allocation3 + $0x378] sm:$0xff]
        %v2403 = vld [vmem:[#allocation3 + $0x380] sm:$0xff]
        %v2404 = vld [vmem:[#allocation3 + $0x388] sm:$0xff]
        %v2405 = vld [vmem:[#allocation3 + $0x390] sm:$0xff]
        %v2406 = vld [vmem:[#allocation3 + $0x398] sm:$0xff]
        %v2407 = vld [vmem:[#allocation3 + $0x3a0] sm:$0xff]
        %v2408 = vld [vmem:[#allocation3 + $0x3a8] sm:$0xff]
        %v2409 = vld [vmem:[#allocation3 + $0x3b0] sm:$0xff]
        %v2410 = vld [vmem:[#allocation3 + $0x3b8] sm:$0xff]
        %v2411 = vld [vmem:[#allocation3 + $0x3c0] sm:$0xff]
        %v2412 = vld [vmem:[#allocation3 + $0x3c8] sm:$0xff]
        %v2413 = vld [vmem:[#allocation3 + $0x3d0] sm:$0xff]
        %v2414 = vld [vmem:[#allocation3 + $0x3d8] sm:$0xff]
        %v2415 = vld [vmem:[#allocation3 + $0x3e0] sm:$0xff]
        %v2416 = vld [vmem:[#allocation3 + $0x3e8] sm:$0xff]
        %v2417 = vld [vmem:[#allocation3 + $0x3f0] sm:$0xff]
        %v2418 = vld [vmem:[#allocation3 + $0x3f8] sm:$0xff]
        %v2419 = vld [vmem:[#allocation3 + $0x400] sm:$0xff]
        %v2420 = vld [vmem:[#allocation3 + $0x408] sm:$0xff]
        %v2421 = vld [vmem:[#allocation3 + $0x410] sm:$0xff]
        %v2422 = vld [vmem:[#allocation3 + $0x418] sm:$0xff]
        %v2423 = vld [vmem:[#allocation3 + $0x420] sm:$0xff]
        %v2424 = vld [vmem:[#allocation3 + $0x428] sm:$0xff]
        %v2425 = vld [vmem:[#allocation3 + $0x430] sm:$0xff]
        %v2426 = vld [vmem:[#allocation3 + $0x438] sm:$0xff]
        %v2427 = vld [vmem:[#allocation3 + $0x440] sm:$0xff]
        %v2428 = vld [vmem:[#allocation3 + $0x448] sm:$0xff]
        %v2429 = vld [vmem:[#allocation3 + $0x450] sm:$0xff]
        %v2430 = vld [vmem:[#allocation3 + $0x458] sm:$0xff]
        %v2431 = vld [vmem:[#allocation3 + $0x460] sm:$0xff]
        %v2432 = vld [vmem:[#allocation3 + $0x468] sm:$0xff]
        %v2433 = vld [vmem:[#allocation3 + $0x470] sm:$0xff]
        %v2434 = vld [vmem:[#allocation3 + $0x478] sm:$0xff]
        %v2435 = vld [vmem:[#allocation3 + $0x480] sm:$0xff]
        %v2436 = vld [vmem:[#allocation3 + $0x488] sm:$0xff]
        %v2437 = vld [vmem:[#allocation3 + $0x490] sm:$0xff]
        %v2438 = vld [vmem:[#allocation3 + $0x498] sm:$0xff]
        %v2439 = vld [vmem:[#allocation3 + $0x4a0] sm:$0xff]
        %v2440 = vld [vmem:[#allocation3 + $0x4a8] sm:$0xff]
        %v2441 = vld [vmem:[#allocation3 + $0x4b0] sm:$0xff]
        %v2442 = vld [vmem:[#allocation3 + $0x4b8] sm:$0xff]
        %v2443 = vld [vmem:[#allocation3 + $0x4c0] sm:$0xff]
        %v2444 = vld [vmem:[#allocation3 + $0x4c8] sm:$0xff]
        %v2445 = vld [vmem:[#allocation3 + $0x4d0] sm:$0xff]
        %v2446 = vld [vmem:[#allocation3 + $0x4d8] sm:$0xff]
        %v2447 = vld [vmem:[#allocation3 + $0x4e0] sm:$0xff]
        %v2448 = vld [vmem:[#allocation3 + $0x4e8] sm:$0xff]
        %v2449 = vld [vmem:[#allocation3 + $0x4f0] sm:$0xff]
        %v2450 = vld [vmem:[#allocation3 + $0x4f8] sm:$0xff]
        %v2451 = vld [vmem:[#allocation3 + $0x500] sm:$0xff]
        %v2452 = vld [vmem:[#allocation3 + $0x508] sm:$0xff]
        %v2453 = vld [vmem:[#allocation3 + $0x510] sm:$0xff]
        %v2454 = vld [vmem:[#allocation3 + $0x518] sm:$0xff]
        %v2455 = vld [vmem:[#allocation3 + $0x520] sm:$0xff]
        %v2456 = vld [vmem:[#allocation3 + $0x528] sm:$0xff]
        %v2457 = vld [vmem:[#allocation3 + $0x530] sm:$0xff]
        %v2458 = vld [vmem:[#allocation3 + $0x538] sm:$0xff]
        %v2459 = vld [vmem:[#allocation3 + $0x540] sm:$0xff]
        %v2460 = vld [vmem:[#allocation3 + $0x548] sm:$0xff]
        %v2461 = vld [vmem:[#allocation3 + $0x550] sm:$0xff]
        %v2462 = vld [vmem:[#allocation3 + $0x558] sm:$0xff]
        %v2463 = vld [vmem:[#allocation3 + $0x560] sm:$0xff]
        %v2464 = vld [vmem:[#allocation3 + $0x568] sm:$0xff]
        %v2465 = vld [vmem:[#allocation3 + $0x570] sm:$0xff]
        %v2466 = vld [vmem:[#allocation3 + $0x578] sm:$0xff]
        %v2467 = vld [vmem:[#allocation3 + $0x580] sm:$0xff]
        %v2468 = vld [vmem:[#allocation3 + $0x588] sm:$0xff]
        %v2469 = vld [vmem:[#allocation3 + $0x590] sm:$0xff]
        %v2470 = vld [vmem:[#allocation3 + $0x598] sm:$0xff]
        %v2471 = vld [vmem:[#allocation3 + $0x5a0] sm:$0xff]
        %v2472 = vld [vmem:[#allocation3 + $0x5a8] sm:$0xff]
        %v2473 = vld [vmem:[#allocation3 + $0x5b0] sm:$0xff]
        %v2474 = vld [vmem:[#allocation3 + $0x5b8] sm:$0xff]
        %v2475 = vld [vmem:[#allocation3 + $0x5c0] sm:$0xff]
        %v2476 = vld [vmem:[#allocation3 + $0x5c8] sm:$0xff]
        %v2477 = vld [vmem:[#allocation3 + $0x5d0] sm:$0xff]
        %v2478 = vld [vmem:[#allocation3 + $0x5d8] sm:$0xff]
        %v2479 = vld [vmem:[#allocation3 + $0x5e0] sm:$0xff]
        %v2480 = vld [vmem:[#allocation3 + $0x5e8] sm:$0xff]
        %v2481 = vld [vmem:[#allocation3 + $0x5f0] sm:$0xff]
        %v2482 = vld [vmem:[#allocation3 + $0x5f8] sm:$0xff]
        %v2483 = vld [vmem:[#allocation3 + $0x600] sm:$0xff]
        %v2484 = vld [vmem:[#allocation3 + $0x608] sm:$0xff]
        %v2485 = vld [vmem:[#allocation3 + $0x610] sm:$0xff]
        %v2486 = vld [vmem:[#allocation3 + $0x618] sm:$0xff]
        %v2487 = vld [vmem:[#allocation3 + $0x620] sm:$0xff]
        %v2488 = vld [vmem:[#allocation3 + $0x628] sm:$0xff]
        %v2489 = vld [vmem:[#allocation3 + $0x630] sm:$0xff]
        %v2490 = vld [vmem:[#allocation3 + $0x638] sm:$0xff]
        %v2491 = vld [vmem:[#allocation3 + $0x640] sm:$0xff]
        %v2492 = vld [vmem:[#allocation3 + $0x648] sm:$0xff]
        %v2493 = vld [vmem:[#allocation3 + $0x650] sm:$0xff]
        %v2494 = vld [vmem:[#allocation3 + $0x658] sm:$0xff]
        %v2495 = vld [vmem:[#allocation3 + $0x660] sm:$0xff]
        %v2496 = vld [vmem:[#allocation3 + $0x668] sm:$0xff]
        %v2497 = vld [vmem:[#allocation3 + $0x670] sm:$0xff]
        %v2498 = vld [vmem:[#allocation3 + $0x678] sm:$0xff]
        %v2499 = vld [vmem:[#allocation3 + $0x680] sm:$0xff]
        %v2500 = vld [vmem:[#allocation3 + $0x688] sm:$0xff]
        %v2501 = vld [vmem:[#allocation3 + $0x690] sm:$0xff]
        %v2502 = vld [vmem:[#allocation3 + $0x698] sm:$0xff]
        %v2503 = vld [vmem:[#allocation3 + $0x6a0] sm:$0xff]
        %v2504 = vld [vmem:[#allocation3 + $0x6a8] sm:$0xff]
        %v2505 = vld [vmem:[#allocation3 + $0x6b0] sm:$0xff]
        %v2506 = vld [vmem:[#allocation3 + $0x6b8] sm:$0xff]
        %v2507 = vld [vmem:[#allocation3 + $0x6c0] sm:$0xff]
        %v2508 = vld [vmem:[#allocation3 + $0x6c8] sm:$0xff]
        %v2509 = vld [vmem:[#allocation3 + $0x6d0] sm:$0xff]
        %v2510 = vld [vmem:[#allocation3 + $0x6d8] sm:$0xff]
        %v2511 = vld [vmem:[#allocation3 + $0x6e0] sm:$0xff]
        %v2512 = vld [vmem:[#allocation3 + $0x6e8] sm:$0xff]
        %v2513 = vld [vmem:[#allocation3 + $0x6f0] sm:$0xff]
        %v2514 = vld [vmem:[#allocation3 + $0x6f8] sm:$0xff]
        %v2515 = vld [vmem:[#allocation3 + $0x700] sm:$0xff]
        %v2516 = vld [vmem:[#allocation3 + $0x708] sm:$0xff]
        %v2517 = vld [vmem:[#allocation3 + $0x710] sm:$0xff]
        %v2518 = vld [vmem:[#allocation3 + $0x718] sm:$0xff]
        %v2519 = vld [vmem:[#allocation3 + $0x720] sm:$0xff]
        %v2520 = vld [vmem:[#allocation3 + $0x728] sm:$0xff]
        %v2521 = vld [vmem:[#allocation3 + $0x730] sm:$0xff]
        %v2522 = vld [vmem:[#allocation3 + $0x738] sm:$0xff]
        %v2523 = vld [vmem:[#allocation3 + $0x740] sm:$0xff]
        %v2524 = vld [vmem:[#allocation3 + $0x748] sm:$0xff]
        %v2525 = vld [vmem:[#allocation3 + $0x750] sm:$0xff]
        %v2526 = vld [vmem:[#allocation3 + $0x758] sm:$0xff]
        %v2527 = vld [vmem:[#allocation3 + $0x760] sm:$0xff]
        %v2528 = vld [vmem:[#allocation3 + $0x768] sm:$0xff]
        %v2529 = vld [vmem:[#allocation3 + $0x770] sm:$0xff]
        %v2530 = vld [vmem:[#allocation3 + $0x778] sm:$0xff]
        %v2531 = vld [vmem:[#allocation3 + $0x780] sm:$0xff]
        %v2532 = vld [vmem:[#allocation3 + $0x788] sm:$0xff]
        %v2533 = vld [vmem:[#allocation3 + $0x790] sm:$0xff]
        %v2534 = vld [vmem:[#allocation3 + $0x798] sm:$0xff]
        %v2535 = vld [vmem:[#allocation3 + $0x7a0] sm:$0xff]
        %v2536 = vld [vmem:[#allocation3 + $0x7a8] sm:$0xff]
        %v2537 = vld [vmem:[#allocation3 + $0x7b0] sm:$0xff]
        %v2538 = vld [vmem:[#allocation3 + $0x7b8] sm:$0xff]
        %v2539 = vld [vmem:[#allocation3 + $0x7c0] sm:$0xff]
        %v2540 = vld [vmem:[#allocation3 + $0x7c8] sm:$0xff]
        %v2541 = vld [vmem:[#allocation3 + $0x7d0] sm:$0xff]
        %v2542 = vld [vmem:[#allocation3 + $0x7d8] sm:$0xff]
        %v2543 = vld [vmem:[#allocation3 + $0x7e0] sm:$0xff]
        %v2544 = vld [vmem:[#allocation3 + $0x7e8] sm:$0xff]
        %v2545 = vld [vmem:[#allocation3 + $0x7f0] sm:$0xff]
        %v2546 = vld [vmem:[#allocation3 + $0x7f8] sm:$0xff]
        %v2547 = vld [vmem:[#allocation3 + $0x800] sm:$0xff]
        %v2548 = vld [vmem:[#allocation3 + $0x808] sm:$0xff]
        %v2549 = vld [vmem:[#allocation3 + $0x810] sm:$0xff]
        %v2550 = vld [vmem:[#allocation3 + $0x818] sm:$0xff]
        %v2551 = vld [vmem:[#allocation3 + $0x820] sm:$0xff]
        %v2552 = vld [vmem:[#allocation3 + $0x828] sm:$0xff]
        %v2553 = vld [vmem:[#allocation3 + $0x830] sm:$0xff]
        %v2554 = vld [vmem:[#allocation3 + $0x838] sm:$0xff]
        %v2555 = vld [vmem:[#allocation3 + $0x840] sm:$0xff]
        %v2556 = vld [vmem:[#allocation3 + $0x848] sm:$0xff]
        %v2557 = vld [vmem:[#allocation3 + $0x850] sm:$0xff]
        %v2558 = vld [vmem:[#allocation3 + $0x858] sm:$0xff]
        %v2559 = vld [vmem:[#allocation3 + $0x860] sm:$0xff]
        %v2560 = vld [vmem:[#allocation3 + $0x868] sm:$0xff]
        %v2561 = vld [vmem:[#allocation3 + $0x870] sm:$0xff]
        %v2562 = vld [vmem:[#allocation3 + $0x878] sm:$0xff]
        %v2563 = vld [vmem:[#allocation3 + $0x880] sm:$0xff]
        %v2564 = vld [vmem:[#allocation3 + $0x888] sm:$0xff]
        %v2565 = vld [vmem:[#allocation3 + $0x890] sm:$0xff]
        %v2566 = vld [vmem:[#allocation3 + $0x898] sm:$0xff]
        %v2567 = vld [vmem:[#allocation3 + $0x8a0] sm:$0xff]
        %v2568 = vld [vmem:[#allocation3 + $0x8a8] sm:$0xff]
        %v2569 = vld [vmem:[#allocation3 + $0x8b0] sm:$0xff]
        %v2570 = vld [vmem:[#allocation3 + $0x8b8] sm:$0xff]
        %v2571 = vld [vmem:[#allocation3 + $0x8c0] sm:$0xff]
        %v2572 = vld [vmem:[#allocation3 + $0x8c8] sm:$0xff]
        %v2573 = vld [vmem:[#allocation3 + $0x8d0] sm:$0xff]
        %v2574 = vld [vmem:[#allocation3 + $0x8d8] sm:$0xff]
        %v2575 = vld [vmem:[#allocation3 + $0x8e0] sm:$0xff]
        %v2576 = vld [vmem:[#allocation3 + $0x8e8] sm:$0xff]
        %v2577 = vld [vmem:[#allocation3 + $0x8f0] sm:$0xff]
        %v2578 = vld [vmem:[#allocation3 + $0x8f8] sm:$0xff]
        %v2579 = vld [vmem:[#allocation3 + $0x900] sm:$0xff]
        %v2580 = vld [vmem:[#allocation3 + $0x908] sm:$0xff]
        %v2581 = vld [vmem:[#allocation3 + $0x910] sm:$0xff]
        %v2582 = vld [vmem:[#allocation3 + $0x918] sm:$0xff]
        %v2583 = vld [vmem:[#allocation3 + $0x920] sm:$0xff]
        %v2584 = vld [vmem:[#allocation3 + $0x928] sm:$0xff]
        %v2585 = vld [vmem:[#allocation3 + $0x930] sm:$0xff]
        %v2586 = vld [vmem:[#allocation3 + $0x938] sm:$0xff]
        %v2587 = vld [vmem:[#allocation3 + $0x940] sm:$0xff]
        %v2588 = vld [vmem:[#allocation3 + $0x948] sm:$0xff]
        %v2589 = vld [vmem:[#allocation3 + $0x950] sm:$0xff]
        %v2590 = vld [vmem:[#allocation3 + $0x958] sm:$0xff]
        %v2591 = vld [vmem:[#allocation3 + $0x960] sm:$0xff]
        %v2592 = vld [vmem:[#allocation3 + $0x968] sm:$0xff]
        %v2593 = vld [vmem:[#allocation3 + $0x970] sm:$0xff]
        %v2594 = vld [vmem:[#allocation3 + $0x978] sm:$0xff]
        %v2595 = vld [vmem:[#allocation3 + $0x980] sm:$0xff]
        %v2596 = vld [vmem:[#allocation3 + $0x988] sm:$0xff]
        %v2597 = vld [vmem:[#allocation3 + $0x990] sm:$0xff]
        %v2598 = vld [vmem:[#allocation3 + $0x998] sm:$0xff]
        %v2599 = vld [vmem:[#allocation3 + $0x9a0] sm:$0xff]
        %v2600 = vld [vmem:[#allocation3 + $0x9a8] sm:$0xff]
        %v2601 = vld [vmem:[#allocation3 + $0x9b0] sm:$0xff]
        %v2602 = vld [vmem:[#allocation3 + $0x9b8] sm:$0xff]
        %v2603 = vld [vmem:[#allocation3 + $0x9c0] sm:$0xff]
        %v2604 = vld [vmem:[#allocation3 + $0x9c8] sm:$0xff]
        %v2605 = vld [vmem:[#allocation3 + $0x9d0] sm:$0xff]
        %v2606 = vld [vmem:[#allocation3 + $0x9d8] sm:$0xff]
        %v2607 = vld [vmem:[#allocation3 + $0x9e0] sm:$0xff]
        %v2608 = vld [vmem:[#allocation3 + $0x9e8] sm:$0xff]
        %v2609 = vld [vmem:[#allocation3 + $0x9f0] sm:$0xff]
        %v2610 = vld [vmem:[#allocation3 + $0x9f8] sm:$0xff]
        %v2611 = vld [vmem:[#allocation3 + $0xa00] sm:$0xff]
        %v2612 = vld [vmem:[#allocation3 + $0xa08] sm:$0xff]
        %v2613 = vld [vmem:[#allocation3 + $0xa10] sm:$0xff]
        %v2614 = vld [vmem:[#allocation3 + $0xa18] sm:$0xff]
        %v2615 = vld [vmem:[#allocation3 + $0xa20] sm:$0xff]
        %v2616 = vld [vmem:[#allocation3 + $0xa28] sm:$0xff]
        %v2617 = vld [vmem:[#allocation3 + $0xa30] sm:$0xff]
        %v2618 = vld [vmem:[#allocation3 + $0xa38] sm:$0xff]
        %v2619 = vld [vmem:[#allocation3 + $0xa40] sm:$0xff]
        %v2620 = vld [vmem:[#allocation3 + $0xa48] sm:$0xff]
        %v2621 = vld [vmem:[#allocation3 + $0xa50] sm:$0xff]
        %v2622 = vld [vmem:[#allocation3 + $0xa58] sm:$0xff]
        %v2623 = vld [vmem:[#allocation3 + $0xa60] sm:$0xff]
        %v2624 = vld [vmem:[#allocation3 + $0xa68] sm:$0xff]
        %v2625 = vld [vmem:[#allocation3 + $0xa70] sm:$0xff]
        %v2626 = vld [vmem:[#allocation3 + $0xa78] sm:$0xff]
        %v2627 = vld [vmem:[#allocation3 + $0xa80] sm:$0xff]
        %v2628 = vld [vmem:[#allocation3 + $0xa88] sm:$0xff]
        %v2629 = vld [vmem:[#allocation3 + $0xa90] sm:$0xff]
        %v2630 = vld [vmem:[#allocation3 + $0xa98] sm:$0xff]
        %v2631 = vld [vmem:[#allocation3 + $0xaa0] sm:$0xff]
        %v2632 = vld [vmem:[#allocation3 + $0xaa8] sm:$0xff]
        %v2633 = vld [vmem:[#allocation3 + $0xab0] sm:$0xff]
        %v2634 = vld [vmem:[#allocation3 + $0xab8] sm:$0xff]
        %v2635 = vld [vmem:[#allocation3 + $0xac0] sm:$0xff]
        %v2636 = vld [vmem:[#allocation3 + $0xac8] sm:$0xff]
        %v2637 = vld [vmem:[#allocation3 + $0xad0] sm:$0xff]
        %v2638 = vld [vmem:[#allocation3 + $0xad8] sm:$0xff]
        %v2639 = vld [vmem:[#allocation3 + $0xae0] sm:$0xff]
        %v2640 = vld [vmem:[#allocation3 + $0xae8] sm:$0xff]
        %v2641 = vld [vmem:[#allocation3 + $0xaf0] sm:$0xff]
        %v2642 = vld [vmem:[#allocation3 + $0xaf8] sm:$0xff]
        %v2643 = vld [vmem:[#allocation3 + $0xb00] sm:$0xff]
        %v2644 = vld [vmem:[#allocation3 + $0xb08] sm:$0xff]
        %v2645 = vld [vmem:[#allocation3 + $0xb10] sm:$0xff]
        %v2646 = vld [vmem:[#allocation3 + $0xb18] sm:$0xff]
        %v2647 = vld [vmem:[#allocation3 + $0xb20] sm:$0xff]
        %v2648 = vld [vmem:[#allocation3 + $0xb28] sm:$0xff]
        %v2649 = vld [vmem:[#allocation3 + $0xb30] sm:$0xff]
        %v2650 = vld [vmem:[#allocation3 + $0xb38] sm:$0xff]
        %v2651 = vld [vmem:[#allocation3 + $0xb40] sm:$0xff]
        %v2652 = vld [vmem:[#allocation3 + $0xb48] sm:$0xff]
        %v2653 = vld [vmem:[#allocation3 + $0xb50] sm:$0xff]
        %v2654 = vld [vmem:[#allocation3 + $0xb58] sm:$0xff]
        %v2655 = vld [vmem:[#allocation3 + $0xb60] sm:$0xff]
        %v2656 = vld [vmem:[#allocation3 + $0xb68] sm:$0xff]
        %v2657 = vld [vmem:[#allocation3 + $0xb70] sm:$0xff]
        %v2658 = vld [vmem:[#allocation3 + $0xb78] sm:$0xff]
        %v2659 = vld [vmem:[#allocation3 + $0xb80] sm:$0xff]
        %v2660 = vld [vmem:[#allocation3 + $0xb88] sm:$0xff]
        %v2661 = vld [vmem:[#allocation3 + $0xb90] sm:$0xff]
        %v2662 = vld [vmem:[#allocation3 + $0xb98] sm:$0xff]
        %v2663 = vld [vmem:[#allocation3 + $0xba0] sm:$0xff]
        %v2664 = vld [vmem:[#allocation3 + $0xba8] sm:$0xff]
        %v2665 = vld [vmem:[#allocation3 + $0xbb0] sm:$0xff]
        %v2666 = vld [vmem:[#allocation3 + $0xbb8] sm:$0xff]
        %v2667 = vld [vmem:[#allocation3 + $0xbc0] sm:$0xff]
        %v2668 = vld [vmem:[#allocation3 + $0xbc8] sm:$0xff]
        %v2669 = vld [vmem:[#allocation3 + $0xbd0] sm:$0xff]
        %v2670 = vld [vmem:[#allocation3 + $0xbd8] sm:$0xff]
        %v2671 = vld [vmem:[#allocation3 + $0xbe0] sm:$0xff]
        %v2672 = vld [vmem:[#allocation3 + $0xbe8] sm:$0xff]
        %v2673 = vld [vmem:[#allocation3 + $0xbf0] sm:$0xff]
        %v2674 = vld [vmem:[#allocation3 + $0xbf8] sm:$0xff]
        %v2675 = vld [vmem:[#allocation3 + $0xc00] sm:$0xff]
        %v2676 = vld [vmem:[#allocation3 + $0xc08] sm:$0xff]
        %v2677 = vld [vmem:[#allocation3 + $0xc10] sm:$0xff]
        %v2678 = vld [vmem:[#allocation3 + $0xc18] sm:$0xff]
        %v2679 = vld [vmem:[#allocation3 + $0xc20] sm:$0xff]
        %v2680 = vld [vmem:[#allocation3 + $0xc28] sm:$0xff]
        %v2681 = vld [vmem:[#allocation3 + $0xc30] sm:$0xff]
        %v2682 = vld [vmem:[#allocation3 + $0xc38] sm:$0xff]
        %v2683 = vld [vmem:[#allocation3 + $0xc40] sm:$0xff]
        %v2684 = vld [vmem:[#allocation3 + $0xc48] sm:$0xff]
        %v2685 = vld [vmem:[#allocation3 + $0xc50] sm:$0xff]
        %v2686 = vld [vmem:[#allocation3 + $0xc58] sm:$0xff]
        %v2687 = vld [vmem:[#allocation3 + $0xc60] sm:$0xff]
        %v2688 = vld [vmem:[#allocation3 + $0xc68] sm:$0xff]
        %v2689 = vld [vmem:[#allocation3 + $0xc70] sm:$0xff]
        %v2690 = vld [vmem:[#allocation3 + $0xc78] sm:$0xff]
        %v2691 = vld [vmem:[#allocation3 + $0xc80] sm:$0xff]
        %v2692 = vld [vmem:[#allocation3 + $0xc88] sm:$0xff]
        %v2693 = vld [vmem:[#allocation3 + $0xc90] sm:$0xff]
        %v2694 = vld [vmem:[#allocation3 + $0xc98] sm:$0xff]
        %v2695 = vld [vmem:[#allocation3 + $0xca0] sm:$0xff]
        %v2696 = vld [vmem:[#allocation3 + $0xca8] sm:$0xff]
        %v2697 = vld [vmem:[#allocation3 + $0xcb0] sm:$0xff]
        %v2698 = vld [vmem:[#allocation3 + $0xcb8] sm:$0xff]
        %v2699 = vld [vmem:[#allocation3 + $0xcc0] sm:$0xff]
        %v2700 = vld [vmem:[#allocation3 + $0xcc8] sm:$0xff]
        %v2701 = vld [vmem:[#allocation3 + $0xcd0] sm:$0xff]
        %v2702 = vld [vmem:[#allocation3 + $0xcd8] sm:$0xff]
        %v2703 = vld [vmem:[#allocation3 + $0xce0] sm:$0xff]
        %v2704 = vld [vmem:[#allocation3 + $0xce8] sm:$0xff]
        %v2705 = vld [vmem:[#allocation3 + $0xcf0] sm:$0xff]
        %v2706 = vld [vmem:[#allocation3 + $0xcf8] sm:$0xff]
        %v2707 = vld [vmem:[#allocation3 + $0xd00] sm:$0xff]
        %v2708 = vld [vmem:[#allocation3 + $0xd08] sm:$0xff]
        %v2709 = vld [vmem:[#allocation3 + $0xd10] sm:$0xff]
        %v2710 = vld [vmem:[#allocation3 + $0xd18] sm:$0xff]
        %v2711 = vld [vmem:[#allocation3 + $0xd20] sm:$0xff]
        %v2712 = vld [vmem:[#allocation3 + $0xd28] sm:$0xff]
        %v2713 = vld [vmem:[#allocation3 + $0xd30] sm:$0xff]
        %v2714 = vld [vmem:[#allocation3 + $0xd38] sm:$0xff]
        %v2715 = vld [vmem:[#allocation3 + $0xd40] sm:$0xff]
        %v2716 = vld [vmem:[#allocation3 + $0xd48] sm:$0xff]
        %v2717 = vld [vmem:[#allocation3 + $0xd50] sm:$0xff]
        %v2718 = vld [vmem:[#allocation3 + $0xd58] sm:$0xff]
        %v2719 = vld [vmem:[#allocation3 + $0xd60] sm:$0xff]
        %v2720 = vld [vmem:[#allocation3 + $0xd68] sm:$0xff]
        %v2721 = vld [vmem:[#allocation3 + $0xd70] sm:$0xff]
        %v2722 = vld [vmem:[#allocation3 + $0xd78] sm:$0xff]
        %v2723 = vld [vmem:[#allocation3 + $0xd80] sm:$0xff]
        %v2724 = vld [vmem:[#allocation3 + $0xd88] sm:$0xff]
        %v2725 = vld [vmem:[#allocation3 + $0xd90] sm:$0xff]
        %v2726 = vld [vmem:[#allocation3 + $0xd98] sm:$0xff]
        %v2727 = vld [vmem:[#allocation3 + $0xda0] sm:$0xff]
        %v2728 = vld [vmem:[#allocation3 + $0xda8] sm:$0xff]
        %v2729 = vld [vmem:[#allocation3 + $0xdb0] sm:$0xff]
        %v2730 = vld [vmem:[#allocation3 + $0xdb8] sm:$0xff]
        %v2731 = vld [vmem:[#allocation3 + $0xdc0] sm:$0xff]
        %v2732 = vld [vmem:[#allocation3 + $0xdc8] sm:$0xff]
        %v2733 = vld [vmem:[#allocation3 + $0xdd0] sm:$0xff]
        %v2734 = vld [vmem:[#allocation3 + $0xdd8] sm:$0xff]
        %v2735 = vld [vmem:[#allocation3 + $0xde0] sm:$0xff]
        %v2736 = vld [vmem:[#allocation3 + $0xde8] sm:$0xff]
        %v2737 = vld [vmem:[#allocation3 + $0xdf0] sm:$0xff]
        %v2738 = vld [vmem:[#allocation3 + $0xdf8] sm:$0xff]
        %v2739 = vld [vmem:[#allocation3 + $0xe00] sm:$0xff]
        %v2740 = vld [vmem:[#allocation3 + $0xe08] sm:$0xff]
        %v2741 = vld [vmem:[#allocation3 + $0xe10] sm:$0xff]
        %v2742 = vld [vmem:[#allocation3 + $0xe18] sm:$0xff]
        %v2743 = vld [vmem:[#allocation3 + $0xe20] sm:$0xff]
        %v2744 = vld [vmem:[#allocation3 + $0xe28] sm:$0xff]
        %v2745 = vld [vmem:[#allocation3 + $0xe30] sm:$0xff]
        %v2746 = vld [vmem:[#allocation3 + $0xe38] sm:$0xff]
        %v2747 = vld [vmem:[#allocation3 + $0xe40] sm:$0xff]
        %v2748 = vld [vmem:[#allocation3 + $0xe48] sm:$0xff]
        %v2749 = vld [vmem:[#allocation3 + $0xe50] sm:$0xff]
        %v2750 = vld [vmem:[#allocation3 + $0xe58] sm:$0xff]
        %v2751 = vld [vmem:[#allocation3 + $0xe60] sm:$0xff]
        %v2752 = vld [vmem:[#allocation3 + $0xe68] sm:$0xff]
        %v2753 = vld [vmem:[#allocation3 + $0xe70] sm:$0xff]
        %v2754 = vld [vmem:[#allocation3 + $0xe78] sm:$0xff]
        %v2755 = vld [vmem:[#allocation3 + $0xe80] sm:$0xff]
        %v2756 = vld [vmem:[#allocation3 + $0xe88] sm:$0xff]
        %v2757 = vld [vmem:[#allocation3 + $0xe90] sm:$0xff]
        %v2758 = vld [vmem:[#allocation3 + $0xe98] sm:$0xff]
        %v2759 = vld [vmem:[#allocation3 + $0xea0] sm:$0xff]
        %v2760 = vld [vmem:[#allocation3 + $0xea8] sm:$0xff]
        %v2761 = vld [vmem:[#allocation3 + $0xeb0] sm:$0xff]
        %v2762 = vld [vmem:[#allocation3 + $0xeb8] sm:$0xff]
        %v2763 = vld [vmem:[#allocation3 + $0xec0] sm:$0xff]
        %v2764 = vld [vmem:[#allocation3 + $0xec8] sm:$0xff]
        %v2765 = vld [vmem:[#allocation3 + $0xed0] sm:$0xff]
        %v2766 = vld [vmem:[#allocation3 + $0xed8] sm:$0xff]
        %v2767 = vld [vmem:[#allocation3 + $0xee0] sm:$0xff]
        %v2768 = vld [vmem:[#allocation3 + $0xee8] sm:$0xff]
        %v2769 = vld [vmem:[#allocation3 + $0xef0] sm:$0xff]
        %v2770 = vld [vmem:[#allocation3 + $0xef8] sm:$0xff]
        %v2771 = vld [vmem:[#allocation3 + $0xf00] sm:$0xff]
        %v2772 = vld [vmem:[#allocation3 + $0xf08] sm:$0xff]
        %v2773 = vld [vmem:[#allocation3 + $0xf10] sm:$0xff]
        %v2774 = vld [vmem:[#allocation3 + $0xf18] sm:$0xff]
        %v2775 = vld [vmem:[#allocation3 + $0xf20] sm:$0xff]
        %v2776 = vld [vmem:[#allocation3 + $0xf28] sm:$0xff]
        %v2777 = vld [vmem:[#allocation3 + $0xf30] sm:$0xff]
        %v2778 = vld [vmem:[#allocation3 + $0xf38] sm:$0xff]
        %v2779 = vld [vmem:[#allocation3 + $0xf40] sm:$0xff]
        %v2780 = vld [vmem:[#allocation3 + $0xf48] sm:$0xff]
        %v2781 = vld [vmem:[#allocation3 + $0xf50] sm:$0xff]
        %v2782 = vld [vmem:[#allocation3 + $0xf58] sm:$0xff]
        %v2783 = vld [vmem:[#allocation3 + $0xf60] sm:$0xff]
        %v2784 = vld [vmem:[#allocation3 + $0xf68] sm:$0xff]
        %v2785 = vld [vmem:[#allocation3 + $0xf70] sm:$0xff]
        %v2786 = vld [vmem:[#allocation3 + $0xf78] sm:$0xff]
        %v2787 = vld [vmem:[#allocation3 + $0xf80] sm:$0xff]
        %v2788 = vld [vmem:[#allocation3 + $0xf88] sm:$0xff]
        %v2789 = vld [vmem:[#allocation3 + $0xf90] sm:$0xff]
        %v2790 = vld [vmem:[#allocation3 + $0xf98] sm:$0xff]
        %v2791 = vld [vmem:[#allocation3 + $0xfa0] sm:$0xff]
        %v2792 = vld [vmem:[#allocation3 + $0xfa8] sm:$0xff]
        %v2793 = vld [vmem:[#allocation3 + $0xfb0] sm:$0xff]
        %v2794 = vld [vmem:[#allocation3 + $0xfb8] sm:$0xff]
        %v2795 = vld [vmem:[#allocation3 + $0xfc0] sm:$0xff]
        %v2796 = vld [vmem:[#allocation3 + $0xfc8] sm:$0xff]
        %v2797 = vld [vmem:[#allocation3 + $0xfd0] sm:$0xff]
        %v2798 = vld [vmem:[#allocation3 + $0xfd8] sm:$0xff]
        %v2799 = vld [vmem:[#allocation3 + $0xfe0] sm:$0xff]
        %v2800 = vld [vmem:[#allocation3 + $0xfe8] sm:$0xff]
        %v2801 = vld [vmem:[#allocation3 + $0xff0] sm:$0xff]
        %v2802 = vld [vmem:[#allocation3 + $0xff8] sm:$0xff]
        %v2803 = vld [vmem:[#allocation3 + $0x1000] sm:$0xff]
        %v2804 = vld [vmem:[#allocation3 + $0x1008] sm:$0xff]
        %v2805 = vld [vmem:[#allocation3 + $0x1010] sm:$0xff]
        %v2806 = vld [vmem:[#allocation3 + $0x1018] sm:$0xff]
        %v2807 = vld [vmem:[#allocation3 + $0x1020] sm:$0xff]
        %v2808 = vld [vmem:[#allocation3 + $0x1028] sm:$0xff]
        %v2809 = vld [vmem:[#allocation3 + $0x1030] sm:$0xff]
        %v2810 = vld [vmem:[#allocation3 + $0x1038] sm:$0xff]
        %v2811 = vld [vmem:[#allocation3 + $0x1040] sm:$0xf]
        %v2812 = vld [vmem:[#allocation3 + $0x1048] sm:$0xf]
        %v2813 = vld [vmem:[#allocation3 + $0x1050] sm:$0xf]
        %v2814 = vld [vmem:[#allocation3 + $0x1058] sm:$0xf]
        %v2815 = vld [vmem:[#allocation3 + $0x1060] sm:$0xf]
        %v2816 = vld [vmem:[#allocation3 + $0x1068] sm:$0xf]
        %v2817 = vld [vmem:[#allocation3 + $0x1070] sm:$0xf]
        %v2818 = vld [vmem:[#allocation3 + $0x1078] sm:$0xf]
        %vm2819 = vcmask 97280
        %v2821 = vsel %vm2819, %v2289, 0
        %vm2823 = vcmask 1043456
        %v2825 = vsel %vm2823, %v2811, 0
        %v2828 = vsel %vm2823, %v2812, 0
        %v2831 = vsel %vm2823, %v2813, 0
        %v2834 = vsel %vm2823, %v2814, 0
        %v2837 = vsel %vm2823, %v2815, 0
        %v2840 = vsel %vm2823, %v2816, 0
        %v2843 = vsel %vm2823, %v2817, 0
        %v2846 = vsel %vm2823, %v2818, 0
        %2848 = vmatpush.msra.mxu0 %v2411
        %2849 = vmatpush.msra.mxu0 %v2403
        %2850 = vmatpush.msra.mxu0 %v2395
        %2851 = vmatpush.msra.mxu0 %v2387
        %2852 = vmatpush.msra.mxu0 %v2379
        %2853 = vmatpush.msra.mxu0 %v2371
        %2854 = vmatpush.msra.mxu0 %v2363
        %2855 = vmatpush.msra.mxu0 %v2355
        %2856 = vmatpush.msra.mxu0 %v2347
        %2857 = vmatpush.msra.mxu0 %v2339
        %2858 = vmatpush.msra.mxu0 %v2331
        %2859 = vmatpush.msra.mxu0 %v2323
        %2860 = vmatpush.msra.mxu0 %v2315
        %2861 = vmatpush.msra.mxu0 %v2307
        %2862 = vmatpush.msra.mxu0 %v2299
        %2863 = vmatpush.msra.mxu0 %v2291
        %2864 = vmatmul.f32.gmra.mxu0 %v2285
        %v2865 = vpop.f32.mrf.mxu0
        %v2866 = vadd.f32 0.0, %v2865
        %2867 = vdwg.mxu0
        %2868 = vmatpush.msra.mxu0 %v2539
        %2869 = vmatpush.msra.mxu0 %v2531
        %2870 = vmatpush.msra.mxu0 %v2523
        %2871 = vmatpush.msra.mxu0 %v2515
        %2872 = vmatpush.msra.mxu0 %v2507
        %2873 = vmatpush.msra.mxu0 %v2499
        %2874 = vmatpush.msra.mxu0 %v2491
        %2875 = vmatpush.msra.mxu0 %v2483
        %2876 = vmatpush.msra.mxu0 %v2475
        %2877 = vmatpush.msra.mxu0 %v2467
        %2878 = vmatpush.msra.mxu0 %v2459
        %2879 = vmatpush.msra.mxu0 %v2451
        %2880 = vmatpush.msra.mxu0 %v2443
        %2881 = vmatpush.msra.mxu0 %v2435
        %2882 = vmatpush.msra.mxu0 %v2427
        %2883 = vmatpush.msra.mxu0 %v2419
        %2884 = vmatmul.f32.gmra.mxu0 %v2286
        %v2885 = vpop.f32.mrf.mxu0
        %v2886 = vadd.f32 %v2866, %v2885
        %2887 = vdwg.mxu0
        %2888 = vmatpush.msra.mxu0 %v2667
        %2889 = vmatpush.msra.mxu0 %v2659
        %2890 = vmatpush.msra.mxu0 %v2651
        %2891 = vmatpush.msra.mxu0 %v2643
        %2892 = vmatpush.msra.mxu0 %v2635
        %2893 = vmatpush.msra.mxu0 %v2627
        %2894 = vmatpush.msra.mxu0 %v2619
        %2895 = vmatpush.msra.mxu0 %v2611
        %2896 = vmatpush.msra.mxu0 %v2603
        %2897 = vmatpush.msra.mxu0 %v2595
        %2898 = vmatpush.msra.mxu0 %v2587
        %2899 = vmatpush.msra.mxu0 %v2579
        %2900 = vmatpush.msra.mxu0 %v2571
        %2901 = vmatpush.msra.mxu0 %v2563
        %2902 = vmatpush.msra.mxu0 %v2555
        %2903 = vmatpush.msra.mxu0 %v2547
        %2904 = vmatmul.f32.gmra.mxu0 %v2287
        %v2905 = vpop.f32.mrf.mxu0
        %v2906 = vadd.f32 %v2886, %v2905
        %2907 = vdwg.mxu0
        %2908 = vmatpush.msra.mxu0 %v2795
        %2909 = vmatpush.msra.mxu0 %v2787
        %2910 = vmatpush.msra.mxu0 %v2779
        %2911 = vmatpush.msra.mxu0 %v2771
        %2912 = vmatpush.msra.mxu0 %v2763
        %2913 = vmatpush.msra.mxu0 %v2755
        %2914 = vmatpush.msra.mxu0 %v2747
        %2915 = vmatpush.msra.mxu0 %v2739
        %2916 = vmatpush.msra.mxu0 %v2731
        %2917 = vmatpush.msra.mxu0 %v2723
        %2918 = vmatpush.msra.mxu0 %v2715
        %2919 = vmatpush.msra.mxu0 %v2707
        %2920 = vmatpush.msra.mxu0 %v2699
        %2921 = vmatpush.msra.mxu0 %v2691
        %2922 = vmatpush.msra.mxu0 %v2683
        %2923 = vmatpush.msra.mxu0 %v2675
        %2924 = vmatmul.f32.gmra.mxu0 %v2288
        %v2925 = vpop.f32.mrf.mxu0
        %v2926 = vadd.f32 %v2906, %v2925
        %2927 = vdwg.mxu0
        %2928 = vmatpush.msra.mxu0 0.0
        %2929 = vmatpush.msra.mxu0 0.0
        %2930 = vmatpush.msra.mxu0 0.0
        %2931 = vmatpush.msra.mxu0 0.0
        %2932 = vmatpush.msra.mxu0 0.0
        %2933 = vmatpush.msra.mxu0 0.0
        %2934 = vmatpush.msra.mxu0 0.0
        %2935 = vmatpush.msra.mxu0 0.0
        %2936 = vmatpush.msra.mxu0 0.0
        %2937 = vmatpush.msra.mxu0 0.0
        %2938 = vmatpush.msra.mxu0 0.0
        %2939 = vmatpush.msra.mxu0 0.0
        %2940 = vmatpush.msra.mxu0 0.0
        %2941 = vmatpush.msra.mxu0 0.0
        %2942 = vmatpush.msra.mxu0 %v2825
        %2943 = vmatpush.msra.mxu0 %v2803
        %2944 = vmatmul.f32.gmra.mxu0 %v2821
        %v2945 = vpop.f32.mrf.mxu0
        %v2946 = vadd.f32 %v2926, %v2945
        %2947 = vdwg.mxu0
        %2948 = vmatpush.msra.mxu0 %v2412
        %2949 = vmatpush.msra.mxu0 %v2404
        %2950 = vmatpush.msra.mxu0 %v2396
        %2951 = vmatpush.msra.mxu0 %v2388
        %2952 = vmatpush.msra.mxu0 %v2380
        %2953 = vmatpush.msra.mxu0 %v2372
        %2954 = vmatpush.msra.mxu0 %v2364
        %2955 = vmatpush.msra.mxu0 %v2356
        %2956 = vmatpush.msra.mxu0 %v2348
        %2957 = vmatpush.msra.mxu0 %v2340
        %2958 = vmatpush.msra.mxu0 %v2332
        %2959 = vmatpush.msra.mxu0 %v2324
        %2960 = vmatpush.msra.mxu0 %v2316
        %2961 = vmatpush.msra.mxu0 %v2308
        %2962 = vmatpush.msra.mxu0 %v2300
        %2963 = vmatpush.msra.mxu0 %v2292
        %2964 = vmatmul.f32.gmra.mxu0 %v2285
        %v2965 = vpop.f32.mrf.mxu0
        %v2966 = vadd.f32 0.0, %v2965
        %2967 = vdwg.mxu0
        %2968 = vmatpush.msra.mxu0 %v2540
        %2969 = vmatpush.msra.mxu0 %v2532
        %2970 = vmatpush.msra.mxu0 %v2524
        %2971 = vmatpush.msra.mxu0 %v2516
        %2972 = vmatpush.msra.mxu0 %v2508
        %2973 = vmatpush.msra.mxu0 %v2500
        %2974 = vmatpush.msra.mxu0 %v2492
        %2975 = vmatpush.msra.mxu0 %v2484
        %2976 = vmatpush.msra.mxu0 %v2476
        %2977 = vmatpush.msra.mxu0 %v2468
        %2978 = vmatpush.msra.mxu0 %v2460
        %2979 = vmatpush.msra.mxu0 %v2452
        %2980 = vmatpush.msra.mxu0 %v2444
        %2981 = vmatpush.msra.mxu0 %v2436
        %2982 = vmatpush.msra.mxu0 %v2428
        %2983 = vmatpush.msra.mxu0 %v2420
        %2984 = vmatmul.f32.gmra.mxu0 %v2286
        %v2985 = vpop.f32.mrf.mxu0
        %v2986 = vadd.f32 %v2966, %v2985
        %2987 = vdwg.mxu0
        %2988 = vmatpush.msra.mxu0 %v2668
        %2989 = vmatpush.msra.mxu0 %v2660
        %2990 = vmatpush.msra.mxu0 %v2652
        %2991 = vmatpush.msra.mxu0 %v2644
        %2992 = vmatpush.msra.mxu0 %v2636
        %2993 = vmatpush.msra.mxu0 %v2628
        %2994 = vmatpush.msra.mxu0 %v2620
        %2995 = vmatpush.msra.mxu0 %v2612
        %2996 = vmatpush.msra.mxu0 %v2604
        %2997 = vmatpush.msra.mxu0 %v2596
        %2998 = vmatpush.msra.mxu0 %v2588
        %2999 = vmatpush.msra.mxu0 %v2580
        %3000 = vmatpush.msra.mxu0 %v2572
        %3001 = vmatpush.msra.mxu0 %v2564
        %3002 = vmatpush.msra.mxu0 %v2556
        %3003 = vmatpush.msra.mxu0 %v2548
        %3004 = vmatmul.f32.gmra.mxu0 %v2287
        %v3005 = vpop.f32.mrf.mxu0
        %v3006 = vadd.f32 %v2986, %v3005
        %3007 = vdwg.mxu0
        %3008 = vmatpush.msra.mxu0 %v2796
        %3009 = vmatpush.msra.mxu0 %v2788
        %3010 = vmatpush.msra.mxu0 %v2780
        %3011 = vmatpush.msra.mxu0 %v2772
        %3012 = vmatpush.msra.mxu0 %v2764
        %3013 = vmatpush.msra.mxu0 %v2756
        %3014 = vmatpush.msra.mxu0 %v2748
        %3015 = vmatpush.msra.mxu0 %v2740
        %3016 = vmatpush.msra.mxu0 %v2732
        %3017 = vmatpush.msra.mxu0 %v2724
        %3018 = vmatpush.msra.mxu0 %v2716
        %3019 = vmatpush.msra.mxu0 %v2708
        %3020 = vmatpush.msra.mxu0 %v2700
        %3021 = vmatpush.msra.mxu0 %v2692
        %3022 = vmatpush.msra.mxu0 %v2684
        %3023 = vmatpush.msra.mxu0 %v2676
        %3024 = vmatmul.f32.gmra.mxu0 %v2288
        %v3025 = vpop.f32.mrf.mxu0
        %v3026 = vadd.f32 %v3006, %v3025
        %3027 = vdwg.mxu0
        %3028 = vmatpush.msra.mxu0 0.0
        %3029 = vmatpush.msra.mxu0 0.0
        %3030 = vmatpush.msra.mxu0 0.0
        %3031 = vmatpush.msra.mxu0 0.0
        %3032 = vmatpush.msra.mxu0 0.0
        %3033 = vmatpush.msra.mxu0 0.0
        %3034 = vmatpush.msra.mxu0 0.0
        %3035 = vmatpush.msra.mxu0 0.0
        %3036 = vmatpush.msra.mxu0 0.0
        %3037 = vmatpush.msra.mxu0 0.0
        %3038 = vmatpush.msra.mxu0 0.0
        %3039 = vmatpush.msra.mxu0 0.0
        %3040 = vmatpush.msra.mxu0 0.0
        %3041 = vmatpush.msra.mxu0 0.0
        %3042 = vmatpush.msra.mxu0 %v2828
        %3043 = vmatpush.msra.mxu0 %v2804
        %3044 = vmatmul.f32.gmra.mxu0 %v2821
        %v3045 = vpop.f32.mrf.mxu0
        %v3046 = vadd.f32 %v3026, %v3045
        %3047 = vdwg.mxu0
        %3048 = vmatpush.msra.mxu0 %v2413
        %3049 = vmatpush.msra.mxu0 %v2405
        %3050 = vmatpush.msra.mxu0 %v2397
        %3051 = vmatpush.msra.mxu0 %v2389
        %3052 = vmatpush.msra.mxu0 %v2381
        %3053 = vmatpush.msra.mxu0 %v2373
        %3054 = vmatpush.msra.mxu0 %v2365
        %3055 = vmatpush.msra.mxu0 %v2357
        %3056 = vmatpush.msra.mxu0 %v2349
        %3057 = vmatpush.msra.mxu0 %v2341
        %3058 = vmatpush.msra.mxu0 %v2333
        %3059 = vmatpush.msra.mxu0 %v2325
        %3060 = vmatpush.msra.mxu0 %v2317
        %3061 = vmatpush.msra.mxu0 %v2309
        %3062 = vmatpush.msra.mxu0 %v2301
        %3063 = vmatpush.msra.mxu0 %v2293
        %3064 = vmatmul.f32.gmra.mxu0 %v2285
        %v3065 = vpop.f32.mrf.mxu0
        %v3066 = vadd.f32 0.0, %v3065
        %3067 = vdwg.mxu0
        %3068 = vmatpush.msra.mxu0 %v2541
        %3069 = vmatpush.msra.mxu0 %v2533
        %3070 = vmatpush.msra.mxu0 %v2525
        %3071 = vmatpush.msra.mxu0 %v2517
        %3072 = vmatpush.msra.mxu0 %v2509
        %3073 = vmatpush.msra.mxu0 %v2501
        %3074 = vmatpush.msra.mxu0 %v2493
        %3075 = vmatpush.msra.mxu0 %v2485
        %3076 = vmatpush.msra.mxu0 %v2477
        %3077 = vmatpush.msra.mxu0 %v2469
        %3078 = vmatpush.msra.mxu0 %v2461
        %3079 = vmatpush.msra.mxu0 %v2453
        %3080 = vmatpush.msra.mxu0 %v2445
        %3081 = vmatpush.msra.mxu0 %v2437
        %3082 = vmatpush.msra.mxu0 %v2429
        %3083 = vmatpush.msra.mxu0 %v2421
        %3084 = vmatmul.f32.gmra.mxu0 %v2286
        %v3085 = vpop.f32.mrf.mxu0
        %v3086 = vadd.f32 %v3066, %v3085
        %3087 = vdwg.mxu0
        %3088 = vmatpush.msra.mxu0 %v2669
        %3089 = vmatpush.msra.mxu0 %v2661
        %3090 = vmatpush.msra.mxu0 %v2653
        %3091 = vmatpush.msra.mxu0 %v2645
        %3092 = vmatpush.msra.mxu0 %v2637
        %3093 = vmatpush.msra.mxu0 %v2629
        %3094 = vmatpush.msra.mxu0 %v2621
        %3095 = vmatpush.msra.mxu0 %v2613
        %3096 = vmatpush.msra.mxu0 %v2605
        %3097 = vmatpush.msra.mxu0 %v2597
        %3098 = vmatpush.msra.mxu0 %v2589
        %3099 = vmatpush.msra.mxu0 %v2581
        %3100 = vmatpush.msra.mxu0 %v2573
        %3101 = vmatpush.msra.mxu0 %v2565
        %3102 = vmatpush.msra.mxu0 %v2557
        %3103 = vmatpush.msra.mxu0 %v2549
        %3104 = vmatmul.f32.gmra.mxu0 %v2287
        %v3105 = vpop.f32.mrf.mxu0
        %v3106 = vadd.f32 %v3086, %v3105
        %3107 = vdwg.mxu0
        %3108 = vmatpush.msra.mxu0 %v2797
        %3109 = vmatpush.msra.mxu0 %v2789
        %3110 = vmatpush.msra.mxu0 %v2781
        %3111 = vmatpush.msra.mxu0 %v2773
        %3112 = vmatpush.msra.mxu0 %v2765
        %3113 = vmatpush.msra.mxu0 %v2757
        %3114 = vmatpush.msra.mxu0 %v2749
        %3115 = vmatpush.msra.mxu0 %v2741
        %3116 = vmatpush.msra.mxu0 %v2733
        %3117 = vmatpush.msra.mxu0 %v2725
        %3118 = vmatpush.msra.mxu0 %v2717
        %3119 = vmatpush.msra.mxu0 %v2709
        %3120 = vmatpush.msra.mxu0 %v2701
        %3121 = vmatpush.msra.mxu0 %v2693
        %3122 = vmatpush.msra.mxu0 %v2685
        %3123 = vmatpush.msra.mxu0 %v2677
        %3124 = vmatmul.f32.gmra.mxu0 %v2288
        %v3125 = vpop.f32.mrf.mxu0
        %v3126 = vadd.f32 %v3106, %v3125
        %3127 = vdwg.mxu0
        %3128 = vmatpush.msra.mxu0 0.0
        %3129 = vmatpush.msra.mxu0 0.0
        %3130 = vmatpush.msra.mxu0 0.0
        %3131 = vmatpush.msra.mxu0 0.0
        %3132 = vmatpush.msra.mxu0 0.0
        %3133 = vmatpush.msra.mxu0 0.0
        %3134 = vmatpush.msra.mxu0 0.0
        %3135 = vmatpush.msra.mxu0 0.0
        %3136 = vmatpush.msra.mxu0 0.0
        %3137 = vmatpush.msra.mxu0 0.0
        %3138 = vmatpush.msra.mxu0 0.0
        %3139 = vmatpush.msra.mxu0 0.0
        %3140 = vmatpush.msra.mxu0 0.0
        %3141 = vmatpush.msra.mxu0 0.0
        %3142 = vmatpush.msra.mxu0 %v2831
        %3143 = vmatpush.msra.mxu0 %v2805
        %3144 = vmatmul.f32.gmra.mxu0 %v2821
        %v3145 = vpop.f32.mrf.mxu0
        %v3146 = vadd.f32 %v3126, %v3145
        %3147 = vdwg.mxu0
        %3148 = vmatpush.msra.mxu0 %v2414
        %3149 = vmatpush.msra.mxu0 %v2406
        %3150 = vmatpush.msra.mxu0 %v2398
        %3151 = vmatpush.msra.mxu0 %v2390
        %3152 = vmatpush.msra.mxu0 %v2382
        %3153 = vmatpush.msra.mxu0 %v2374
        %3154 = vmatpush.msra.mxu0 %v2366
        %3155 = vmatpush.msra.mxu0 %v2358
        %3156 = vmatpush.msra.mxu0 %v2350
        %3157 = vmatpush.msra.mxu0 %v2342
        %3158 = vmatpush.msra.mxu0 %v2334
        %3159 = vmatpush.msra.mxu0 %v2326
        %3160 = vmatpush.msra.mxu0 %v2318
        %3161 = vmatpush.msra.mxu0 %v2310
        %3162 = vmatpush.msra.mxu0 %v2302
        %3163 = vmatpush.msra.mxu0 %v2294
        %3164 = vmatmul.f32.gmra.mxu0 %v2285
        %v3165 = vpop.f32.mrf.mxu0
        %v3166 = vadd.f32 0.0, %v3165
        %3167 = vdwg.mxu0
        %3168 = vmatpush.msra.mxu0 %v2542
        %3169 = vmatpush.msra.mxu0 %v2534
        %3170 = vmatpush.msra.mxu0 %v2526
        %3171 = vmatpush.msra.mxu0 %v2518
        %3172 = vmatpush.msra.mxu0 %v2510
        %3173 = vmatpush.msra.mxu0 %v2502
        %3174 = vmatpush.msra.mxu0 %v2494
        %3175 = vmatpush.msra.mxu0 %v2486
        %3176 = vmatpush.msra.mxu0 %v2478
        %3177 = vmatpush.msra.mxu0 %v2470
        %3178 = vmatpush.msra.mxu0 %v2462
        %3179 = vmatpush.msra.mxu0 %v2454
        %3180 = vmatpush.msra.mxu0 %v2446
        %3181 = vmatpush.msra.mxu0 %v2438
        %3182 = vmatpush.msra.mxu0 %v2430
        %3183 = vmatpush.msra.mxu0 %v2422
        %3184 = vmatmul.f32.gmra.mxu0 %v2286
        %v3185 = vpop.f32.mrf.mxu0
        %v3186 = vadd.f32 %v3166, %v3185
        %3187 = vdwg.mxu0
        %3188 = vmatpush.msra.mxu0 %v2670
        %3189 = vmatpush.msra.mxu0 %v2662
        %3190 = vmatpush.msra.mxu0 %v2654
        %3191 = vmatpush.msra.mxu0 %v2646
        %3192 = vmatpush.msra.mxu0 %v2638
        %3193 = vmatpush.msra.mxu0 %v2630
        %3194 = vmatpush.msra.mxu0 %v2622
        %3195 = vmatpush.msra.mxu0 %v2614
        %3196 = vmatpush.msra.mxu0 %v2606
        %3197 = vmatpush.msra.mxu0 %v2598
        %3198 = vmatpush.msra.mxu0 %v2590
        %3199 = vmatpush.msra.mxu0 %v2582
        %3200 = vmatpush.msra.mxu0 %v2574
        %3201 = vmatpush.msra.mxu0 %v2566
        %3202 = vmatpush.msra.mxu0 %v2558
        %3203 = vmatpush.msra.mxu0 %v2550
        %3204 = vmatmul.f32.gmra.mxu0 %v2287
        %v3205 = vpop.f32.mrf.mxu0
        %v3206 = vadd.f32 %v3186, %v3205
        %3207 = vdwg.mxu0
        %3208 = vmatpush.msra.mxu0 %v2798
        %3209 = vmatpush.msra.mxu0 %v2790
        %3210 = vmatpush.msra.mxu0 %v2782
        %3211 = vmatpush.msra.mxu0 %v2774
        %3212 = vmatpush.msra.mxu0 %v2766
        %3213 = vmatpush.msra.mxu0 %v2758
        %3214 = vmatpush.msra.mxu0 %v2750
        %3215 = vmatpush.msra.mxu0 %v2742
        %3216 = vmatpush.msra.mxu0 %v2734
        %3217 = vmatpush.msra.mxu0 %v2726
        %3218 = vmatpush.msra.mxu0 %v2718
        %3219 = vmatpush.msra.mxu0 %v2710
        %3220 = vmatpush.msra.mxu0 %v2702
        %3221 = vmatpush.msra.mxu0 %v2694
        %3222 = vmatpush.msra.mxu0 %v2686
        %3223 = vmatpush.msra.mxu0 %v2678
        %3224 = vmatmul.f32.gmra.mxu0 %v2288
        %v3225 = vpop.f32.mrf.mxu0
        %v3226 = vadd.f32 %v3206, %v3225
        %3227 = vdwg.mxu0
        %3228 = vmatpush.msra.mxu0 0.0
        %3229 = vmatpush.msra.mxu0 0.0
        %3230 = vmatpush.msra.mxu0 0.0
        %3231 = vmatpush.msra.mxu0 0.0
        %3232 = vmatpush.msra.mxu0 0.0
        %3233 = vmatpush.msra.mxu0 0.0
        %3234 = vmatpush.msra.mxu0 0.0
        %3235 = vmatpush.msra.mxu0 0.0
        %3236 = vmatpush.msra.mxu0 0.0
        %3237 = vmatpush.msra.mxu0 0.0
        %3238 = vmatpush.msra.mxu0 0.0
        %3239 = vmatpush.msra.mxu0 0.0
        %3240 = vmatpush.msra.mxu0 0.0
        %3241 = vmatpush.msra.mxu0 0.0
        %3242 = vmatpush.msra.mxu0 %v2834
        %3243 = vmatpush.msra.mxu0 %v2806
        %3244 = vmatmul.f32.gmra.mxu0 %v2821
        %v3245 = vpop.f32.mrf.mxu0
        %v3246 = vadd.f32 %v3226, %v3245
        %3247 = vdwg.mxu0
        %3248 = vmatpush.msra.mxu0 %v2415
        %3249 = vmatpush.msra.mxu0 %v2407
        %3250 = vmatpush.msra.mxu0 %v2399
        %3251 = vmatpush.msra.mxu0 %v2391
        %3252 = vmatpush.msra.mxu0 %v2383
        %3253 = vmatpush.msra.mxu0 %v2375
        %3254 = vmatpush.msra.mxu0 %v2367
        %3255 = vmatpush.msra.mxu0 %v2359
        %3256 = vmatpush.msra.mxu0 %v2351
        %3257 = vmatpush.msra.mxu0 %v2343
        %3258 = vmatpush.msra.mxu0 %v2335
        %3259 = vmatpush.msra.mxu0 %v2327
        %3260 = vmatpush.msra.mxu0 %v2319
        %3261 = vmatpush.msra.mxu0 %v2311
        %3262 = vmatpush.msra.mxu0 %v2303
        %3263 = vmatpush.msra.mxu0 %v2295
        %3264 = vmatmul.f32.gmra.mxu0 %v2285
        %v3265 = vpop.f32.mrf.mxu0
        %v3266 = vadd.f32 0.0, %v3265
        %3267 = vdwg.mxu0
        %3268 = vmatpush.msra.mxu0 %v2543
        %3269 = vmatpush.msra.mxu0 %v2535
        %3270 = vmatpush.msra.mxu0 %v2527
        %3271 = vmatpush.msra.mxu0 %v2519
        %3272 = vmatpush.msra.mxu0 %v2511
        %3273 = vmatpush.msra.mxu0 %v2503
        %3274 = vmatpush.msra.mxu0 %v2495
        %3275 = vmatpush.msra.mxu0 %v2487
        %3276 = vmatpush.msra.mxu0 %v2479
        %3277 = vmatpush.msra.mxu0 %v2471
        %3278 = vmatpush.msra.mxu0 %v2463
        %3279 = vmatpush.msra.mxu0 %v2455
        %3280 = vmatpush.msra.mxu0 %v2447
        %3281 = vmatpush.msra.mxu0 %v2439
        %3282 = vmatpush.msra.mxu0 %v2431
        %3283 = vmatpush.msra.mxu0 %v2423
        %3284 = vmatmul.f32.gmra.mxu0 %v2286
        %v3285 = vpop.f32.mrf.mxu0
        %v3286 = vadd.f32 %v3266, %v3285
        %3287 = vdwg.mxu0
        %3288 = vmatpush.msra.mxu0 %v2671
        %3289 = vmatpush.msra.mxu0 %v2663
        %3290 = vmatpush.msra.mxu0 %v2655
        %3291 = vmatpush.msra.mxu0 %v2647
        %3292 = vmatpush.msra.mxu0 %v2639
        %3293 = vmatpush.msra.mxu0 %v2631
        %3294 = vmatpush.msra.mxu0 %v2623
        %3295 = vmatpush.msra.mxu0 %v2615
        %3296 = vmatpush.msra.mxu0 %v2607
        %3297 = vmatpush.msra.mxu0 %v2599
        %3298 = vmatpush.msra.mxu0 %v2591
        %3299 = vmatpush.msra.mxu0 %v2583
        %3300 = vmatpush.msra.mxu0 %v2575
        %3301 = vmatpush.msra.mxu0 %v2567
        %3302 = vmatpush.msra.mxu0 %v2559
        %3303 = vmatpush.msra.mxu0 %v2551
        %3304 = vmatmul.f32.gmra.mxu0 %v2287
        %v3305 = vpop.f32.mrf.mxu0
        %v3306 = vadd.f32 %v3286, %v3305
        %3307 = vdwg.mxu0
        %3308 = vmatpush.msra.mxu0 %v2799
        %3309 = vmatpush.msra.mxu0 %v2791
        %3310 = vmatpush.msra.mxu0 %v2783
        %3311 = vmatpush.msra.mxu0 %v2775
        %3312 = vmatpush.msra.mxu0 %v2767
        %3313 = vmatpush.msra.mxu0 %v2759
        %3314 = vmatpush.msra.mxu0 %v2751
        %3315 = vmatpush.msra.mxu0 %v2743
        %3316 = vmatpush.msra.mxu0 %v2735
        %3317 = vmatpush.msra.mxu0 %v2727
        %3318 = vmatpush.msra.mxu0 %v2719
        %3319 = vmatpush.msra.mxu0 %v2711
        %3320 = vmatpush.msra.mxu0 %v2703
        %3321 = vmatpush.msra.mxu0 %v2695
        %3322 = vmatpush.msra.mxu0 %v2687
        %3323 = vmatpush.msra.mxu0 %v2679
        %3324 = vmatmul.f32.gmra.mxu0 %v2288
        %v3325 = vpop.f32.mrf.mxu0
        %v3326 = vadd.f32 %v3306, %v3325
        %3327 = vdwg.mxu0
        %3328 = vmatpush.msra.mxu0 0.0
        %3329 = vmatpush.msra.mxu0 0.0
        %3330 = vmatpush.msra.mxu0 0.0
        %3331 = vmatpush.msra.mxu0 0.0
        %3332 = vmatpush.msra.mxu0 0.0
        %3333 = vmatpush.msra.mxu0 0.0
        %3334 = vmatpush.msra.mxu0 0.0
        %3335 = vmatpush.msra.mxu0 0.0
        %3336 = vmatpush.msra.mxu0 0.0
        %3337 = vmatpush.msra.mxu0 0.0
        %3338 = vmatpush.msra.mxu0 0.0
        %3339 = vmatpush.msra.mxu0 0.0
        %3340 = vmatpush.msra.mxu0 0.0
        %3341 = vmatpush.msra.mxu0 0.0
        %3342 = vmatpush.msra.mxu0 %v2837
        %3343 = vmatpush.msra.mxu0 %v2807
        %3344 = vmatmul.f32.gmra.mxu0 %v2821
        %v3345 = vpop.f32.mrf.mxu0
        %v3346 = vadd.f32 %v3326, %v3345
        %3347 = vdwg.mxu0
        %3348 = vmatpush.msra.mxu0 %v2416
        %3349 = vmatpush.msra.mxu0 %v2408
        %3350 = vmatpush.msra.mxu0 %v2400
        %3351 = vmatpush.msra.mxu0 %v2392
        %3352 = vmatpush.msra.mxu0 %v2384
        %3353 = vmatpush.msra.mxu0 %v2376
        %3354 = vmatpush.msra.mxu0 %v2368
        %3355 = vmatpush.msra.mxu0 %v2360
        %3356 = vmatpush.msra.mxu0 %v2352
        %3357 = vmatpush.msra.mxu0 %v2344
        %3358 = vmatpush.msra.mxu0 %v2336
        %3359 = vmatpush.msra.mxu0 %v2328
        %3360 = vmatpush.msra.mxu0 %v2320
        %3361 = vmatpush.msra.mxu0 %v2312
        %3362 = vmatpush.msra.mxu0 %v2304
        %3363 = vmatpush.msra.mxu0 %v2296
        %3364 = vmatmul.f32.gmra.mxu0 %v2285
        %v3365 = vpop.f32.mrf.mxu0
        %v3366 = vadd.f32 0.0, %v3365
        %3367 = vdwg.mxu0
        %3368 = vmatpush.msra.mxu0 %v2544
        %3369 = vmatpush.msra.mxu0 %v2536
        %3370 = vmatpush.msra.mxu0 %v2528
        %3371 = vmatpush.msra.mxu0 %v2520
        %3372 = vmatpush.msra.mxu0 %v2512
        %3373 = vmatpush.msra.mxu0 %v2504
        %3374 = vmatpush.msra.mxu0 %v2496
        %3375 = vmatpush.msra.mxu0 %v2488
        %3376 = vmatpush.msra.mxu0 %v2480
        %3377 = vmatpush.msra.mxu0 %v2472
        %3378 = vmatpush.msra.mxu0 %v2464
        %3379 = vmatpush.msra.mxu0 %v2456
        %3380 = vmatpush.msra.mxu0 %v2448
        %3381 = vmatpush.msra.mxu0 %v2440
        %3382 = vmatpush.msra.mxu0 %v2432
        %3383 = vmatpush.msra.mxu0 %v2424
        %3384 = vmatmul.f32.gmra.mxu0 %v2286
        %v3385 = vpop.f32.mrf.mxu0
        %v3386 = vadd.f32 %v3366, %v3385
        %3387 = vdwg.mxu0
        %3388 = vmatpush.msra.mxu0 %v2672
        %3389 = vmatpush.msra.mxu0 %v2664
        %3390 = vmatpush.msra.mxu0 %v2656
        %3391 = vmatpush.msra.mxu0 %v2648
        %3392 = vmatpush.msra.mxu0 %v2640
        %3393 = vmatpush.msra.mxu0 %v2632
        %3394 = vmatpush.msra.mxu0 %v2624
        %3395 = vmatpush.msra.mxu0 %v2616
        %3396 = vmatpush.msra.mxu0 %v2608
        %3397 = vmatpush.msra.mxu0 %v2600
        %3398 = vmatpush.msra.mxu0 %v2592
        %3399 = vmatpush.msra.mxu0 %v2584
        %3400 = vmatpush.msra.mxu0 %v2576
        %3401 = vmatpush.msra.mxu0 %v2568
        %3402 = vmatpush.msra.mxu0 %v2560
        %3403 = vmatpush.msra.mxu0 %v2552
        %3404 = vmatmul.f32.gmra.mxu0 %v2287
        %v3405 = vpop.f32.mrf.mxu0
        %v3406 = vadd.f32 %v3386, %v3405
        %3407 = vdwg.mxu0
        %3408 = vmatpush.msra.mxu0 %v2800
        %3409 = vmatpush.msra.mxu0 %v2792
        %3410 = vmatpush.msra.mxu0 %v2784
        %3411 = vmatpush.msra.mxu0 %v2776
        %3412 = vmatpush.msra.mxu0 %v2768
        %3413 = vmatpush.msra.mxu0 %v2760
        %3414 = vmatpush.msra.mxu0 %v2752
        %3415 = vmatpush.msra.mxu0 %v2744
        %3416 = vmatpush.msra.mxu0 %v2736
        %3417 = vmatpush.msra.mxu0 %v2728
        %3418 = vmatpush.msra.mxu0 %v2720
        %3419 = vmatpush.msra.mxu0 %v2712
        %3420 = vmatpush.msra.mxu0 %v2704
        %3421 = vmatpush.msra.mxu0 %v2696
        %3422 = vmatpush.msra.mxu0 %v2688
        %3423 = vmatpush.msra.mxu0 %v2680
        %3424 = vmatmul.f32.gmra.mxu0 %v2288
        %v3425 = vpop.f32.mrf.mxu0
        %v3426 = vadd.f32 %v3406, %v3425
        %3427 = vdwg.mxu0
        %3428 = vmatpush.msra.mxu0 0.0
        %3429 = vmatpush.msra.mxu0 0.0
        %3430 = vmatpush.msra.mxu0 0.0
        %3431 = vmatpush.msra.mxu0 0.0
        %3432 = vmatpush.msra.mxu0 0.0
        %3433 = vmatpush.msra.mxu0 0.0
        %3434 = vmatpush.msra.mxu0 0.0
        %3435 = vmatpush.msra.mxu0 0.0
        %3436 = vmatpush.msra.mxu0 0.0
        %3437 = vmatpush.msra.mxu0 0.0
        %3438 = vmatpush.msra.mxu0 0.0
        %3439 = vmatpush.msra.mxu0 0.0
        %3440 = vmatpush.msra.mxu0 0.0
        %3441 = vmatpush.msra.mxu0 0.0
        %3442 = vmatpush.msra.mxu0 %v2840
        %3443 = vmatpush.msra.mxu0 %v2808
        %3444 = vmatmul.f32.gmra.mxu0 %v2821
        %v3445 = vpop.f32.mrf.mxu0
        %v3446 = vadd.f32 %v3426, %v3445
        %3447 = vdwg.mxu0
        %3448 = vmatpush.msra.mxu0 %v2417
        %3449 = vmatpush.msra.mxu0 %v2409
        %3450 = vmatpush.msra.mxu0 %v2401
        %3451 = vmatpush.msra.mxu0 %v2393
        %3452 = vmatpush.msra.mxu0 %v2385
        %3453 = vmatpush.msra.mxu0 %v2377
        %3454 = vmatpush.msra.mxu0 %v2369
        %3455 = vmatpush.msra.mxu0 %v2361
        %3456 = vmatpush.msra.mxu0 %v2353
        %3457 = vmatpush.msra.mxu0 %v2345
        %3458 = vmatpush.msra.mxu0 %v2337
        %3459 = vmatpush.msra.mxu0 %v2329
        %3460 = vmatpush.msra.mxu0 %v2321
        %3461 = vmatpush.msra.mxu0 %v2313
        %3462 = vmatpush.msra.mxu0 %v2305
        %3463 = vmatpush.msra.mxu0 %v2297
        %3464 = vmatmul.f32.gmra.mxu0 %v2285
        %v3465 = vpop.f32.mrf.mxu0
        %v3466 = vadd.f32 0.0, %v3465
        %3467 = vdwg.mxu0
        %3468 = vmatpush.msra.mxu0 %v2545
        %3469 = vmatpush.msra.mxu0 %v2537
        %3470 = vmatpush.msra.mxu0 %v2529
        %3471 = vmatpush.msra.mxu0 %v2521
        %3472 = vmatpush.msra.mxu0 %v2513
        %3473 = vmatpush.msra.mxu0 %v2505
        %3474 = vmatpush.msra.mxu0 %v2497
        %3475 = vmatpush.msra.mxu0 %v2489
        %3476 = vmatpush.msra.mxu0 %v2481
        %3477 = vmatpush.msra.mxu0 %v2473
        %3478 = vmatpush.msra.mxu0 %v2465
        %3479 = vmatpush.msra.mxu0 %v2457
        %3480 = vmatpush.msra.mxu0 %v2449
        %3481 = vmatpush.msra.mxu0 %v2441
        %3482 = vmatpush.msra.mxu0 %v2433
        %3483 = vmatpush.msra.mxu0 %v2425
        %3484 = vmatmul.f32.gmra.mxu0 %v2286
        %v3485 = vpop.f32.mrf.mxu0
        %v3486 = vadd.f32 %v3466, %v3485
        %3487 = vdwg.mxu0
        %3488 = vmatpush.msra.mxu0 %v2673
        %3489 = vmatpush.msra.mxu0 %v2665
        %3490 = vmatpush.msra.mxu0 %v2657
        %3491 = vmatpush.msra.mxu0 %v2649
        %3492 = vmatpush.msra.mxu0 %v2641
        %3493 = vmatpush.msra.mxu0 %v2633
        %3494 = vmatpush.msra.mxu0 %v2625
        %3495 = vmatpush.msra.mxu0 %v2617
        %3496 = vmatpush.msra.mxu0 %v2609
        %3497 = vmatpush.msra.mxu0 %v2601
        %3498 = vmatpush.msra.mxu0 %v2593
        %3499 = vmatpush.msra.mxu0 %v2585
        %3500 = vmatpush.msra.mxu0 %v2577
        %3501 = vmatpush.msra.mxu0 %v2569
        %3502 = vmatpush.msra.mxu0 %v2561
        %3503 = vmatpush.msra.mxu0 %v2553
        %3504 = vmatmul.f32.gmra.mxu0 %v2287
        %v3505 = vpop.f32.mrf.mxu0
        %v3506 = vadd.f32 %v3486, %v3505
        %3507 = vdwg.mxu0
        %3508 = vmatpush.msra.mxu0 %v2801
        %3509 = vmatpush.msra.mxu0 %v2793
        %3510 = vmatpush.msra.mxu0 %v2785
        %3511 = vmatpush.msra.mxu0 %v2777
        %3512 = vmatpush.msra.mxu0 %v2769
        %3513 = vmatpush.msra.mxu0 %v2761
        %3514 = vmatpush.msra.mxu0 %v2753
        %3515 = vmatpush.msra.mxu0 %v2745
        %3516 = vmatpush.msra.mxu0 %v2737
        %3517 = vmatpush.msra.mxu0 %v2729
        %3518 = vmatpush.msra.mxu0 %v2721
        %3519 = vmatpush.msra.mxu0 %v2713
        %3520 = vmatpush.msra.mxu0 %v2705
        %3521 = vmatpush.msra.mxu0 %v2697
        %3522 = vmatpush.msra.mxu0 %v2689
        %3523 = vmatpush.msra.mxu0 %v2681
        %3524 = vmatmul.f32.gmra.mxu0 %v2288
        %v3525 = vpop.f32.mrf.mxu0
        %v3526 = vadd.f32 %v3506, %v3525
        %3527 = vdwg.mxu0
        %3528 = vmatpush.msra.mxu0 0.0
        %3529 = vmatpush.msra.mxu0 0.0
        %3530 = vmatpush.msra.mxu0 0.0
        %3531 = vmatpush.msra.mxu0 0.0
        %3532 = vmatpush.msra.mxu0 0.0
        %3533 = vmatpush.msra.mxu0 0.0
        %3534 = vmatpush.msra.mxu0 0.0
        %3535 = vmatpush.msra.mxu0 0.0
        %3536 = vmatpush.msra.mxu0 0.0
        %3537 = vmatpush.msra.mxu0 0.0
        %3538 = vmatpush.msra.mxu0 0.0
        %3539 = vmatpush.msra.mxu0 0.0
        %3540 = vmatpush.msra.mxu0 0.0
        %3541 = vmatpush.msra.mxu0 0.0
        %3542 = vmatpush.msra.mxu0 %v2843
        %3543 = vmatpush.msra.mxu0 %v2809
        %3544 = vmatmul.f32.gmra.mxu0 %v2821
        %v3545 = vpop.f32.mrf.mxu0
        %v3546 = vadd.f32 %v3526, %v3545
        %3547 = vdwg.mxu0
        %3548 = vmatpush.msra.mxu0 %v2418
        %3549 = vmatpush.msra.mxu0 %v2410
        %3550 = vmatpush.msra.mxu0 %v2402
        %3551 = vmatpush.msra.mxu0 %v2394
        %3552 = vmatpush.msra.mxu0 %v2386
        %3553 = vmatpush.msra.mxu0 %v2378
        %3554 = vmatpush.msra.mxu0 %v2370
        %3555 = vmatpush.msra.mxu0 %v2362
        %3556 = vmatpush.msra.mxu0 %v2354
        %3557 = vmatpush.msra.mxu0 %v2346
        %3558 = vmatpush.msra.mxu0 %v2338
        %3559 = vmatpush.msra.mxu0 %v2330
        %3560 = vmatpush.msra.mxu0 %v2322
        %3561 = vmatpush.msra.mxu0 %v2314
        %3562 = vmatpush.msra.mxu0 %v2306
        %3563 = vmatpush.msra.mxu0 %v2298
        %3564 = vmatmul.f32.gmra.mxu0 %v2285
        %v3565 = vpop.f32.mrf.mxu0
        %v3566 = vadd.f32 0.0, %v3565
        %3567 = vdwg.mxu0
        %3568 = vmatpush.msra.mxu0 %v2546
        %3569 = vmatpush.msra.mxu0 %v2538
        %3570 = vmatpush.msra.mxu0 %v2530
        %3571 = vmatpush.msra.mxu0 %v2522
        %3572 = vmatpush.msra.mxu0 %v2514
        %3573 = vmatpush.msra.mxu0 %v2506
        %3574 = vmatpush.msra.mxu0 %v2498
        %3575 = vmatpush.msra.mxu0 %v2490
        %3576 = vmatpush.msra.mxu0 %v2482
        %3577 = vmatpush.msra.mxu0 %v2474
        %3578 = vmatpush.msra.mxu0 %v2466
        %3579 = vmatpush.msra.mxu0 %v2458
        %3580 = vmatpush.msra.mxu0 %v2450
        %3581 = vmatpush.msra.mxu0 %v2442
        %3582 = vmatpush.msra.mxu0 %v2434
        %3583 = vmatpush.msra.mxu0 %v2426
        %3584 = vmatmul.f32.gmra.mxu0 %v2286
        %v3585 = vpop.f32.mrf.mxu0
        %v3586 = vadd.f32 %v3566, %v3585
        %3587 = vdwg.mxu0
        %3588 = vmatpush.msra.mxu0 %v2674
        %3589 = vmatpush.msra.mxu0 %v2666
        %3590 = vmatpush.msra.mxu0 %v2658
        %3591 = vmatpush.msra.mxu0 %v2650
        %3592 = vmatpush.msra.mxu0 %v2642
        %3593 = vmatpush.msra.mxu0 %v2634
        %3594 = vmatpush.msra.mxu0 %v2626
        %3595 = vmatpush.msra.mxu0 %v2618
        %3596 = vmatpush.msra.mxu0 %v2610
        %3597 = vmatpush.msra.mxu0 %v2602
        %3598 = vmatpush.msra.mxu0 %v2594
        %3599 = vmatpush.msra.mxu0 %v2586
        %3600 = vmatpush.msra.mxu0 %v2578
        %3601 = vmatpush.msra.mxu0 %v2570
        %3602 = vmatpush.msra.mxu0 %v2562
        %3603 = vmatpush.msra.mxu0 %v2554
        %3604 = vmatmul.f32.gmra.mxu0 %v2287
        %v3605 = vpop.f32.mrf.mxu0
        %v3606 = vadd.f32 %v3586, %v3605
        %3607 = vdwg.mxu0
        %3608 = vmatpush.msra.mxu0 %v2802
        %3609 = vmatpush.msra.mxu0 %v2794
        %3610 = vmatpush.msra.mxu0 %v2786
        %3611 = vmatpush.msra.mxu0 %v2778
        %3612 = vmatpush.msra.mxu0 %v2770
        %3613 = vmatpush.msra.mxu0 %v2762
        %3614 = vmatpush.msra.mxu0 %v2754
        %3615 = vmatpush.msra.mxu0 %v2746
        %3616 = vmatpush.msra.mxu0 %v2738
        %3617 = vmatpush.msra.mxu0 %v2730
        %3618 = vmatpush.msra.mxu0 %v2722
        %3619 = vmatpush.msra.mxu0 %v2714
        %3620 = vmatpush.msra.mxu0 %v2706
        %3621 = vmatpush.msra.mxu0 %v2698
        %3622 = vmatpush.msra.mxu0 %v2690
        %3623 = vmatpush.msra.mxu0 %v2682
        %3624 = vmatmul.f32.gmra.mxu0 %v2288
        %v3625 = vpop.f32.mrf.mxu0
        %v3626 = vadd.f32 %v3606, %v3625
        %3627 = vdwg.mxu0
        %3628 = vmatpush.msra.mxu0 0.0
        %3629 = vmatpush.msra.mxu0 0.0
        %3630 = vmatpush.msra.mxu0 0.0
        %3631 = vmatpush.msra.mxu0 0.0
        %3632 = vmatpush.msra.mxu0 0.0
        %3633 = vmatpush.msra.mxu0 0.0
        %3634 = vmatpush.msra.mxu0 0.0
        %3635 = vmatpush.msra.mxu0 0.0
        %3636 = vmatpush.msra.mxu0 0.0
        %3637 = vmatpush.msra.mxu0 0.0
        %3638 = vmatpush.msra.mxu0 0.0
        %3639 = vmatpush.msra.mxu0 0.0
        %3640 = vmatpush.msra.mxu0 0.0
        %3641 = vmatpush.msra.mxu0 0.0
        %3642 = vmatpush.msra.mxu0 %v2846
        %3643 = vmatpush.msra.mxu0 %v2810
        %3644 = vmatmul.f32.gmra.mxu0 %v2821
        %v3645 = vpop.f32.mrf.mxu0
        %v3646 = vadd.f32 %v3626, %v3645
        %3647 = vdwg.mxu0
        %v3656 = vrot.slane %v3046, 7
        %v3657 = vrot.slane %v3146, 6
        %v3658 = vrot.slane %v3246, 5
        %v3659 = vrot.slane %v3346, 4
        %v3660 = vrot.slane %v3446, 3
        %v3661 = vrot.slane %v3546, 2
        %v3662 = vrot.slane %v3646, 1
        %vm3663 = vcmask 1040384
        %v3664 = vsel %vm3663, %v2946, %v3656
        %vm3665 = vcmask 1042434
        %v3666 = vsel %vm3665, %v3657, %v3658
        %vm3667 = vcmask 1041408
        %v3668 = vsel %vm3667, %v3664, %v3666
        %vm3669 = vcmask 1044484
        %v3670 = vsel %vm3669, %v3659, %v3660
        %vm3671 = vcmask 1046534
        %v3672 = vsel %vm3671, %v3661, %v3662
        %vm3673 = vcmask 1045508
        %v3674 = vsel %vm3673, %v3670, %v3672
        %v3675 = vsel %vm2823, %v3668, %v3674
        %v3677 = vadd.f32 %v2290, %v3675
        %s3678 = scalar_lea.vmem [#allocation3], 4224
        %v3679 = vld [vmem:[%s3678] sm:$0xff]
        %v3680 = vld [vmem:[%s3678 + $0x8] sm:$0xff]
        %v3681 = vld [vmem:[%s3678 + $0x10] sm:$0xff]
        %v3682 = vld [vmem:[%s3678 + $0x18] sm:$0xff]
        %v3683 = vld [vmem:[%s3678 + $0x20] sm:$0xff]
        %v3684 = vld [vmem:[%s3678 + $0x28] sm:$0xff]
        %v3685 = vld [vmem:[%s3678 + $0x30] sm:$0xff]
        %v3686 = vld [vmem:[%s3678 + $0x38] sm:$0xff]
        %v3687 = vld [vmem:[%s3678 + $0x40] sm:$0xff]
        %v3688 = vld [vmem:[%s3678 + $0x48] sm:$0xff]
        %v3689 = vld [vmem:[%s3678 + $0x50] sm:$0xff]
        %v3690 = vld [vmem:[%s3678 + $0x58] sm:$0xff]
        %v3691 = vld [vmem:[%s3678 + $0x60] sm:$0xff]
        %v3692 = vld [vmem:[%s3678 + $0x68] sm:$0xff]
        %v3693 = vld [vmem:[%s3678 + $0x70] sm:$0xff]
        %v3694 = vld [vmem:[%s3678 + $0x78] sm:$0xff]
        %v3695 = vld [vmem:[%s3678 + $0x80] sm:$0xff]
        %v3696 = vld [vmem:[%s3678 + $0x88] sm:$0xff]
        %v3697 = vld [vmem:[%s3678 + $0x90] sm:$0xff]
        %v3698 = vld [vmem:[%s3678 + $0x98] sm:$0xff]
        %v3699 = vld [vmem:[%s3678 + $0xa0] sm:$0xff]
        %v3700 = vld [vmem:[%s3678 + $0xa8] sm:$0xff]
        %v3701 = vld [vmem:[%s3678 + $0xb0] sm:$0xff]
        %v3702 = vld [vmem:[%s3678 + $0xb8] sm:$0xff]
        %v3703 = vld [vmem:[%s3678 + $0xc0] sm:$0xff]
        %v3704 = vld [vmem:[%s3678 + $0xc8] sm:$0xff]
        %v3705 = vld [vmem:[%s3678 + $0xd0] sm:$0xff]
        %v3706 = vld [vmem:[%s3678 + $0xd8] sm:$0xff]
        %v3707 = vld [vmem:[%s3678 + $0xe0] sm:$0xff]
        %v3708 = vld [vmem:[%s3678 + $0xe8] sm:$0xff]
        %v3709 = vld [vmem:[%s3678 + $0xf0] sm:$0xff]
        %v3710 = vld [vmem:[%s3678 + $0xf8] sm:$0xff]
        %v3711 = vld [vmem:[%s3678 + $0x100] sm:$0xff]
        %v3712 = vld [vmem:[%s3678 + $0x108] sm:$0xff]
        %v3713 = vld [vmem:[%s3678 + $0x110] sm:$0xff]
        %v3714 = vld [vmem:[%s3678 + $0x118] sm:$0xff]
        %v3715 = vld [vmem:[%s3678 + $0x120] sm:$0xff]
        %v3716 = vld [vmem:[%s3678 + $0x128] sm:$0xff]
        %v3717 = vld [vmem:[%s3678 + $0x130] sm:$0xff]
        %v3718 = vld [vmem:[%s3678 + $0x138] sm:$0xff]
        %v3719 = vld [vmem:[%s3678 + $0x140] sm:$0xff]
        %v3720 = vld [vmem:[%s3678 + $0x148] sm:$0xff]
        %v3721 = vld [vmem:[%s3678 + $0x150] sm:$0xff]
        %v3722 = vld [vmem:[%s3678 + $0x158] sm:$0xff]
        %v3723 = vld [vmem:[%s3678 + $0x160] sm:$0xff]
        %v3724 = vld [vmem:[%s3678 + $0x168] sm:$0xff]
        %v3725 = vld [vmem:[%s3678 + $0x170] sm:$0xff]
        %v3726 = vld [vmem:[%s3678 + $0x178] sm:$0xff]
        %v3727 = vld [vmem:[%s3678 + $0x180] sm:$0xff]
        %v3728 = vld [vmem:[%s3678 + $0x188] sm:$0xff]
        %v3729 = vld [vmem:[%s3678 + $0x190] sm:$0xff]
        %v3730 = vld [vmem:[%s3678 + $0x198] sm:$0xff]
        %v3731 = vld [vmem:[%s3678 + $0x1a0] sm:$0xff]
        %v3732 = vld [vmem:[%s3678 + $0x1a8] sm:$0xff]
        %v3733 = vld [vmem:[%s3678 + $0x1b0] sm:$0xff]
        %v3734 = vld [vmem:[%s3678 + $0x1b8] sm:$0xff]
        %v3735 = vld [vmem:[%s3678 + $0x1c0] sm:$0xff]
        %v3736 = vld [vmem:[%s3678 + $0x1c8] sm:$0xff]
        %v3737 = vld [vmem:[%s3678 + $0x1d0] sm:$0xff]
        %v3738 = vld [vmem:[%s3678 + $0x1d8] sm:$0xff]
        %v3739 = vld [vmem:[%s3678 + $0x1e0] sm:$0xff]
        %v3740 = vld [vmem:[%s3678 + $0x1e8] sm:$0xff]
        %v3741 = vld [vmem:[%s3678 + $0x1f0] sm:$0xff]
        %v3742 = vld [vmem:[%s3678 + $0x1f8] sm:$0xff]
        %v3743 = vld [vmem:[%s3678 + $0x200] sm:$0xff]
        %v3744 = vld [vmem:[%s3678 + $0x208] sm:$0xff]
        %v3745 = vld [vmem:[%s3678 + $0x210] sm:$0xff]
        %v3746 = vld [vmem:[%s3678 + $0x218] sm:$0xff]
        %v3747 = vld [vmem:[%s3678 + $0x220] sm:$0xff]
        %v3748 = vld [vmem:[%s3678 + $0x228] sm:$0xff]
        %v3749 = vld [vmem:[%s3678 + $0x230] sm:$0xff]
        %v3750 = vld [vmem:[%s3678 + $0x238] sm:$0xff]
        %v3751 = vld [vmem:[%s3678 + $0x240] sm:$0xff]
        %v3752 = vld [vmem:[%s3678 + $0x248] sm:$0xff]
        %v3753 = vld [vmem:[%s3678 + $0x250] sm:$0xff]
        %v3754 = vld [vmem:[%s3678 + $0x258] sm:$0xff]
        %v3755 = vld [vmem:[%s3678 + $0x260] sm:$0xff]
        %v3756 = vld [vmem:[%s3678 + $0x268] sm:$0xff]
        %v3757 = vld [vmem:[%s3678 + $0x270] sm:$0xff]
        %v3758 = vld [vmem:[%s3678 + $0x278] sm:$0xff]
        %v3759 = vld [vmem:[%s3678 + $0x280] sm:$0xff]
        %v3760 = vld [vmem:[%s3678 + $0x288] sm:$0xff]
        %v3761 = vld [vmem:[%s3678 + $0x290] sm:$0xff]
        %v3762 = vld [vmem:[%s3678 + $0x298] sm:$0xff]
        %v3763 = vld [vmem:[%s3678 + $0x2a0] sm:$0xff]
        %v3764 = vld [vmem:[%s3678 + $0x2a8] sm:$0xff]
        %v3765 = vld [vmem:[%s3678 + $0x2b0] sm:$0xff]
        %v3766 = vld [vmem:[%s3678 + $0x2b8] sm:$0xff]
        %v3767 = vld [vmem:[%s3678 + $0x2c0] sm:$0xff]
        %v3768 = vld [vmem:[%s3678 + $0x2c8] sm:$0xff]
        %v3769 = vld [vmem:[%s3678 + $0x2d0] sm:$0xff]
        %v3770 = vld [vmem:[%s3678 + $0x2d8] sm:$0xff]
        %v3771 = vld [vmem:[%s3678 + $0x2e0] sm:$0xff]
        %v3772 = vld [vmem:[%s3678 + $0x2e8] sm:$0xff]
        %v3773 = vld [vmem:[%s3678 + $0x2f0] sm:$0xff]
        %v3774 = vld [vmem:[%s3678 + $0x2f8] sm:$0xff]
        %v3775 = vld [vmem:[%s3678 + $0x300] sm:$0xff]
        %v3776 = vld [vmem:[%s3678 + $0x308] sm:$0xff]
        %v3777 = vld [vmem:[%s3678 + $0x310] sm:$0xff]
        %v3778 = vld [vmem:[%s3678 + $0x318] sm:$0xff]
        %v3779 = vld [vmem:[%s3678 + $0x320] sm:$0xff]
        %v3780 = vld [vmem:[%s3678 + $0x328] sm:$0xff]
        %v3781 = vld [vmem:[%s3678 + $0x330] sm:$0xff]
        %v3782 = vld [vmem:[%s3678 + $0x338] sm:$0xff]
        %v3783 = vld [vmem:[%s3678 + $0x340] sm:$0xff]
        %v3784 = vld [vmem:[%s3678 + $0x348] sm:$0xff]
        %v3785 = vld [vmem:[%s3678 + $0x350] sm:$0xff]
        %v3786 = vld [vmem:[%s3678 + $0x358] sm:$0xff]
        %v3787 = vld [vmem:[%s3678 + $0x360] sm:$0xff]
        %v3788 = vld [vmem:[%s3678 + $0x368] sm:$0xff]
        %v3789 = vld [vmem:[%s3678 + $0x370] sm:$0xff]
        %v3790 = vld [vmem:[%s3678 + $0x378] sm:$0xff]
        %v3791 = vld [vmem:[%s3678 + $0x380] sm:$0xff]
        %v3792 = vld [vmem:[%s3678 + $0x388] sm:$0xff]
        %v3793 = vld [vmem:[%s3678 + $0x390] sm:$0xff]
        %v3794 = vld [vmem:[%s3678 + $0x398] sm:$0xff]
        %v3795 = vld [vmem:[%s3678 + $0x3a0] sm:$0xff]
        %v3796 = vld [vmem:[%s3678 + $0x3a8] sm:$0xff]
        %v3797 = vld [vmem:[%s3678 + $0x3b0] sm:$0xff]
        %v3798 = vld [vmem:[%s3678 + $0x3b8] sm:$0xff]
        %v3799 = vld [vmem:[%s3678 + $0x3c0] sm:$0xff]
        %v3800 = vld [vmem:[%s3678 + $0x3c8] sm:$0xff]
        %v3801 = vld [vmem:[%s3678 + $0x3d0] sm:$0xff]
        %v3802 = vld [vmem:[%s3678 + $0x3d8] sm:$0xff]
        %v3803 = vld [vmem:[%s3678 + $0x3e0] sm:$0xff]
        %v3804 = vld [vmem:[%s3678 + $0x3e8] sm:$0xff]
        %v3805 = vld [vmem:[%s3678 + $0x3f0] sm:$0xff]
        %v3806 = vld [vmem:[%s3678 + $0x3f8] sm:$0xff]
        %v3807 = vld [vmem:[%s3678 + $0x400] sm:$0xff]
        %v3808 = vld [vmem:[%s3678 + $0x408] sm:$0xff]
        %v3809 = vld [vmem:[%s3678 + $0x410] sm:$0xff]
        %v3810 = vld [vmem:[%s3678 + $0x418] sm:$0xff]
        %v3811 = vld [vmem:[%s3678 + $0x420] sm:$0xff]
        %v3812 = vld [vmem:[%s3678 + $0x428] sm:$0xff]
        %v3813 = vld [vmem:[%s3678 + $0x430] sm:$0xff]
        %v3814 = vld [vmem:[%s3678 + $0x438] sm:$0xff]
        %v3815 = vld [vmem:[%s3678 + $0x440] sm:$0xff]
        %v3816 = vld [vmem:[%s3678 + $0x448] sm:$0xff]
        %v3817 = vld [vmem:[%s3678 + $0x450] sm:$0xff]
        %v3818 = vld [vmem:[%s3678 + $0x458] sm:$0xff]
        %v3819 = vld [vmem:[%s3678 + $0x460] sm:$0xff]
        %v3820 = vld [vmem:[%s3678 + $0x468] sm:$0xff]
        %v3821 = vld [vmem:[%s3678 + $0x470] sm:$0xff]
        %v3822 = vld [vmem:[%s3678 + $0x478] sm:$0xff]
        %v3823 = vld [vmem:[%s3678 + $0x480] sm:$0xff]
        %v3824 = vld [vmem:[%s3678 + $0x488] sm:$0xff]
        %v3825 = vld [vmem:[%s3678 + $0x490] sm:$0xff]
        %v3826 = vld [vmem:[%s3678 + $0x498] sm:$0xff]
        %v3827 = vld [vmem:[%s3678 + $0x4a0] sm:$0xff]
        %v3828 = vld [vmem:[%s3678 + $0x4a8] sm:$0xff]
        %v3829 = vld [vmem:[%s3678 + $0x4b0] sm:$0xff]
        %v3830 = vld [vmem:[%s3678 + $0x4b8] sm:$0xff]
        %v3831 = vld [vmem:[%s3678 + $0x4c0] sm:$0xff]
        %v3832 = vld [vmem:[%s3678 + $0x4c8] sm:$0xff]
        %v3833 = vld [vmem:[%s3678 + $0x4d0] sm:$0xff]
        %v3834 = vld [vmem:[%s3678 + $0x4d8] sm:$0xff]
        %v3835 = vld [vmem:[%s3678 + $0x4e0] sm:$0xff]
        %v3836 = vld [vmem:[%s3678 + $0x4e8] sm:$0xff]
        %v3837 = vld [vmem:[%s3678 + $0x4f0] sm:$0xff]
        %v3838 = vld [vmem:[%s3678 + $0x4f8] sm:$0xff]
        %v3839 = vld [vmem:[%s3678 + $0x500] sm:$0xff]
        %v3840 = vld [vmem:[%s3678 + $0x508] sm:$0xff]
        %v3841 = vld [vmem:[%s3678 + $0x510] sm:$0xff]
        %v3842 = vld [vmem:[%s3678 + $0x518] sm:$0xff]
        %v3843 = vld [vmem:[%s3678 + $0x520] sm:$0xff]
        %v3844 = vld [vmem:[%s3678 + $0x528] sm:$0xff]
        %v3845 = vld [vmem:[%s3678 + $0x530] sm:$0xff]
        %v3846 = vld [vmem:[%s3678 + $0x538] sm:$0xff]
        %v3847 = vld [vmem:[%s3678 + $0x540] sm:$0xff]
        %v3848 = vld [vmem:[%s3678 + $0x548] sm:$0xff]
        %v3849 = vld [vmem:[%s3678 + $0x550] sm:$0xff]
        %v3850 = vld [vmem:[%s3678 + $0x558] sm:$0xff]
        %v3851 = vld [vmem:[%s3678 + $0x560] sm:$0xff]
        %v3852 = vld [vmem:[%s3678 + $0x568] sm:$0xff]
        %v3853 = vld [vmem:[%s3678 + $0x570] sm:$0xff]
        %v3854 = vld [vmem:[%s3678 + $0x578] sm:$0xff]
        %v3855 = vld [vmem:[%s3678 + $0x580] sm:$0xff]
        %v3856 = vld [vmem:[%s3678 + $0x588] sm:$0xff]
        %v3857 = vld [vmem:[%s3678 + $0x590] sm:$0xff]
        %v3858 = vld [vmem:[%s3678 + $0x598] sm:$0xff]
        %v3859 = vld [vmem:[%s3678 + $0x5a0] sm:$0xff]
        %v3860 = vld [vmem:[%s3678 + $0x5a8] sm:$0xff]
        %v3861 = vld [vmem:[%s3678 + $0x5b0] sm:$0xff]
        %v3862 = vld [vmem:[%s3678 + $0x5b8] sm:$0xff]
        %v3863 = vld [vmem:[%s3678 + $0x5c0] sm:$0xff]
        %v3864 = vld [vmem:[%s3678 + $0x5c8] sm:$0xff]
        %v3865 = vld [vmem:[%s3678 + $0x5d0] sm:$0xff]
        %v3866 = vld [vmem:[%s3678 + $0x5d8] sm:$0xff]
        %v3867 = vld [vmem:[%s3678 + $0x5e0] sm:$0xff]
        %v3868 = vld [vmem:[%s3678 + $0x5e8] sm:$0xff]
        %v3869 = vld [vmem:[%s3678 + $0x5f0] sm:$0xff]
        %v3870 = vld [vmem:[%s3678 + $0x5f8] sm:$0xff]
        %v3871 = vld [vmem:[%s3678 + $0x600] sm:$0xff]
        %v3872 = vld [vmem:[%s3678 + $0x608] sm:$0xff]
        %v3873 = vld [vmem:[%s3678 + $0x610] sm:$0xff]
        %v3874 = vld [vmem:[%s3678 + $0x618] sm:$0xff]
        %v3875 = vld [vmem:[%s3678 + $0x620] sm:$0xff]
        %v3876 = vld [vmem:[%s3678 + $0x628] sm:$0xff]
        %v3877 = vld [vmem:[%s3678 + $0x630] sm:$0xff]
        %v3878 = vld [vmem:[%s3678 + $0x638] sm:$0xff]
        %v3879 = vld [vmem:[%s3678 + $0x640] sm:$0xff]
        %v3880 = vld [vmem:[%s3678 + $0x648] sm:$0xff]
        %v3881 = vld [vmem:[%s3678 + $0x650] sm:$0xff]
        %v3882 = vld [vmem:[%s3678 + $0x658] sm:$0xff]
        %v3883 = vld [vmem:[%s3678 + $0x660] sm:$0xff]
        %v3884 = vld [vmem:[%s3678 + $0x668] sm:$0xff]
        %v3885 = vld [vmem:[%s3678 + $0x670] sm:$0xff]
        %v3886 = vld [vmem:[%s3678 + $0x678] sm:$0xff]
        %v3887 = vld [vmem:[%s3678 + $0x680] sm:$0xff]
        %v3888 = vld [vmem:[%s3678 + $0x688] sm:$0xff]
        %v3889 = vld [vmem:[%s3678 + $0x690] sm:$0xff]
        %v3890 = vld [vmem:[%s3678 + $0x698] sm:$0xff]
        %v3891 = vld [vmem:[%s3678 + $0x6a0] sm:$0xff]
        %v3892 = vld [vmem:[%s3678 + $0x6a8] sm:$0xff]
        %v3893 = vld [vmem:[%s3678 + $0x6b0] sm:$0xff]
        %v3894 = vld [vmem:[%s3678 + $0x6b8] sm:$0xff]
        %v3895 = vld [vmem:[%s3678 + $0x6c0] sm:$0xff]
        %v3896 = vld [vmem:[%s3678 + $0x6c8] sm:$0xff]
        %v3897 = vld [vmem:[%s3678 + $0x6d0] sm:$0xff]
        %v3898 = vld [vmem:[%s3678 + $0x6d8] sm:$0xff]
        %v3899 = vld [vmem:[%s3678 + $0x6e0] sm:$0xff]
        %v3900 = vld [vmem:[%s3678 + $0x6e8] sm:$0xff]
        %v3901 = vld [vmem:[%s3678 + $0x6f0] sm:$0xff]
        %v3902 = vld [vmem:[%s3678 + $0x6f8] sm:$0xff]
        %v3903 = vld [vmem:[%s3678 + $0x700] sm:$0xff]
        %v3904 = vld [vmem:[%s3678 + $0x708] sm:$0xff]
        %v3905 = vld [vmem:[%s3678 + $0x710] sm:$0xff]
        %v3906 = vld [vmem:[%s3678 + $0x718] sm:$0xff]
        %v3907 = vld [vmem:[%s3678 + $0x720] sm:$0xff]
        %v3908 = vld [vmem:[%s3678 + $0x728] sm:$0xff]
        %v3909 = vld [vmem:[%s3678 + $0x730] sm:$0xff]
        %v3910 = vld [vmem:[%s3678 + $0x738] sm:$0xff]
        %v3911 = vld [vmem:[%s3678 + $0x740] sm:$0xff]
        %v3912 = vld [vmem:[%s3678 + $0x748] sm:$0xff]
        %v3913 = vld [vmem:[%s3678 + $0x750] sm:$0xff]
        %v3914 = vld [vmem:[%s3678 + $0x758] sm:$0xff]
        %v3915 = vld [vmem:[%s3678 + $0x760] sm:$0xff]
        %v3916 = vld [vmem:[%s3678 + $0x768] sm:$0xff]
        %v3917 = vld [vmem:[%s3678 + $0x770] sm:$0xff]
        %v3918 = vld [vmem:[%s3678 + $0x778] sm:$0xff]
        %v3919 = vld [vmem:[%s3678 + $0x780] sm:$0xff]
        %v3920 = vld [vmem:[%s3678 + $0x788] sm:$0xff]
        %v3921 = vld [vmem:[%s3678 + $0x790] sm:$0xff]
        %v3922 = vld [vmem:[%s3678 + $0x798] sm:$0xff]
        %v3923 = vld [vmem:[%s3678 + $0x7a0] sm:$0xff]
        %v3924 = vld [vmem:[%s3678 + $0x7a8] sm:$0xff]
        %v3925 = vld [vmem:[%s3678 + $0x7b0] sm:$0xff]
        %v3926 = vld [vmem:[%s3678 + $0x7b8] sm:$0xff]
        %v3927 = vld [vmem:[%s3678 + $0x7c0] sm:$0xff]
        %v3928 = vld [vmem:[%s3678 + $0x7c8] sm:$0xff]
        %v3929 = vld [vmem:[%s3678 + $0x7d0] sm:$0xff]
        %v3930 = vld [vmem:[%s3678 + $0x7d8] sm:$0xff]
        %v3931 = vld [vmem:[%s3678 + $0x7e0] sm:$0xff]
        %v3932 = vld [vmem:[%s3678 + $0x7e8] sm:$0xff]
        %v3933 = vld [vmem:[%s3678 + $0x7f0] sm:$0xff]
        %v3934 = vld [vmem:[%s3678 + $0x7f8] sm:$0xff]
        %v3935 = vld [vmem:[%s3678 + $0x800] sm:$0xff]
        %v3936 = vld [vmem:[%s3678 + $0x808] sm:$0xff]
        %v3937 = vld [vmem:[%s3678 + $0x810] sm:$0xff]
        %v3938 = vld [vmem:[%s3678 + $0x818] sm:$0xff]
        %v3939 = vld [vmem:[%s3678 + $0x820] sm:$0xff]
        %v3940 = vld [vmem:[%s3678 + $0x828] sm:$0xff]
        %v3941 = vld [vmem:[%s3678 + $0x830] sm:$0xff]
        %v3942 = vld [vmem:[%s3678 + $0x838] sm:$0xff]
        %v3943 = vld [vmem:[%s3678 + $0x840] sm:$0xff]
        %v3944 = vld [vmem:[%s3678 + $0x848] sm:$0xff]
        %v3945 = vld [vmem:[%s3678 + $0x850] sm:$0xff]
        %v3946 = vld [vmem:[%s3678 + $0x858] sm:$0xff]
        %v3947 = vld [vmem:[%s3678 + $0x860] sm:$0xff]
        %v3948 = vld [vmem:[%s3678 + $0x868] sm:$0xff]
        %v3949 = vld [vmem:[%s3678 + $0x870] sm:$0xff]
        %v3950 = vld [vmem:[%s3678 + $0x878] sm:$0xff]
        %v3951 = vld [vmem:[%s3678 + $0x880] sm:$0xff]
        %v3952 = vld [vmem:[%s3678 + $0x888] sm:$0xff]
        %v3953 = vld [vmem:[%s3678 + $0x890] sm:$0xff]
        %v3954 = vld [vmem:[%s3678 + $0x898] sm:$0xff]
        %v3955 = vld [vmem:[%s3678 + $0x8a0] sm:$0xff]
        %v3956 = vld [vmem:[%s3678 + $0x8a8] sm:$0xff]
        %v3957 = vld [vmem:[%s3678 + $0x8b0] sm:$0xff]
        %v3958 = vld [vmem:[%s3678 + $0x8b8] sm:$0xff]
        %v3959 = vld [vmem:[%s3678 + $0x8c0] sm:$0xff]
        %v3960 = vld [vmem:[%s3678 + $0x8c8] sm:$0xff]
        %v3961 = vld [vmem:[%s3678 + $0x8d0] sm:$0xff]
        %v3962 = vld [vmem:[%s3678 + $0x8d8] sm:$0xff]
        %v3963 = vld [vmem:[%s3678 + $0x8e0] sm:$0xff]
        %v3964 = vld [vmem:[%s3678 + $0x8e8] sm:$0xff]
        %v3965 = vld [vmem:[%s3678 + $0x8f0] sm:$0xff]
        %v3966 = vld [vmem:[%s3678 + $0x8f8] sm:$0xff]
        %v3967 = vld [vmem:[%s3678 + $0x900] sm:$0xff]
        %v3968 = vld [vmem:[%s3678 + $0x908] sm:$0xff]
        %v3969 = vld [vmem:[%s3678 + $0x910] sm:$0xff]
        %v3970 = vld [vmem:[%s3678 + $0x918] sm:$0xff]
        %v3971 = vld [vmem:[%s3678 + $0x920] sm:$0xff]
        %v3972 = vld [vmem:[%s3678 + $0x928] sm:$0xff]
        %v3973 = vld [vmem:[%s3678 + $0x930] sm:$0xff]
        %v3974 = vld [vmem:[%s3678 + $0x938] sm:$0xff]
        %v3975 = vld [vmem:[%s3678 + $0x940] sm:$0xff]
        %v3976 = vld [vmem:[%s3678 + $0x948] sm:$0xff]
        %v3977 = vld [vmem:[%s3678 + $0x950] sm:$0xff]
        %v3978 = vld [vmem:[%s3678 + $0x958] sm:$0xff]
        %v3979 = vld [vmem:[%s3678 + $0x960] sm:$0xff]
        %v3980 = vld [vmem:[%s3678 + $0x968] sm:$0xff]
        %v3981 = vld [vmem:[%s3678 + $0x970] sm:$0xff]
        %v3982 = vld [vmem:[%s3678 + $0x978] sm:$0xff]
        %v3983 = vld [vmem:[%s3678 + $0x980] sm:$0xff]
        %v3984 = vld [vmem:[%s3678 + $0x988] sm:$0xff]
        %v3985 = vld [vmem:[%s3678 + $0x990] sm:$0xff]
        %v3986 = vld [vmem:[%s3678 + $0x998] sm:$0xff]
        %v3987 = vld [vmem:[%s3678 + $0x9a0] sm:$0xff]
        %v3988 = vld [vmem:[%s3678 + $0x9a8] sm:$0xff]
        %v3989 = vld [vmem:[%s3678 + $0x9b0] sm:$0xff]
        %v3990 = vld [vmem:[%s3678 + $0x9b8] sm:$0xff]
        %v3991 = vld [vmem:[%s3678 + $0x9c0] sm:$0xff]
        %v3992 = vld [vmem:[%s3678 + $0x9c8] sm:$0xff]
        %v3993 = vld [vmem:[%s3678 + $0x9d0] sm:$0xff]
        %v3994 = vld [vmem:[%s3678 + $0x9d8] sm:$0xff]
        %v3995 = vld [vmem:[%s3678 + $0x9e0] sm:$0xff]
        %v3996 = vld [vmem:[%s3678 + $0x9e8] sm:$0xff]
        %v3997 = vld [vmem:[%s3678 + $0x9f0] sm:$0xff]
        %v3998 = vld [vmem:[%s3678 + $0x9f8] sm:$0xff]
        %v3999 = vld [vmem:[%s3678 + $0xa00] sm:$0xff]
        %v4000 = vld [vmem:[%s3678 + $0xa08] sm:$0xff]
        %v4001 = vld [vmem:[%s3678 + $0xa10] sm:$0xff]
        %v4002 = vld [vmem:[%s3678 + $0xa18] sm:$0xff]
        %v4003 = vld [vmem:[%s3678 + $0xa20] sm:$0xff]
        %v4004 = vld [vmem:[%s3678 + $0xa28] sm:$0xff]
        %v4005 = vld [vmem:[%s3678 + $0xa30] sm:$0xff]
        %v4006 = vld [vmem:[%s3678 + $0xa38] sm:$0xff]
        %v4007 = vld [vmem:[%s3678 + $0xa40] sm:$0xff]
        %v4008 = vld [vmem:[%s3678 + $0xa48] sm:$0xff]
        %v4009 = vld [vmem:[%s3678 + $0xa50] sm:$0xff]
        %v4010 = vld [vmem:[%s3678 + $0xa58] sm:$0xff]
        %v4011 = vld [vmem:[%s3678 + $0xa60] sm:$0xff]
        %v4012 = vld [vmem:[%s3678 + $0xa68] sm:$0xff]
        %v4013 = vld [vmem:[%s3678 + $0xa70] sm:$0xff]
        %v4014 = vld [vmem:[%s3678 + $0xa78] sm:$0xff]
        %v4015 = vld [vmem:[%s3678 + $0xa80] sm:$0xff]
        %v4016 = vld [vmem:[%s3678 + $0xa88] sm:$0xff]
        %v4017 = vld [vmem:[%s3678 + $0xa90] sm:$0xff]
        %v4018 = vld [vmem:[%s3678 + $0xa98] sm:$0xff]
        %v4019 = vld [vmem:[%s3678 + $0xaa0] sm:$0xff]
        %v4020 = vld [vmem:[%s3678 + $0xaa8] sm:$0xff]
        %v4021 = vld [vmem:[%s3678 + $0xab0] sm:$0xff]
        %v4022 = vld [vmem:[%s3678 + $0xab8] sm:$0xff]
        %v4023 = vld [vmem:[%s3678 + $0xac0] sm:$0xff]
        %v4024 = vld [vmem:[%s3678 + $0xac8] sm:$0xff]
        %v4025 = vld [vmem:[%s3678 + $0xad0] sm:$0xff]
        %v4026 = vld [vmem:[%s3678 + $0xad8] sm:$0xff]
        %v4027 = vld [vmem:[%s3678 + $0xae0] sm:$0xff]
        %v4028 = vld [vmem:[%s3678 + $0xae8] sm:$0xff]
        %v4029 = vld [vmem:[%s3678 + $0xaf0] sm:$0xff]
        %v4030 = vld [vmem:[%s3678 + $0xaf8] sm:$0xff]
        %v4031 = vld [vmem:[%s3678 + $0xb00] sm:$0xff]
        %v4032 = vld [vmem:[%s3678 + $0xb08] sm:$0xff]
        %v4033 = vld [vmem:[%s3678 + $0xb10] sm:$0xff]
        %v4034 = vld [vmem:[%s3678 + $0xb18] sm:$0xff]
        %v4035 = vld [vmem:[%s3678 + $0xb20] sm:$0xff]
        %v4036 = vld [vmem:[%s3678 + $0xb28] sm:$0xff]
        %v4037 = vld [vmem:[%s3678 + $0xb30] sm:$0xff]
        %v4038 = vld [vmem:[%s3678 + $0xb38] sm:$0xff]
        %v4039 = vld [vmem:[%s3678 + $0xb40] sm:$0xff]
        %v4040 = vld [vmem:[%s3678 + $0xb48] sm:$0xff]
        %v4041 = vld [vmem:[%s3678 + $0xb50] sm:$0xff]
        %v4042 = vld [vmem:[%s3678 + $0xb58] sm:$0xff]
        %v4043 = vld [vmem:[%s3678 + $0xb60] sm:$0xff]
        %v4044 = vld [vmem:[%s3678 + $0xb68] sm:$0xff]
        %v4045 = vld [vmem:[%s3678 + $0xb70] sm:$0xff]
        %v4046 = vld [vmem:[%s3678 + $0xb78] sm:$0xff]
        %v4047 = vld [vmem:[%s3678 + $0xb80] sm:$0xff]
        %v4048 = vld [vmem:[%s3678 + $0xb88] sm:$0xff]
        %v4049 = vld [vmem:[%s3678 + $0xb90] sm:$0xff]
        %v4050 = vld [vmem:[%s3678 + $0xb98] sm:$0xff]
        %v4051 = vld [vmem:[%s3678 + $0xba0] sm:$0xff]
        %v4052 = vld [vmem:[%s3678 + $0xba8] sm:$0xff]
        %v4053 = vld [vmem:[%s3678 + $0xbb0] sm:$0xff]
        %v4054 = vld [vmem:[%s3678 + $0xbb8] sm:$0xff]
        %v4055 = vld [vmem:[%s3678 + $0xbc0] sm:$0xff]
        %v4056 = vld [vmem:[%s3678 + $0xbc8] sm:$0xff]
        %v4057 = vld [vmem:[%s3678 + $0xbd0] sm:$0xff]
        %v4058 = vld [vmem:[%s3678 + $0xbd8] sm:$0xff]
        %v4059 = vld [vmem:[%s3678 + $0xbe0] sm:$0xff]
        %v4060 = vld [vmem:[%s3678 + $0xbe8] sm:$0xff]
        %v4061 = vld [vmem:[%s3678 + $0xbf0] sm:$0xff]
        %v4062 = vld [vmem:[%s3678 + $0xbf8] sm:$0xff]
        %v4063 = vld [vmem:[%s3678 + $0xc00] sm:$0xff]
        %v4064 = vld [vmem:[%s3678 + $0xc08] sm:$0xff]
        %v4065 = vld [vmem:[%s3678 + $0xc10] sm:$0xff]
        %v4066 = vld [vmem:[%s3678 + $0xc18] sm:$0xff]
        %v4067 = vld [vmem:[%s3678 + $0xc20] sm:$0xff]
        %v4068 = vld [vmem:[%s3678 + $0xc28] sm:$0xff]
        %v4069 = vld [vmem:[%s3678 + $0xc30] sm:$0xff]
        %v4070 = vld [vmem:[%s3678 + $0xc38] sm:$0xff]
        %v4071 = vld [vmem:[%s3678 + $0xc40] sm:$0xff]
        %v4072 = vld [vmem:[%s3678 + $0xc48] sm:$0xff]
        %v4073 = vld [vmem:[%s3678 + $0xc50] sm:$0xff]
        %v4074 = vld [vmem:[%s3678 + $0xc58] sm:$0xff]
        %v4075 = vld [vmem:[%s3678 + $0xc60] sm:$0xff]
        %v4076 = vld [vmem:[%s3678 + $0xc68] sm:$0xff]
        %v4077 = vld [vmem:[%s3678 + $0xc70] sm:$0xff]
        %v4078 = vld [vmem:[%s3678 + $0xc78] sm:$0xff]
        %v4079 = vld [vmem:[%s3678 + $0xc80] sm:$0xff]
        %v4080 = vld [vmem:[%s3678 + $0xc88] sm:$0xff]
        %v4081 = vld [vmem:[%s3678 + $0xc90] sm:$0xff]
        %v4082 = vld [vmem:[%s3678 + $0xc98] sm:$0xff]
        %v4083 = vld [vmem:[%s3678 + $0xca0] sm:$0xff]
        %v4084 = vld [vmem:[%s3678 + $0xca8] sm:$0xff]
        %v4085 = vld [vmem:[%s3678 + $0xcb0] sm:$0xff]
        %v4086 = vld [vmem:[%s3678 + $0xcb8] sm:$0xff]
        %v4087 = vld [vmem:[%s3678 + $0xcc0] sm:$0xff]
        %v4088 = vld [vmem:[%s3678 + $0xcc8] sm:$0xff]
        %v4089 = vld [vmem:[%s3678 + $0xcd0] sm:$0xff]
        %v4090 = vld [vmem:[%s3678 + $0xcd8] sm:$0xff]
        %v4091 = vld [vmem:[%s3678 + $0xce0] sm:$0xff]
        %v4092 = vld [vmem:[%s3678 + $0xce8] sm:$0xff]
        %v4093 = vld [vmem:[%s3678 + $0xcf0] sm:$0xff]
        %v4094 = vld [vmem:[%s3678 + $0xcf8] sm:$0xff]
        %v4095 = vld [vmem:[%s3678 + $0xd00] sm:$0xff]
        %v4096 = vld [vmem:[%s3678 + $0xd08] sm:$0xff]
        %v4097 = vld [vmem:[%s3678 + $0xd10] sm:$0xff]
        %v4098 = vld [vmem:[%s3678 + $0xd18] sm:$0xff]
        %v4099 = vld [vmem:[%s3678 + $0xd20] sm:$0xff]
        %v4100 = vld [vmem:[%s3678 + $0xd28] sm:$0xff]
        %v4101 = vld [vmem:[%s3678 + $0xd30] sm:$0xff]
        %v4102 = vld [vmem:[%s3678 + $0xd38] sm:$0xff]
        %v4103 = vld [vmem:[%s3678 + $0xd40] sm:$0xff]
        %v4104 = vld [vmem:[%s3678 + $0xd48] sm:$0xff]
        %v4105 = vld [vmem:[%s3678 + $0xd50] sm:$0xff]
        %v4106 = vld [vmem:[%s3678 + $0xd58] sm:$0xff]
        %v4107 = vld [vmem:[%s3678 + $0xd60] sm:$0xff]
        %v4108 = vld [vmem:[%s3678 + $0xd68] sm:$0xff]
        %v4109 = vld [vmem:[%s3678 + $0xd70] sm:$0xff]
        %v4110 = vld [vmem:[%s3678 + $0xd78] sm:$0xff]
        %v4111 = vld [vmem:[%s3678 + $0xd80] sm:$0xff]
        %v4112 = vld [vmem:[%s3678 + $0xd88] sm:$0xff]
        %v4113 = vld [vmem:[%s3678 + $0xd90] sm:$0xff]
        %v4114 = vld [vmem:[%s3678 + $0xd98] sm:$0xff]
        %v4115 = vld [vmem:[%s3678 + $0xda0] sm:$0xff]
        %v4116 = vld [vmem:[%s3678 + $0xda8] sm:$0xff]
        %v4117 = vld [vmem:[%s3678 + $0xdb0] sm:$0xff]
        %v4118 = vld [vmem:[%s3678 + $0xdb8] sm:$0xff]
        %v4119 = vld [vmem:[%s3678 + $0xdc0] sm:$0xff]
        %v4120 = vld [vmem:[%s3678 + $0xdc8] sm:$0xff]
        %v4121 = vld [vmem:[%s3678 + $0xdd0] sm:$0xff]
        %v4122 = vld [vmem:[%s3678 + $0xdd8] sm:$0xff]
        %v4123 = vld [vmem:[%s3678 + $0xde0] sm:$0xff]
        %v4124 = vld [vmem:[%s3678 + $0xde8] sm:$0xff]
        %v4125 = vld [vmem:[%s3678 + $0xdf0] sm:$0xff]
        %v4126 = vld [vmem:[%s3678 + $0xdf8] sm:$0xff]
        %v4127 = vld [vmem:[%s3678 + $0xe00] sm:$0xff]
        %v4128 = vld [vmem:[%s3678 + $0xe08] sm:$0xff]
        %v4129 = vld [vmem:[%s3678 + $0xe10] sm:$0xff]
        %v4130 = vld [vmem:[%s3678 + $0xe18] sm:$0xff]
        %v4131 = vld [vmem:[%s3678 + $0xe20] sm:$0xff]
        %v4132 = vld [vmem:[%s3678 + $0xe28] sm:$0xff]
        %v4133 = vld [vmem:[%s3678 + $0xe30] sm:$0xff]
        %v4134 = vld [vmem:[%s3678 + $0xe38] sm:$0xff]
        %v4135 = vld [vmem:[%s3678 + $0xe40] sm:$0xff]
        %v4136 = vld [vmem:[%s3678 + $0xe48] sm:$0xff]
        %v4137 = vld [vmem:[%s3678 + $0xe50] sm:$0xff]
        %v4138 = vld [vmem:[%s3678 + $0xe58] sm:$0xff]
        %v4139 = vld [vmem:[%s3678 + $0xe60] sm:$0xff]
        %v4140 = vld [vmem:[%s3678 + $0xe68] sm:$0xff]
        %v4141 = vld [vmem:[%s3678 + $0xe70] sm:$0xff]
        %v4142 = vld [vmem:[%s3678 + $0xe78] sm:$0xff]
        %v4143 = vld [vmem:[%s3678 + $0xe80] sm:$0xff]
        %v4144 = vld [vmem:[%s3678 + $0xe88] sm:$0xff]
        %v4145 = vld [vmem:[%s3678 + $0xe90] sm:$0xff]
        %v4146 = vld [vmem:[%s3678 + $0xe98] sm:$0xff]
        %v4147 = vld [vmem:[%s3678 + $0xea0] sm:$0xff]
        %v4148 = vld [vmem:[%s3678 + $0xea8] sm:$0xff]
        %v4149 = vld [vmem:[%s3678 + $0xeb0] sm:$0xff]
        %v4150 = vld [vmem:[%s3678 + $0xeb8] sm:$0xff]
        %v4151 = vld [vmem:[%s3678 + $0xec0] sm:$0xff]
        %v4152 = vld [vmem:[%s3678 + $0xec8] sm:$0xff]
        %v4153 = vld [vmem:[%s3678 + $0xed0] sm:$0xff]
        %v4154 = vld [vmem:[%s3678 + $0xed8] sm:$0xff]
        %v4155 = vld [vmem:[%s3678 + $0xee0] sm:$0xff]
        %v4156 = vld [vmem:[%s3678 + $0xee8] sm:$0xff]
        %v4157 = vld [vmem:[%s3678 + $0xef0] sm:$0xff]
        %v4158 = vld [vmem:[%s3678 + $0xef8] sm:$0xff]
        %v4159 = vld [vmem:[%s3678 + $0xf00] sm:$0xff]
        %v4160 = vld [vmem:[%s3678 + $0xf08] sm:$0xff]
        %v4161 = vld [vmem:[%s3678 + $0xf10] sm:$0xff]
        %v4162 = vld [vmem:[%s3678 + $0xf18] sm:$0xff]
        %v4163 = vld [vmem:[%s3678 + $0xf20] sm:$0xff]
        %v4164 = vld [vmem:[%s3678 + $0xf28] sm:$0xff]
        %v4165 = vld [vmem:[%s3678 + $0xf30] sm:$0xff]
        %v4166 = vld [vmem:[%s3678 + $0xf38] sm:$0xff]
        %v4167 = vld [vmem:[%s3678 + $0xf40] sm:$0xff]
        %v4168 = vld [vmem:[%s3678 + $0xf48] sm:$0xff]
        %v4169 = vld [vmem:[%s3678 + $0xf50] sm:$0xff]
        %v4170 = vld [vmem:[%s3678 + $0xf58] sm:$0xff]
        %v4171 = vld [vmem:[%s3678 + $0xf60] sm:$0xff]
        %v4172 = vld [vmem:[%s3678 + $0xf68] sm:$0xff]
        %v4173 = vld [vmem:[%s3678 + $0xf70] sm:$0xff]
        %v4174 = vld [vmem:[%s3678 + $0xf78] sm:$0xff]
        %v4175 = vld [vmem:[%s3678 + $0xf80] sm:$0xff]
        %v4176 = vld [vmem:[%s3678 + $0xf88] sm:$0xff]
        %v4177 = vld [vmem:[%s3678 + $0xf90] sm:$0xff]
        %v4178 = vld [vmem:[%s3678 + $0xf98] sm:$0xff]
        %v4179 = vld [vmem:[%s3678 + $0xfa0] sm:$0xff]
        %v4180 = vld [vmem:[%s3678 + $0xfa8] sm:$0xff]
        %v4181 = vld [vmem:[%s3678 + $0xfb0] sm:$0xff]
        %v4182 = vld [vmem:[%s3678 + $0xfb8] sm:$0xff]
        %v4183 = vld [vmem:[%s3678 + $0xfc0] sm:$0xff]
        %v4184 = vld [vmem:[%s3678 + $0xfc8] sm:$0xff]
        %v4185 = vld [vmem:[%s3678 + $0xfd0] sm:$0xff]
        %v4186 = vld [vmem:[%s3678 + $0xfd8] sm:$0xff]
        %v4187 = vld [vmem:[%s3678 + $0xfe0] sm:$0xff]
        %v4188 = vld [vmem:[%s3678 + $0xfe8] sm:$0xff]
        %v4189 = vld [vmem:[%s3678 + $0xff0] sm:$0xff]
        %v4190 = vld [vmem:[%s3678 + $0xff8] sm:$0xff]
        %v4191 = vld [vmem:[%s3678 + $0x1000] sm:$0xff]
        %v4192 = vld [vmem:[%s3678 + $0x1008] sm:$0xff]
        %v4193 = vld [vmem:[%s3678 + $0x1010] sm:$0xff]
        %v4194 = vld [vmem:[%s3678 + $0x1018] sm:$0xff]
        %v4195 = vld [vmem:[%s3678 + $0x1020] sm:$0xff]
        %v4196 = vld [vmem:[%s3678 + $0x1028] sm:$0xff]
        %v4197 = vld [vmem:[%s3678 + $0x1030] sm:$0xff]
        %v4198 = vld [vmem:[%s3678 + $0x1038] sm:$0xff]
        %v4199 = vld [vmem:[%s3678 + $0x1040] sm:$0xf]
        %v4200 = vld [vmem:[%s3678 + $0x1048] sm:$0xf]
        %v4201 = vld [vmem:[%s3678 + $0x1050] sm:$0xf]
        %v4202 = vld [vmem:[%s3678 + $0x1058] sm:$0xf]
        %v4203 = vld [vmem:[%s3678 + $0x1060] sm:$0xf]
        %v4204 = vld [vmem:[%s3678 + $0x1068] sm:$0xf]
        %v4205 = vld [vmem:[%s3678 + $0x1070] sm:$0xf]
        %v4206 = vld [vmem:[%s3678 + $0x1078] sm:$0xf]
        %v4211 = vrot.slane %v2285, 1
        %v4212 = vrot.slane %v2286, 1
        %v4213 = vrot.slane %v2287, 1
        %v4214 = vrot.slane %v2288, 1
        %v4215 = vrot.slane %v2289, 1
        %v4220 = vsel %vm2819, %v4215, 0
        %v4223 = vsel %vm2823, %v4199, 0
        %v4226 = vsel %vm2823, %v4200, 0
        %v4229 = vsel %vm2823, %v4201, 0
        %v4232 = vsel %vm2823, %v4202, 0
        %v4235 = vsel %vm2823, %v4203, 0
        %v4238 = vsel %vm2823, %v4204, 0
        %v4241 = vsel %vm2823, %v4205, 0
        %v4244 = vsel %vm2823, %v4206, 0
        %4246 = vmatpush.msra.mxu0 %v3799
        %4247 = vmatpush.msra.mxu0 %v3791
        %4248 = vmatpush.msra.mxu0 %v3783
        %4249 = vmatpush.msra.mxu0 %v3775
        %4250 = vmatpush.msra.mxu0 %v3767
        %4251 = vmatpush.msra.mxu0 %v3759
        %4252 = vmatpush.msra.mxu0 %v3751
        %4253 = vmatpush.msra.mxu0 %v3743
        %4254 = vmatpush.msra.mxu0 %v3735
        %4255 = vmatpush.msra.mxu0 %v3727
        %4256 = vmatpush.msra.mxu0 %v3719
        %4257 = vmatpush.msra.mxu0 %v3711
        %4258 = vmatpush.msra.mxu0 %v3703
        %4259 = vmatpush.msra.mxu0 %v3695
        %4260 = vmatpush.msra.mxu0 %v3687
        %4261 = vmatpush.msra.mxu0 %v3679
        %4262 = vmatmul.f32.gmra.mxu0 %v4211
        %v4263 = vpop.f32.mrf.mxu0
        %v4264 = vadd.f32 0.0, %v4263
        %4265 = vdwg.mxu0
        %4266 = vmatpush.msra.mxu0 %v3927
        %4267 = vmatpush.msra.mxu0 %v3919
        %4268 = vmatpush.msra.mxu0 %v3911
        %4269 = vmatpush.msra.mxu0 %v3903
        %4270 = vmatpush.msra.mxu0 %v3895
        %4271 = vmatpush.msra.mxu0 %v3887
        %4272 = vmatpush.msra.mxu0 %v3879
        %4273 = vmatpush.msra.mxu0 %v3871
        %4274 = vmatpush.msra.mxu0 %v3863
        %4275 = vmatpush.msra.mxu0 %v3855
        %4276 = vmatpush.msra.mxu0 %v3847
        %4277 = vmatpush.msra.mxu0 %v3839
        %4278 = vmatpush.msra.mxu0 %v3831
        %4279 = vmatpush.msra.mxu0 %v3823
        %4280 = vmatpush.msra.mxu0 %v3815
        %4281 = vmatpush.msra.mxu0 %v3807
        %4282 = vmatmul.f32.gmra.mxu0 %v4212
        %v4283 = vpop.f32.mrf.mxu0
        %v4284 = vadd.f32 %v4264, %v4283
        %4285 = vdwg.mxu0
        %4286 = vmatpush.msra.mxu0 %v4055
        %4287 = vmatpush.msra.mxu0 %v4047
        %4288 = vmatpush.msra.mxu0 %v4039
        %4289 = vmatpush.msra.mxu0 %v4031
        %4290 = vmatpush.msra.mxu0 %v4023
        %4291 = vmatpush.msra.mxu0 %v4015
        %4292 = vmatpush.msra.mxu0 %v4007
        %4293 = vmatpush.msra.mxu0 %v3999
        %4294 = vmatpush.msra.mxu0 %v3991
        %4295 = vmatpush.msra.mxu0 %v3983
        %4296 = vmatpush.msra.mxu0 %v3975
        %4297 = vmatpush.msra.mxu0 %v3967
        %4298 = vmatpush.msra.mxu0 %v3959
        %4299 = vmatpush.msra.mxu0 %v3951
        %4300 = vmatpush.msra.mxu0 %v3943
        %4301 = vmatpush.msra.mxu0 %v3935
        %4302 = vmatmul.f32.gmra.mxu0 %v4213
        %v4303 = vpop.f32.mrf.mxu0
        %v4304 = vadd.f32 %v4284, %v4303
        %4305 = vdwg.mxu0
        %4306 = vmatpush.msra.mxu0 %v4183
        %4307 = vmatpush.msra.mxu0 %v4175
        %4308 = vmatpush.msra.mxu0 %v4167
        %4309 = vmatpush.msra.mxu0 %v4159
        %4310 = vmatpush.msra.mxu0 %v4151
        %4311 = vmatpush.msra.mxu0 %v4143
        %4312 = vmatpush.msra.mxu0 %v4135
        %4313 = vmatpush.msra.mxu0 %v4127
        %4314 = vmatpush.msra.mxu0 %v4119
        %4315 = vmatpush.msra.mxu0 %v4111
        %4316 = vmatpush.msra.mxu0 %v4103
        %4317 = vmatpush.msra.mxu0 %v4095
        %4318 = vmatpush.msra.mxu0 %v4087
        %4319 = vmatpush.msra.mxu0 %v4079
        %4320 = vmatpush.msra.mxu0 %v4071
        %4321 = vmatpush.msra.mxu0 %v4063
        %4322 = vmatmul.f32.gmra.mxu0 %v4214
        %v4323 = vpop.f32.mrf.mxu0
        %v4324 = vadd.f32 %v4304, %v4323
        %4325 = vdwg.mxu0
        %4326 = vmatpush.msra.mxu0 0.0
        %4327 = vmatpush.msra.mxu0 0.0
        %4328 = vmatpush.msra.mxu0 0.0
        %4329 = vmatpush.msra.mxu0 0.0
        %4330 = vmatpush.msra.mxu0 0.0
        %4331 = vmatpush.msra.mxu0 0.0
        %4332 = vmatpush.msra.mxu0 0.0
        %4333 = vmatpush.msra.mxu0 0.0
        %4334 = vmatpush.msra.mxu0 0.0
        %4335 = vmatpush.msra.mxu0 0.0
        %4336 = vmatpush.msra.mxu0 0.0
        %4337 = vmatpush.msra.mxu0 0.0
        %4338 = vmatpush.msra.mxu0 0.0
        %4339 = vmatpush.msra.mxu0 0.0
        %4340 = vmatpush.msra.mxu0 %v4223
        %4341 = vmatpush.msra.mxu0 %v4191
        %4342 = vmatmul.f32.gmra.mxu0 %v4220
        %v4343 = vpop.f32.mrf.mxu0
        %v4344 = vadd.f32 %v4324, %v4343
        %4345 = vdwg.mxu0
        %4346 = vmatpush.msra.mxu0 %v3800
        %4347 = vmatpush.msra.mxu0 %v3792
        %4348 = vmatpush.msra.mxu0 %v3784
        %4349 = vmatpush.msra.mxu0 %v3776
        %4350 = vmatpush.msra.mxu0 %v3768
        %4351 = vmatpush.msra.mxu0 %v3760
        %4352 = vmatpush.msra.mxu0 %v3752
        %4353 = vmatpush.msra.mxu0 %v3744
        %4354 = vmatpush.msra.mxu0 %v3736
        %4355 = vmatpush.msra.mxu0 %v3728
        %4356 = vmatpush.msra.mxu0 %v3720
        %4357 = vmatpush.msra.mxu0 %v3712
        %4358 = vmatpush.msra.mxu0 %v3704
        %4359 = vmatpush.msra.mxu0 %v3696
        %4360 = vmatpush.msra.mxu0 %v3688
        %4361 = vmatpush.msra.mxu0 %v3680
        %4362 = vmatmul.f32.gmra.mxu0 %v4211
        %v4363 = vpop.f32.mrf.mxu0
        %v4364 = vadd.f32 0.0, %v4363
        %4365 = vdwg.mxu0
        %4366 = vmatpush.msra.mxu0 %v3928
        %4367 = vmatpush.msra.mxu0 %v3920
        %4368 = vmatpush.msra.mxu0 %v3912
        %4369 = vmatpush.msra.mxu0 %v3904
        %4370 = vmatpush.msra.mxu0 %v3896
        %4371 = vmatpush.msra.mxu0 %v3888
        %4372 = vmatpush.msra.mxu0 %v3880
        %4373 = vmatpush.msra.mxu0 %v3872
        %4374 = vmatpush.msra.mxu0 %v3864
        %4375 = vmatpush.msra.mxu0 %v3856
        %4376 = vmatpush.msra.mxu0 %v3848
        %4377 = vmatpush.msra.mxu0 %v3840
        %4378 = vmatpush.msra.mxu0 %v3832
        %4379 = vmatpush.msra.mxu0 %v3824
        %4380 = vmatpush.msra.mxu0 %v3816
        %4381 = vmatpush.msra.mxu0 %v3808
        %4382 = vmatmul.f32.gmra.mxu0 %v4212
        %v4383 = vpop.f32.mrf.mxu0
        %v4384 = vadd.f32 %v4364, %v4383
        %4385 = vdwg.mxu0
        %4386 = vmatpush.msra.mxu0 %v4056
        %4387 = vmatpush.msra.mxu0 %v4048
        %4388 = vmatpush.msra.mxu0 %v4040
        %4389 = vmatpush.msra.mxu0 %v4032
        %4390 = vmatpush.msra.mxu0 %v4024
        %4391 = vmatpush.msra.mxu0 %v4016
        %4392 = vmatpush.msra.mxu0 %v4008
        %4393 = vmatpush.msra.mxu0 %v4000
        %4394 = vmatpush.msra.mxu0 %v3992
        %4395 = vmatpush.msra.mxu0 %v3984
        %4396 = vmatpush.msra.mxu0 %v3976
        %4397 = vmatpush.msra.mxu0 %v3968
        %4398 = vmatpush.msra.mxu0 %v3960
        %4399 = vmatpush.msra.mxu0 %v3952
        %4400 = vmatpush.msra.mxu0 %v3944
        %4401 = vmatpush.msra.mxu0 %v3936
        %4402 = vmatmul.f32.gmra.mxu0 %v4213
        %v4403 = vpop.f32.mrf.mxu0
        %v4404 = vadd.f32 %v4384, %v4403
        %4405 = vdwg.mxu0
        %4406 = vmatpush.msra.mxu0 %v4184
        %4407 = vmatpush.msra.mxu0 %v4176
        %4408 = vmatpush.msra.mxu0 %v4168
        %4409 = vmatpush.msra.mxu0 %v4160
        %4410 = vmatpush.msra.mxu0 %v4152
        %4411 = vmatpush.msra.mxu0 %v4144
        %4412 = vmatpush.msra.mxu0 %v4136
        %4413 = vmatpush.msra.mxu0 %v4128
        %4414 = vmatpush.msra.mxu0 %v4120
        %4415 = vmatpush.msra.mxu0 %v4112
        %4416 = vmatpush.msra.mxu0 %v4104
        %4417 = vmatpush.msra.mxu0 %v4096
        %4418 = vmatpush.msra.mxu0 %v4088
        %4419 = vmatpush.msra.mxu0 %v4080
        %4420 = vmatpush.msra.mxu0 %v4072
        %4421 = vmatpush.msra.mxu0 %v4064
        %4422 = vmatmul.f32.gmra.mxu0 %v4214
        %v4423 = vpop.f32.mrf.mxu0
        %v4424 = vadd.f32 %v4404, %v4423
        %4425 = vdwg.mxu0
        %4426 = vmatpush.msra.mxu0 0.0
        %4427 = vmatpush.msra.mxu0 0.0
        %4428 = vmatpush.msra.mxu0 0.0
        %4429 = vmatpush.msra.mxu0 0.0
        %4430 = vmatpush.msra.mxu0 0.0
        %4431 = vmatpush.msra.mxu0 0.0
        %4432 = vmatpush.msra.mxu0 0.0
        %4433 = vmatpush.msra.mxu0 0.0
        %4434 = vmatpush.msra.mxu0 0.0
        %4435 = vmatpush.msra.mxu0 0.0
        %4436 = vmatpush.msra.mxu0 0.0
        %4437 = vmatpush.msra.mxu0 0.0
        %4438 = vmatpush.msra.mxu0 0.0
        %4439 = vmatpush.msra.mxu0 0.0
        %4440 = vmatpush.msra.mxu0 %v4226
        %4441 = vmatpush.msra.mxu0 %v4192
        %4442 = vmatmul.f32.gmra.mxu0 %v4220
        %v4443 = vpop.f32.mrf.mxu0
        %v4444 = vadd.f32 %v4424, %v4443
        %4445 = vdwg.mxu0
        %4446 = vmatpush.msra.mxu0 %v3801
        %4447 = vmatpush.msra.mxu0 %v3793
        %4448 = vmatpush.msra.mxu0 %v3785
        %4449 = vmatpush.msra.mxu0 %v3777
        %4450 = vmatpush.msra.mxu0 %v3769
        %4451 = vmatpush.msra.mxu0 %v3761
        %4452 = vmatpush.msra.mxu0 %v3753
        %4453 = vmatpush.msra.mxu0 %v3745
        %4454 = vmatpush.msra.mxu0 %v3737
        %4455 = vmatpush.msra.mxu0 %v3729
        %4456 = vmatpush.msra.mxu0 %v3721
        %4457 = vmatpush.msra.mxu0 %v3713
        %4458 = vmatpush.msra.mxu0 %v3705
        %4459 = vmatpush.msra.mxu0 %v3697
        %4460 = vmatpush.msra.mxu0 %v3689
        %4461 = vmatpush.msra.mxu0 %v3681
        %4462 = vmatmul.f32.gmra.mxu0 %v4211
        %v4463 = vpop.f32.mrf.mxu0
        %v4464 = vadd.f32 0.0, %v4463
        %4465 = vdwg.mxu0
        %4466 = vmatpush.msra.mxu0 %v3929
        %4467 = vmatpush.msra.mxu0 %v3921
        %4468 = vmatpush.msra.mxu0 %v3913
        %4469 = vmatpush.msra.mxu0 %v3905
        %4470 = vmatpush.msra.mxu0 %v3897
        %4471 = vmatpush.msra.mxu0 %v3889
        %4472 = vmatpush.msra.mxu0 %v3881
        %4473 = vmatpush.msra.mxu0 %v3873
        %4474 = vmatpush.msra.mxu0 %v3865
        %4475 = vmatpush.msra.mxu0 %v3857
        %4476 = vmatpush.msra.mxu0 %v3849
        %4477 = vmatpush.msra.mxu0 %v3841
        %4478 = vmatpush.msra.mxu0 %v3833
        %4479 = vmatpush.msra.mxu0 %v3825
        %4480 = vmatpush.msra.mxu0 %v3817
        %4481 = vmatpush.msra.mxu0 %v3809
        %4482 = vmatmul.f32.gmra.mxu0 %v4212
        %v4483 = vpop.f32.mrf.mxu0
        %v4484 = vadd.f32 %v4464, %v4483
        %4485 = vdwg.mxu0
        %4486 = vmatpush.msra.mxu0 %v4057
        %4487 = vmatpush.msra.mxu0 %v4049
        %4488 = vmatpush.msra.mxu0 %v4041
        %4489 = vmatpush.msra.mxu0 %v4033
        %4490 = vmatpush.msra.mxu0 %v4025
        %4491 = vmatpush.msra.mxu0 %v4017
        %4492 = vmatpush.msra.mxu0 %v4009
        %4493 = vmatpush.msra.mxu0 %v4001
        %4494 = vmatpush.msra.mxu0 %v3993
        %4495 = vmatpush.msra.mxu0 %v3985
        %4496 = vmatpush.msra.mxu0 %v3977
        %4497 = vmatpush.msra.mxu0 %v3969
        %4498 = vmatpush.msra.mxu0 %v3961
        %4499 = vmatpush.msra.mxu0 %v3953
        %4500 = vmatpush.msra.mxu0 %v3945
        %4501 = vmatpush.msra.mxu0 %v3937
        %4502 = vmatmul.f32.gmra.mxu0 %v4213
        %v4503 = vpop.f32.mrf.mxu0
        %v4504 = vadd.f32 %v4484, %v4503
        %4505 = vdwg.mxu0
        %4506 = vmatpush.msra.mxu0 %v4185
        %4507 = vmatpush.msra.mxu0 %v4177
        %4508 = vmatpush.msra.mxu0 %v4169
        %4509 = vmatpush.msra.mxu0 %v4161
        %4510 = vmatpush.msra.mxu0 %v4153
        %4511 = vmatpush.msra.mxu0 %v4145
        %4512 = vmatpush.msra.mxu0 %v4137
        %4513 = vmatpush.msra.mxu0 %v4129
        %4514 = vmatpush.msra.mxu0 %v4121
        %4515 = vmatpush.msra.mxu0 %v4113
        %4516 = vmatpush.msra.mxu0 %v4105
        %4517 = vmatpush.msra.mxu0 %v4097
        %4518 = vmatpush.msra.mxu0 %v4089
        %4519 = vmatpush.msra.mxu0 %v4081
        %4520 = vmatpush.msra.mxu0 %v4073
        %4521 = vmatpush.msra.mxu0 %v4065
        %4522 = vmatmul.f32.gmra.mxu0 %v4214
        %v4523 = vpop.f32.mrf.mxu0
        %v4524 = vadd.f32 %v4504, %v4523
        %4525 = vdwg.mxu0
        %4526 = vmatpush.msra.mxu0 0.0
        %4527 = vmatpush.msra.mxu0 0.0
        %4528 = vmatpush.msra.mxu0 0.0
        %4529 = vmatpush.msra.mxu0 0.0
        %4530 = vmatpush.msra.mxu0 0.0
        %4531 = vmatpush.msra.mxu0 0.0
        %4532 = vmatpush.msra.mxu0 0.0
        %4533 = vmatpush.msra.mxu0 0.0
        %4534 = vmatpush.msra.mxu0 0.0
        %4535 = vmatpush.msra.mxu0 0.0
        %4536 = vmatpush.msra.mxu0 0.0
        %4537 = vmatpush.msra.mxu0 0.0
        %4538 = vmatpush.msra.mxu0 0.0
        %4539 = vmatpush.msra.mxu0 0.0
        %4540 = vmatpush.msra.mxu0 %v4229
        %4541 = vmatpush.msra.mxu0 %v4193
        %4542 = vmatmul.f32.gmra.mxu0 %v4220
        %v4543 = vpop.f32.mrf.mxu0
        %v4544 = vadd.f32 %v4524, %v4543
        %4545 = vdwg.mxu0
        %4546 = vmatpush.msra.mxu0 %v3802
        %4547 = vmatpush.msra.mxu0 %v3794
        %4548 = vmatpush.msra.mxu0 %v3786
        %4549 = vmatpush.msra.mxu0 %v3778
        %4550 = vmatpush.msra.mxu0 %v3770
        %4551 = vmatpush.msra.mxu0 %v3762
        %4552 = vmatpush.msra.mxu0 %v3754
        %4553 = vmatpush.msra.mxu0 %v3746
        %4554 = vmatpush.msra.mxu0 %v3738
        %4555 = vmatpush.msra.mxu0 %v3730
        %4556 = vmatpush.msra.mxu0 %v3722
        %4557 = vmatpush.msra.mxu0 %v3714
        %4558 = vmatpush.msra.mxu0 %v3706
        %4559 = vmatpush.msra.mxu0 %v3698
        %4560 = vmatpush.msra.mxu0 %v3690
        %4561 = vmatpush.msra.mxu0 %v3682
        %4562 = vmatmul.f32.gmra.mxu0 %v4211
        %v4563 = vpop.f32.mrf.mxu0
        %v4564 = vadd.f32 0.0, %v4563
        %4565 = vdwg.mxu0
        %4566 = vmatpush.msra.mxu0 %v3930
        %4567 = vmatpush.msra.mxu0 %v3922
        %4568 = vmatpush.msra.mxu0 %v3914
        %4569 = vmatpush.msra.mxu0 %v3906
        %4570 = vmatpush.msra.mxu0 %v3898
        %4571 = vmatpush.msra.mxu0 %v3890
        %4572 = vmatpush.msra.mxu0 %v3882
        %4573 = vmatpush.msra.mxu0 %v3874
        %4574 = vmatpush.msra.mxu0 %v3866
        %4575 = vmatpush.msra.mxu0 %v3858
        %4576 = vmatpush.msra.mxu0 %v3850
        %4577 = vmatpush.msra.mxu0 %v3842
        %4578 = vmatpush.msra.mxu0 %v3834
        %4579 = vmatpush.msra.mxu0 %v3826
        %4580 = vmatpush.msra.mxu0 %v3818
        %4581 = vmatpush.msra.mxu0 %v3810
        %4582 = vmatmul.f32.gmra.mxu0 %v4212
        %v4583 = vpop.f32.mrf.mxu0
        %v4584 = vadd.f32 %v4564, %v4583
        %4585 = vdwg.mxu0
        %4586 = vmatpush.msra.mxu0 %v4058
        %4587 = vmatpush.msra.mxu0 %v4050
        %4588 = vmatpush.msra.mxu0 %v4042
        %4589 = vmatpush.msra.mxu0 %v4034
        %4590 = vmatpush.msra.mxu0 %v4026
        %4591 = vmatpush.msra.mxu0 %v4018
        %4592 = vmatpush.msra.mxu0 %v4010
        %4593 = vmatpush.msra.mxu0 %v4002
        %4594 = vmatpush.msra.mxu0 %v3994
        %4595 = vmatpush.msra.mxu0 %v3986
        %4596 = vmatpush.msra.mxu0 %v3978
        %4597 = vmatpush.msra.mxu0 %v3970
        %4598 = vmatpush.msra.mxu0 %v3962
        %4599 = vmatpush.msra.mxu0 %v3954
        %4600 = vmatpush.msra.mxu0 %v3946
        %4601 = vmatpush.msra.mxu0 %v3938
        %4602 = vmatmul.f32.gmra.mxu0 %v4213
        %v4603 = vpop.f32.mrf.mxu0
        %v4604 = vadd.f32 %v4584, %v4603
        %4605 = vdwg.mxu0
        %4606 = vmatpush.msra.mxu0 %v4186
        %4607 = vmatpush.msra.mxu0 %v4178
        %4608 = vmatpush.msra.mxu0 %v4170
        %4609 = vmatpush.msra.mxu0 %v4162
        %4610 = vmatpush.msra.mxu0 %v4154
        %4611 = vmatpush.msra.mxu0 %v4146
        %4612 = vmatpush.msra.mxu0 %v4138
        %4613 = vmatpush.msra.mxu0 %v4130
        %4614 = vmatpush.msra.mxu0 %v4122
        %4615 = vmatpush.msra.mxu0 %v4114
        %4616 = vmatpush.msra.mxu0 %v4106
        %4617 = vmatpush.msra.mxu0 %v4098
        %4618 = vmatpush.msra.mxu0 %v4090
        %4619 = vmatpush.msra.mxu0 %v4082
        %4620 = vmatpush.msra.mxu0 %v4074
        %4621 = vmatpush.msra.mxu0 %v4066
        %4622 = vmatmul.f32.gmra.mxu0 %v4214
        %v4623 = vpop.f32.mrf.mxu0
        %v4624 = vadd.f32 %v4604, %v4623
        %4625 = vdwg.mxu0
        %4626 = vmatpush.msra.mxu0 0.0
        %4627 = vmatpush.msra.mxu0 0.0
        %4628 = vmatpush.msra.mxu0 0.0
        %4629 = vmatpush.msra.mxu0 0.0
        %4630 = vmatpush.msra.mxu0 0.0
        %4631 = vmatpush.msra.mxu0 0.0
        %4632 = vmatpush.msra.mxu0 0.0
        %4633 = vmatpush.msra.mxu0 0.0
        %4634 = vmatpush.msra.mxu0 0.0
        %4635 = vmatpush.msra.mxu0 0.0
        %4636 = vmatpush.msra.mxu0 0.0
        %4637 = vmatpush.msra.mxu0 0.0
        %4638 = vmatpush.msra.mxu0 0.0
        %4639 = vmatpush.msra.mxu0 0.0
        %4640 = vmatpush.msra.mxu0 %v4232
        %4641 = vmatpush.msra.mxu0 %v4194
        %4642 = vmatmul.f32.gmra.mxu0 %v4220
        %v4643 = vpop.f32.mrf.mxu0
        %v4644 = vadd.f32 %v4624, %v4643
        %4645 = vdwg.mxu0
        %4646 = vmatpush.msra.mxu0 %v3803
        %4647 = vmatpush.msra.mxu0 %v3795
        %4648 = vmatpush.msra.mxu0 %v3787
        %4649 = vmatpush.msra.mxu0 %v3779
        %4650 = vmatpush.msra.mxu0 %v3771
        %4651 = vmatpush.msra.mxu0 %v3763
        %4652 = vmatpush.msra.mxu0 %v3755
        %4653 = vmatpush.msra.mxu0 %v3747
        %4654 = vmatpush.msra.mxu0 %v3739
        %4655 = vmatpush.msra.mxu0 %v3731
        %4656 = vmatpush.msra.mxu0 %v3723
        %4657 = vmatpush.msra.mxu0 %v3715
        %4658 = vmatpush.msra.mxu0 %v3707
        %4659 = vmatpush.msra.mxu0 %v3699
        %4660 = vmatpush.msra.mxu0 %v3691
        %4661 = vmatpush.msra.mxu0 %v3683
        %4662 = vmatmul.f32.gmra.mxu0 %v4211
        %v4663 = vpop.f32.mrf.mxu0
        %v4664 = vadd.f32 0.0, %v4663
        %4665 = vdwg.mxu0
        %4666 = vmatpush.msra.mxu0 %v3931
        %4667 = vmatpush.msra.mxu0 %v3923
        %4668 = vmatpush.msra.mxu0 %v3915
        %4669 = vmatpush.msra.mxu0 %v3907
        %4670 = vmatpush.msra.mxu0 %v3899
        %4671 = vmatpush.msra.mxu0 %v3891
        %4672 = vmatpush.msra.mxu0 %v3883
        %4673 = vmatpush.msra.mxu0 %v3875
        %4674 = vmatpush.msra.mxu0 %v3867
        %4675 = vmatpush.msra.mxu0 %v3859
        %4676 = vmatpush.msra.mxu0 %v3851
        %4677 = vmatpush.msra.mxu0 %v3843
        %4678 = vmatpush.msra.mxu0 %v3835
        %4679 = vmatpush.msra.mxu0 %v3827
        %4680 = vmatpush.msra.mxu0 %v3819
        %4681 = vmatpush.msra.mxu0 %v3811
        %4682 = vmatmul.f32.gmra.mxu0 %v4212
        %v4683 = vpop.f32.mrf.mxu0
        %v4684 = vadd.f32 %v4664, %v4683
        %4685 = vdwg.mxu0
        %4686 = vmatpush.msra.mxu0 %v4059
        %4687 = vmatpush.msra.mxu0 %v4051
        %4688 = vmatpush.msra.mxu0 %v4043
        %4689 = vmatpush.msra.mxu0 %v4035
        %4690 = vmatpush.msra.mxu0 %v4027
        %4691 = vmatpush.msra.mxu0 %v4019
        %4692 = vmatpush.msra.mxu0 %v4011
        %4693 = vmatpush.msra.mxu0 %v4003
        %4694 = vmatpush.msra.mxu0 %v3995
        %4695 = vmatpush.msra.mxu0 %v3987
        %4696 = vmatpush.msra.mxu0 %v3979
        %4697 = vmatpush.msra.mxu0 %v3971
        %4698 = vmatpush.msra.mxu0 %v3963
        %4699 = vmatpush.msra.mxu0 %v3955
        %4700 = vmatpush.msra.mxu0 %v3947
        %4701 = vmatpush.msra.mxu0 %v3939
        %4702 = vmatmul.f32.gmra.mxu0 %v4213
        %v4703 = vpop.f32.mrf.mxu0
        %v4704 = vadd.f32 %v4684, %v4703
        %4705 = vdwg.mxu0
        %4706 = vmatpush.msra.mxu0 %v4187
        %4707 = vmatpush.msra.mxu0 %v4179
        %4708 = vmatpush.msra.mxu0 %v4171
        %4709 = vmatpush.msra.mxu0 %v4163
        %4710 = vmatpush.msra.mxu0 %v4155
        %4711 = vmatpush.msra.mxu0 %v4147
        %4712 = vmatpush.msra.mxu0 %v4139
        %4713 = vmatpush.msra.mxu0 %v4131
        %4714 = vmatpush.msra.mxu0 %v4123
        %4715 = vmatpush.msra.mxu0 %v4115
        %4716 = vmatpush.msra.mxu0 %v4107
        %4717 = vmatpush.msra.mxu0 %v4099
        %4718 = vmatpush.msra.mxu0 %v4091
        %4719 = vmatpush.msra.mxu0 %v4083
        %4720 = vmatpush.msra.mxu0 %v4075
        %4721 = vmatpush.msra.mxu0 %v4067
        %4722 = vmatmul.f32.gmra.mxu0 %v4214
        %v4723 = vpop.f32.mrf.mxu0
        %v4724 = vadd.f32 %v4704, %v4723
        %4725 = vdwg.mxu0
        %4726 = vmatpush.msra.mxu0 0.0
        %4727 = vmatpush.msra.mxu0 0.0
        %4728 = vmatpush.msra.mxu0 0.0
        %4729 = vmatpush.msra.mxu0 0.0
        %4730 = vmatpush.msra.mxu0 0.0
        %4731 = vmatpush.msra.mxu0 0.0
        %4732 = vmatpush.msra.mxu0 0.0
        %4733 = vmatpush.msra.mxu0 0.0
        %4734 = vmatpush.msra.mxu0 0.0
        %4735 = vmatpush.msra.mxu0 0.0
        %4736 = vmatpush.msra.mxu0 0.0
        %4737 = vmatpush.msra.mxu0 0.0
        %4738 = vmatpush.msra.mxu0 0.0
        %4739 = vmatpush.msra.mxu0 0.0
        %4740 = vmatpush.msra.mxu0 %v4235
        %4741 = vmatpush.msra.mxu0 %v4195
        %4742 = vmatmul.f32.gmra.mxu0 %v4220
        %v4743 = vpop.f32.mrf.mxu0
        %v4744 = vadd.f32 %v4724, %v4743
        %4745 = vdwg.mxu0
        %4746 = vmatpush.msra.mxu0 %v3804
        %4747 = vmatpush.msra.mxu0 %v3796
        %4748 = vmatpush.msra.mxu0 %v3788
        %4749 = vmatpush.msra.mxu0 %v3780
        %4750 = vmatpush.msra.mxu0 %v3772
        %4751 = vmatpush.msra.mxu0 %v3764
        %4752 = vmatpush.msra.mxu0 %v3756
        %4753 = vmatpush.msra.mxu0 %v3748
        %4754 = vmatpush.msra.mxu0 %v3740
        %4755 = vmatpush.msra.mxu0 %v3732
        %4756 = vmatpush.msra.mxu0 %v3724
        %4757 = vmatpush.msra.mxu0 %v3716
        %4758 = vmatpush.msra.mxu0 %v3708
        %4759 = vmatpush.msra.mxu0 %v3700
        %4760 = vmatpush.msra.mxu0 %v3692
        %4761 = vmatpush.msra.mxu0 %v3684
        %4762 = vmatmul.f32.gmra.mxu0 %v4211
        %v4763 = vpop.f32.mrf.mxu0
        %v4764 = vadd.f32 0.0, %v4763
        %4765 = vdwg.mxu0
        %4766 = vmatpush.msra.mxu0 %v3932
        %4767 = vmatpush.msra.mxu0 %v3924
        %4768 = vmatpush.msra.mxu0 %v3916
        %4769 = vmatpush.msra.mxu0 %v3908
        %4770 = vmatpush.msra.mxu0 %v3900
        %4771 = vmatpush.msra.mxu0 %v3892
        %4772 = vmatpush.msra.mxu0 %v3884
        %4773 = vmatpush.msra.mxu0 %v3876
        %4774 = vmatpush.msra.mxu0 %v3868
        %4775 = vmatpush.msra.mxu0 %v3860
        %4776 = vmatpush.msra.mxu0 %v3852
        %4777 = vmatpush.msra.mxu0 %v3844
        %4778 = vmatpush.msra.mxu0 %v3836
        %4779 = vmatpush.msra.mxu0 %v3828
        %4780 = vmatpush.msra.mxu0 %v3820
        %4781 = vmatpush.msra.mxu0 %v3812
        %4782 = vmatmul.f32.gmra.mxu0 %v4212
        %v4783 = vpop.f32.mrf.mxu0
        %v4784 = vadd.f32 %v4764, %v4783
        %4785 = vdwg.mxu0
        %4786 = vmatpush.msra.mxu0 %v4060
        %4787 = vmatpush.msra.mxu0 %v4052
        %4788 = vmatpush.msra.mxu0 %v4044
        %4789 = vmatpush.msra.mxu0 %v4036
        %4790 = vmatpush.msra.mxu0 %v4028
        %4791 = vmatpush.msra.mxu0 %v4020
        %4792 = vmatpush.msra.mxu0 %v4012
        %4793 = vmatpush.msra.mxu0 %v4004
        %4794 = vmatpush.msra.mxu0 %v3996
        %4795 = vmatpush.msra.mxu0 %v3988
        %4796 = vmatpush.msra.mxu0 %v3980
        %4797 = vmatpush.msra.mxu0 %v3972
        %4798 = vmatpush.msra.mxu0 %v3964
        %4799 = vmatpush.msra.mxu0 %v3956
        %4800 = vmatpush.msra.mxu0 %v3948
        %4801 = vmatpush.msra.mxu0 %v3940
        %4802 = vmatmul.f32.gmra.mxu0 %v4213
        %v4803 = vpop.f32.mrf.mxu0
        %v4804 = vadd.f32 %v4784, %v4803
        %4805 = vdwg.mxu0
        %4806 = vmatpush.msra.mxu0 %v4188
        %4807 = vmatpush.msra.mxu0 %v4180
        %4808 = vmatpush.msra.mxu0 %v4172
        %4809 = vmatpush.msra.mxu0 %v4164
        %4810 = vmatpush.msra.mxu0 %v4156
        %4811 = vmatpush.msra.mxu0 %v4148
        %4812 = vmatpush.msra.mxu0 %v4140
        %4813 = vmatpush.msra.mxu0 %v4132
        %4814 = vmatpush.msra.mxu0 %v4124
        %4815 = vmatpush.msra.mxu0 %v4116
        %4816 = vmatpush.msra.mxu0 %v4108
        %4817 = vmatpush.msra.mxu0 %v4100
        %4818 = vmatpush.msra.mxu0 %v4092
        %4819 = vmatpush.msra.mxu0 %v4084
        %4820 = vmatpush.msra.mxu0 %v4076
        %4821 = vmatpush.msra.mxu0 %v4068
        %4822 = vmatmul.f32.gmra.mxu0 %v4214
        %v4823 = vpop.f32.mrf.mxu0
        %v4824 = vadd.f32 %v4804, %v4823
        %4825 = vdwg.mxu0
        %4826 = vmatpush.msra.mxu0 0.0
        %4827 = vmatpush.msra.mxu0 0.0
        %4828 = vmatpush.msra.mxu0 0.0
        %4829 = vmatpush.msra.mxu0 0.0
        %4830 = vmatpush.msra.mxu0 0.0
        %4831 = vmatpush.msra.mxu0 0.0
        %4832 = vmatpush.msra.mxu0 0.0
        %4833 = vmatpush.msra.mxu0 0.0
        %4834 = vmatpush.msra.mxu0 0.0
        %4835 = vmatpush.msra.mxu0 0.0
        %4836 = vmatpush.msra.mxu0 0.0
        %4837 = vmatpush.msra.mxu0 0.0
        %4838 = vmatpush.msra.mxu0 0.0
        %4839 = vmatpush.msra.mxu0 0.0
        %4840 = vmatpush.msra.mxu0 %v4238
        %4841 = vmatpush.msra.mxu0 %v4196
        %4842 = vmatmul.f32.gmra.mxu0 %v4220
        %v4843 = vpop.f32.mrf.mxu0
        %v4844 = vadd.f32 %v4824, %v4843
        %4845 = vdwg.mxu0
        %4846 = vmatpush.msra.mxu0 %v3805
        %4847 = vmatpush.msra.mxu0 %v3797
        %4848 = vmatpush.msra.mxu0 %v3789
        %4849 = vmatpush.msra.mxu0 %v3781
        %4850 = vmatpush.msra.mxu0 %v3773
        %4851 = vmatpush.msra.mxu0 %v3765
        %4852 = vmatpush.msra.mxu0 %v3757
        %4853 = vmatpush.msra.mxu0 %v3749
        %4854 = vmatpush.msra.mxu0 %v3741
        %4855 = vmatpush.msra.mxu0 %v3733
        %4856 = vmatpush.msra.mxu0 %v3725
        %4857 = vmatpush.msra.mxu0 %v3717
        %4858 = vmatpush.msra.mxu0 %v3709
        %4859 = vmatpush.msra.mxu0 %v3701
        %4860 = vmatpush.msra.mxu0 %v3693
        %4861 = vmatpush.msra.mxu0 %v3685
        %4862 = vmatmul.f32.gmra.mxu0 %v4211
        %v4863 = vpop.f32.mrf.mxu0
        %v4864 = vadd.f32 0.0, %v4863
        %4865 = vdwg.mxu0
        %4866 = vmatpush.msra.mxu0 %v3933
        %4867 = vmatpush.msra.mxu0 %v3925
        %4868 = vmatpush.msra.mxu0 %v3917
        %4869 = vmatpush.msra.mxu0 %v3909
        %4870 = vmatpush.msra.mxu0 %v3901
        %4871 = vmatpush.msra.mxu0 %v3893
        %4872 = vmatpush.msra.mxu0 %v3885
        %4873 = vmatpush.msra.mxu0 %v3877
        %4874 = vmatpush.msra.mxu0 %v3869
        %4875 = vmatpush.msra.mxu0 %v3861
        %4876 = vmatpush.msra.mxu0 %v3853
        %4877 = vmatpush.msra.mxu0 %v3845
        %4878 = vmatpush.msra.mxu0 %v3837
        %4879 = vmatpush.msra.mxu0 %v3829
        %4880 = vmatpush.msra.mxu0 %v3821
        %4881 = vmatpush.msra.mxu0 %v3813
        %4882 = vmatmul.f32.gmra.mxu0 %v4212
        %v4883 = vpop.f32.mrf.mxu0
        %v4884 = vadd.f32 %v4864, %v4883
        %4885 = vdwg.mxu0
        %4886 = vmatpush.msra.mxu0 %v4061
        %4887 = vmatpush.msra.mxu0 %v4053
        %4888 = vmatpush.msra.mxu0 %v4045
        %4889 = vmatpush.msra.mxu0 %v4037
        %4890 = vmatpush.msra.mxu0 %v4029
        %4891 = vmatpush.msra.mxu0 %v4021
        %4892 = vmatpush.msra.mxu0 %v4013
        %4893 = vmatpush.msra.mxu0 %v4005
        %4894 = vmatpush.msra.mxu0 %v3997
        %4895 = vmatpush.msra.mxu0 %v3989
        %4896 = vmatpush.msra.mxu0 %v3981
        %4897 = vmatpush.msra.mxu0 %v3973
        %4898 = vmatpush.msra.mxu0 %v3965
        %4899 = vmatpush.msra.mxu0 %v3957
        %4900 = vmatpush.msra.mxu0 %v3949
        %4901 = vmatpush.msra.mxu0 %v3941
        %4902 = vmatmul.f32.gmra.mxu0 %v4213
        %v4903 = vpop.f32.mrf.mxu0
        %v4904 = vadd.f32 %v4884, %v4903
        %4905 = vdwg.mxu0
        %4906 = vmatpush.msra.mxu0 %v4189
        %4907 = vmatpush.msra.mxu0 %v4181
        %4908 = vmatpush.msra.mxu0 %v4173
        %4909 = vmatpush.msra.mxu0 %v4165
        %4910 = vmatpush.msra.mxu0 %v4157
        %4911 = vmatpush.msra.mxu0 %v4149
        %4912 = vmatpush.msra.mxu0 %v4141
        %4913 = vmatpush.msra.mxu0 %v4133
        %4914 = vmatpush.msra.mxu0 %v4125
        %4915 = vmatpush.msra.mxu0 %v4117
        %4916 = vmatpush.msra.mxu0 %v4109
        %4917 = vmatpush.msra.mxu0 %v4101
        %4918 = vmatpush.msra.mxu0 %v4093
        %4919 = vmatpush.msra.mxu0 %v4085
        %4920 = vmatpush.msra.mxu0 %v4077
        %4921 = vmatpush.msra.mxu0 %v4069
        %4922 = vmatmul.f32.gmra.mxu0 %v4214
        %v4923 = vpop.f32.mrf.mxu0
        %v4924 = vadd.f32 %v4904, %v4923
        %4925 = vdwg.mxu0
        %4926 = vmatpush.msra.mxu0 0.0
        %4927 = vmatpush.msra.mxu0 0.0
        %4928 = vmatpush.msra.mxu0 0.0
        %4929 = vmatpush.msra.mxu0 0.0
        %4930 = vmatpush.msra.mxu0 0.0
        %4931 = vmatpush.msra.mxu0 0.0
        %4932 = vmatpush.msra.mxu0 0.0
        %4933 = vmatpush.msra.mxu0 0.0
        %4934 = vmatpush.msra.mxu0 0.0
        %4935 = vmatpush.msra.mxu0 0.0
        %4936 = vmatpush.msra.mxu0 0.0
        %4937 = vmatpush.msra.mxu0 0.0
        %4938 = vmatpush.msra.mxu0 0.0
        %4939 = vmatpush.msra.mxu0 0.0
        %4940 = vmatpush.msra.mxu0 %v4241
        %4941 = vmatpush.msra.mxu0 %v4197
        %4942 = vmatmul.f32.gmra.mxu0 %v4220
        %v4943 = vpop.f32.mrf.mxu0
        %v4944 = vadd.f32 %v4924, %v4943
        %4945 = vdwg.mxu0
        %4946 = vmatpush.msra.mxu0 %v3806
        %4947 = vmatpush.msra.mxu0 %v3798
        %4948 = vmatpush.msra.mxu0 %v3790
        %4949 = vmatpush.msra.mxu0 %v3782
        %4950 = vmatpush.msra.mxu0 %v3774
        %4951 = vmatpush.msra.mxu0 %v3766
        %4952 = vmatpush.msra.mxu0 %v3758
        %4953 = vmatpush.msra.mxu0 %v3750
        %4954 = vmatpush.msra.mxu0 %v3742
        %4955 = vmatpush.msra.mxu0 %v3734
        %4956 = vmatpush.msra.mxu0 %v3726
        %4957 = vmatpush.msra.mxu0 %v3718
        %4958 = vmatpush.msra.mxu0 %v3710
        %4959 = vmatpush.msra.mxu0 %v3702
        %4960 = vmatpush.msra.mxu0 %v3694
        %4961 = vmatpush.msra.mxu0 %v3686
        %4962 = vmatmul.f32.gmra.mxu0 %v4211
        %v4963 = vpop.f32.mrf.mxu0
        %v4964 = vadd.f32 0.0, %v4963
        %4965 = vdwg.mxu0
        %4966 = vmatpush.msra.mxu0 %v3934
        %4967 = vmatpush.msra.mxu0 %v3926
        %4968 = vmatpush.msra.mxu0 %v3918
        %4969 = vmatpush.msra.mxu0 %v3910
        %4970 = vmatpush.msra.mxu0 %v3902
        %4971 = vmatpush.msra.mxu0 %v3894
        %4972 = vmatpush.msra.mxu0 %v3886
        %4973 = vmatpush.msra.mxu0 %v3878
        %4974 = vmatpush.msra.mxu0 %v3870
        %4975 = vmatpush.msra.mxu0 %v3862
        %4976 = vmatpush.msra.mxu0 %v3854
        %4977 = vmatpush.msra.mxu0 %v3846
        %4978 = vmatpush.msra.mxu0 %v3838
        %4979 = vmatpush.msra.mxu0 %v3830
        %4980 = vmatpush.msra.mxu0 %v3822
        %4981 = vmatpush.msra.mxu0 %v3814
        %4982 = vmatmul.f32.gmra.mxu0 %v4212
        %v4983 = vpop.f32.mrf.mxu0
        %v4984 = vadd.f32 %v4964, %v4983
        %4985 = vdwg.mxu0
        %4986 = vmatpush.msra.mxu0 %v4062
        %4987 = vmatpush.msra.mxu0 %v4054
        %4988 = vmatpush.msra.mxu0 %v4046
        %4989 = vmatpush.msra.mxu0 %v4038
        %4990 = vmatpush.msra.mxu0 %v4030
        %4991 = vmatpush.msra.mxu0 %v4022
        %4992 = vmatpush.msra.mxu0 %v4014
        %4993 = vmatpush.msra.mxu0 %v4006
        %4994 = vmatpush.msra.mxu0 %v3998
        %4995 = vmatpush.msra.mxu0 %v3990
        %4996 = vmatpush.msra.mxu0 %v3982
        %4997 = vmatpush.msra.mxu0 %v3974
        %4998 = vmatpush.msra.mxu0 %v3966
        %4999 = vmatpush.msra.mxu0 %v3958
        %5000 = vmatpush.msra.mxu0 %v3950
        %5001 = vmatpush.msra.mxu0 %v3942
        %5002 = vmatmul.f32.gmra.mxu0 %v4213
        %v5003 = vpop.f32.mrf.mxu0
        %v5004 = vadd.f32 %v4984, %v5003
        %5005 = vdwg.mxu0
        %5006 = vmatpush.msra.mxu0 %v4190
        %5007 = vmatpush.msra.mxu0 %v4182
        %5008 = vmatpush.msra.mxu0 %v4174
        %5009 = vmatpush.msra.mxu0 %v4166
        %5010 = vmatpush.msra.mxu0 %v4158
        %5011 = vmatpush.msra.mxu0 %v4150
        %5012 = vmatpush.msra.mxu0 %v4142
        %5013 = vmatpush.msra.mxu0 %v4134
        %5014 = vmatpush.msra.mxu0 %v4126
        %5015 = vmatpush.msra.mxu0 %v4118
        %5016 = vmatpush.msra.mxu0 %v4110
        %5017 = vmatpush.msra.mxu0 %v4102
        %5018 = vmatpush.msra.mxu0 %v4094
        %5019 = vmatpush.msra.mxu0 %v4086
        %5020 = vmatpush.msra.mxu0 %v4078
        %5021 = vmatpush.msra.mxu0 %v4070
        %5022 = vmatmul.f32.gmra.mxu0 %v4214
        %v5023 = vpop.f32.mrf.mxu0
        %v5024 = vadd.f32 %v5004, %v5023
        %5025 = vdwg.mxu0
        %5026 = vmatpush.msra.mxu0 0.0
        %5027 = vmatpush.msra.mxu0 0.0
        %5028 = vmatpush.msra.mxu0 0.0
        %5029 = vmatpush.msra.mxu0 0.0
        %5030 = vmatpush.msra.mxu0 0.0
        %5031 = vmatpush.msra.mxu0 0.0
        %5032 = vmatpush.msra.mxu0 0.0
        %5033 = vmatpush.msra.mxu0 0.0
        %5034 = vmatpush.msra.mxu0 0.0
        %5035 = vmatpush.msra.mxu0 0.0
        %5036 = vmatpush.msra.mxu0 0.0
        %5037 = vmatpush.msra.mxu0 0.0
        %5038 = vmatpush.msra.mxu0 0.0
        %5039 = vmatpush.msra.mxu0 0.0
        %5040 = vmatpush.msra.mxu0 %v4244
        %5041 = vmatpush.msra.mxu0 %v4198
        %5042 = vmatmul.f32.gmra.mxu0 %v4220
        %v5043 = vpop.f32.mrf.mxu0
        %v5044 = vadd.f32 %v5024, %v5043
        %5045 = vdwg.mxu0
        %v5054 = vrot.slane %v4444, 7
        %v5055 = vrot.slane %v4544, 6
        %v5056 = vrot.slane %v4644, 5
        %v5057 = vrot.slane %v4744, 4
        %v5058 = vrot.slane %v4844, 3
        %v5059 = vrot.slane %v4944, 2
        %v5060 = vrot.slane %v5044, 1
        %v5061 = vsel %vm3663, %v4344, %v5054
        %v5062 = vsel %vm3665, %v5055, %v5056
        %v5063 = vsel %vm3667, %v5061, %v5062
        %v5064 = vsel %vm3669, %v5057, %v5058
        %v5065 = vsel %vm3671, %v5059, %v5060
        %v5066 = vsel %vm3673, %v5064, %v5065
        %v5067 = vsel %vm2823, %v5063, %v5066
        %v5069 = vadd.f32 %v3677, %v5067
        %s5070 = scalar_lea.vmem [#allocation3], 8448
        %v5071 = vld [vmem:[%s5070] sm:$0xff]
        %v5072 = vld [vmem:[%s5070 + $0x8] sm:$0xff]
        %v5073 = vld [vmem:[%s5070 + $0x10] sm:$0xff]
        %v5074 = vld [vmem:[%s5070 + $0x18] sm:$0xff]
        %v5075 = vld [vmem:[%s5070 + $0x20] sm:$0xff]
        %v5076 = vld [vmem:[%s5070 + $0x28] sm:$0xff]
        %v5077 = vld [vmem:[%s5070 + $0x30] sm:$0xff]
        %v5078 = vld [vmem:[%s5070 + $0x38] sm:$0xff]
        %v5079 = vld [vmem:[%s5070 + $0x40] sm:$0xff]
        %v5080 = vld [vmem:[%s5070 + $0x48] sm:$0xff]
        %v5081 = vld [vmem:[%s5070 + $0x50] sm:$0xff]
        %v5082 = vld [vmem:[%s5070 + $0x58] sm:$0xff]
        %v5083 = vld [vmem:[%s5070 + $0x60] sm:$0xff]
        %v5084 = vld [vmem:[%s5070 + $0x68] sm:$0xff]
        %v5085 = vld [vmem:[%s5070 + $0x70] sm:$0xff]
        %v5086 = vld [vmem:[%s5070 + $0x78] sm:$0xff]
        %v5087 = vld [vmem:[%s5070 + $0x80] sm:$0xff]
        %v5088 = vld [vmem:[%s5070 + $0x88] sm:$0xff]
        %v5089 = vld [vmem:[%s5070 + $0x90] sm:$0xff]
        %v5090 = vld [vmem:[%s5070 + $0x98] sm:$0xff]
        %v5091 = vld [vmem:[%s5070 + $0xa0] sm:$0xff]
        %v5092 = vld [vmem:[%s5070 + $0xa8] sm:$0xff]
        %v5093 = vld [vmem:[%s5070 + $0xb0] sm:$0xff]
        %v5094 = vld [vmem:[%s5070 + $0xb8] sm:$0xff]
        %v5095 = vld [vmem:[%s5070 + $0xc0] sm:$0xff]
        %v5096 = vld [vmem:[%s5070 + $0xc8] sm:$0xff]
        %v5097 = vld [vmem:[%s5070 + $0xd0] sm:$0xff]
        %v5098 = vld [vmem:[%s5070 + $0xd8] sm:$0xff]
        %v5099 = vld [vmem:[%s5070 + $0xe0] sm:$0xff]
        %v5100 = vld [vmem:[%s5070 + $0xe8] sm:$0xff]
        %v5101 = vld [vmem:[%s5070 + $0xf0] sm:$0xff]
        %v5102 = vld [vmem:[%s5070 + $0xf8] sm:$0xff]
        %v5103 = vld [vmem:[%s5070 + $0x100] sm:$0xff]
        %v5104 = vld [vmem:[%s5070 + $0x108] sm:$0xff]
        %v5105 = vld [vmem:[%s5070 + $0x110] sm:$0xff]
        %v5106 = vld [vmem:[%s5070 + $0x118] sm:$0xff]
        %v5107 = vld [vmem:[%s5070 + $0x120] sm:$0xff]
        %v5108 = vld [vmem:[%s5070 + $0x128] sm:$0xff]
        %v5109 = vld [vmem:[%s5070 + $0x130] sm:$0xff]
        %v5110 = vld [vmem:[%s5070 + $0x138] sm:$0xff]
        %v5111 = vld [vmem:[%s5070 + $0x140] sm:$0xff]
        %v5112 = vld [vmem:[%s5070 + $0x148] sm:$0xff]
        %v5113 = vld [vmem:[%s5070 + $0x150] sm:$0xff]
        %v5114 = vld [vmem:[%s5070 + $0x158] sm:$0xff]
        %v5115 = vld [vmem:[%s5070 + $0x160] sm:$0xff]
        %v5116 = vld [vmem:[%s5070 + $0x168] sm:$0xff]
        %v5117 = vld [vmem:[%s5070 + $0x170] sm:$0xff]
        %v5118 = vld [vmem:[%s5070 + $0x178] sm:$0xff]
        %v5119 = vld [vmem:[%s5070 + $0x180] sm:$0xff]
        %v5120 = vld [vmem:[%s5070 + $0x188] sm:$0xff]
        %v5121 = vld [vmem:[%s5070 + $0x190] sm:$0xff]
        %v5122 = vld [vmem:[%s5070 + $0x198] sm:$0xff]
        %v5123 = vld [vmem:[%s5070 + $0x1a0] sm:$0xff]
        %v5124 = vld [vmem:[%s5070 + $0x1a8] sm:$0xff]
        %v5125 = vld [vmem:[%s5070 + $0x1b0] sm:$0xff]
        %v5126 = vld [vmem:[%s5070 + $0x1b8] sm:$0xff]
        %v5127 = vld [vmem:[%s5070 + $0x1c0] sm:$0xff]
        %v5128 = vld [vmem:[%s5070 + $0x1c8] sm:$0xff]
        %v5129 = vld [vmem:[%s5070 + $0x1d0] sm:$0xff]
        %v5130 = vld [vmem:[%s5070 + $0x1d8] sm:$0xff]
        %v5131 = vld [vmem:[%s5070 + $0x1e0] sm:$0xff]
        %v5132 = vld [vmem:[%s5070 + $0x1e8] sm:$0xff]
        %v5133 = vld [vmem:[%s5070 + $0x1f0] sm:$0xff]
        %v5134 = vld [vmem:[%s5070 + $0x1f8] sm:$0xff]
        %v5135 = vld [vmem:[%s5070 + $0x200] sm:$0xff]
        %v5136 = vld [vmem:[%s5070 + $0x208] sm:$0xff]
        %v5137 = vld [vmem:[%s5070 + $0x210] sm:$0xff]
        %v5138 = vld [vmem:[%s5070 + $0x218] sm:$0xff]
        %v5139 = vld [vmem:[%s5070 + $0x220] sm:$0xff]
        %v5140 = vld [vmem:[%s5070 + $0x228] sm:$0xff]
        %v5141 = vld [vmem:[%s5070 + $0x230] sm:$0xff]
        %v5142 = vld [vmem:[%s5070 + $0x238] sm:$0xff]
        %v5143 = vld [vmem:[%s5070 + $0x240] sm:$0xff]
        %v5144 = vld [vmem:[%s5070 + $0x248] sm:$0xff]
        %v5145 = vld [vmem:[%s5070 + $0x250] sm:$0xff]
        %v5146 = vld [vmem:[%s5070 + $0x258] sm:$0xff]
        %v5147 = vld [vmem:[%s5070 + $0x260] sm:$0xff]
        %v5148 = vld [vmem:[%s5070 + $0x268] sm:$0xff]
        %v5149 = vld [vmem:[%s5070 + $0x270] sm:$0xff]
        %v5150 = vld [vmem:[%s5070 + $0x278] sm:$0xff]
        %v5151 = vld [vmem:[%s5070 + $0x280] sm:$0xff]
        %v5152 = vld [vmem:[%s5070 + $0x288] sm:$0xff]
        %v5153 = vld [vmem:[%s5070 + $0x290] sm:$0xff]
        %v5154 = vld [vmem:[%s5070 + $0x298] sm:$0xff]
        %v5155 = vld [vmem:[%s5070 + $0x2a0] sm:$0xff]
        %v5156 = vld [vmem:[%s5070 + $0x2a8] sm:$0xff]
        %v5157 = vld [vmem:[%s5070 + $0x2b0] sm:$0xff]
        %v5158 = vld [vmem:[%s5070 + $0x2b8] sm:$0xff]
        %v5159 = vld [vmem:[%s5070 + $0x2c0] sm:$0xff]
        %v5160 = vld [vmem:[%s5070 + $0x2c8] sm:$0xff]
        %v5161 = vld [vmem:[%s5070 + $0x2d0] sm:$0xff]
        %v5162 = vld [vmem:[%s5070 + $0x2d8] sm:$0xff]
        %v5163 = vld [vmem:[%s5070 + $0x2e0] sm:$0xff]
        %v5164 = vld [vmem:[%s5070 + $0x2e8] sm:$0xff]
        %v5165 = vld [vmem:[%s5070 + $0x2f0] sm:$0xff]
        %v5166 = vld [vmem:[%s5070 + $0x2f8] sm:$0xff]
        %v5167 = vld [vmem:[%s5070 + $0x300] sm:$0xff]
        %v5168 = vld [vmem:[%s5070 + $0x308] sm:$0xff]
        %v5169 = vld [vmem:[%s5070 + $0x310] sm:$0xff]
        %v5170 = vld [vmem:[%s5070 + $0x318] sm:$0xff]
        %v5171 = vld [vmem:[%s5070 + $0x320] sm:$0xff]
        %v5172 = vld [vmem:[%s5070 + $0x328] sm:$0xff]
        %v5173 = vld [vmem:[%s5070 + $0x330] sm:$0xff]
        %v5174 = vld [vmem:[%s5070 + $0x338] sm:$0xff]
        %v5175 = vld [vmem:[%s5070 + $0x340] sm:$0xff]
        %v5176 = vld [vmem:[%s5070 + $0x348] sm:$0xff]
        %v5177 = vld [vmem:[%s5070 + $0x350] sm:$0xff]
        %v5178 = vld [vmem:[%s5070 + $0x358] sm:$0xff]
        %v5179 = vld [vmem:[%s5070 + $0x360] sm:$0xff]
        %v5180 = vld [vmem:[%s5070 + $0x368] sm:$0xff]
        %v5181 = vld [vmem:[%s5070 + $0x370] sm:$0xff]
        %v5182 = vld [vmem:[%s5070 + $0x378] sm:$0xff]
        %v5183 = vld [vmem:[%s5070 + $0x380] sm:$0xff]
        %v5184 = vld [vmem:[%s5070 + $0x388] sm:$0xff]
        %v5185 = vld [vmem:[%s5070 + $0x390] sm:$0xff]
        %v5186 = vld [vmem:[%s5070 + $0x398] sm:$0xff]
        %v5187 = vld [vmem:[%s5070 + $0x3a0] sm:$0xff]
        %v5188 = vld [vmem:[%s5070 + $0x3a8] sm:$0xff]
        %v5189 = vld [vmem:[%s5070 + $0x3b0] sm:$0xff]
        %v5190 = vld [vmem:[%s5070 + $0x3b8] sm:$0xff]
        %v5191 = vld [vmem:[%s5070 + $0x3c0] sm:$0xff]
        %v5192 = vld [vmem:[%s5070 + $0x3c8] sm:$0xff]
        %v5193 = vld [vmem:[%s5070 + $0x3d0] sm:$0xff]
        %v5194 = vld [vmem:[%s5070 + $0x3d8] sm:$0xff]
        %v5195 = vld [vmem:[%s5070 + $0x3e0] sm:$0xff]
        %v5196 = vld [vmem:[%s5070 + $0x3e8] sm:$0xff]
        %v5197 = vld [vmem:[%s5070 + $0x3f0] sm:$0xff]
        %v5198 = vld [vmem:[%s5070 + $0x3f8] sm:$0xff]
        %v5199 = vld [vmem:[%s5070 + $0x400] sm:$0xff]
        %v5200 = vld [vmem:[%s5070 + $0x408] sm:$0xff]
        %v5201 = vld [vmem:[%s5070 + $0x410] sm:$0xff]
        %v5202 = vld [vmem:[%s5070 + $0x418] sm:$0xff]
        %v5203 = vld [vmem:[%s5070 + $0x420] sm:$0xff]
        %v5204 = vld [vmem:[%s5070 + $0x428] sm:$0xff]
        %v5205 = vld [vmem:[%s5070 + $0x430] sm:$0xff]
        %v5206 = vld [vmem:[%s5070 + $0x438] sm:$0xff]
        %v5207 = vld [vmem:[%s5070 + $0x440] sm:$0xff]
        %v5208 = vld [vmem:[%s5070 + $0x448] sm:$0xff]
        %v5209 = vld [vmem:[%s5070 + $0x450] sm:$0xff]
        %v5210 = vld [vmem:[%s5070 + $0x458] sm:$0xff]
        %v5211 = vld [vmem:[%s5070 + $0x460] sm:$0xff]
        %v5212 = vld [vmem:[%s5070 + $0x468] sm:$0xff]
        %v5213 = vld [vmem:[%s5070 + $0x470] sm:$0xff]
        %v5214 = vld [vmem:[%s5070 + $0x478] sm:$0xff]
        %v5215 = vld [vmem:[%s5070 + $0x480] sm:$0xff]
        %v5216 = vld [vmem:[%s5070 + $0x488] sm:$0xff]
        %v5217 = vld [vmem:[%s5070 + $0x490] sm:$0xff]
        %v5218 = vld [vmem:[%s5070 + $0x498] sm:$0xff]
        %v5219 = vld [vmem:[%s5070 + $0x4a0] sm:$0xff]
        %v5220 = vld [vmem:[%s5070 + $0x4a8] sm:$0xff]
        %v5221 = vld [vmem:[%s5070 + $0x4b0] sm:$0xff]
        %v5222 = vld [vmem:[%s5070 + $0x4b8] sm:$0xff]
        %v5223 = vld [vmem:[%s5070 + $0x4c0] sm:$0xff]
        %v5224 = vld [vmem:[%s5070 + $0x4c8] sm:$0xff]
        %v5225 = vld [vmem:[%s5070 + $0x4d0] sm:$0xff]
        %v5226 = vld [vmem:[%s5070 + $0x4d8] sm:$0xff]
        %v5227 = vld [vmem:[%s5070 + $0x4e0] sm:$0xff]
        %v5228 = vld [vmem:[%s5070 + $0x4e8] sm:$0xff]
        %v5229 = vld [vmem:[%s5070 + $0x4f0] sm:$0xff]
        %v5230 = vld [vmem:[%s5070 + $0x4f8] sm:$0xff]
        %v5231 = vld [vmem:[%s5070 + $0x500] sm:$0xff]
        %v5232 = vld [vmem:[%s5070 + $0x508] sm:$0xff]
        %v5233 = vld [vmem:[%s5070 + $0x510] sm:$0xff]
        %v5234 = vld [vmem:[%s5070 + $0x518] sm:$0xff]
        %v5235 = vld [vmem:[%s5070 + $0x520] sm:$0xff]
        %v5236 = vld [vmem:[%s5070 + $0x528] sm:$0xff]
        %v5237 = vld [vmem:[%s5070 + $0x530] sm:$0xff]
        %v5238 = vld [vmem:[%s5070 + $0x538] sm:$0xff]
        %v5239 = vld [vmem:[%s5070 + $0x540] sm:$0xff]
        %v5240 = vld [vmem:[%s5070 + $0x548] sm:$0xff]
        %v5241 = vld [vmem:[%s5070 + $0x550] sm:$0xff]
        %v5242 = vld [vmem:[%s5070 + $0x558] sm:$0xff]
        %v5243 = vld [vmem:[%s5070 + $0x560] sm:$0xff]
        %v5244 = vld [vmem:[%s5070 + $0x568] sm:$0xff]
        %v5245 = vld [vmem:[%s5070 + $0x570] sm:$0xff]
        %v5246 = vld [vmem:[%s5070 + $0x578] sm:$0xff]
        %v5247 = vld [vmem:[%s5070 + $0x580] sm:$0xff]
        %v5248 = vld [vmem:[%s5070 + $0x588] sm:$0xff]
        %v5249 = vld [vmem:[%s5070 + $0x590] sm:$0xff]
        %v5250 = vld [vmem:[%s5070 + $0x598] sm:$0xff]
        %v5251 = vld [vmem:[%s5070 + $0x5a0] sm:$0xff]
        %v5252 = vld [vmem:[%s5070 + $0x5a8] sm:$0xff]
        %v5253 = vld [vmem:[%s5070 + $0x5b0] sm:$0xff]
        %v5254 = vld [vmem:[%s5070 + $0x5b8] sm:$0xff]
        %v5255 = vld [vmem:[%s5070 + $0x5c0] sm:$0xff]
        %v5256 = vld [vmem:[%s5070 + $0x5c8] sm:$0xff]
        %v5257 = vld [vmem:[%s5070 + $0x5d0] sm:$0xff]
        %v5258 = vld [vmem:[%s5070 + $0x5d8] sm:$0xff]
        %v5259 = vld [vmem:[%s5070 + $0x5e0] sm:$0xff]
        %v5260 = vld [vmem:[%s5070 + $0x5e8] sm:$0xff]
        %v5261 = vld [vmem:[%s5070 + $0x5f0] sm:$0xff]
        %v5262 = vld [vmem:[%s5070 + $0x5f8] sm:$0xff]
        %v5263 = vld [vmem:[%s5070 + $0x600] sm:$0xff]
        %v5264 = vld [vmem:[%s5070 + $0x608] sm:$0xff]
        %v5265 = vld [vmem:[%s5070 + $0x610] sm:$0xff]
        %v5266 = vld [vmem:[%s5070 + $0x618] sm:$0xff]
        %v5267 = vld [vmem:[%s5070 + $0x620] sm:$0xff]
        %v5268 = vld [vmem:[%s5070 + $0x628] sm:$0xff]
        %v5269 = vld [vmem:[%s5070 + $0x630] sm:$0xff]
        %v5270 = vld [vmem:[%s5070 + $0x638] sm:$0xff]
        %v5271 = vld [vmem:[%s5070 + $0x640] sm:$0xff]
        %v5272 = vld [vmem:[%s5070 + $0x648] sm:$0xff]
        %v5273 = vld [vmem:[%s5070 + $0x650] sm:$0xff]
        %v5274 = vld [vmem:[%s5070 + $0x658] sm:$0xff]
        %v5275 = vld [vmem:[%s5070 + $0x660] sm:$0xff]
        %v5276 = vld [vmem:[%s5070 + $0x668] sm:$0xff]
        %v5277 = vld [vmem:[%s5070 + $0x670] sm:$0xff]
        %v5278 = vld [vmem:[%s5070 + $0x678] sm:$0xff]
        %v5279 = vld [vmem:[%s5070 + $0x680] sm:$0xff]
        %v5280 = vld [vmem:[%s5070 + $0x688] sm:$0xff]
        %v5281 = vld [vmem:[%s5070 + $0x690] sm:$0xff]
        %v5282 = vld [vmem:[%s5070 + $0x698] sm:$0xff]
        %v5283 = vld [vmem:[%s5070 + $0x6a0] sm:$0xff]
        %v5284 = vld [vmem:[%s5070 + $0x6a8] sm:$0xff]
        %v5285 = vld [vmem:[%s5070 + $0x6b0] sm:$0xff]
        %v5286 = vld [vmem:[%s5070 + $0x6b8] sm:$0xff]
        %v5287 = vld [vmem:[%s5070 + $0x6c0] sm:$0xff]
        %v5288 = vld [vmem:[%s5070 + $0x6c8] sm:$0xff]
        %v5289 = vld [vmem:[%s5070 + $0x6d0] sm:$0xff]
        %v5290 = vld [vmem:[%s5070 + $0x6d8] sm:$0xff]
        %v5291 = vld [vmem:[%s5070 + $0x6e0] sm:$0xff]
        %v5292 = vld [vmem:[%s5070 + $0x6e8] sm:$0xff]
        %v5293 = vld [vmem:[%s5070 + $0x6f0] sm:$0xff]
        %v5294 = vld [vmem:[%s5070 + $0x6f8] sm:$0xff]
        %v5295 = vld [vmem:[%s5070 + $0x700] sm:$0xff]
        %v5296 = vld [vmem:[%s5070 + $0x708] sm:$0xff]
        %v5297 = vld [vmem:[%s5070 + $0x710] sm:$0xff]
        %v5298 = vld [vmem:[%s5070 + $0x718] sm:$0xff]
        %v5299 = vld [vmem:[%s5070 + $0x720] sm:$0xff]
        %v5300 = vld [vmem:[%s5070 + $0x728] sm:$0xff]
        %v5301 = vld [vmem:[%s5070 + $0x730] sm:$0xff]
        %v5302 = vld [vmem:[%s5070 + $0x738] sm:$0xff]
        %v5303 = vld [vmem:[%s5070 + $0x740] sm:$0xff]
        %v5304 = vld [vmem:[%s5070 + $0x748] sm:$0xff]
        %v5305 = vld [vmem:[%s5070 + $0x750] sm:$0xff]
        %v5306 = vld [vmem:[%s5070 + $0x758] sm:$0xff]
        %v5307 = vld [vmem:[%s5070 + $0x760] sm:$0xff]
        %v5308 = vld [vmem:[%s5070 + $0x768] sm:$0xff]
        %v5309 = vld [vmem:[%s5070 + $0x770] sm:$0xff]
        %v5310 = vld [vmem:[%s5070 + $0x778] sm:$0xff]
        %v5311 = vld [vmem:[%s5070 + $0x780] sm:$0xff]
        %v5312 = vld [vmem:[%s5070 + $0x788] sm:$0xff]
        %v5313 = vld [vmem:[%s5070 + $0x790] sm:$0xff]
        %v5314 = vld [vmem:[%s5070 + $0x798] sm:$0xff]
        %v5315 = vld [vmem:[%s5070 + $0x7a0] sm:$0xff]
        %v5316 = vld [vmem:[%s5070 + $0x7a8] sm:$0xff]
        %v5317 = vld [vmem:[%s5070 + $0x7b0] sm:$0xff]
        %v5318 = vld [vmem:[%s5070 + $0x7b8] sm:$0xff]
        %v5319 = vld [vmem:[%s5070 + $0x7c0] sm:$0xff]
        %v5320 = vld [vmem:[%s5070 + $0x7c8] sm:$0xff]
        %v5321 = vld [vmem:[%s5070 + $0x7d0] sm:$0xff]
        %v5322 = vld [vmem:[%s5070 + $0x7d8] sm:$0xff]
        %v5323 = vld [vmem:[%s5070 + $0x7e0] sm:$0xff]
        %v5324 = vld [vmem:[%s5070 + $0x7e8] sm:$0xff]
        %v5325 = vld [vmem:[%s5070 + $0x7f0] sm:$0xff]
        %v5326 = vld [vmem:[%s5070 + $0x7f8] sm:$0xff]
        %v5327 = vld [vmem:[%s5070 + $0x800] sm:$0xff]
        %v5328 = vld [vmem:[%s5070 + $0x808] sm:$0xff]
        %v5329 = vld [vmem:[%s5070 + $0x810] sm:$0xff]
        %v5330 = vld [vmem:[%s5070 + $0x818] sm:$0xff]
        %v5331 = vld [vmem:[%s5070 + $0x820] sm:$0xff]
        %v5332 = vld [vmem:[%s5070 + $0x828] sm:$0xff]
        %v5333 = vld [vmem:[%s5070 + $0x830] sm:$0xff]
        %v5334 = vld [vmem:[%s5070 + $0x838] sm:$0xff]
        %v5335 = vld [vmem:[%s5070 + $0x840] sm:$0xff]
        %v5336 = vld [vmem:[%s5070 + $0x848] sm:$0xff]
        %v5337 = vld [vmem:[%s5070 + $0x850] sm:$0xff]
        %v5338 = vld [vmem:[%s5070 + $0x858] sm:$0xff]
        %v5339 = vld [vmem:[%s5070 + $0x860] sm:$0xff]
        %v5340 = vld [vmem:[%s5070 + $0x868] sm:$0xff]
        %v5341 = vld [vmem:[%s5070 + $0x870] sm:$0xff]
        %v5342 = vld [vmem:[%s5070 + $0x878] sm:$0xff]
        %v5343 = vld [vmem:[%s5070 + $0x880] sm:$0xff]
        %v5344 = vld [vmem:[%s5070 + $0x888] sm:$0xff]
        %v5345 = vld [vmem:[%s5070 + $0x890] sm:$0xff]
        %v5346 = vld [vmem:[%s5070 + $0x898] sm:$0xff]
        %v5347 = vld [vmem:[%s5070 + $0x8a0] sm:$0xff]
        %v5348 = vld [vmem:[%s5070 + $0x8a8] sm:$0xff]
        %v5349 = vld [vmem:[%s5070 + $0x8b0] sm:$0xff]
        %v5350 = vld [vmem:[%s5070 + $0x8b8] sm:$0xff]
        %v5351 = vld [vmem:[%s5070 + $0x8c0] sm:$0xff]
        %v5352 = vld [vmem:[%s5070 + $0x8c8] sm:$0xff]
        %v5353 = vld [vmem:[%s5070 + $0x8d0] sm:$0xff]
        %v5354 = vld [vmem:[%s5070 + $0x8d8] sm:$0xff]
        %v5355 = vld [vmem:[%s5070 + $0x8e0] sm:$0xff]
        %v5356 = vld [vmem:[%s5070 + $0x8e8] sm:$0xff]
        %v5357 = vld [vmem:[%s5070 + $0x8f0] sm:$0xff]
        %v5358 = vld [vmem:[%s5070 + $0x8f8] sm:$0xff]
        %v5359 = vld [vmem:[%s5070 + $0x900] sm:$0xff]
        %v5360 = vld [vmem:[%s5070 + $0x908] sm:$0xff]
        %v5361 = vld [vmem:[%s5070 + $0x910] sm:$0xff]
        %v5362 = vld [vmem:[%s5070 + $0x918] sm:$0xff]
        %v5363 = vld [vmem:[%s5070 + $0x920] sm:$0xff]
        %v5364 = vld [vmem:[%s5070 + $0x928] sm:$0xff]
        %v5365 = vld [vmem:[%s5070 + $0x930] sm:$0xff]
        %v5366 = vld [vmem:[%s5070 + $0x938] sm:$0xff]
        %v5367 = vld [vmem:[%s5070 + $0x940] sm:$0xff]
        %v5368 = vld [vmem:[%s5070 + $0x948] sm:$0xff]
        %v5369 = vld [vmem:[%s5070 + $0x950] sm:$0xff]
        %v5370 = vld [vmem:[%s5070 + $0x958] sm:$0xff]
        %v5371 = vld [vmem:[%s5070 + $0x960] sm:$0xff]
        %v5372 = vld [vmem:[%s5070 + $0x968] sm:$0xff]
        %v5373 = vld [vmem:[%s5070 + $0x970] sm:$0xff]
        %v5374 = vld [vmem:[%s5070 + $0x978] sm:$0xff]
        %v5375 = vld [vmem:[%s5070 + $0x980] sm:$0xff]
        %v5376 = vld [vmem:[%s5070 + $0x988] sm:$0xff]
        %v5377 = vld [vmem:[%s5070 + $0x990] sm:$0xff]
        %v5378 = vld [vmem:[%s5070 + $0x998] sm:$0xff]
        %v5379 = vld [vmem:[%s5070 + $0x9a0] sm:$0xff]
        %v5380 = vld [vmem:[%s5070 + $0x9a8] sm:$0xff]
        %v5381 = vld [vmem:[%s5070 + $0x9b0] sm:$0xff]
        %v5382 = vld [vmem:[%s5070 + $0x9b8] sm:$0xff]
        %v5383 = vld [vmem:[%s5070 + $0x9c0] sm:$0xff]
        %v5384 = vld [vmem:[%s5070 + $0x9c8] sm:$0xff]
        %v5385 = vld [vmem:[%s5070 + $0x9d0] sm:$0xff]
        %v5386 = vld [vmem:[%s5070 + $0x9d8] sm:$0xff]
        %v5387 = vld [vmem:[%s5070 + $0x9e0] sm:$0xff]
        %v5388 = vld [vmem:[%s5070 + $0x9e8] sm:$0xff]
        %v5389 = vld [vmem:[%s5070 + $0x9f0] sm:$0xff]
        %v5390 = vld [vmem:[%s5070 + $0x9f8] sm:$0xff]
        %v5391 = vld [vmem:[%s5070 + $0xa00] sm:$0xff]
        %v5392 = vld [vmem:[%s5070 + $0xa08] sm:$0xff]
        %v5393 = vld [vmem:[%s5070 + $0xa10] sm:$0xff]
        %v5394 = vld [vmem:[%s5070 + $0xa18] sm:$0xff]
        %v5395 = vld [vmem:[%s5070 + $0xa20] sm:$0xff]
        %v5396 = vld [vmem:[%s5070 + $0xa28] sm:$0xff]
        %v5397 = vld [vmem:[%s5070 + $0xa30] sm:$0xff]
        %v5398 = vld [vmem:[%s5070 + $0xa38] sm:$0xff]
        %v5399 = vld [vmem:[%s5070 + $0xa40] sm:$0xff]
        %v5400 = vld [vmem:[%s5070 + $0xa48] sm:$0xff]
        %v5401 = vld [vmem:[%s5070 + $0xa50] sm:$0xff]
        %v5402 = vld [vmem:[%s5070 + $0xa58] sm:$0xff]
        %v5403 = vld [vmem:[%s5070 + $0xa60] sm:$0xff]
        %v5404 = vld [vmem:[%s5070 + $0xa68] sm:$0xff]
        %v5405 = vld [vmem:[%s5070 + $0xa70] sm:$0xff]
        %v5406 = vld [vmem:[%s5070 + $0xa78] sm:$0xff]
        %v5407 = vld [vmem:[%s5070 + $0xa80] sm:$0xff]
        %v5408 = vld [vmem:[%s5070 + $0xa88] sm:$0xff]
        %v5409 = vld [vmem:[%s5070 + $0xa90] sm:$0xff]
        %v5410 = vld [vmem:[%s5070 + $0xa98] sm:$0xff]
        %v5411 = vld [vmem:[%s5070 + $0xaa0] sm:$0xff]
        %v5412 = vld [vmem:[%s5070 + $0xaa8] sm:$0xff]
        %v5413 = vld [vmem:[%s5070 + $0xab0] sm:$0xff]
        %v5414 = vld [vmem:[%s5070 + $0xab8] sm:$0xff]
        %v5415 = vld [vmem:[%s5070 + $0xac0] sm:$0xff]
        %v5416 = vld [vmem:[%s5070 + $0xac8] sm:$0xff]
        %v5417 = vld [vmem:[%s5070 + $0xad0] sm:$0xff]
        %v5418 = vld [vmem:[%s5070 + $0xad8] sm:$0xff]
        %v5419 = vld [vmem:[%s5070 + $0xae0] sm:$0xff]
        %v5420 = vld [vmem:[%s5070 + $0xae8] sm:$0xff]
        %v5421 = vld [vmem:[%s5070 + $0xaf0] sm:$0xff]
        %v5422 = vld [vmem:[%s5070 + $0xaf8] sm:$0xff]
        %v5423 = vld [vmem:[%s5070 + $0xb00] sm:$0xff]
        %v5424 = vld [vmem:[%s5070 + $0xb08] sm:$0xff]
        %v5425 = vld [vmem:[%s5070 + $0xb10] sm:$0xff]
        %v5426 = vld [vmem:[%s5070 + $0xb18] sm:$0xff]
        %v5427 = vld [vmem:[%s5070 + $0xb20] sm:$0xff]
        %v5428 = vld [vmem:[%s5070 + $0xb28] sm:$0xff]
        %v5429 = vld [vmem:[%s5070 + $0xb30] sm:$0xff]
        %v5430 = vld [vmem:[%s5070 + $0xb38] sm:$0xff]
        %v5431 = vld [vmem:[%s5070 + $0xb40] sm:$0xff]
        %v5432 = vld [vmem:[%s5070 + $0xb48] sm:$0xff]
        %v5433 = vld [vmem:[%s5070 + $0xb50] sm:$0xff]
        %v5434 = vld [vmem:[%s5070 + $0xb58] sm:$0xff]
        %v5435 = vld [vmem:[%s5070 + $0xb60] sm:$0xff]
        %v5436 = vld [vmem:[%s5070 + $0xb68] sm:$0xff]
        %v5437 = vld [vmem:[%s5070 + $0xb70] sm:$0xff]
        %v5438 = vld [vmem:[%s5070 + $0xb78] sm:$0xff]
        %v5439 = vld [vmem:[%s5070 + $0xb80] sm:$0xff]
        %v5440 = vld [vmem:[%s5070 + $0xb88] sm:$0xff]
        %v5441 = vld [vmem:[%s5070 + $0xb90] sm:$0xff]
        %v5442 = vld [vmem:[%s5070 + $0xb98] sm:$0xff]
        %v5443 = vld [vmem:[%s5070 + $0xba0] sm:$0xff]
        %v5444 = vld [vmem:[%s5070 + $0xba8] sm:$0xff]
        %v5445 = vld [vmem:[%s5070 + $0xbb0] sm:$0xff]
        %v5446 = vld [vmem:[%s5070 + $0xbb8] sm:$0xff]
        %v5447 = vld [vmem:[%s5070 + $0xbc0] sm:$0xff]
        %v5448 = vld [vmem:[%s5070 + $0xbc8] sm:$0xff]
        %v5449 = vld [vmem:[%s5070 + $0xbd0] sm:$0xff]
        %v5450 = vld [vmem:[%s5070 + $0xbd8] sm:$0xff]
        %v5451 = vld [vmem:[%s5070 + $0xbe0] sm:$0xff]
        %v5452 = vld [vmem:[%s5070 + $0xbe8] sm:$0xff]
        %v5453 = vld [vmem:[%s5070 + $0xbf0] sm:$0xff]
        %v5454 = vld [vmem:[%s5070 + $0xbf8] sm:$0xff]
        %v5455 = vld [vmem:[%s5070 + $0xc00] sm:$0xff]
        %v5456 = vld [vmem:[%s5070 + $0xc08] sm:$0xff]
        %v5457 = vld [vmem:[%s5070 + $0xc10] sm:$0xff]
        %v5458 = vld [vmem:[%s5070 + $0xc18] sm:$0xff]
        %v5459 = vld [vmem:[%s5070 + $0xc20] sm:$0xff]
        %v5460 = vld [vmem:[%s5070 + $0xc28] sm:$0xff]
        %v5461 = vld [vmem:[%s5070 + $0xc30] sm:$0xff]
        %v5462 = vld [vmem:[%s5070 + $0xc38] sm:$0xff]
        %v5463 = vld [vmem:[%s5070 + $0xc40] sm:$0xff]
        %v5464 = vld [vmem:[%s5070 + $0xc48] sm:$0xff]
        %v5465 = vld [vmem:[%s5070 + $0xc50] sm:$0xff]
        %v5466 = vld [vmem:[%s5070 + $0xc58] sm:$0xff]
        %v5467 = vld [vmem:[%s5070 + $0xc60] sm:$0xff]
        %v5468 = vld [vmem:[%s5070 + $0xc68] sm:$0xff]
        %v5469 = vld [vmem:[%s5070 + $0xc70] sm:$0xff]
        %v5470 = vld [vmem:[%s5070 + $0xc78] sm:$0xff]
        %v5471 = vld [vmem:[%s5070 + $0xc80] sm:$0xff]
        %v5472 = vld [vmem:[%s5070 + $0xc88] sm:$0xff]
        %v5473 = vld [vmem:[%s5070 + $0xc90] sm:$0xff]
        %v5474 = vld [vmem:[%s5070 + $0xc98] sm:$0xff]
        %v5475 = vld [vmem:[%s5070 + $0xca0] sm:$0xff]
        %v5476 = vld [vmem:[%s5070 + $0xca8] sm:$0xff]
        %v5477 = vld [vmem:[%s5070 + $0xcb0] sm:$0xff]
        %v5478 = vld [vmem:[%s5070 + $0xcb8] sm:$0xff]
        %v5479 = vld [vmem:[%s5070 + $0xcc0] sm:$0xff]
        %v5480 = vld [vmem:[%s5070 + $0xcc8] sm:$0xff]
        %v5481 = vld [vmem:[%s5070 + $0xcd0] sm:$0xff]
        %v5482 = vld [vmem:[%s5070 + $0xcd8] sm:$0xff]
        %v5483 = vld [vmem:[%s5070 + $0xce0] sm:$0xff]
        %v5484 = vld [vmem:[%s5070 + $0xce8] sm:$0xff]
        %v5485 = vld [vmem:[%s5070 + $0xcf0] sm:$0xff]
        %v5486 = vld [vmem:[%s5070 + $0xcf8] sm:$0xff]
        %v5487 = vld [vmem:[%s5070 + $0xd00] sm:$0xff]
        %v5488 = vld [vmem:[%s5070 + $0xd08] sm:$0xff]
        %v5489 = vld [vmem:[%s5070 + $0xd10] sm:$0xff]
        %v5490 = vld [vmem:[%s5070 + $0xd18] sm:$0xff]
        %v5491 = vld [vmem:[%s5070 + $0xd20] sm:$0xff]
        %v5492 = vld [vmem:[%s5070 + $0xd28] sm:$0xff]
        %v5493 = vld [vmem:[%s5070 + $0xd30] sm:$0xff]
        %v5494 = vld [vmem:[%s5070 + $0xd38] sm:$0xff]
        %v5495 = vld [vmem:[%s5070 + $0xd40] sm:$0xff]
        %v5496 = vld [vmem:[%s5070 + $0xd48] sm:$0xff]
        %v5497 = vld [vmem:[%s5070 + $0xd50] sm:$0xff]
        %v5498 = vld [vmem:[%s5070 + $0xd58] sm:$0xff]
        %v5499 = vld [vmem:[%s5070 + $0xd60] sm:$0xff]
        %v5500 = vld [vmem:[%s5070 + $0xd68] sm:$0xff]
        %v5501 = vld [vmem:[%s5070 + $0xd70] sm:$0xff]
        %v5502 = vld [vmem:[%s5070 + $0xd78] sm:$0xff]
        %v5503 = vld [vmem:[%s5070 + $0xd80] sm:$0xff]
        %v5504 = vld [vmem:[%s5070 + $0xd88] sm:$0xff]
        %v5505 = vld [vmem:[%s5070 + $0xd90] sm:$0xff]
        %v5506 = vld [vmem:[%s5070 + $0xd98] sm:$0xff]
        %v5507 = vld [vmem:[%s5070 + $0xda0] sm:$0xff]
        %v5508 = vld [vmem:[%s5070 + $0xda8] sm:$0xff]
        %v5509 = vld [vmem:[%s5070 + $0xdb0] sm:$0xff]
        %v5510 = vld [vmem:[%s5070 + $0xdb8] sm:$0xff]
        %v5511 = vld [vmem:[%s5070 + $0xdc0] sm:$0xff]
        %v5512 = vld [vmem:[%s5070 + $0xdc8] sm:$0xff]
        %v5513 = vld [vmem:[%s5070 + $0xdd0] sm:$0xff]
        %v5514 = vld [vmem:[%s5070 + $0xdd8] sm:$0xff]
        %v5515 = vld [vmem:[%s5070 + $0xde0] sm:$0xff]
        %v5516 = vld [vmem:[%s5070 + $0xde8] sm:$0xff]
        %v5517 = vld [vmem:[%s5070 + $0xdf0] sm:$0xff]
        %v5518 = vld [vmem:[%s5070 + $0xdf8] sm:$0xff]
        %v5519 = vld [vmem:[%s5070 + $0xe00] sm:$0xff]
        %v5520 = vld [vmem:[%s5070 + $0xe08] sm:$0xff]
        %v5521 = vld [vmem:[%s5070 + $0xe10] sm:$0xff]
        %v5522 = vld [vmem:[%s5070 + $0xe18] sm:$0xff]
        %v5523 = vld [vmem:[%s5070 + $0xe20] sm:$0xff]
        %v5524 = vld [vmem:[%s5070 + $0xe28] sm:$0xff]
        %v5525 = vld [vmem:[%s5070 + $0xe30] sm:$0xff]
        %v5526 = vld [vmem:[%s5070 + $0xe38] sm:$0xff]
        %v5527 = vld [vmem:[%s5070 + $0xe40] sm:$0xff]
        %v5528 = vld [vmem:[%s5070 + $0xe48] sm:$0xff]
        %v5529 = vld [vmem:[%s5070 + $0xe50] sm:$0xff]
        %v5530 = vld [vmem:[%s5070 + $0xe58] sm:$0xff]
        %v5531 = vld [vmem:[%s5070 + $0xe60] sm:$0xff]
        %v5532 = vld [vmem:[%s5070 + $0xe68] sm:$0xff]
        %v5533 = vld [vmem:[%s5070 + $0xe70] sm:$0xff]
        %v5534 = vld [vmem:[%s5070 + $0xe78] sm:$0xff]
        %v5535 = vld [vmem:[%s5070 + $0xe80] sm:$0xff]
        %v5536 = vld [vmem:[%s5070 + $0xe88] sm:$0xff]
        %v5537 = vld [vmem:[%s5070 + $0xe90] sm:$0xff]
        %v5538 = vld [vmem:[%s5070 + $0xe98] sm:$0xff]
        %v5539 = vld [vmem:[%s5070 + $0xea0] sm:$0xff]
        %v5540 = vld [vmem:[%s5070 + $0xea8] sm:$0xff]
        %v5541 = vld [vmem:[%s5070 + $0xeb0] sm:$0xff]
        %v5542 = vld [vmem:[%s5070 + $0xeb8] sm:$0xff]
        %v5543 = vld [vmem:[%s5070 + $0xec0] sm:$0xff]
        %v5544 = vld [vmem:[%s5070 + $0xec8] sm:$0xff]
        %v5545 = vld [vmem:[%s5070 + $0xed0] sm:$0xff]
        %v5546 = vld [vmem:[%s5070 + $0xed8] sm:$0xff]
        %v5547 = vld [vmem:[%s5070 + $0xee0] sm:$0xff]
        %v5548 = vld [vmem:[%s5070 + $0xee8] sm:$0xff]
        %v5549 = vld [vmem:[%s5070 + $0xef0] sm:$0xff]
        %v5550 = vld [vmem:[%s5070 + $0xef8] sm:$0xff]
        %v5551 = vld [vmem:[%s5070 + $0xf00] sm:$0xff]
        %v5552 = vld [vmem:[%s5070 + $0xf08] sm:$0xff]
        %v5553 = vld [vmem:[%s5070 + $0xf10] sm:$0xff]
        %v5554 = vld [vmem:[%s5070 + $0xf18] sm:$0xff]
        %v5555 = vld [vmem:[%s5070 + $0xf20] sm:$0xff]
        %v5556 = vld [vmem:[%s5070 + $0xf28] sm:$0xff]
        %v5557 = vld [vmem:[%s5070 + $0xf30] sm:$0xff]
        %v5558 = vld [vmem:[%s5070 + $0xf38] sm:$0xff]
        %v5559 = vld [vmem:[%s5070 + $0xf40] sm:$0xff]
        %v5560 = vld [vmem:[%s5070 + $0xf48] sm:$0xff]
        %v5561 = vld [vmem:[%s5070 + $0xf50] sm:$0xff]
        %v5562 = vld [vmem:[%s5070 + $0xf58] sm:$0xff]
        %v5563 = vld [vmem:[%s5070 + $0xf60] sm:$0xff]
        %v5564 = vld [vmem:[%s5070 + $0xf68] sm:$0xff]
        %v5565 = vld [vmem:[%s5070 + $0xf70] sm:$0xff]
        %v5566 = vld [vmem:[%s5070 + $0xf78] sm:$0xff]
        %v5567 = vld [vmem:[%s5070 + $0xf80] sm:$0xff]
        %v5568 = vld [vmem:[%s5070 + $0xf88] sm:$0xff]
        %v5569 = vld [vmem:[%s5070 + $0xf90] sm:$0xff]
        %v5570 = vld [vmem:[%s5070 + $0xf98] sm:$0xff]
        %v5571 = vld [vmem:[%s5070 + $0xfa0] sm:$0xff]
        %v5572 = vld [vmem:[%s5070 + $0xfa8] sm:$0xff]
        %v5573 = vld [vmem:[%s5070 + $0xfb0] sm:$0xff]
        %v5574 = vld [vmem:[%s5070 + $0xfb8] sm:$0xff]
        %v5575 = vld [vmem:[%s5070 + $0xfc0] sm:$0xff]
        %v5576 = vld [vmem:[%s5070 + $0xfc8] sm:$0xff]
        %v5577 = vld [vmem:[%s5070 + $0xfd0] sm:$0xff]
        %v5578 = vld [vmem:[%s5070 + $0xfd8] sm:$0xff]
        %v5579 = vld [vmem:[%s5070 + $0xfe0] sm:$0xff]
        %v5580 = vld [vmem:[%s5070 + $0xfe8] sm:$0xff]
        %v5581 = vld [vmem:[%s5070 + $0xff0] sm:$0xff]
        %v5582 = vld [vmem:[%s5070 + $0xff8] sm:$0xff]
        %v5583 = vld [vmem:[%s5070 + $0x1000] sm:$0xff]
        %v5584 = vld [vmem:[%s5070 + $0x1008] sm:$0xff]
        %v5585 = vld [vmem:[%s5070 + $0x1010] sm:$0xff]
        %v5586 = vld [vmem:[%s5070 + $0x1018] sm:$0xff]
        %v5587 = vld [vmem:[%s5070 + $0x1020] sm:$0xff]
        %v5588 = vld [vmem:[%s5070 + $0x1028] sm:$0xff]
        %v5589 = vld [vmem:[%s5070 + $0x1030] sm:$0xff]
        %v5590 = vld [vmem:[%s5070 + $0x1038] sm:$0xff]
        %v5591 = vld [vmem:[%s5070 + $0x1040] sm:$0xf]
        %v5592 = vld [vmem:[%s5070 + $0x1048] sm:$0xf]
        %v5593 = vld [vmem:[%s5070 + $0x1050] sm:$0xf]
        %v5594 = vld [vmem:[%s5070 + $0x1058] sm:$0xf]
        %v5595 = vld [vmem:[%s5070 + $0x1060] sm:$0xf]
        %v5596 = vld [vmem:[%s5070 + $0x1068] sm:$0xf]
        %v5597 = vld [vmem:[%s5070 + $0x1070] sm:$0xf]
        %v5598 = vld [vmem:[%s5070 + $0x1078] sm:$0xf]
        %v5599 = vrot.slane %v2285, 2
        %v5600 = vrot.slane %v2286, 2
        %v5601 = vrot.slane %v2287, 2
        %v5602 = vrot.slane %v2288, 2
        %v5603 = vrot.slane %v2289, 2
        %v5608 = vsel %vm2819, %v5603, 0
        %v5611 = vsel %vm2823, %v5591, 0
        %v5614 = vsel %vm2823, %v5592, 0
        %v5617 = vsel %vm2823, %v5593, 0
        %v5620 = vsel %vm2823, %v5594, 0
        %v5623 = vsel %vm2823, %v5595, 0
        %v5626 = vsel %vm2823, %v5596, 0
        %v5629 = vsel %vm2823, %v5597, 0
        %v5632 = vsel %vm2823, %v5598, 0
        %5634 = vmatpush.msra.mxu0 %v5191
        %5635 = vmatpush.msra.mxu0 %v5183
        %5636 = vmatpush.msra.mxu0 %v5175
        %5637 = vmatpush.msra.mxu0 %v5167
        %5638 = vmatpush.msra.mxu0 %v5159
        %5639 = vmatpush.msra.mxu0 %v5151
        %5640 = vmatpush.msra.mxu0 %v5143
        %5641 = vmatpush.msra.mxu0 %v5135
        %5642 = vmatpush.msra.mxu0 %v5127
        %5643 = vmatpush.msra.mxu0 %v5119
        %5644 = vmatpush.msra.mxu0 %v5111
        %5645 = vmatpush.msra.mxu0 %v5103
        %5646 = vmatpush.msra.mxu0 %v5095
        %5647 = vmatpush.msra.mxu0 %v5087
        %5648 = vmatpush.msra.mxu0 %v5079
        %5649 = vmatpush.msra.mxu0 %v5071
        %5650 = vmatmul.f32.gmra.mxu0 %v5599
        %v5651 = vpop.f32.mrf.mxu0
        %v5652 = vadd.f32 0.0, %v5651
        %5653 = vdwg.mxu0
        %5654 = vmatpush.msra.mxu0 %v5319
        %5655 = vmatpush.msra.mxu0 %v5311
        %5656 = vmatpush.msra.mxu0 %v5303
        %5657 = vmatpush.msra.mxu0 %v5295
        %5658 = vmatpush.msra.mxu0 %v5287
        %5659 = vmatpush.msra.mxu0 %v5279
        %5660 = vmatpush.msra.mxu0 %v5271
        %5661 = vmatpush.msra.mxu0 %v5263
        %5662 = vmatpush.msra.mxu0 %v5255
        %5663 = vmatpush.msra.mxu0 %v5247
        %5664 = vmatpush.msra.mxu0 %v5239
        %5665 = vmatpush.msra.mxu0 %v5231
        %5666 = vmatpush.msra.mxu0 %v5223
        %5667 = vmatpush.msra.mxu0 %v5215
        %5668 = vmatpush.msra.mxu0 %v5207
        %5669 = vmatpush.msra.mxu0 %v5199
        %5670 = vmatmul.f32.gmra.mxu0 %v5600
        %v5671 = vpop.f32.mrf.mxu0
        %v5672 = vadd.f32 %v5652, %v5671
        %5673 = vdwg.mxu0
        %5674 = vmatpush.msra.mxu0 %v5447
        %5675 = vmatpush.msra.mxu0 %v5439
        %5676 = vmatpush.msra.mxu0 %v5431
        %5677 = vmatpush.msra.mxu0 %v5423
        %5678 = vmatpush.msra.mxu0 %v5415
        %5679 = vmatpush.msra.mxu0 %v5407
        %5680 = vmatpush.msra.mxu0 %v5399
        %5681 = vmatpush.msra.mxu0 %v5391
        %5682 = vmatpush.msra.mxu0 %v5383
        %5683 = vmatpush.msra.mxu0 %v5375
        %5684 = vmatpush.msra.mxu0 %v5367
        %5685 = vmatpush.msra.mxu0 %v5359
        %5686 = vmatpush.msra.mxu0 %v5351
        %5687 = vmatpush.msra.mxu0 %v5343
        %5688 = vmatpush.msra.mxu0 %v5335
        %5689 = vmatpush.msra.mxu0 %v5327
        %5690 = vmatmul.f32.gmra.mxu0 %v5601
        %v5691 = vpop.f32.mrf.mxu0
        %v5692 = vadd.f32 %v5672, %v5691
        %5693 = vdwg.mxu0
        %5694 = vmatpush.msra.mxu0 %v5575
        %5695 = vmatpush.msra.mxu0 %v5567
        %5696 = vmatpush.msra.mxu0 %v5559
        %5697 = vmatpush.msra.mxu0 %v5551
        %5698 = vmatpush.msra.mxu0 %v5543
        %5699 = vmatpush.msra.mxu0 %v5535
        %5700 = vmatpush.msra.mxu0 %v5527
        %5701 = vmatpush.msra.mxu0 %v5519
        %5702 = vmatpush.msra.mxu0 %v5511
        %5703 = vmatpush.msra.mxu0 %v5503
        %5704 = vmatpush.msra.mxu0 %v5495
        %5705 = vmatpush.msra.mxu0 %v5487
        %5706 = vmatpush.msra.mxu0 %v5479
        %5707 = vmatpush.msra.mxu0 %v5471
        %5708 = vmatpush.msra.mxu0 %v5463
        %5709 = vmatpush.msra.mxu0 %v5455
        %5710 = vmatmul.f32.gmra.mxu0 %v5602
        %v5711 = vpop.f32.mrf.mxu0
        %v5712 = vadd.f32 %v5692, %v5711
        %5713 = vdwg.mxu0
        %5714 = vmatpush.msra.mxu0 0.0
        %5715 = vmatpush.msra.mxu0 0.0
        %5716 = vmatpush.msra.mxu0 0.0
        %5717 = vmatpush.msra.mxu0 0.0
        %5718 = vmatpush.msra.mxu0 0.0
        %5719 = vmatpush.msra.mxu0 0.0
        %5720 = vmatpush.msra.mxu0 0.0
        %5721 = vmatpush.msra.mxu0 0.0
        %5722 = vmatpush.msra.mxu0 0.0
        %5723 = vmatpush.msra.mxu0 0.0
        %5724 = vmatpush.msra.mxu0 0.0
        %5725 = vmatpush.msra.mxu0 0.0
        %5726 = vmatpush.msra.mxu0 0.0
        %5727 = vmatpush.msra.mxu0 0.0
        %5728 = vmatpush.msra.mxu0 %v5611
        %5729 = vmatpush.msra.mxu0 %v5583
        %5730 = vmatmul.f32.gmra.mxu0 %v5608
        %v5731 = vpop.f32.mrf.mxu0
        %v5732 = vadd.f32 %v5712, %v5731
        %5733 = vdwg.mxu0
        %5734 = vmatpush.msra.mxu0 %v5192
        %5735 = vmatpush.msra.mxu0 %v5184
        %5736 = vmatpush.msra.mxu0 %v5176
        %5737 = vmatpush.msra.mxu0 %v5168
        %5738 = vmatpush.msra.mxu0 %v5160
        %5739 = vmatpush.msra.mxu0 %v5152
        %5740 = vmatpush.msra.mxu0 %v5144
        %5741 = vmatpush.msra.mxu0 %v5136
        %5742 = vmatpush.msra.mxu0 %v5128
        %5743 = vmatpush.msra.mxu0 %v5120
        %5744 = vmatpush.msra.mxu0 %v5112
        %5745 = vmatpush.msra.mxu0 %v5104
        %5746 = vmatpush.msra.mxu0 %v5096
        %5747 = vmatpush.msra.mxu0 %v5088
        %5748 = vmatpush.msra.mxu0 %v5080
        %5749 = vmatpush.msra.mxu0 %v5072
        %5750 = vmatmul.f32.gmra.mxu0 %v5599
        %v5751 = vpop.f32.mrf.mxu0
        %v5752 = vadd.f32 0.0, %v5751
        %5753 = vdwg.mxu0
        %5754 = vmatpush.msra.mxu0 %v5320
        %5755 = vmatpush.msra.mxu0 %v5312
        %5756 = vmatpush.msra.mxu0 %v5304
        %5757 = vmatpush.msra.mxu0 %v5296
        %5758 = vmatpush.msra.mxu0 %v5288
        %5759 = vmatpush.msra.mxu0 %v5280
        %5760 = vmatpush.msra.mxu0 %v5272
        %5761 = vmatpush.msra.mxu0 %v5264
        %5762 = vmatpush.msra.mxu0 %v5256
        %5763 = vmatpush.msra.mxu0 %v5248
        %5764 = vmatpush.msra.mxu0 %v5240
        %5765 = vmatpush.msra.mxu0 %v5232
        %5766 = vmatpush.msra.mxu0 %v5224
        %5767 = vmatpush.msra.mxu0 %v5216
        %5768 = vmatpush.msra.mxu0 %v5208
        %5769 = vmatpush.msra.mxu0 %v5200
        %5770 = vmatmul.f32.gmra.mxu0 %v5600
        %v5771 = vpop.f32.mrf.mxu0
        %v5772 = vadd.f32 %v5752, %v5771
        %5773 = vdwg.mxu0
        %5774 = vmatpush.msra.mxu0 %v5448
        %5775 = vmatpush.msra.mxu0 %v5440
        %5776 = vmatpush.msra.mxu0 %v5432
        %5777 = vmatpush.msra.mxu0 %v5424
        %5778 = vmatpush.msra.mxu0 %v5416
        %5779 = vmatpush.msra.mxu0 %v5408
        %5780 = vmatpush.msra.mxu0 %v5400
        %5781 = vmatpush.msra.mxu0 %v5392
        %5782 = vmatpush.msra.mxu0 %v5384
        %5783 = vmatpush.msra.mxu0 %v5376
        %5784 = vmatpush.msra.mxu0 %v5368
        %5785 = vmatpush.msra.mxu0 %v5360
        %5786 = vmatpush.msra.mxu0 %v5352
        %5787 = vmatpush.msra.mxu0 %v5344
        %5788 = vmatpush.msra.mxu0 %v5336
        %5789 = vmatpush.msra.mxu0 %v5328
        %5790 = vmatmul.f32.gmra.mxu0 %v5601
        %v5791 = vpop.f32.mrf.mxu0
        %v5792 = vadd.f32 %v5772, %v5791
        %5793 = vdwg.mxu0
        %5794 = vmatpush.msra.mxu0 %v5576
        %5795 = vmatpush.msra.mxu0 %v5568
        %5796 = vmatpush.msra.mxu0 %v5560
        %5797 = vmatpush.msra.mxu0 %v5552
        %5798 = vmatpush.msra.mxu0 %v5544
        %5799 = vmatpush.msra.mxu0 %v5536
        %5800 = vmatpush.msra.mxu0 %v5528
        %5801 = vmatpush.msra.mxu0 %v5520
        %5802 = vmatpush.msra.mxu0 %v5512
        %5803 = vmatpush.msra.mxu0 %v5504
        %5804 = vmatpush.msra.mxu0 %v5496
        %5805 = vmatpush.msra.mxu0 %v5488
        %5806 = vmatpush.msra.mxu0 %v5480
        %5807 = vmatpush.msra.mxu0 %v5472
        %5808 = vmatpush.msra.mxu0 %v5464
        %5809 = vmatpush.msra.mxu0 %v5456
        %5810 = vmatmul.f32.gmra.mxu0 %v5602
        %v5811 = vpop.f32.mrf.mxu0
        %v5812 = vadd.f32 %v5792, %v5811
        %5813 = vdwg.mxu0
        %5814 = vmatpush.msra.mxu0 0.0
        %5815 = vmatpush.msra.mxu0 0.0
        %5816 = vmatpush.msra.mxu0 0.0
        %5817 = vmatpush.msra.mxu0 0.0
        %5818 = vmatpush.msra.mxu0 0.0
        %5819 = vmatpush.msra.mxu0 0.0
        %5820 = vmatpush.msra.mxu0 0.0
        %5821 = vmatpush.msra.mxu0 0.0
        %5822 = vmatpush.msra.mxu0 0.0
        %5823 = vmatpush.msra.mxu0 0.0
        %5824 = vmatpush.msra.mxu0 0.0
        %5825 = vmatpush.msra.mxu0 0.0
        %5826 = vmatpush.msra.mxu0 0.0
        %5827 = vmatpush.msra.mxu0 0.0
        %5828 = vmatpush.msra.mxu0 %v5614
        %5829 = vmatpush.msra.mxu0 %v5584
        %5830 = vmatmul.f32.gmra.mxu0 %v5608
        %v5831 = vpop.f32.mrf.mxu0
        %v5832 = vadd.f32 %v5812, %v5831
        %5833 = vdwg.mxu0
        %5834 = vmatpush.msra.mxu0 %v5193
        %5835 = vmatpush.msra.mxu0 %v5185
        %5836 = vmatpush.msra.mxu0 %v5177
        %5837 = vmatpush.msra.mxu0 %v5169
        %5838 = vmatpush.msra.mxu0 %v5161
        %5839 = vmatpush.msra.mxu0 %v5153
        %5840 = vmatpush.msra.mxu0 %v5145
        %5841 = vmatpush.msra.mxu0 %v5137
        %5842 = vmatpush.msra.mxu0 %v5129
        %5843 = vmatpush.msra.mxu0 %v5121
        %5844 = vmatpush.msra.mxu0 %v5113
        %5845 = vmatpush.msra.mxu0 %v5105
        %5846 = vmatpush.msra.mxu0 %v5097
        %5847 = vmatpush.msra.mxu0 %v5089
        %5848 = vmatpush.msra.mxu0 %v5081
        %5849 = vmatpush.msra.mxu0 %v5073
        %5850 = vmatmul.f32.gmra.mxu0 %v5599
        %v5851 = vpop.f32.mrf.mxu0
        %v5852 = vadd.f32 0.0, %v5851
        %5853 = vdwg.mxu0
        %5854 = vmatpush.msra.mxu0 %v5321
        %5855 = vmatpush.msra.mxu0 %v5313
        %5856 = vmatpush.msra.mxu0 %v5305
        %5857 = vmatpush.msra.mxu0 %v5297
        %5858 = vmatpush.msra.mxu0 %v5289
        %5859 = vmatpush.msra.mxu0 %v5281
        %5860 = vmatpush.msra.mxu0 %v5273
        %5861 = vmatpush.msra.mxu0 %v5265
        %5862 = vmatpush.msra.mxu0 %v5257
        %5863 = vmatpush.msra.mxu0 %v5249
        %5864 = vmatpush.msra.mxu0 %v5241
        %5865 = vmatpush.msra.mxu0 %v5233
        %5866 = vmatpush.msra.mxu0 %v5225
        %5867 = vmatpush.msra.mxu0 %v5217
        %5868 = vmatpush.msra.mxu0 %v5209
        %5869 = vmatpush.msra.mxu0 %v5201
        %5870 = vmatmul.f32.gmra.mxu0 %v5600
        %v5871 = vpop.f32.mrf.mxu0
        %v5872 = vadd.f32 %v5852, %v5871
        %5873 = vdwg.mxu0
        %5874 = vmatpush.msra.mxu0 %v5449
        %5875 = vmatpush.msra.mxu0 %v5441
        %5876 = vmatpush.msra.mxu0 %v5433
        %5877 = vmatpush.msra.mxu0 %v5425
        %5878 = vmatpush.msra.mxu0 %v5417
        %5879 = vmatpush.msra.mxu0 %v5409
        %5880 = vmatpush.msra.mxu0 %v5401
        %5881 = vmatpush.msra.mxu0 %v5393
        %5882 = vmatpush.msra.mxu0 %v5385
        %5883 = vmatpush.msra.mxu0 %v5377
        %5884 = vmatpush.msra.mxu0 %v5369
        %5885 = vmatpush.msra.mxu0 %v5361
        %5886 = vmatpush.msra.mxu0 %v5353
        %5887 = vmatpush.msra.mxu0 %v5345
        %5888 = vmatpush.msra.mxu0 %v5337
        %5889 = vmatpush.msra.mxu0 %v5329
        %5890 = vmatmul.f32.gmra.mxu0 %v5601
        %v5891 = vpop.f32.mrf.mxu0
        %v5892 = vadd.f32 %v5872, %v5891
        %5893 = vdwg.mxu0
        %5894 = vmatpush.msra.mxu0 %v5577
        %5895 = vmatpush.msra.mxu0 %v5569
        %5896 = vmatpush.msra.mxu0 %v5561
        %5897 = vmatpush.msra.mxu0 %v5553
        %5898 = vmatpush.msra.mxu0 %v5545
        %5899 = vmatpush.msra.mxu0 %v5537
        %5900 = vmatpush.msra.mxu0 %v5529
        %5901 = vmatpush.msra.mxu0 %v5521
        %5902 = vmatpush.msra.mxu0 %v5513
        %5903 = vmatpush.msra.mxu0 %v5505
        %5904 = vmatpush.msra.mxu0 %v5497
        %5905 = vmatpush.msra.mxu0 %v5489
        %5906 = vmatpush.msra.mxu0 %v5481
        %5907 = vmatpush.msra.mxu0 %v5473
        %5908 = vmatpush.msra.mxu0 %v5465
        %5909 = vmatpush.msra.mxu0 %v5457
        %5910 = vmatmul.f32.gmra.mxu0 %v5602
        %v5911 = vpop.f32.mrf.mxu0
        %v5912 = vadd.f32 %v5892, %v5911
        %5913 = vdwg.mxu0
        %5914 = vmatpush.msra.mxu0 0.0
        %5915 = vmatpush.msra.mxu0 0.0
        %5916 = vmatpush.msra.mxu0 0.0
        %5917 = vmatpush.msra.mxu0 0.0
        %5918 = vmatpush.msra.mxu0 0.0
        %5919 = vmatpush.msra.mxu0 0.0
        %5920 = vmatpush.msra.mxu0 0.0
        %5921 = vmatpush.msra.mxu0 0.0
        %5922 = vmatpush.msra.mxu0 0.0
        %5923 = vmatpush.msra.mxu0 0.0
        %5924 = vmatpush.msra.mxu0 0.0
        %5925 = vmatpush.msra.mxu0 0.0
        %5926 = vmatpush.msra.mxu0 0.0
        %5927 = vmatpush.msra.mxu0 0.0
        %5928 = vmatpush.msra.mxu0 %v5617
        %5929 = vmatpush.msra.mxu0 %v5585
        %5930 = vmatmul.f32.gmra.mxu0 %v5608
        %v5931 = vpop.f32.mrf.mxu0
        %v5932 = vadd.f32 %v5912, %v5931
        %5933 = vdwg.mxu0
        %5934 = vmatpush.msra.mxu0 %v5194
        %5935 = vmatpush.msra.mxu0 %v5186
        %5936 = vmatpush.msra.mxu0 %v5178
        %5937 = vmatpush.msra.mxu0 %v5170
        %5938 = vmatpush.msra.mxu0 %v5162
        %5939 = vmatpush.msra.mxu0 %v5154
        %5940 = vmatpush.msra.mxu0 %v5146
        %5941 = vmatpush.msra.mxu0 %v5138
        %5942 = vmatpush.msra.mxu0 %v5130
        %5943 = vmatpush.msra.mxu0 %v5122
        %5944 = vmatpush.msra.mxu0 %v5114
        %5945 = vmatpush.msra.mxu0 %v5106
        %5946 = vmatpush.msra.mxu0 %v5098
        %5947 = vmatpush.msra.mxu0 %v5090
        %5948 = vmatpush.msra.mxu0 %v5082
        %5949 = vmatpush.msra.mxu0 %v5074
        %5950 = vmatmul.f32.gmra.mxu0 %v5599
        %v5951 = vpop.f32.mrf.mxu0
        %v5952 = vadd.f32 0.0, %v5951
        %5953 = vdwg.mxu0
        %5954 = vmatpush.msra.mxu0 %v5322
        %5955 = vmatpush.msra.mxu0 %v5314
        %5956 = vmatpush.msra.mxu0 %v5306
        %5957 = vmatpush.msra.mxu0 %v5298
        %5958 = vmatpush.msra.mxu0 %v5290
        %5959 = vmatpush.msra.mxu0 %v5282
        %5960 = vmatpush.msra.mxu0 %v5274
        %5961 = vmatpush.msra.mxu0 %v5266
        %5962 = vmatpush.msra.mxu0 %v5258
        %5963 = vmatpush.msra.mxu0 %v5250
        %5964 = vmatpush.msra.mxu0 %v5242
        %5965 = vmatpush.msra.mxu0 %v5234
        %5966 = vmatpush.msra.mxu0 %v5226
        %5967 = vmatpush.msra.mxu0 %v5218
        %5968 = vmatpush.msra.mxu0 %v5210
        %5969 = vmatpush.msra.mxu0 %v5202
        %5970 = vmatmul.f32.gmra.mxu0 %v5600
        %v5971 = vpop.f32.mrf.mxu0
        %v5972 = vadd.f32 %v5952, %v5971
        %5973 = vdwg.mxu0
        %5974 = vmatpush.msra.mxu0 %v5450
        %5975 = vmatpush.msra.mxu0 %v5442
        %5976 = vmatpush.msra.mxu0 %v5434
        %5977 = vmatpush.msra.mxu0 %v5426
        %5978 = vmatpush.msra.mxu0 %v5418
        %5979 = vmatpush.msra.mxu0 %v5410
        %5980 = vmatpush.msra.mxu0 %v5402
        %5981 = vmatpush.msra.mxu0 %v5394
        %5982 = vmatpush.msra.mxu0 %v5386
        %5983 = vmatpush.msra.mxu0 %v5378
        %5984 = vmatpush.msra.mxu0 %v5370
        %5985 = vmatpush.msra.mxu0 %v5362
        %5986 = vmatpush.msra.mxu0 %v5354
        %5987 = vmatpush.msra.mxu0 %v5346
        %5988 = vmatpush.msra.mxu0 %v5338
        %5989 = vmatpush.msra.mxu0 %v5330
        %5990 = vmatmul.f32.gmra.mxu0 %v5601
        %v5991 = vpop.f32.mrf.mxu0
        %v5992 = vadd.f32 %v5972, %v5991
        %5993 = vdwg.mxu0
        %5994 = vmatpush.msra.mxu0 %v5578
        %5995 = vmatpush.msra.mxu0 %v5570
        %5996 = vmatpush.msra.mxu0 %v5562
        %5997 = vmatpush.msra.mxu0 %v5554
        %5998 = vmatpush.msra.mxu0 %v5546
        %5999 = vmatpush.msra.mxu0 %v5538
        %6000 = vmatpush.msra.mxu0 %v5530
        %6001 = vmatpush.msra.mxu0 %v5522
        %6002 = vmatpush.msra.mxu0 %v5514
        %6003 = vmatpush.msra.mxu0 %v5506
        %6004 = vmatpush.msra.mxu0 %v5498
        %6005 = vmatpush.msra.mxu0 %v5490
        %6006 = vmatpush.msra.mxu0 %v5482
        %6007 = vmatpush.msra.mxu0 %v5474
        %6008 = vmatpush.msra.mxu0 %v5466
        %6009 = vmatpush.msra.mxu0 %v5458
        %6010 = vmatmul.f32.gmra.mxu0 %v5602
        %v6011 = vpop.f32.mrf.mxu0
        %v6012 = vadd.f32 %v5992, %v6011
        %6013 = vdwg.mxu0
        %6014 = vmatpush.msra.mxu0 0.0
        %6015 = vmatpush.msra.mxu0 0.0
        %6016 = vmatpush.msra.mxu0 0.0
        %6017 = vmatpush.msra.mxu0 0.0
        %6018 = vmatpush.msra.mxu0 0.0
        %6019 = vmatpush.msra.mxu0 0.0
        %6020 = vmatpush.msra.mxu0 0.0
        %6021 = vmatpush.msra.mxu0 0.0
        %6022 = vmatpush.msra.mxu0 0.0
        %6023 = vmatpush.msra.mxu0 0.0
        %6024 = vmatpush.msra.mxu0 0.0
        %6025 = vmatpush.msra.mxu0 0.0
        %6026 = vmatpush.msra.mxu0 0.0
        %6027 = vmatpush.msra.mxu0 0.0
        %6028 = vmatpush.msra.mxu0 %v5620
        %6029 = vmatpush.msra.mxu0 %v5586
        %6030 = vmatmul.f32.gmra.mxu0 %v5608
        %v6031 = vpop.f32.mrf.mxu0
        %v6032 = vadd.f32 %v6012, %v6031
        %6033 = vdwg.mxu0
        %6034 = vmatpush.msra.mxu0 %v5195
        %6035 = vmatpush.msra.mxu0 %v5187
        %6036 = vmatpush.msra.mxu0 %v5179
        %6037 = vmatpush.msra.mxu0 %v5171
        %6038 = vmatpush.msra.mxu0 %v5163
        %6039 = vmatpush.msra.mxu0 %v5155
        %6040 = vmatpush.msra.mxu0 %v5147
        %6041 = vmatpush.msra.mxu0 %v5139
        %6042 = vmatpush.msra.mxu0 %v5131
        %6043 = vmatpush.msra.mxu0 %v5123
        %6044 = vmatpush.msra.mxu0 %v5115
        %6045 = vmatpush.msra.mxu0 %v5107
        %6046 = vmatpush.msra.mxu0 %v5099
        %6047 = vmatpush.msra.mxu0 %v5091
        %6048 = vmatpush.msra.mxu0 %v5083
        %6049 = vmatpush.msra.mxu0 %v5075
        %6050 = vmatmul.f32.gmra.mxu0 %v5599
        %v6051 = vpop.f32.mrf.mxu0
        %v6052 = vadd.f32 0.0, %v6051
        %6053 = vdwg.mxu0
        %6054 = vmatpush.msra.mxu0 %v5323
        %6055 = vmatpush.msra.mxu0 %v5315
        %6056 = vmatpush.msra.mxu0 %v5307
        %6057 = vmatpush.msra.mxu0 %v5299
        %6058 = vmatpush.msra.mxu0 %v5291
        %6059 = vmatpush.msra.mxu0 %v5283
        %6060 = vmatpush.msra.mxu0 %v5275
        %6061 = vmatpush.msra.mxu0 %v5267
        %6062 = vmatpush.msra.mxu0 %v5259
        %6063 = vmatpush.msra.mxu0 %v5251
        %6064 = vmatpush.msra.mxu0 %v5243
        %6065 = vmatpush.msra.mxu0 %v5235
        %6066 = vmatpush.msra.mxu0 %v5227
        %6067 = vmatpush.msra.mxu0 %v5219
        %6068 = vmatpush.msra.mxu0 %v5211
        %6069 = vmatpush.msra.mxu0 %v5203
        %6070 = vmatmul.f32.gmra.mxu0 %v5600
        %v6071 = vpop.f32.mrf.mxu0
        %v6072 = vadd.f32 %v6052, %v6071
        %6073 = vdwg.mxu0
        %6074 = vmatpush.msra.mxu0 %v5451
        %6075 = vmatpush.msra.mxu0 %v5443
        %6076 = vmatpush.msra.mxu0 %v5435
        %6077 = vmatpush.msra.mxu0 %v5427
        %6078 = vmatpush.msra.mxu0 %v5419
        %6079 = vmatpush.msra.mxu0 %v5411
        %6080 = vmatpush.msra.mxu0 %v5403
        %6081 = vmatpush.msra.mxu0 %v5395
        %6082 = vmatpush.msra.mxu0 %v5387
        %6083 = vmatpush.msra.mxu0 %v5379
        %6084 = vmatpush.msra.mxu0 %v5371
        %6085 = vmatpush.msra.mxu0 %v5363
        %6086 = vmatpush.msra.mxu0 %v5355
        %6087 = vmatpush.msra.mxu0 %v5347
        %6088 = vmatpush.msra.mxu0 %v5339
        %6089 = vmatpush.msra.mxu0 %v5331
        %6090 = vmatmul.f32.gmra.mxu0 %v5601
        %v6091 = vpop.f32.mrf.mxu0
        %v6092 = vadd.f32 %v6072, %v6091
        %6093 = vdwg.mxu0
        %6094 = vmatpush.msra.mxu0 %v5579
        %6095 = vmatpush.msra.mxu0 %v5571
        %6096 = vmatpush.msra.mxu0 %v5563
        %6097 = vmatpush.msra.mxu0 %v5555
        %6098 = vmatpush.msra.mxu0 %v5547
        %6099 = vmatpush.msra.mxu0 %v5539
        %6100 = vmatpush.msra.mxu0 %v5531
        %6101 = vmatpush.msra.mxu0 %v5523
        %6102 = vmatpush.msra.mxu0 %v5515
        %6103 = vmatpush.msra.mxu0 %v5507
        %6104 = vmatpush.msra.mxu0 %v5499
        %6105 = vmatpush.msra.mxu0 %v5491
        %6106 = vmatpush.msra.mxu0 %v5483
        %6107 = vmatpush.msra.mxu0 %v5475
        %6108 = vmatpush.msra.mxu0 %v5467
        %6109 = vmatpush.msra.mxu0 %v5459
        %6110 = vmatmul.f32.gmra.mxu0 %v5602
        %v6111 = vpop.f32.mrf.mxu0
        %v6112 = vadd.f32 %v6092, %v6111
        %6113 = vdwg.mxu0
        %6114 = vmatpush.msra.mxu0 0.0
        %6115 = vmatpush.msra.mxu0 0.0
        %6116 = vmatpush.msra.mxu0 0.0
        %6117 = vmatpush.msra.mxu0 0.0
        %6118 = vmatpush.msra.mxu0 0.0
        %6119 = vmatpush.msra.mxu0 0.0
        %6120 = vmatpush.msra.mxu0 0.0
        %6121 = vmatpush.msra.mxu0 0.0
        %6122 = vmatpush.msra.mxu0 0.0
        %6123 = vmatpush.msra.mxu0 0.0
        %6124 = vmatpush.msra.mxu0 0.0
        %6125 = vmatpush.msra.mxu0 0.0
        %6126 = vmatpush.msra.mxu0 0.0
        %6127 = vmatpush.msra.mxu0 0.0
        %6128 = vmatpush.msra.mxu0 %v5623
        %6129 = vmatpush.msra.mxu0 %v5587
        %6130 = vmatmul.f32.gmra.mxu0 %v5608
        %v6131 = vpop.f32.mrf.mxu0
        %v6132 = vadd.f32 %v6112, %v6131
        %6133 = vdwg.mxu0
        %6134 = vmatpush.msra.mxu0 %v5196
        %6135 = vmatpush.msra.mxu0 %v5188
        %6136 = vmatpush.msra.mxu0 %v5180
        %6137 = vmatpush.msra.mxu0 %v5172
        %6138 = vmatpush.msra.mxu0 %v5164
        %6139 = vmatpush.msra.mxu0 %v5156
        %6140 = vmatpush.msra.mxu0 %v5148
        %6141 = vmatpush.msra.mxu0 %v5140
        %6142 = vmatpush.msra.mxu0 %v5132
        %6143 = vmatpush.msra.mxu0 %v5124
        %6144 = vmatpush.msra.mxu0 %v5116
        %6145 = vmatpush.msra.mxu0 %v5108
        %6146 = vmatpush.msra.mxu0 %v5100
        %6147 = vmatpush.msra.mxu0 %v5092
        %6148 = vmatpush.msra.mxu0 %v5084
        %6149 = vmatpush.msra.mxu0 %v5076
        %6150 = vmatmul.f32.gmra.mxu0 %v5599
        %v6151 = vpop.f32.mrf.mxu0
        %v6152 = vadd.f32 0.0, %v6151
        %6153 = vdwg.mxu0
        %6154 = vmatpush.msra.mxu0 %v5324
        %6155 = vmatpush.msra.mxu0 %v5316
        %6156 = vmatpush.msra.mxu0 %v5308
        %6157 = vmatpush.msra.mxu0 %v5300
        %6158 = vmatpush.msra.mxu0 %v5292
        %6159 = vmatpush.msra.mxu0 %v5284
        %6160 = vmatpush.msra.mxu0 %v5276
        %6161 = vmatpush.msra.mxu0 %v5268
        %6162 = vmatpush.msra.mxu0 %v5260
        %6163 = vmatpush.msra.mxu0 %v5252
        %6164 = vmatpush.msra.mxu0 %v5244
        %6165 = vmatpush.msra.mxu0 %v5236
        %6166 = vmatpush.msra.mxu0 %v5228
        %6167 = vmatpush.msra.mxu0 %v5220
        %6168 = vmatpush.msra.mxu0 %v5212
        %6169 = vmatpush.msra.mxu0 %v5204
        %6170 = vmatmul.f32.gmra.mxu0 %v5600
        %v6171 = vpop.f32.mrf.mxu0
        %v6172 = vadd.f32 %v6152, %v6171
        %6173 = vdwg.mxu0
        %6174 = vmatpush.msra.mxu0 %v5452
        %6175 = vmatpush.msra.mxu0 %v5444
        %6176 = vmatpush.msra.mxu0 %v5436
        %6177 = vmatpush.msra.mxu0 %v5428
        %6178 = vmatpush.msra.mxu0 %v5420
        %6179 = vmatpush.msra.mxu0 %v5412
        %6180 = vmatpush.msra.mxu0 %v5404
        %6181 = vmatpush.msra.mxu0 %v5396
        %6182 = vmatpush.msra.mxu0 %v5388
        %6183 = vmatpush.msra.mxu0 %v5380
        %6184 = vmatpush.msra.mxu0 %v5372
        %6185 = vmatpush.msra.mxu0 %v5364
        %6186 = vmatpush.msra.mxu0 %v5356
        %6187 = vmatpush.msra.mxu0 %v5348
        %6188 = vmatpush.msra.mxu0 %v5340
        %6189 = vmatpush.msra.mxu0 %v5332
        %6190 = vmatmul.f32.gmra.mxu0 %v5601
        %v6191 = vpop.f32.mrf.mxu0
        %v6192 = vadd.f32 %v6172, %v6191
        %6193 = vdwg.mxu0
        %6194 = vmatpush.msra.mxu0 %v5580
        %6195 = vmatpush.msra.mxu0 %v5572
        %6196 = vmatpush.msra.mxu0 %v5564
        %6197 = vmatpush.msra.mxu0 %v5556
        %6198 = vmatpush.msra.mxu0 %v5548
        %6199 = vmatpush.msra.mxu0 %v5540
        %6200 = vmatpush.msra.mxu0 %v5532
        %6201 = vmatpush.msra.mxu0 %v5524
        %6202 = vmatpush.msra.mxu0 %v5516
        %6203 = vmatpush.msra.mxu0 %v5508
        %6204 = vmatpush.msra.mxu0 %v5500
        %6205 = vmatpush.msra.mxu0 %v5492
        %6206 = vmatpush.msra.mxu0 %v5484
        %6207 = vmatpush.msra.mxu0 %v5476
        %6208 = vmatpush.msra.mxu0 %v5468
        %6209 = vmatpush.msra.mxu0 %v5460
        %6210 = vmatmul.f32.gmra.mxu0 %v5602
        %v6211 = vpop.f32.mrf.mxu0
        %v6212 = vadd.f32 %v6192, %v6211
        %6213 = vdwg.mxu0
        %6214 = vmatpush.msra.mxu0 0.0
        %6215 = vmatpush.msra.mxu0 0.0
        %6216 = vmatpush.msra.mxu0 0.0
        %6217 = vmatpush.msra.mxu0 0.0
        %6218 = vmatpush.msra.mxu0 0.0
        %6219 = vmatpush.msra.mxu0 0.0
        %6220 = vmatpush.msra.mxu0 0.0
        %6221 = vmatpush.msra.mxu0 0.0
        %6222 = vmatpush.msra.mxu0 0.0
        %6223 = vmatpush.msra.mxu0 0.0
        %6224 = vmatpush.msra.mxu0 0.0
        %6225 = vmatpush.msra.mxu0 0.0
        %6226 = vmatpush.msra.mxu0 0.0
        %6227 = vmatpush.msra.mxu0 0.0
        %6228 = vmatpush.msra.mxu0 %v5626
        %6229 = vmatpush.msra.mxu0 %v5588
        %6230 = vmatmul.f32.gmra.mxu0 %v5608
        %v6231 = vpop.f32.mrf.mxu0
        %v6232 = vadd.f32 %v6212, %v6231
        %6233 = vdwg.mxu0
        %6234 = vmatpush.msra.mxu0 %v5197
        %6235 = vmatpush.msra.mxu0 %v5189
        %6236 = vmatpush.msra.mxu0 %v5181
        %6237 = vmatpush.msra.mxu0 %v5173
        %6238 = vmatpush.msra.mxu0 %v5165
        %6239 = vmatpush.msra.mxu0 %v5157
        %6240 = vmatpush.msra.mxu0 %v5149
        %6241 = vmatpush.msra.mxu0 %v5141
        %6242 = vmatpush.msra.mxu0 %v5133
        %6243 = vmatpush.msra.mxu0 %v5125
        %6244 = vmatpush.msra.mxu0 %v5117
        %6245 = vmatpush.msra.mxu0 %v5109
        %6246 = vmatpush.msra.mxu0 %v5101
        %6247 = vmatpush.msra.mxu0 %v5093
        %6248 = vmatpush.msra.mxu0 %v5085
        %6249 = vmatpush.msra.mxu0 %v5077
        %6250 = vmatmul.f32.gmra.mxu0 %v5599
        %v6251 = vpop.f32.mrf.mxu0
        %v6252 = vadd.f32 0.0, %v6251
        %6253 = vdwg.mxu0
        %6254 = vmatpush.msra.mxu0 %v5325
        %6255 = vmatpush.msra.mxu0 %v5317
        %6256 = vmatpush.msra.mxu0 %v5309
        %6257 = vmatpush.msra.mxu0 %v5301
        %6258 = vmatpush.msra.mxu0 %v5293
        %6259 = vmatpush.msra.mxu0 %v5285
        %6260 = vmatpush.msra.mxu0 %v5277
        %6261 = vmatpush.msra.mxu0 %v5269
        %6262 = vmatpush.msra.mxu0 %v5261
        %6263 = vmatpush.msra.mxu0 %v5253
        %6264 = vmatpush.msra.mxu0 %v5245
        %6265 = vmatpush.msra.mxu0 %v5237
        %6266 = vmatpush.msra.mxu0 %v5229
        %6267 = vmatpush.msra.mxu0 %v5221
        %6268 = vmatpush.msra.mxu0 %v5213
        %6269 = vmatpush.msra.mxu0 %v5205
        %6270 = vmatmul.f32.gmra.mxu0 %v5600
        %v6271 = vpop.f32.mrf.mxu0
        %v6272 = vadd.f32 %v6252, %v6271
        %6273 = vdwg.mxu0
        %6274 = vmatpush.msra.mxu0 %v5453
        %6275 = vmatpush.msra.mxu0 %v5445
        %6276 = vmatpush.msra.mxu0 %v5437
        %6277 = vmatpush.msra.mxu0 %v5429
        %6278 = vmatpush.msra.mxu0 %v5421
        %6279 = vmatpush.msra.mxu0 %v5413
        %6280 = vmatpush.msra.mxu0 %v5405
        %6281 = vmatpush.msra.mxu0 %v5397
        %6282 = vmatpush.msra.mxu0 %v5389
        %6283 = vmatpush.msra.mxu0 %v5381
        %6284 = vmatpush.msra.mxu0 %v5373
        %6285 = vmatpush.msra.mxu0 %v5365
        %6286 = vmatpush.msra.mxu0 %v5357
        %6287 = vmatpush.msra.mxu0 %v5349
        %6288 = vmatpush.msra.mxu0 %v5341
        %6289 = vmatpush.msra.mxu0 %v5333
        %6290 = vmatmul.f32.gmra.mxu0 %v5601
        %v6291 = vpop.f32.mrf.mxu0
        %v6292 = vadd.f32 %v6272, %v6291
        %6293 = vdwg.mxu0
        %6294 = vmatpush.msra.mxu0 %v5581
        %6295 = vmatpush.msra.mxu0 %v5573
        %6296 = vmatpush.msra.mxu0 %v5565
        %6297 = vmatpush.msra.mxu0 %v5557
        %6298 = vmatpush.msra.mxu0 %v5549
        %6299 = vmatpush.msra.mxu0 %v5541
        %6300 = vmatpush.msra.mxu0 %v5533
        %6301 = vmatpush.msra.mxu0 %v5525
        %6302 = vmatpush.msra.mxu0 %v5517
        %6303 = vmatpush.msra.mxu0 %v5509
        %6304 = vmatpush.msra.mxu0 %v5501
        %6305 = vmatpush.msra.mxu0 %v5493
        %6306 = vmatpush.msra.mxu0 %v5485
        %6307 = vmatpush.msra.mxu0 %v5477
        %6308 = vmatpush.msra.mxu0 %v5469
        %6309 = vmatpush.msra.mxu0 %v5461
        %6310 = vmatmul.f32.gmra.mxu0 %v5602
        %v6311 = vpop.f32.mrf.mxu0
        %v6312 = vadd.f32 %v6292, %v6311
        %6313 = vdwg.mxu0
        %6314 = vmatpush.msra.mxu0 0.0
        %6315 = vmatpush.msra.mxu0 0.0
        %6316 = vmatpush.msra.mxu0 0.0
        %6317 = vmatpush.msra.mxu0 0.0
        %6318 = vmatpush.msra.mxu0 0.0
        %6319 = vmatpush.msra.mxu0 0.0
        %6320 = vmatpush.msra.mxu0 0.0
        %6321 = vmatpush.msra.mxu0 0.0
        %6322 = vmatpush.msra.mxu0 0.0
        %6323 = vmatpush.msra.mxu0 0.0
        %6324 = vmatpush.msra.mxu0 0.0
        %6325 = vmatpush.msra.mxu0 0.0
        %6326 = vmatpush.msra.mxu0 0.0
        %6327 = vmatpush.msra.mxu0 0.0
        %6328 = vmatpush.msra.mxu0 %v5629
        %6329 = vmatpush.msra.mxu0 %v5589
        %6330 = vmatmul.f32.gmra.mxu0 %v5608
        %v6331 = vpop.f32.mrf.mxu0
        %v6332 = vadd.f32 %v6312, %v6331
        %6333 = vdwg.mxu0
        %6334 = vmatpush.msra.mxu0 %v5198
        %6335 = vmatpush.msra.mxu0 %v5190
        %6336 = vmatpush.msra.mxu0 %v5182
        %6337 = vmatpush.msra.mxu0 %v5174
        %6338 = vmatpush.msra.mxu0 %v5166
        %6339 = vmatpush.msra.mxu0 %v5158
        %6340 = vmatpush.msra.mxu0 %v5150
        %6341 = vmatpush.msra.mxu0 %v5142
        %6342 = vmatpush.msra.mxu0 %v5134
        %6343 = vmatpush.msra.mxu0 %v5126
        %6344 = vmatpush.msra.mxu0 %v5118
        %6345 = vmatpush.msra.mxu0 %v5110
        %6346 = vmatpush.msra.mxu0 %v5102
        %6347 = vmatpush.msra.mxu0 %v5094
        %6348 = vmatpush.msra.mxu0 %v5086
        %6349 = vmatpush.msra.mxu0 %v5078
        %6350 = vmatmul.f32.gmra.mxu0 %v5599
        %v6351 = vpop.f32.mrf.mxu0
        %v6352 = vadd.f32 0.0, %v6351
        %6353 = vdwg.mxu0
        %6354 = vmatpush.msra.mxu0 %v5326
        %6355 = vmatpush.msra.mxu0 %v5318
        %6356 = vmatpush.msra.mxu0 %v5310
        %6357 = vmatpush.msra.mxu0 %v5302
        %6358 = vmatpush.msra.mxu0 %v5294
        %6359 = vmatpush.msra.mxu0 %v5286
        %6360 = vmatpush.msra.mxu0 %v5278
        %6361 = vmatpush.msra.mxu0 %v5270
        %6362 = vmatpush.msra.mxu0 %v5262
        %6363 = vmatpush.msra.mxu0 %v5254
        %6364 = vmatpush.msra.mxu0 %v5246
        %6365 = vmatpush.msra.mxu0 %v5238
        %6366 = vmatpush.msra.mxu0 %v5230
        %6367 = vmatpush.msra.mxu0 %v5222
        %6368 = vmatpush.msra.mxu0 %v5214
        %6369 = vmatpush.msra.mxu0 %v5206
        %6370 = vmatmul.f32.gmra.mxu0 %v5600
        %v6371 = vpop.f32.mrf.mxu0
        %v6372 = vadd.f32 %v6352, %v6371
        %6373 = vdwg.mxu0
        %6374 = vmatpush.msra.mxu0 %v5454
        %6375 = vmatpush.msra.mxu0 %v5446
        %6376 = vmatpush.msra.mxu0 %v5438
        %6377 = vmatpush.msra.mxu0 %v5430
        %6378 = vmatpush.msra.mxu0 %v5422
        %6379 = vmatpush.msra.mxu0 %v5414
        %6380 = vmatpush.msra.mxu0 %v5406
        %6381 = vmatpush.msra.mxu0 %v5398
        %6382 = vmatpush.msra.mxu0 %v5390
        %6383 = vmatpush.msra.mxu0 %v5382
        %6384 = vmatpush.msra.mxu0 %v5374
        %6385 = vmatpush.msra.mxu0 %v5366
        %6386 = vmatpush.msra.mxu0 %v5358
        %6387 = vmatpush.msra.mxu0 %v5350
        %6388 = vmatpush.msra.mxu0 %v5342
        %6389 = vmatpush.msra.mxu0 %v5334
        %6390 = vmatmul.f32.gmra.mxu0 %v5601
        %v6391 = vpop.f32.mrf.mxu0
        %v6392 = vadd.f32 %v6372, %v6391
        %6393 = vdwg.mxu0
        %6394 = vmatpush.msra.mxu0 %v5582
        %6395 = vmatpush.msra.mxu0 %v5574
        %6396 = vmatpush.msra.mxu0 %v5566
        %6397 = vmatpush.msra.mxu0 %v5558
        %6398 = vmatpush.msra.mxu0 %v5550
        %6399 = vmatpush.msra.mxu0 %v5542
        %6400 = vmatpush.msra.mxu0 %v5534
        %6401 = vmatpush.msra.mxu0 %v5526
        %6402 = vmatpush.msra.mxu0 %v5518
        %6403 = vmatpush.msra.mxu0 %v5510
        %6404 = vmatpush.msra.mxu0 %v5502
        %6405 = vmatpush.msra.mxu0 %v5494
        %6406 = vmatpush.msra.mxu0 %v5486
        %6407 = vmatpush.msra.mxu0 %v5478
        %6408 = vmatpush.msra.mxu0 %v5470
        %6409 = vmatpush.msra.mxu0 %v5462
        %6410 = vmatmul.f32.gmra.mxu0 %v5602
        %v6411 = vpop.f32.mrf.mxu0
        %v6412 = vadd.f32 %v6392, %v6411
        %6413 = vdwg.mxu0
        %6414 = vmatpush.msra.mxu0 0.0
        %6415 = vmatpush.msra.mxu0 0.0
        %6416 = vmatpush.msra.mxu0 0.0
        %6417 = vmatpush.msra.mxu0 0.0
        %6418 = vmatpush.msra.mxu0 0.0
        %6419 = vmatpush.msra.mxu0 0.0
        %6420 = vmatpush.msra.mxu0 0.0
        %6421 = vmatpush.msra.mxu0 0.0
        %6422 = vmatpush.msra.mxu0 0.0
        %6423 = vmatpush.msra.mxu0 0.0
        %6424 = vmatpush.msra.mxu0 0.0
        %6425 = vmatpush.msra.mxu0 0.0
        %6426 = vmatpush.msra.mxu0 0.0
        %6427 = vmatpush.msra.mxu0 0.0
        %6428 = vmatpush.msra.mxu0 %v5632
        %6429 = vmatpush.msra.mxu0 %v5590
        %6430 = vmatmul.f32.gmra.mxu0 %v5608
        %v6431 = vpop.f32.mrf.mxu0
        %v6432 = vadd.f32 %v6412, %v6431
        %6433 = vdwg.mxu0
        %v6442 = vrot.slane %v5832, 7
        %v6443 = vrot.slane %v5932, 6
        %v6444 = vrot.slane %v6032, 5
        %v6445 = vrot.slane %v6132, 4
        %v6446 = vrot.slane %v6232, 3
        %v6447 = vrot.slane %v6332, 2
        %v6448 = vrot.slane %v6432, 1
        %v6449 = vsel %vm3663, %v5732, %v6442
        %v6450 = vsel %vm3665, %v6443, %v6444
        %v6451 = vsel %vm3667, %v6449, %v6450
        %v6452 = vsel %vm3669, %v6445, %v6446
        %v6453 = vsel %vm3671, %v6447, %v6448
        %v6454 = vsel %vm3673, %v6452, %v6453
        %v6455 = vsel %vm2823, %v6451, %v6454
        %v6457 = vadd.f32 %v5069, %v6455
        %v6458 = vmax.f32 %v6457, 0.0
        %v6459 = vld [vmem:[%s11] sm:$0xff]
        %v6460 = vld [vmem:[%s11 + $0x8] sm:$0xff]
        %v6461 = vld [vmem:[%s11 + $0x10] sm:$0xff]
        %v6462 = vld [vmem:[%s11 + $0x18] sm:$0xff]
        %v6463 = vld [vmem:[%s11 + $0x20] sm:$0xff]
        %v6464 = vld [vmem:[%s11 + $0x28] sm:$0xff]
        %v6465 = vld [vmem:[%s11 + $0x30] sm:$0xff]
        %v6466 = vld [vmem:[%s11 + $0x38] sm:$0xff]
        %v6467 = vld [vmem:[%s11 + $0x40] sm:$0xff]
        %v6468 = vld [vmem:[%s11 + $0x48] sm:$0xff]
        %v6469 = vld [vmem:[%s11 + $0x50] sm:$0xff]
        %v6470 = vld [vmem:[%s11 + $0x58] sm:$0xff]
        %v6471 = vld [vmem:[%s11 + $0x60] sm:$0xff]
        %v6472 = vld [vmem:[%s11 + $0x68] sm:$0xff]
        %v6473 = vld [vmem:[%s11 + $0x70] sm:$0xff]
        %v6474 = vld [vmem:[%s11 + $0x78] sm:$0xff]
        %v6475 = vld [vmem:[%s11 + $0x80] sm:$0xff]
        %v6476 = vld [vmem:[%s11 + $0x88] sm:$0xff]
        %v6477 = vld [vmem:[%s11 + $0x90] sm:$0xff]
        %v6478 = vld [vmem:[%s11 + $0x98] sm:$0xff]
        %v6479 = vld [vmem:[%s11 + $0xa0] sm:$0xff]
        %v6480 = vld [vmem:[%s11 + $0xa8] sm:$0xff]
        %v6481 = vld [vmem:[%s11 + $0xb0] sm:$0xff]
        %v6482 = vld [vmem:[%s11 + $0xb8] sm:$0xff]
        %v6483 = vld [vmem:[%s11 + $0xc0] sm:$0xff]
        %v6484 = vld [vmem:[%s11 + $0xc8] sm:$0xff]
        %v6485 = vld [vmem:[%s11 + $0xd0] sm:$0xff]
        %v6486 = vld [vmem:[%s11 + $0xd8] sm:$0xff]
        %v6487 = vld [vmem:[%s11 + $0xe0] sm:$0xff]
        %v6488 = vld [vmem:[%s11 + $0xe8] sm:$0xff]
        %v6489 = vld [vmem:[%s11 + $0xf0] sm:$0xff]
        %v6490 = vld [vmem:[%s11 + $0xf8] sm:$0xff]
        %v6491 = vld [vmem:[%s11 + $0x100] sm:$0xff]
        %v6492 = vld [vmem:[%s11 + $0x108] sm:$0xff]
        %v6493 = vld [vmem:[%s11 + $0x110] sm:$0xff]
        %v6494 = vld [vmem:[%s11 + $0x118] sm:$0xff]
        %v6495 = vld [vmem:[%s11 + $0x120] sm:$0xff]
        %v6496 = vld [vmem:[%s11 + $0x128] sm:$0xff]
        %v6497 = vld [vmem:[%s11 + $0x130] sm:$0xff]
        %v6498 = vld [vmem:[%s11 + $0x138] sm:$0xff]
        %v6499 = vld [vmem:[%s11 + $0x140] sm:$0xff]
        %v6500 = vld [vmem:[%s11 + $0x148] sm:$0xff]
        %v6501 = vld [vmem:[%s11 + $0x150] sm:$0xff]
        %v6502 = vld [vmem:[%s11 + $0x158] sm:$0xff]
        %v6503 = vld [vmem:[%s11 + $0x160] sm:$0xff]
        %v6504 = vld [vmem:[%s11 + $0x168] sm:$0xff]
        %v6505 = vld [vmem:[%s11 + $0x170] sm:$0xff]
        %v6506 = vld [vmem:[%s11 + $0x178] sm:$0xff]
        %v6507 = vld [vmem:[%s11 + $0x180] sm:$0xff]
        %v6508 = vld [vmem:[%s11 + $0x188] sm:$0xff]
        %v6509 = vld [vmem:[%s11 + $0x190] sm:$0xff]
        %v6510 = vld [vmem:[%s11 + $0x198] sm:$0xff]
        %v6511 = vld [vmem:[%s11 + $0x1a0] sm:$0xff]
        %v6512 = vld [vmem:[%s11 + $0x1a8] sm:$0xff]
        %v6513 = vld [vmem:[%s11 + $0x1b0] sm:$0xff]
        %v6514 = vld [vmem:[%s11 + $0x1b8] sm:$0xff]
        %v6515 = vld [vmem:[%s11 + $0x1c0] sm:$0xff]
        %v6516 = vld [vmem:[%s11 + $0x1c8] sm:$0xff]
        %v6517 = vld [vmem:[%s11 + $0x1d0] sm:$0xff]
        %v6518 = vld [vmem:[%s11 + $0x1d8] sm:$0xff]
        %v6519 = vld [vmem:[%s11 + $0x1e0] sm:$0xff]
        %v6520 = vld [vmem:[%s11 + $0x1e8] sm:$0xff]
        %v6521 = vld [vmem:[%s11 + $0x1f0] sm:$0xff]
        %v6522 = vld [vmem:[%s11 + $0x1f8] sm:$0xff]
        %v6523 = vld [vmem:[%s11 + $0x200] sm:$0xff]
        %v6524 = vld [vmem:[%s11 + $0x208] sm:$0xff]
        %v6525 = vld [vmem:[%s11 + $0x210] sm:$0xff]
        %v6526 = vld [vmem:[%s11 + $0x218] sm:$0xff]
        %v6527 = vld [vmem:[%s11 + $0x220] sm:$0xff]
        %v6528 = vld [vmem:[%s11 + $0x228] sm:$0xff]
        %v6529 = vld [vmem:[%s11 + $0x230] sm:$0xff]
        %v6530 = vld [vmem:[%s11 + $0x238] sm:$0xff]
        %v6531 = vld [vmem:[%s11 + $0x240] sm:$0xff]
        %v6532 = vld [vmem:[%s11 + $0x248] sm:$0xff]
        %v6533 = vld [vmem:[%s11 + $0x250] sm:$0xff]
        %v6534 = vld [vmem:[%s11 + $0x258] sm:$0xff]
        %v6535 = vld [vmem:[%s11 + $0x260] sm:$0xff]
        %v6536 = vld [vmem:[%s11 + $0x268] sm:$0xff]
        %v6537 = vld [vmem:[%s11 + $0x270] sm:$0xff]
        %v6538 = vld [vmem:[%s11 + $0x278] sm:$0xff]
        %v6539 = vld [vmem:[%s11 + $0x280] sm:$0xff]
        %v6540 = vld [vmem:[%s11 + $0x288] sm:$0xff]
        %v6541 = vld [vmem:[%s11 + $0x290] sm:$0xff]
        %v6542 = vld [vmem:[%s11 + $0x298] sm:$0xff]
        %v6543 = vld [vmem:[%s11 + $0x2a0] sm:$0xff]
        %v6544 = vld [vmem:[%s11 + $0x2a8] sm:$0xff]
        %v6545 = vld [vmem:[%s11 + $0x2b0] sm:$0xff]
        %v6546 = vld [vmem:[%s11 + $0x2b8] sm:$0xff]
        %v6547 = vld [vmem:[%s11 + $0x2c0] sm:$0xff]
        %v6548 = vld [vmem:[%s11 + $0x2c8] sm:$0xff]
        %v6549 = vld [vmem:[%s11 + $0x2d0] sm:$0xff]
        %v6550 = vld [vmem:[%s11 + $0x2d8] sm:$0xff]
        %v6551 = vld [vmem:[%s11 + $0x2e0] sm:$0xff]
        %v6552 = vld [vmem:[%s11 + $0x2e8] sm:$0xff]
        %v6553 = vld [vmem:[%s11 + $0x2f0] sm:$0xff]
        %v6554 = vld [vmem:[%s11 + $0x2f8] sm:$0xff]
        %v6555 = vld [vmem:[%s11 + $0x300] sm:$0xff]
        %v6556 = vld [vmem:[%s11 + $0x308] sm:$0xff]
        %v6557 = vld [vmem:[%s11 + $0x310] sm:$0xff]
        %v6558 = vld [vmem:[%s11 + $0x318] sm:$0xff]
        %v6559 = vld [vmem:[%s11 + $0x320] sm:$0xff]
        %v6560 = vld [vmem:[%s11 + $0x328] sm:$0xff]
        %v6561 = vld [vmem:[%s11 + $0x330] sm:$0xff]
        %v6562 = vld [vmem:[%s11 + $0x338] sm:$0xff]
        %v6563 = vld [vmem:[%s11 + $0x340] sm:$0xff]
        %v6564 = vld [vmem:[%s11 + $0x348] sm:$0xff]
        %v6565 = vld [vmem:[%s11 + $0x350] sm:$0xff]
        %v6566 = vld [vmem:[%s11 + $0x358] sm:$0xff]
        %v6567 = vld [vmem:[%s11 + $0x360] sm:$0xff]
        %v6568 = vld [vmem:[%s11 + $0x368] sm:$0xff]
        %v6569 = vld [vmem:[%s11 + $0x370] sm:$0xff]
        %v6570 = vld [vmem:[%s11 + $0x378] sm:$0xff]
        %v6571 = vld [vmem:[%s11 + $0x380] sm:$0xff]
        %v6572 = vld [vmem:[%s11 + $0x388] sm:$0xff]
        %v6573 = vld [vmem:[%s11 + $0x390] sm:$0xff]
        %v6574 = vld [vmem:[%s11 + $0x398] sm:$0xff]
        %v6575 = vld [vmem:[%s11 + $0x3a0] sm:$0xff]
        %v6576 = vld [vmem:[%s11 + $0x3a8] sm:$0xff]
        %v6577 = vld [vmem:[%s11 + $0x3b0] sm:$0xff]
        %v6578 = vld [vmem:[%s11 + $0x3b8] sm:$0xff]
        %v6579 = vld [vmem:[%s11 + $0x3c0] sm:$0xff]
        %v6580 = vld [vmem:[%s11 + $0x3c8] sm:$0xff]
        %v6581 = vld [vmem:[%s11 + $0x3d0] sm:$0xff]
        %v6582 = vld [vmem:[%s11 + $0x3d8] sm:$0xff]
        %v6583 = vld [vmem:[%s11 + $0x3e0] sm:$0xff]
        %v6584 = vld [vmem:[%s11 + $0x3e8] sm:$0xff]
        %v6585 = vld [vmem:[%s11 + $0x3f0] sm:$0xff]
        %v6586 = vld [vmem:[%s11 + $0x3f8] sm:$0xff]
        %v6587 = vld [vmem:[#allocation2] sm:$0x1]
        %v6589 = vperm.slane %v6458, 0
        %v6590 = vperm.slane %v6458, 1
        %v6591 = vperm.slane %v6458, 2
        %v6592 = vperm.slane %v6458, 3
        %v6593 = vperm.slane %v6458, 4
        %v6594 = vperm.slane %v6458, 5
        %v6595 = vperm.slane %v6458, 6
        %v6596 = vperm.slane %v6458, 7
        %6605 = vmatpush.msra.mxu0 %v6474
        %6606 = vmatpush.msra.mxu0 %v6473
        %6607 = vmatpush.msra.mxu0 %v6472
        %6608 = vmatpush.msra.mxu0 %v6471
        %6609 = vmatpush.msra.mxu0 %v6470
        %6610 = vmatpush.msra.mxu0 %v6469
        %6611 = vmatpush.msra.mxu0 %v6468
        %6612 = vmatpush.msra.mxu0 %v6467
        %6613 = vmatpush.msra.mxu0 %v6466
        %6614 = vmatpush.msra.mxu0 %v6465
        %6615 = vmatpush.msra.mxu0 %v6464
        %6616 = vmatpush.msra.mxu0 %v6463
        %6617 = vmatpush.msra.mxu0 %v6462
        %6618 = vmatpush.msra.mxu0 %v6461
        %6619 = vmatpush.msra.mxu0 %v6460
        %6620 = vmatpush.msra.mxu0 %v6459
        %6621 = vmatmul.f32.gmra.mxu0 %v6589
        %v6622 = vpop.f32.mrf.mxu0
        %v6623 = vadd.f32 %v6587, %v6622
        %6624 = vdwg.mxu0
        %6625 = vmatpush.msra.mxu0 %v6490
        %6626 = vmatpush.msra.mxu0 %v6489
        %6627 = vmatpush.msra.mxu0 %v6488
        %6628 = vmatpush.msra.mxu0 %v6487
        %6629 = vmatpush.msra.mxu0 %v6486
        %6630 = vmatpush.msra.mxu0 %v6485
        %6631 = vmatpush.msra.mxu0 %v6484
        %6632 = vmatpush.msra.mxu0 %v6483
        %6633 = vmatpush.msra.mxu0 %v6482
        %6634 = vmatpush.msra.mxu0 %v6481
        %6635 = vmatpush.msra.mxu0 %v6480
        %6636 = vmatpush.msra.mxu0 %v6479
        %6637 = vmatpush.msra.mxu0 %v6478
        %6638 = vmatpush.msra.mxu0 %v6477
        %6639 = vmatpush.msra.mxu0 %v6476
        %6640 = vmatpush.msra.mxu0 %v6475
        %6641 = vmatmul.f32.gmra.mxu0 %v6590
        %v6642 = vpop.f32.mrf.mxu0
        %v6643 = vadd.f32 %v6623, %v6642
        %6644 = vdwg.mxu0
        %6645 = vmatpush.msra.mxu0 %v6506
        %6646 = vmatpush.msra.mxu0 %v6505
        %6647 = vmatpush.msra.mxu0 %v6504
        %6648 = vmatpush.msra.mxu0 %v6503
        %6649 = vmatpush.msra.mxu0 %v6502
        %6650 = vmatpush.msra.mxu0 %v6501
        %6651 = vmatpush.msra.mxu0 %v6500
        %6652 = vmatpush.msra.mxu0 %v6499
        %6653 = vmatpush.msra.mxu0 %v6498
        %6654 = vmatpush.msra.mxu0 %v6497
        %6655 = vmatpush.msra.mxu0 %v6496
        %6656 = vmatpush.msra.mxu0 %v6495
        %6657 = vmatpush.msra.mxu0 %v6494
        %6658 = vmatpush.msra.mxu0 %v6493
        %6659 = vmatpush.msra.mxu0 %v6492
        %6660 = vmatpush.msra.mxu0 %v6491
        %6661 = vmatmul.f32.gmra.mxu0 %v6591
        %v6662 = vpop.f32.mrf.mxu0
        %v6663 = vadd.f32 %v6643, %v6662
        %6664 = vdwg.mxu0
        %6665 = vmatpush.msra.mxu0 %v6522
        %6666 = vmatpush.msra.mxu0 %v6521
        %6667 = vmatpush.msra.mxu0 %v6520
        %6668 = vmatpush.msra.mxu0 %v6519
        %6669 = vmatpush.msra.mxu0 %v6518
        %6670 = vmatpush.msra.mxu0 %v6517
        %6671 = vmatpush.msra.mxu0 %v6516
        %6672 = vmatpush.msra.mxu0 %v6515
        %6673 = vmatpush.msra.mxu0 %v6514
        %6674 = vmatpush.msra.mxu0 %v6513
        %6675 = vmatpush.msra.mxu0 %v6512
        %6676 = vmatpush.msra.mxu0 %v6511
        %6677 = vmatpush.msra.mxu0 %v6510
        %6678 = vmatpush.msra.mxu0 %v6509
        %6679 = vmatpush.msra.mxu0 %v6508
        %6680 = vmatpush.msra.mxu0 %v6507
        %6681 = vmatmul.f32.gmra.mxu0 %v6592
        %v6682 = vpop.f32.mrf.mxu0
        %v6683 = vadd.f32 %v6663, %v6682
        %6684 = vdwg.mxu0
        %6685 = vmatpush.msra.mxu0 %v6538
        %6686 = vmatpush.msra.mxu0 %v6537
        %6687 = vmatpush.msra.mxu0 %v6536
        %6688 = vmatpush.msra.mxu0 %v6535
        %6689 = vmatpush.msra.mxu0 %v6534
        %6690 = vmatpush.msra.mxu0 %v6533
        %6691 = vmatpush.msra.mxu0 %v6532
        %6692 = vmatpush.msra.mxu0 %v6531
        %6693 = vmatpush.msra.mxu0 %v6530
        %6694 = vmatpush.msra.mxu0 %v6529
        %6695 = vmatpush.msra.mxu0 %v6528
        %6696 = vmatpush.msra.mxu0 %v6527
        %6697 = vmatpush.msra.mxu0 %v6526
        %6698 = vmatpush.msra.mxu0 %v6525
        %6699 = vmatpush.msra.mxu0 %v6524
        %6700 = vmatpush.msra.mxu0 %v6523
        %6701 = vmatmul.f32.gmra.mxu0 %v6593
        %v6702 = vpop.f32.mrf.mxu0
        %v6703 = vadd.f32 %v6683, %v6702
        %6704 = vdwg.mxu0
        %6705 = vmatpush.msra.mxu0 %v6554
        %6706 = vmatpush.msra.mxu0 %v6553
        %6707 = vmatpush.msra.mxu0 %v6552
        %6708 = vmatpush.msra.mxu0 %v6551
        %6709 = vmatpush.msra.mxu0 %v6550
        %6710 = vmatpush.msra.mxu0 %v6549
        %6711 = vmatpush.msra.mxu0 %v6548
        %6712 = vmatpush.msra.mxu0 %v6547
        %6713 = vmatpush.msra.mxu0 %v6546
        %6714 = vmatpush.msra.mxu0 %v6545
        %6715 = vmatpush.msra.mxu0 %v6544
        %6716 = vmatpush.msra.mxu0 %v6543
        %6717 = vmatpush.msra.mxu0 %v6542
        %6718 = vmatpush.msra.mxu0 %v6541
        %6719 = vmatpush.msra.mxu0 %v6540
        %6720 = vmatpush.msra.mxu0 %v6539
        %6721 = vmatmul.f32.gmra.mxu0 %v6594
        %v6722 = vpop.f32.mrf.mxu0
        %v6723 = vadd.f32 %v6703, %v6722
        %6724 = vdwg.mxu0
        %6725 = vmatpush.msra.mxu0 %v6570
        %6726 = vmatpush.msra.mxu0 %v6569
        %6727 = vmatpush.msra.mxu0 %v6568
        %6728 = vmatpush.msra.mxu0 %v6567
        %6729 = vmatpush.msra.mxu0 %v6566
        %6730 = vmatpush.msra.mxu0 %v6565
        %6731 = vmatpush.msra.mxu0 %v6564
        %6732 = vmatpush.msra.mxu0 %v6563
        %6733 = vmatpush.msra.mxu0 %v6562
        %6734 = vmatpush.msra.mxu0 %v6561
        %6735 = vmatpush.msra.mxu0 %v6560
        %6736 = vmatpush.msra.mxu0 %v6559
        %6737 = vmatpush.msra.mxu0 %v6558
        %6738 = vmatpush.msra.mxu0 %v6557
        %6739 = vmatpush.msra.mxu0 %v6556
        %6740 = vmatpush.msra.mxu0 %v6555
        %6741 = vmatmul.f32.gmra.mxu0 %v6595
        %v6742 = vpop.f32.mrf.mxu0
        %v6743 = vadd.f32 %v6723, %v6742
        %6744 = vdwg.mxu0
        %6745 = vmatpush.msra.mxu0 %v6586
        %6746 = vmatpush.msra.mxu0 %v6585
        %6747 = vmatpush.msra.mxu0 %v6584
        %6748 = vmatpush.msra.mxu0 %v6583
        %6749 = vmatpush.msra.mxu0 %v6582
        %6750 = vmatpush.msra.mxu0 %v6581
        %6751 = vmatpush.msra.mxu0 %v6580
        %6752 = vmatpush.msra.mxu0 %v6579
        %6753 = vmatpush.msra.mxu0 %v6578
        %6754 = vmatpush.msra.mxu0 %v6577
        %6755 = vmatpush.msra.mxu0 %v6576
        %6756 = vmatpush.msra.mxu0 %v6575
        %6757 = vmatpush.msra.mxu0 %v6574
        %6758 = vmatpush.msra.mxu0 %v6573
        %6759 = vmatpush.msra.mxu0 %v6572
        %6760 = vmatpush.msra.mxu0 %v6571
        %6761 = vmatmul.f32.gmra.mxu0 %v6596
        %v6762 = vpop.f32.mrf.mxu0
        %v6763 = vadd.f32 %v6743, %v6762
        %6764 = vdwg.mxu0
        %vm6765 = vcmask 0
        %6766 = vst.msk [vmem:[%s455] sm:$0x1] %vm6765, %v6763
        %p6767 = scmp.lt.s32.totalorder %s27, 1
        %s6768 = scalar_select %p6767, %s27, 1
        %s6769 = scalar_lea.vmem %s13, %s6768
        // Predicated region
        $region77: #{ablation_mark_ws_forward.1} parent=71 // pred_check
          %p6770 = pneg %p323
        $region78: #{ablation_mark_ws_forward.1} parent=71 // pred_check_branch
          %6772 = sbr.rel (%p6770) target = $region80
        $region79: #{ablation_mark_ws_forward.1} parent=71 // pred_region
          _
        $region80: #{ablation_mark_ws_forward.1} parent=71 // pred_fallthru
          _
      $region72: #{ablation_mark_ws_forward.1} parent=5 // pred_fallthru
        _
      %p6773 = scmp.le.s32.totalorder 2, %s22
      // Predicated region
      $region81: #{ablation_mark_ws_forward.1} parent=5 // pred_check
        %p6774 = pneg %p6773
      $region82: #{ablation_mark_ws_forward.1} parent=5 // pred_check_branch
        %6776 = sbr.rel (%p6774) target = $region84
      $region83: #{ablation_mark_ws_forward.1} parent=5 // pred_region
        %s6777 = ssub.s32 %s22, 2
        // Predicated region
        $region85: #{ablation_mark_ws_forward.1} parent=83 // pred_check
          %p6778 = pneg %p329
        $region86: #{ablation_mark_ws_forward.1} parent=83 // pred_check_branch
          %6780 = sbr.rel (%p6778) target = $region88
        $region87: #{ablation_mark_ws_forward.1} parent=83 // pred_region
          %p6781 = scmp.lt.s32.totalorder %s28, 1
          %s6782 = scalar_select %p6781, %s28, 1
          %s6783 = scalar_lea.vmem %s13, %s6782
        $region88: #{ablation_mark_ws_forward.1} parent=83 // pred_fallthru
          _
      $region84: #{ablation_mark_ws_forward.1} parent=5 // pred_fallthru
        _
    $region6: #{ablation_mark_ws_forward.1} parent=1 // loop_footer
      %s26 = sadd.s32 1, %s22
    $region7: #{ablation_mark_ws_forward.1} parent=1 // loop_footer_branch
      %21 = sbr.rel target = $region3
    $region8: #{ablation_mark_ws_forward.1} parent=1 // loop_exit
      _
    %6784 = vsyncpa [#allocation4], 1
    %s6785 = scalar_lea.sflag [#allocation4], 1
    %6786 = vsyncpa %s6785, 1

</llo_original>
